<compile_context>
chip_gen: v7x
topology: tpu7x:2x2x1
jax: 0.10.0
libtpu: 0.0.40
codegen_flags: <defaults>
</compile_context>

<pallas_src>
import numpy as np
import jax
import jax.numpy as jnp
from jax.experimental import pallas as pl
from jax.experimental.pallas import tpu as pltpu

# ----------------------------- static problem sizes ---------------------------
N_BATCH = 2
C_IN, H_IN, W_IN = 3, 32, 32
C1, C2 = 16, 32
H1 = W1 = H_IN // 2            # 16 : conv1 output spatial
H2 = W2 = H1 // 2              # 8  : conv2 output spatial
S1 = H1 * W1                   # 256
S2 = H2 * W2                   # 64
K1 = 9 * C_IN                  # 27 : conv1 im2col depth
F_OUT1, F_OUT2 = 10, 5
F_OUT = F_OUT1 + F_OUT2        # 15
FEAT = C2 * S2                 # 2048


# ------------------------------ fused Pallas kernel ---------------------------
def _fused_forward_kernel(patches1t_ref, w1t_ref, b1_ref,
                          selt_ref, w2t_ref, b2_ref,
                          wfc_ref, bfc_ref, out_ref):
    f32 = jnp.float32

    # conv1 as one GEMM, channels x (batch*spatial):
    #   h1t[c, n*S1 + s1] = conv1(x)[n, c, s1]
    h1t = jnp.dot(w1t_ref[...], patches1t_ref[...],
                  preferred_element_type=f32) + b1_ref[...]          # (C1, N*S1)

    for n in range(N_BATCH):                      # batch of 2, unrolled
        h1t_n = h1t[:, n * S1:(n + 1) * S1]                          # (C1, S1)

        # conv2: im2col realised in-kernel as one-hot gather matmuls on the MXU
        # (selt_ref[k] selects the stride-2 / pad-1 input pixel for each output
        #  pixel of tap k; out-of-bounds taps are all-zero columns).
        acc2t = jnp.zeros((C2, S2), dtype=f32)                       # (C2, S2)
        for k in range(9):                        # 3x3 taps, unrolled
            gathered = jnp.dot(h1t_n, selt_ref[k],
                               preferred_element_type=f32)           # (C1, S2)
            acc2t = acc2t + jnp.dot(w2t_ref[k], gathered,
                                    preferred_element_type=f32)      # (C2, S2)
        acc2t = acc2t + b2_ref[...]
        # acc2t[co, s2] is exactly torch.flatten(conv2_out, 1) order (channel-major).

        # fused fc1/fc2 head: contract (co, s2) without ever materialising the
        # 2048-wide flatten -- accumulate one (1,S2)@(S2,15) matmul per channel.
        out_n = bfc_ref[...]                                          # (1, F_OUT)
        for co in range(C2):
            out_n = out_n + jnp.dot(acc2t[co:co + 1, :], wfc_ref[co],
                                    preferred_element_type=f32)
        out_ref[n:n + 1, :] = out_n


def _fused_forward(patches1t, w1t, b1, selt, w2t, b2, wfc, bfc):
    return pl.pallas_call(
        _fused_forward_kernel,
        out_shape=jax.ShapeDtypeStruct((N_BATCH, F_OUT), jnp.float32),
        grid_spec=pltpu.PrefetchScalarGridSpec(
            num_scalar_prefetch=0,
            grid=(1,),                                   # whole model = one block
            in_specs=[
                pl.BlockSpec((K1, N_BATCH * S1), lambda i: (0, 0)),   # patches1t
                pl.BlockSpec((C1, K1), lambda i: (0, 0)),             # w1t
                pl.BlockSpec((C1, 1), lambda i: (0, 0)),              # b1
                pl.BlockSpec((9, S1, S2), lambda i: (0, 0, 0)),       # selt
                pl.BlockSpec((9, C2, C1), lambda i: (0, 0, 0)),       # w2t
                pl.BlockSpec((C2, 1), lambda i: (0, 0)),              # b2
                pl.BlockSpec((C2, S2, F_OUT), lambda i: (0, 0, 0)),   # wfc
                pl.BlockSpec((1, F_OUT), lambda i: (0, 0)),           # bfc
            ],
            out_specs=pl.BlockSpec((N_BATCH, F_OUT), lambda i: (0, 0)),
        ),
        compiler_params=pltpu.CompilerParams(
            dimension_semantics=("arbitrary",),
            vmem_limit_bytes=32 * 1024 * 1024,
        ),
    )(patches1t, w1t, b1, selt, w2t, b2, wfc, bfc)


# --------------------- one-time weight packing (outside jit) ------------------
def pack_params(params):
    """Hoist every weight-layout transform out of the traced forward pass."""
    w1 = np.asarray(params["conv1_w"])            # (16, 3, 3, 3)  OIHW
    w2 = np.asarray(params["conv2_w"])            # (32, 16, 3, 3) OIHW

    # conv1 weight as (C1, K1) with K1 ordered (kh, kw, cin) to match patches1t.
    w1t = w1.transpose(0, 2, 3, 1).reshape(C1, K1)
    # conv2 weight per tap: w2t[kh*3+kw] = (C2, C1).
    w2t = w2.transpose(2, 3, 0, 1).reshape(9, C2, C1)

    # One-hot gather matrices implementing conv2's stride-2 / pad-1 im2col.
    selt = np.zeros((9, S1, S2), dtype=np.float32)
    for kh in range(3):
        for kw in range(3):
            k = kh * 3 + kw
            for oh in range(H2):
                for ow in range(W2):
                    r = 2 * oh + kh - 1
                    c = 2 * ow + kw - 1
                    if 0 <= r < H1 and 0 <= c < W1:
                        selt[k, r * W1 + c, oh * W2 + ow] = 1.0

    # Fuse fc1/fc2 and regroup rows per conv2 channel so the kernel never needs a
    # (C2, S2) -> 2048 relayout:  wfc[co] is (S2, 15).
    wcat = np.concatenate([np.asarray(params["fc1_w"]),
                           np.asarray(params["fc2_w"])], axis=0)      # (15, 2048)
    wfc = wcat.reshape(F_OUT, C2, S2).transpose(1, 2, 0)              # (32, 64, 15)
    bcat = np.concatenate([np.asarray(params["fc1_b"]),
                           np.asarray(params["fc2_b"])], axis=0)      # (15,)

    return {
        "w1t": jnp.asarray(w1t, jnp.float32),
        "b1": jnp.asarray(np.asarray(params["conv1_b"]).reshape(C1, 1), jnp.float32),
        "selt": jnp.asarray(selt),
        "w2t": jnp.asarray(w2t, jnp.float32),
        "b2": jnp.asarray(np.asarray(params["conv2_b"]).reshape(C2, 1), jnp.float32),
        "wfc": jnp.asarray(wfc, jnp.float32),
        "bfc": jnp.asarray(bcat.reshape(1, F_OUT), jnp.float32),
    }


# --------------------------- forward pass (traced) ----------------------------
def _build_conv1_patches_t(x_nchw):
    """(N,3,32,32) -> (27, N*256): transposed im2col for conv1 (k3, s2, p1)."""
    x_nhwc = jnp.transpose(x_nchw, (0, 2, 3, 1))                      # (N,32,32,3)
    xp = jnp.pad(x_nhwc, ((0, 0), (1, 1), (1, 1), (0, 0)))            # (N,34,34,3)
    rows = []
    for kh in range(3):
        for kw in range(3):
            tap = xp[:, kh:kh + 2 * H1:2, kw:kw + 2 * W1:2, :]        # (N,16,16,3)
            rows.append(jnp.transpose(tap, (3, 0, 1, 2)).reshape(C_IN, N_BATCH * S1))
    return jnp.concatenate(rows, axis=0)                              # (27, N*256)


def multi_output_model(x, packed):
    patches1t = _build_conv1_patches_t(x)
    out = _fused_forward(patches1t, packed["w1t"], packed["b1"], packed["selt"],
                         packed["w2t"], packed["b2"], packed["wfc"], packed["bfc"])
    return out[:, :F_OUT1], out[:, F_OUT1:F_OUT]


# ------------------------------ reference (pure JAX) ---------------------------
def _reference_forward(x, params):
    dn = ("NCHW", "OIHW", "NCHW")
    y = jax.lax.conv_general_dilated(x, params["conv1_w"], (2, 2),
                                     [(1, 1), (1, 1)], dimension_numbers=dn)
    y = y + params["conv1_b"].reshape(1, C1, 1, 1)
    y = jax.lax.conv_general_dilated(y, params["conv2_w"], (2, 2),
                                     [(1, 1), (1, 1)], dimension_numbers=dn)
    y = y + params["conv2_b"].reshape(1, C2, 1, 1)
    feats = y.reshape(N_BATCH, -1)
    o1 = feats @ params["fc1_w"].T + params["fc1_b"]
    o2 = feats @ params["fc2_w"].T + params["fc2_b"]
    return o1, o2


# ------------------------------------ main -------------------------------------
if __name__ == "__main__":
    key = jax.random.PRNGKey(0)
    k_x, k_p = jax.random.split(key)

    x = jax.random.normal(k_x, (N_BATCH, C_IN, H_IN, W_IN), jnp.float32)

    ks = jax.random.split(k_p, 8)
    s = 0.05
    params = {
        "conv1_w": s * jax.random.normal(ks[0], (C1, C_IN, 3, 3), jnp.float32),
        "conv1_b": s * jax.random.normal(ks[1], (C1,), jnp.float32),
        "conv2_w": s * jax.random.normal(ks[2], (C2, C1, 3, 3), jnp.float32),
        "conv2_b": s * jax.random.normal(ks[3], (C2,), jnp.float32),
        "fc1_w": s * jax.random.normal(ks[4], (F_OUT1, FEAT), jnp.float32),
        "fc1_b": s * jax.random.normal(ks[5], (F_OUT1,), jnp.float32),
        "fc2_w": s * jax.random.normal(ks[6], (F_OUT2, FEAT), jnp.float32),
        "fc2_b": s * jax.random.normal(ks[7], (F_OUT2,), jnp.float32),
    }

    packed = pack_params(params)          # runs once, outside jit
    fwd = jax.jit(multi_output_model)

    out1, out2 = fwd(x, packed)
    jax.block_until_ready((out1, out2))

    assert out1.shape == (N_BATCH, F_OUT1) and out1.dtype == jnp.float32
    assert out2.shape == (N_BATCH, F_OUT2) and out2.dtype == jnp.float32

    # numerical check against a pure-JAX/XLA reference of the same module
    ref1, ref2 = _reference_forward(x, params)
    np.testing.assert_allclose(np.asarray(out1), np.asarray(ref1), rtol=2e-2, atol=1e-3)
    np.testing.assert_allclose(np.asarray(out2), np.asarray(ref2), rtol=2e-2, atol=1e-3)

    print("KERNEL_OK")
</pallas_src>

<mosaic_0001>
module attributes {stable_mosaic.version = 11 : i64} {
  func.func @_fused_forward_kernel(%arg0: i32, %arg1: memref<27x512xf32, #tpu.memory_space<vmem>>, %arg2: memref<16x27xf32, #tpu.memory_space<vmem>>, %arg3: memref<16x1xf32, #tpu.memory_space<vmem>>, %arg4: memref<9x256x64xf32, #tpu.memory_space<vmem>>, %arg5: memref<9x32x16xf32, #tpu.memory_space<vmem>>, %arg6: memref<32x1xf32, #tpu.memory_space<vmem>>, %arg7: memref<32x64x15xf32, #tpu.memory_space<vmem>>, %arg8: memref<1x15xf32, #tpu.memory_space<vmem>>, %arg9: memref<2x15xf32, #tpu.memory_space<vmem>>) attributes {dimension_semantics = [#tpu.dimension_semantics<arbitrary>], iteration_bounds = array<i64: 1>, scalar_prefetch = 0 : i64, scratch_operands = 0 : i64, tpu.core_type = #tpu.core_type<tc>, window_params = [{pipeline_mode = #tpu.pipeline_mode<synchronous>, transform_indices = @transform_0, window_bounds = array<i64: 27, 512>}, {pipeline_mode = #tpu.pipeline_mode<synchronous>, transform_indices = @transform_1, window_bounds = array<i64: 16, 27>}, {pipeline_mode = #tpu.pipeline_mode<synchronous>, transform_indices = @transform_2, window_bounds = array<i64: 16, 1>}, {pipeline_mode = #tpu.pipeline_mode<synchronous>, transform_indices = @transform_3, window_bounds = array<i64: 9, 256, 64>}, {pipeline_mode = #tpu.pipeline_mode<synchronous>, transform_indices = @transform_4, window_bounds = array<i64: 9, 32, 16>}, {pipeline_mode = #tpu.pipeline_mode<synchronous>, transform_indices = @transform_5, window_bounds = array<i64: 32, 1>}, {pipeline_mode = #tpu.pipeline_mode<synchronous>, transform_indices = @transform_6, window_bounds = array<i64: 32, 64, 15>}, {pipeline_mode = #tpu.pipeline_mode<synchronous>, transform_indices = @transform_7, window_bounds = array<i64: 1, 15>}, {pipeline_mode = #tpu.pipeline_mode<synchronous>, transform_indices = @transform_8, window_bounds = array<i64: 2, 15>}]} {
    %c0 = arith.constant 0 : index
    %c0_0 = arith.constant 0 : index
    %0 = vector.load %arg2[%c0, %c0_0] : memref<16x27xf32, #tpu.memory_space<vmem>>, vector<16x27xf32>
    %c0_1 = arith.constant 0 : index
    %c0_2 = arith.constant 0 : index
    %1 = vector.load %arg1[%c0_1, %c0_2] : memref<27x512xf32, #tpu.memory_space<vmem>>, vector<27x512xf32>
    %cst = arith.constant dense<0.000000e+00> : vector<16x512xf32>
    %2 = tpu.matmul %0, %1, %cst {dimension_numbers = #tpu.dot_dimension_numbers<[1], [0], [0], [1], [0, 0, 1, 1], [], []>} : vector<16x27xf32>, vector<27x512xf32>, vector<16x512xf32> -> vector<16x512xf32>
    %c0_3 = arith.constant 0 : index
    %c0_4 = arith.constant 0 : index
    %3 = vector.load %arg3[%c0_3, %c0_4] : memref<16x1xf32, #tpu.memory_space<vmem>>, vector<16x1xf32>
    %4 = vector.broadcast %3 : vector<16x1xf32> to vector<16x512xf32>
    %5 = arith.addf %2, %4 : vector<16x512xf32>
    %6 = vector.extract_strided_slice %5 {offsets = [0, 0], sizes = [16, 256], strides = [1, 1]} : vector<16x512xf32> to vector<16x256xf32>
    %cst_5 = arith.constant 0.000000e+00 : f32
    %7 = vector.broadcast %cst_5 : f32 to vector<32x64xf32>
    %c0_6 = arith.constant 0 : index
    %c0_7 = arith.constant 0 : index
    %c0_8 = arith.constant 0 : index
    %8 = vector.load %arg4[%c0_6, %c0_7, %c0_8] : memref<9x256x64xf32, #tpu.memory_space<vmem>>, vector<1x256x64xf32>
    %9 = vector.shape_cast %8 : vector<1x256x64xf32> to vector<256x64xf32>
    %cst_9 = arith.constant dense<0.000000e+00> : vector<16x64xf32>
    %10 = tpu.matmul %6, %9, %cst_9 {dimension_numbers = #tpu.dot_dimension_numbers<[1], [0], [0], [1], [0, 0, 1, 1], [], []>} : vector<16x256xf32>, vector<256x64xf32>, vector<16x64xf32> -> vector<16x64xf32>
    %c0_10 = arith.constant 0 : index
    %c0_11 = arith.constant 0 : index
    %c0_12 = arith.constant 0 : index
    %11 = vector.load %arg5[%c0_10, %c0_11, %c0_12] : memref<9x32x16xf32, #tpu.memory_space<vmem>>, vector<1x32x16xf32>
    %12 = vector.shape_cast %11 : vector<1x32x16xf32> to vector<32x16xf32>
    %cst_13 = arith.constant dense<0.000000e+00> : vector<32x64xf32>
    %13 = tpu.matmul %12, %10, %cst_13 {dimension_numbers = #tpu.dot_dimension_numbers<[1], [0], [0], [1], [0, 0, 1, 1], [], []>} : vector<32x16xf32>, vector<16x64xf32>, vector<32x64xf32> -> vector<32x64xf32>
    %14 = arith.addf %7, %13 : vector<32x64xf32>
    %c1 = arith.constant 1 : index
    %c0_14 = arith.constant 0 : index
    %c0_15 = arith.constant 0 : index
    %15 = vector.load %arg4[%c1, %c0_14, %c0_15] : memref<9x256x64xf32, #tpu.memory_space<vmem>>, vector<1x256x64xf32>
    %16 = vector.shape_cast %15 : vector<1x256x64xf32> to vector<256x64xf32>
    %cst_16 = arith.constant dense<0.000000e+00> : vector<16x64xf32>
    %17 = tpu.matmul %6, %16, %cst_16 {dimension_numbers = #tpu.dot_dimension_numbers<[1], [0], [0], [1], [0, 0, 1, 1], [], []>} : vector<16x256xf32>, vector<256x64xf32>, vector<16x64xf32> -> vector<16x64xf32>
    %c1_17 = arith.constant 1 : index
    %c0_18 = arith.constant 0 : index
    %c0_19 = arith.constant 0 : index
    %18 = vector.load %arg5[%c1_17, %c0_18, %c0_19] : memref<9x32x16xf32, #tpu.memory_space<vmem>>, vector<1x32x16xf32>
    %19 = vector.shape_cast %18 : vector<1x32x16xf32> to vector<32x16xf32>
    %cst_20 = arith.constant dense<0.000000e+00> : vector<32x64xf32>
    %20 = tpu.matmul %19, %17, %cst_20 {dimension_numbers = #tpu.dot_dimension_numbers<[1], [0], [0], [1], [0, 0, 1, 1], [], []>} : vector<32x16xf32>, vector<16x64xf32>, vector<32x64xf32> -> vector<32x64xf32>
    %21 = arith.addf %14, %20 : vector<32x64xf32>
    %c2 = arith.constant 2 : index
    %c0_21 = arith.constant 0 : index
    %c0_22 = arith.constant 0 : index
    %22 = vector.load %arg4[%c2, %c0_21, %c0_22] : memref<9x256x64xf32, #tpu.memory_space<vmem>>, vector<1x256x64xf32>
    %23 = vector.shape_cast %22 : vector<1x256x64xf32> to vector<256x64xf32>
    %cst_23 = arith.constant dense<0.000000e+00> : vector<16x64xf32>
    %24 = tpu.matmul %6, %23, %cst_23 {dimension_numbers = #tpu.dot_dimension_numbers<[1], [0], [0], [1], [0, 0, 1, 1], [], []>} : vector<16x256xf32>, vector<256x64xf32>, vector<16x64xf32> -> vector<16x64xf32>
    %c2_24 = arith.constant 2 : index
    %c0_25 = arith.constant 0 : index
    %c0_26 = arith.constant 0 : index
    %25 = vector.load %arg5[%c2_24, %c0_25, %c0_26] : memref<9x32x16xf32, #tpu.memory_space<vmem>>, vector<1x32x16xf32>
    %26 = vector.shape_cast %25 : vector<1x32x16xf32> to vector<32x16xf32>
    %cst_27 = arith.constant dense<0.000000e+00> : vector<32x64xf32>
    %27 = tpu.matmul %26, %24, %cst_27 {dimension_numbers = #tpu.dot_dimension_numbers<[1], [0], [0], [1], [0, 0, 1, 1], [], []>} : vector<32x16xf32>, vector<16x64xf32>, vector<32x64xf32> -> vector<32x64xf32>
    %28 = arith.addf %21, %27 : vector<32x64xf32>
    %c3 = arith.constant 3 : index
    %c0_28 = arith.constant 0 : index
    %c0_29 = arith.constant 0 : index
    %29 = vector.load %arg4[%c3, %c0_28, %c0_29] : memref<9x256x64xf32, #tpu.memory_space<vmem>>, vector<1x256x64xf32>
    %30 = vector.shape_cast %29 : vector<1x256x64xf32> to vector<256x64xf32>
    %cst_30 = arith.constant dense<0.000000e+00> : vector<16x64xf32>
    %31 = tpu.matmul %6, %30, %cst_30 {dimension_numbers = #tpu.dot_dimension_numbers<[1], [0], [0], [1], [0, 0, 1, 1], [], []>} : vector<16x256xf32>, vector<256x64xf32>, vector<16x64xf32> -> vector<16x64xf32>
    %c3_31 = arith.constant 3 : index
    %c0_32 = arith.constant 0 : index
    %c0_33 = arith.constant 0 : index
    %32 = vector.load %arg5[%c3_31, %c0_32, %c0_33] : memref<9x32x16xf32, #tpu.memory_space<vmem>>, vector<1x32x16xf32>
    %33 = vector.shape_cast %32 : vector<1x32x16xf32> to vector<32x16xf32>
    %cst_34 = arith.constant dense<0.000000e+00> : vector<32x64xf32>
    %34 = tpu.matmul %33, %31, %cst_34 {dimension_numbers = #tpu.dot_dimension_numbers<[1], [0], [0], [1], [0, 0, 1, 1], [], []>} : vector<32x16xf32>, vector<16x64xf32>, vector<32x64xf32> -> vector<32x64xf32>
    %35 = arith.addf %28, %34 : vector<32x64xf32>
    %c4 = arith.constant 4 : index
    %c0_35 = arith.constant 0 : index
    %c0_36 = arith.constant 0 : index
    %36 = vector.load %arg4[%c4, %c0_35, %c0_36] : memref<9x256x64xf32, #tpu.memory_space<vmem>>, vector<1x256x64xf32>
    %37 = vector.shape_cast %36 : vector<1x256x64xf32> to vector<256x64xf32>
    %cst_37 = arith.constant dense<0.000000e+00> : vector<16x64xf32>
    %38 = tpu.matmul %6, %37, %cst_37 {dimension_numbers = #tpu.dot_dimension_numbers<[1], [0], [0], [1], [0, 0, 1, 1], [], []>} : vector<16x256xf32>, vector<256x64xf32>, vector<16x64xf32> -> vector<16x64xf32>
    %c4_38 = arith.constant 4 : index
    %c0_39 = arith.constant 0 : index
    %c0_40 = arith.constant 0 : index
    %39 = vector.load %arg5[%c4_38, %c0_39, %c0_40] : memref<9x32x16xf32, #tpu.memory_space<vmem>>, vector<1x32x16xf32>
    %40 = vector.shape_cast %39 : vector<1x32x16xf32> to vector<32x16xf32>
    %cst_41 = arith.constant dense<0.000000e+00> : vector<32x64xf32>
    %41 = tpu.matmul %40, %38, %cst_41 {dimension_numbers = #tpu.dot_dimension_numbers<[1], [0], [0], [1], [0, 0, 1, 1], [], []>} : vector<32x16xf32>, vector<16x64xf32>, vector<32x64xf32> -> vector<32x64xf32>
    %42 = arith.addf %35, %41 : vector<32x64xf32>
    %c5 = arith.constant 5 : index
    %c0_42 = arith.constant 0 : index
    %c0_43 = arith.constant 0 : index
    %43 = vector.load %arg4[%c5, %c0_42, %c0_43] : memref<9x256x64xf32, #tpu.memory_space<vmem>>, vector<1x256x64xf32>
    %44 = vector.shape_cast %43 : vector<1x256x64xf32> to vector<256x64xf32>
    %cst_44 = arith.constant dense<0.000000e+00> : vector<16x64xf32>
    %45 = tpu.matmul %6, %44, %cst_44 {dimension_numbers = #tpu.dot_dimension_numbers<[1], [0], [0], [1], [0, 0, 1, 1], [], []>} : vector<16x256xf32>, vector<256x64xf32>, vector<16x64xf32> -> vector<16x64xf32>
    %c5_45 = arith.constant 5 : index
    %c0_46 = arith.constant 0 : index
    %c0_47 = arith.constant 0 : index
    %46 = vector.load %arg5[%c5_45, %c0_46, %c0_47] : memref<9x32x16xf32, #tpu.memory_space<vmem>>, vector<1x32x16xf32>
    %47 = vector.shape_cast %46 : vector<1x32x16xf32> to vector<32x16xf32>
    %cst_48 = arith.constant dense<0.000000e+00> : vector<32x64xf32>
    %48 = tpu.matmul %47, %45, %cst_48 {dimension_numbers = #tpu.dot_dimension_numbers<[1], [0], [0], [1], [0, 0, 1, 1], [], []>} : vector<32x16xf32>, vector<16x64xf32>, vector<32x64xf32> -> vector<32x64xf32>
    %49 = arith.addf %42, %48 : vector<32x64xf32>
    %c6 = arith.constant 6 : index
    %c0_49 = arith.constant 0 : index
    %c0_50 = arith.constant 0 : index
    %50 = vector.load %arg4[%c6, %c0_49, %c0_50] : memref<9x256x64xf32, #tpu.memory_space<vmem>>, vector<1x256x64xf32>
    %51 = vector.shape_cast %50 : vector<1x256x64xf32> to vector<256x64xf32>
    %cst_51 = arith.constant dense<0.000000e+00> : vector<16x64xf32>
    %52 = tpu.matmul %6, %51, %cst_51 {dimension_numbers = #tpu.dot_dimension_numbers<[1], [0], [0], [1], [0, 0, 1, 1], [], []>} : vector<16x256xf32>, vector<256x64xf32>, vector<16x64xf32> -> vector<16x64xf32>
    %c6_52 = arith.constant 6 : index
    %c0_53 = arith.constant 0 : index
    %c0_54 = arith.constant 0 : index
    %53 = vector.load %arg5[%c6_52, %c0_53, %c0_54] : memref<9x32x16xf32, #tpu.memory_space<vmem>>, vector<1x32x16xf32>
    %54 = vector.shape_cast %53 : vector<1x32x16xf32> to vector<32x16xf32>
    %cst_55 = arith.constant dense<0.000000e+00> : vector<32x64xf32>
    %55 = tpu.matmul %54, %52, %cst_55 {dimension_numbers = #tpu.dot_dimension_numbers<[1], [0], [0], [1], [0, 0, 1, 1], [], []>} : vector<32x16xf32>, vector<16x64xf32>, vector<32x64xf32> -> vector<32x64xf32>
    %56 = arith.addf %49, %55 : vector<32x64xf32>
    %c7 = arith.constant 7 : index
    %c0_56 = arith.constant 0 : index
    %c0_57 = arith.constant 0 : index
    %57 = vector.load %arg4[%c7, %c0_56, %c0_57] : memref<9x256x64xf32, #tpu.memory_space<vmem>>, vector<1x256x64xf32>
    %58 = vector.shape_cast %57 : vector<1x256x64xf32> to vector<256x64xf32>
    %cst_58 = arith.constant dense<0.000000e+00> : vector<16x64xf32>
    %59 = tpu.matmul %6, %58, %cst_58 {dimension_numbers = #tpu.dot_dimension_numbers<[1], [0], [0], [1], [0, 0, 1, 1], [], []>} : vector<16x256xf32>, vector<256x64xf32>, vector<16x64xf32> -> vector<16x64xf32>
    %c7_59 = arith.constant 7 : index
    %c0_60 = arith.constant 0 : index
    %c0_61 = arith.constant 0 : index
    %60 = vector.load %arg5[%c7_59, %c0_60, %c0_61] : memref<9x32x16xf32, #tpu.memory_space<vmem>>, vector<1x32x16xf32>
    %61 = vector.shape_cast %60 : vector<1x32x16xf32> to vector<32x16xf32>
    %cst_62 = arith.constant dense<0.000000e+00> : vector<32x64xf32>
    %62 = tpu.matmul %61, %59, %cst_62 {dimension_numbers = #tpu.dot_dimension_numbers<[1], [0], [0], [1], [0, 0, 1, 1], [], []>} : vector<32x16xf32>, vector<16x64xf32>, vector<32x64xf32> -> vector<32x64xf32>
    %63 = arith.addf %56, %62 : vector<32x64xf32>
    %c8 = arith.constant 8 : index
    %c0_63 = arith.constant 0 : index
    %c0_64 = arith.constant 0 : index
    %64 = vector.load %arg4[%c8, %c0_63, %c0_64] : memref<9x256x64xf32, #tpu.memory_space<vmem>>, vector<1x256x64xf32>
    %65 = vector.shape_cast %64 : vector<1x256x64xf32> to vector<256x64xf32>
    %cst_65 = arith.constant dense<0.000000e+00> : vector<16x64xf32>
    %66 = tpu.matmul %6, %65, %cst_65 {dimension_numbers = #tpu.dot_dimension_numbers<[1], [0], [0], [1], [0, 0, 1, 1], [], []>} : vector<16x256xf32>, vector<256x64xf32>, vector<16x64xf32> -> vector<16x64xf32>
    %c8_66 = arith.constant 8 : index
    %c0_67 = arith.constant 0 : index
    %c0_68 = arith.constant 0 : index
    %67 = vector.load %arg5[%c8_66, %c0_67, %c0_68] : memref<9x32x16xf32, #tpu.memory_space<vmem>>, vector<1x32x16xf32>
    %68 = vector.shape_cast %67 : vector<1x32x16xf32> to vector<32x16xf32>
    %cst_69 = arith.constant dense<0.000000e+00> : vector<32x64xf32>
    %69 = tpu.matmul %68, %66, %cst_69 {dimension_numbers = #tpu.dot_dimension_numbers<[1], [0], [0], [1], [0, 0, 1, 1], [], []>} : vector<32x16xf32>, vector<16x64xf32>, vector<32x64xf32> -> vector<32x64xf32>
    %70 = arith.addf %63, %69 : vector<32x64xf32>
    %c0_70 = arith.constant 0 : index
    %c0_71 = arith.constant 0 : index
    %71 = vector.load %arg6[%c0_70, %c0_71] : memref<32x1xf32, #tpu.memory_space<vmem>>, vector<32x1xf32>
    %72 = vector.broadcast %71 : vector<32x1xf32> to vector<32x64xf32>
    %73 = arith.addf %70, %72 : vector<32x64xf32>
    %c0_72 = arith.constant 0 : index
    %c0_73 = arith.constant 0 : index
    %74 = vector.load %arg8[%c0_72, %c0_73] : memref<1x15xf32, #tpu.memory_space<vmem>>, vector<1x15xf32>
    %75 = vector.extract_strided_slice %73 {offsets = [0, 0], sizes = [1, 64], strides = [1, 1]} : vector<32x64xf32> to vector<1x64xf32>
    %c0_74 = arith.constant 0 : index
    %c0_75 = arith.constant 0 : index
    %c0_76 = arith.constant 0 : index
    %76 = vector.load %arg7[%c0_74, %c0_75, %c0_76] : memref<32x64x15xf32, #tpu.memory_space<vmem>>, vector<1x64x15xf32>
    %77 = vector.shape_cast %76 : vector<1x64x15xf32> to vector<64x15xf32>
    %cst_77 = arith.constant dense<0.000000e+00> : vector<1x15xf32>
    %78 = tpu.matmul %75, %77, %cst_77 {dimension_numbers = #tpu.dot_dimension_numbers<[1], [0], [0], [1], [0, 0, 1, 1], [], []>} : vector<1x64xf32>, vector<64x15xf32>, vector<1x15xf32> -> vector<1x15xf32>
    %79 = arith.addf %74, %78 : vector<1x15xf32>
    %80 = vector.extract_strided_slice %73 {offsets = [1, 0], sizes = [1, 64], strides = [1, 1]} : vector<32x64xf32> to vector<1x64xf32>
    %c1_78 = arith.constant 1 : index
    %c0_79 = arith.constant 0 : index
    %c0_80 = arith.constant 0 : index
    %81 = vector.load %arg7[%c1_78, %c0_79, %c0_80] : memref<32x64x15xf32, #tpu.memory_space<vmem>>, vector<1x64x15xf32>
    %82 = vector.shape_cast %81 : vector<1x64x15xf32> to vector<64x15xf32>
    %cst_81 = arith.constant dense<0.000000e+00> : vector<1x15xf32>
    %83 = tpu.matmul %80, %82, %cst_81 {dimension_numbers = #tpu.dot_dimension_numbers<[1], [0], [0], [1], [0, 0, 1, 1], [], []>} : vector<1x64xf32>, vector<64x15xf32>, vector<1x15xf32> -> vector<1x15xf32>
    %84 = arith.addf %79, %83 : vector<1x15xf32>
    %85 = vector.extract_strided_slice %73 {offsets = [2, 0], sizes = [1, 64], strides = [1, 1]} : vector<32x64xf32> to vector<1x64xf32>
    %c2_82 = arith.constant 2 : index
    %c0_83 = arith.constant 0 : index
    %c0_84 = arith.constant 0 : index
    %86 = vector.load %arg7[%c2_82, %c0_83, %c0_84] : memref<32x64x15xf32, #tpu.memory_space<vmem>>, vector<1x64x15xf32>
    %87 = vector.shape_cast %86 : vector<1x64x15xf32> to vector<64x15xf32>
    %cst_85 = arith.constant dense<0.000000e+00> : vector<1x15xf32>
    %88 = tpu.matmul %85, %87, %cst_85 {dimension_numbers = #tpu.dot_dimension_numbers<[1], [0], [0], [1], [0, 0, 1, 1], [], []>} : vector<1x64xf32>, vector<64x15xf32>, vector<1x15xf32> -> vector<1x15xf32>
    %89 = arith.addf %84, %88 : vector<1x15xf32>
    %90 = vector.extract_strided_slice %73 {offsets = [3, 0], sizes = [1, 64], strides = [1, 1]} : vector<32x64xf32> to vector<1x64xf32>
    %c3_86 = arith.constant 3 : index
    %c0_87 = arith.constant 0 : index
    %c0_88 = arith.constant 0 : index
    %91 = vector.load %arg7[%c3_86, %c0_87, %c0_88] : memref<32x64x15xf32, #tpu.memory_space<vmem>>, vector<1x64x15xf32>
    %92 = vector.shape_cast %91 : vector<1x64x15xf32> to vector<64x15xf32>
    %cst_89 = arith.constant dense<0.000000e+00> : vector<1x15xf32>
    %93 = tpu.matmul %90, %92, %cst_89 {dimension_numbers = #tpu.dot_dimension_numbers<[1], [0], [0], [1], [0, 0, 1, 1], [], []>} : vector<1x64xf32>, vector<64x15xf32>, vector<1x15xf32> -> vector<1x15xf32>
    %94 = arith.addf %89, %93 : vector<1x15xf32>
    %95 = vector.extract_strided_slice %73 {offsets = [4, 0], sizes = [1, 64], strides = [1, 1]} : vector<32x64xf32> to vector<1x64xf32>
    %c4_90 = arith.constant 4 : index
    %c0_91 = arith.constant 0 : index
    %c0_92 = arith.constant 0 : index
    %96 = vector.load %arg7[%c4_90, %c0_91, %c0_92] : memref<32x64x15xf32, #tpu.memory_space<vmem>>, vector<1x64x15xf32>
    %97 = vector.shape_cast %96 : vector<1x64x15xf32> to vector<64x15xf32>
    %cst_93 = arith.constant dense<0.000000e+00> : vector<1x15xf32>
    %98 = tpu.matmul %95, %97, %cst_93 {dimension_numbers = #tpu.dot_dimension_numbers<[1], [0], [0], [1], [0, 0, 1, 1], [], []>} : vector<1x64xf32>, vector<64x15xf32>, vector<1x15xf32> -> vector<1x15xf32>
    %99 = arith.addf %94, %98 : vector<1x15xf32>
    %100 = vector.extract_strided_slice %73 {offsets = [5, 0], sizes = [1, 64], strides = [1, 1]} : vector<32x64xf32> to vector<1x64xf32>
    %c5_94 = arith.constant 5 : index
    %c0_95 = arith.constant 0 : index
    %c0_96 = arith.constant 0 : index
    %101 = vector.load %arg7[%c5_94, %c0_95, %c0_96] : memref<32x64x15xf32, #tpu.memory_space<vmem>>, vector<1x64x15xf32>
    %102 = vector.shape_cast %101 : vector<1x64x15xf32> to vector<64x15xf32>
    %cst_97 = arith.constant dense<0.000000e+00> : vector<1x15xf32>
    %103 = tpu.matmul %100, %102, %cst_97 {dimension_numbers = #tpu.dot_dimension_numbers<[1], [0], [0], [1], [0, 0, 1, 1], [], []>} : vector<1x64xf32>, vector<64x15xf32>, vector<1x15xf32> -> vector<1x15xf32>
    %104 = arith.addf %99, %103 : vector<1x15xf32>
    %105 = vector.extract_strided_slice %73 {offsets = [6, 0], sizes = [1, 64], strides = [1, 1]} : vector<32x64xf32> to vector<1x64xf32>
    %c6_98 = arith.constant 6 : index
    %c0_99 = arith.constant 0 : index
    %c0_100 = arith.constant 0 : index
    %106 = vector.load %arg7[%c6_98, %c0_99, %c0_100] : memref<32x64x15xf32, #tpu.memory_space<vmem>>, vector<1x64x15xf32>
    %107 = vector.shape_cast %106 : vector<1x64x15xf32> to vector<64x15xf32>
    %cst_101 = arith.constant dense<0.000000e+00> : vector<1x15xf32>
    %108 = tpu.matmul %105, %107, %cst_101 {dimension_numbers = #tpu.dot_dimension_numbers<[1], [0], [0], [1], [0, 0, 1, 1], [], []>} : vector<1x64xf32>, vector<64x15xf32>, vector<1x15xf32> -> vector<1x15xf32>
    %109 = arith.addf %104, %108 : vector<1x15xf32>
    %110 = vector.extract_strided_slice %73 {offsets = [7, 0], sizes = [1, 64], strides = [1, 1]} : vector<32x64xf32> to vector<1x64xf32>
    %c7_102 = arith.constant 7 : index
    %c0_103 = arith.constant 0 : index
    %c0_104 = arith.constant 0 : index
    %111 = vector.load %arg7[%c7_102, %c0_103, %c0_104] : memref<32x64x15xf32, #tpu.memory_space<vmem>>, vector<1x64x15xf32>
    %112 = vector.shape_cast %111 : vector<1x64x15xf32> to vector<64x15xf32>
    %cst_105 = arith.constant dense<0.000000e+00> : vector<1x15xf32>
    %113 = tpu.matmul %110, %112, %cst_105 {dimension_numbers = #tpu.dot_dimension_numbers<[1], [0], [0], [1], [0, 0, 1, 1], [], []>} : vector<1x64xf32>, vector<64x15xf32>, vector<1x15xf32> -> vector<1x15xf32>
    %114 = arith.addf %109, %113 : vector<1x15xf32>
    %115 = vector.extract_strided_slice %73 {offsets = [8, 0], sizes = [1, 64], strides = [1, 1]} : vector<32x64xf32> to vector<1x64xf32>
    %c8_106 = arith.constant 8 : index
    %c0_107 = arith.constant 0 : index
    %c0_108 = arith.constant 0 : index
    %116 = vector.load %arg7[%c8_106, %c0_107, %c0_108] : memref<32x64x15xf32, #tpu.memory_space<vmem>>, vector<1x64x15xf32>
    %117 = vector.shape_cast %116 : vector<1x64x15xf32> to vector<64x15xf32>
    %cst_109 = arith.constant dense<0.000000e+00> : vector<1x15xf32>
    %118 = tpu.matmul %115, %117, %cst_109 {dimension_numbers = #tpu.dot_dimension_numbers<[1], [0], [0], [1], [0, 0, 1, 1], [], []>} : vector<1x64xf32>, vector<64x15xf32>, vector<1x15xf32> -> vector<1x15xf32>
    %119 = arith.addf %114, %118 : vector<1x15xf32>
    %120 = vector.extract_strided_slice %73 {offsets = [9, 0], sizes = [1, 64], strides = [1, 1]} : vector<32x64xf32> to vector<1x64xf32>
    %c9 = arith.constant 9 : index
    %c0_110 = arith.constant 0 : index
    %c0_111 = arith.constant 0 : index
    %121 = vector.load %arg7[%c9, %c0_110, %c0_111] : memref<32x64x15xf32, #tpu.memory_space<vmem>>, vector<1x64x15xf32>
    %122 = vector.shape_cast %121 : vector<1x64x15xf32> to vector<64x15xf32>
    %cst_112 = arith.constant dense<0.000000e+00> : vector<1x15xf32>
    %123 = tpu.matmul %120, %122, %cst_112 {dimension_numbers = #tpu.dot_dimension_numbers<[1], [0], [0], [1], [0, 0, 1, 1], [], []>} : vector<1x64xf32>, vector<64x15xf32>, vector<1x15xf32> -> vector<1x15xf32>
    %124 = arith.addf %119, %123 : vector<1x15xf32>
    %125 = vector.extract_strided_slice %73 {offsets = [10, 0], sizes = [1, 64], strides = [1, 1]} : vector<32x64xf32> to vector<1x64xf32>
    %c10 = arith.constant 10 : index
    %c0_113 = arith.constant 0 : index
    %c0_114 = arith.constant 0 : index
    %126 = vector.load %arg7[%c10, %c0_113, %c0_114] : memref<32x64x15xf32, #tpu.memory_space<vmem>>, vector<1x64x15xf32>
    %127 = vector.shape_cast %126 : vector<1x64x15xf32> to vector<64x15xf32>
    %cst_115 = arith.constant dense<0.000000e+00> : vector<1x15xf32>
    %128 = tpu.matmul %125, %127, %cst_115 {dimension_numbers = #tpu.dot_dimension_numbers<[1], [0], [0], [1], [0, 0, 1, 1], [], []>} : vector<1x64xf32>, vector<64x15xf32>, vector<1x15xf32> -> vector<1x15xf32>
    %129 = arith.addf %124, %128 : vector<1x15xf32>
    %130 = vector.extract_strided_slice %73 {offsets = [11, 0], sizes = [1, 64], strides = [1, 1]} : vector<32x64xf32> to vector<1x64xf32>
    %c11 = arith.constant 11 : index
    %c0_116 = arith.constant 0 : index
    %c0_117 = arith.constant 0 : index
    %131 = vector.load %arg7[%c11, %c0_116, %c0_117] : memref<32x64x15xf32, #tpu.memory_space<vmem>>, vector<1x64x15xf32>
    %132 = vector.shape_cast %131 : vector<1x64x15xf32> to vector<64x15xf32>
    %cst_118 = arith.constant dense<0.000000e+00> : vector<1x15xf32>
    %133 = tpu.matmul %130, %132, %cst_118 {dimension_numbers = #tpu.dot_dimension_numbers<[1], [0], [0], [1], [0, 0, 1, 1], [], []>} : vector<1x64xf32>, vector<64x15xf32>, vector<1x15xf32> -> vector<1x15xf32>
    %134 = arith.addf %129, %133 : vector<1x15xf32>
    %135 = vector.extract_strided_slice %73 {offsets = [12, 0], sizes = [1, 64], strides = [1, 1]} : vector<32x64xf32> to vector<1x64xf32>
    %c12 = arith.constant 12 : index
    %c0_119 = arith.constant 0 : index
    %c0_120 = arith.constant 0 : index
    %136 = vector.load %arg7[%c12, %c0_119, %c0_120] : memref<32x64x15xf32, #tpu.memory_space<vmem>>, vector<1x64x15xf32>
    %137 = vector.shape_cast %136 : vector<1x64x15xf32> to vector<64x15xf32>
    %cst_121 = arith.constant dense<0.000000e+00> : vector<1x15xf32>
    %138 = tpu.matmul %135, %137, %cst_121 {dimension_numbers = #tpu.dot_dimension_numbers<[1], [0], [0], [1], [0, 0, 1, 1], [], []>} : vector<1x64xf32>, vector<64x15xf32>, vector<1x15xf32> -> vector<1x15xf32>
    %139 = arith.addf %134, %138 : vector<1x15xf32>
    %140 = vector.extract_strided_slice %73 {offsets = [13, 0], sizes = [1, 64], strides = [1, 1]} : vector<32x64xf32> to vector<1x64xf32>
    %c13 = arith.constant 13 : index
    %c0_122 = arith.constant 0 : index
    %c0_123 = arith.constant 0 : index
    %141 = vector.load %arg7[%c13, %c0_122, %c0_123] : memref<32x64x15xf32, #tpu.memory_space<vmem>>, vector<1x64x15xf32>
    %142 = vector.shape_cast %141 : vector<1x64x15xf32> to vector<64x15xf32>
    %cst_124 = arith.constant dense<0.000000e+00> : vector<1x15xf32>
    %143 = tpu.matmul %140, %142, %cst_124 {dimension_numbers = #tpu.dot_dimension_numbers<[1], [0], [0], [1], [0, 0, 1, 1], [], []>} : vector<1x64xf32>, vector<64x15xf32>, vector<1x15xf32> -> vector<1x15xf32>
    %144 = arith.addf %139, %143 : vector<1x15xf32>
    %145 = vector.extract_strided_slice %73 {offsets = [14, 0], sizes = [1, 64], strides = [1, 1]} : vector<32x64xf32> to vector<1x64xf32>
    %c14 = arith.constant 14 : index
    %c0_125 = arith.constant 0 : index
    %c0_126 = arith.constant 0 : index
    %146 = vector.load %arg7[%c14, %c0_125, %c0_126] : memref<32x64x15xf32, #tpu.memory_space<vmem>>, vector<1x64x15xf32>
    %147 = vector.shape_cast %146 : vector<1x64x15xf32> to vector<64x15xf32>
    %cst_127 = arith.constant dense<0.000000e+00> : vector<1x15xf32>
    %148 = tpu.matmul %145, %147, %cst_127 {dimension_numbers = #tpu.dot_dimension_numbers<[1], [0], [0], [1], [0, 0, 1, 1], [], []>} : vector<1x64xf32>, vector<64x15xf32>, vector<1x15xf32> -> vector<1x15xf32>
    %149 = arith.addf %144, %148 : vector<1x15xf32>
    %150 = vector.extract_strided_slice %73 {offsets = [15, 0], sizes = [1, 64], strides = [1, 1]} : vector<32x64xf32> to vector<1x64xf32>
    %c15 = arith.constant 15 : index
    %c0_128 = arith.constant 0 : index
    %c0_129 = arith.constant 0 : index
    %151 = vector.load %arg7[%c15, %c0_128, %c0_129] : memref<32x64x15xf32, #tpu.memory_space<vmem>>, vector<1x64x15xf32>
    %152 = vector.shape_cast %151 : vector<1x64x15xf32> to vector<64x15xf32>
    %cst_130 = arith.constant dense<0.000000e+00> : vector<1x15xf32>
    %153 = tpu.matmul %150, %152, %cst_130 {dimension_numbers = #tpu.dot_dimension_numbers<[1], [0], [0], [1], [0, 0, 1, 1], [], []>} : vector<1x64xf32>, vector<64x15xf32>, vector<1x15xf32> -> vector<1x15xf32>
    %154 = arith.addf %149, %153 : vector<1x15xf32>
    %155 = vector.extract_strided_slice %73 {offsets = [16, 0], sizes = [1, 64], strides = [1, 1]} : vector<32x64xf32> to vector<1x64xf32>
    %c16 = arith.constant 16 : index
    %c0_131 = arith.constant 0 : index
    %c0_132 = arith.constant 0 : index
    %156 = vector.load %arg7[%c16, %c0_131, %c0_132] : memref<32x64x15xf32, #tpu.memory_space<vmem>>, vector<1x64x15xf32>
    %157 = vector.shape_cast %156 : vector<1x64x15xf32> to vector<64x15xf32>
    %cst_133 = arith.constant dense<0.000000e+00> : vector<1x15xf32>
    %158 = tpu.matmul %155, %157, %cst_133 {dimension_numbers = #tpu.dot_dimension_numbers<[1], [0], [0], [1], [0, 0, 1, 1], [], []>} : vector<1x64xf32>, vector<64x15xf32>, vector<1x15xf32> -> vector<1x15xf32>
    %159 = arith.addf %154, %158 : vector<1x15xf32>
    %160 = vector.extract_strided_slice %73 {offsets = [17, 0], sizes = [1, 64], strides = [1, 1]} : vector<32x64xf32> to vector<1x64xf32>
    %c17 = arith.constant 17 : index
    %c0_134 = arith.constant 0 : index
    %c0_135 = arith.constant 0 : index
    %161 = vector.load %arg7[%c17, %c0_134, %c0_135] : memref<32x64x15xf32, #tpu.memory_space<vmem>>, vector<1x64x15xf32>
    %162 = vector.shape_cast %161 : vector<1x64x15xf32> to vector<64x15xf32>
    %cst_136 = arith.constant dense<0.000000e+00> : vector<1x15xf32>
    %163 = tpu.matmul %160, %162, %cst_136 {dimension_numbers = #tpu.dot_dimension_numbers<[1], [0], [0], [1], [0, 0, 1, 1], [], []>} : vector<1x64xf32>, vector<64x15xf32>, vector<1x15xf32> -> vector<1x15xf32>
    %164 = arith.addf %159, %163 : vector<1x15xf32>
    %165 = vector.extract_strided_slice %73 {offsets = [18, 0], sizes = [1, 64], strides = [1, 1]} : vector<32x64xf32> to vector<1x64xf32>
    %c18 = arith.constant 18 : index
    %c0_137 = arith.constant 0 : index
    %c0_138 = arith.constant 0 : index
    %166 = vector.load %arg7[%c18, %c0_137, %c0_138] : memref<32x64x15xf32, #tpu.memory_space<vmem>>, vector<1x64x15xf32>
    %167 = vector.shape_cast %166 : vector<1x64x15xf32> to vector<64x15xf32>
    %cst_139 = arith.constant dense<0.000000e+00> : vector<1x15xf32>
    %168 = tpu.matmul %165, %167, %cst_139 {dimension_numbers = #tpu.dot_dimension_numbers<[1], [0], [0], [1], [0, 0, 1, 1], [], []>} : vector<1x64xf32>, vector<64x15xf32>, vector<1x15xf32> -> vector<1x15xf32>
    %169 = arith.addf %164, %168 : vector<1x15xf32>
    %170 = vector.extract_strided_slice %73 {offsets = [19, 0], sizes = [1, 64], strides = [1, 1]} : vector<32x64xf32> to vector<1x64xf32>
    %c19 = arith.constant 19 : index
    %c0_140 = arith.constant 0 : index
    %c0_141 = arith.constant 0 : index
    %171 = vector.load %arg7[%c19, %c0_140, %c0_141] : memref<32x64x15xf32, #tpu.memory_space<vmem>>, vector<1x64x15xf32>
    %172 = vector.shape_cast %171 : vector<1x64x15xf32> to vector<64x15xf32>
    %cst_142 = arith.constant dense<0.000000e+00> : vector<1x15xf32>
    %173 = tpu.matmul %170, %172, %cst_142 {dimension_numbers = #tpu.dot_dimension_numbers<[1], [0], [0], [1], [0, 0, 1, 1], [], []>} : vector<1x64xf32>, vector<64x15xf32>, vector<1x15xf32> -> vector<1x15xf32>
    %174 = arith.addf %169, %173 : vector<1x15xf32>
    %175 = vector.extract_strided_slice %73 {offsets = [20, 0], sizes = [1, 64], strides = [1, 1]} : vector<32x64xf32> to vector<1x64xf32>
    %c20 = arith.constant 20 : index
    %c0_143 = arith.constant 0 : index
    %c0_144 = arith.constant 0 : index
    %176 = vector.load %arg7[%c20, %c0_143, %c0_144] : memref<32x64x15xf32, #tpu.memory_space<vmem>>, vector<1x64x15xf32>
    %177 = vector.shape_cast %176 : vector<1x64x15xf32> to vector<64x15xf32>
    %cst_145 = arith.constant dense<0.000000e+00> : vector<1x15xf32>
    %178 = tpu.matmul %175, %177, %cst_145 {dimension_numbers = #tpu.dot_dimension_numbers<[1], [0], [0], [1], [0, 0, 1, 1], [], []>} : vector<1x64xf32>, vector<64x15xf32>, vector<1x15xf32> -> vector<1x15xf32>
    %179 = arith.addf %174, %178 : vector<1x15xf32>
    %180 = vector.extract_strided_slice %73 {offsets = [21, 0], sizes = [1, 64], strides = [1, 1]} : vector<32x64xf32> to vector<1x64xf32>
    %c21 = arith.constant 21 : index
    %c0_146 = arith.constant 0 : index
    %c0_147 = arith.constant 0 : index
    %181 = vector.load %arg7[%c21, %c0_146, %c0_147] : memref<32x64x15xf32, #tpu.memory_space<vmem>>, vector<1x64x15xf32>
    %182 = vector.shape_cast %181 : vector<1x64x15xf32> to vector<64x15xf32>
    %cst_148 = arith.constant dense<0.000000e+00> : vector<1x15xf32>
    %183 = tpu.matmul %180, %182, %cst_148 {dimension_numbers = #tpu.dot_dimension_numbers<[1], [0], [0], [1], [0, 0, 1, 1], [], []>} : vector<1x64xf32>, vector<64x15xf32>, vector<1x15xf32> -> vector<1x15xf32>
    %184 = arith.addf %179, %183 : vector<1x15xf32>
    %185 = vector.extract_strided_slice %73 {offsets = [22, 0], sizes = [1, 64], strides = [1, 1]} : vector<32x64xf32> to vector<1x64xf32>
    %c22 = arith.constant 22 : index
    %c0_149 = arith.constant 0 : index
    %c0_150 = arith.constant 0 : index
    %186 = vector.load %arg7[%c22, %c0_149, %c0_150] : memref<32x64x15xf32, #tpu.memory_space<vmem>>, vector<1x64x15xf32>
    %187 = vector.shape_cast %186 : vector<1x64x15xf32> to vector<64x15xf32>
    %cst_151 = arith.constant dense<0.000000e+00> : vector<1x15xf32>
    %188 = tpu.matmul %185, %187, %cst_151 {dimension_numbers = #tpu.dot_dimension_numbers<[1], [0], [0], [1], [0, 0, 1, 1], [], []>} : vector<1x64xf32>, vector<64x15xf32>, vector<1x15xf32> -> vector<1x15xf32>
    %189 = arith.addf %184, %188 : vector<1x15xf32>
    %190 = vector.extract_strided_slice %73 {offsets = [23, 0], sizes = [1, 64], strides = [1, 1]} : vector<32x64xf32> to vector<1x64xf32>
    %c23 = arith.constant 23 : index
    %c0_152 = arith.constant 0 : index
    %c0_153 = arith.constant 0 : index
    %191 = vector.load %arg7[%c23, %c0_152, %c0_153] : memref<32x64x15xf32, #tpu.memory_space<vmem>>, vector<1x64x15xf32>
    %192 = vector.shape_cast %191 : vector<1x64x15xf32> to vector<64x15xf32>
    %cst_154 = arith.constant dense<0.000000e+00> : vector<1x15xf32>
    %193 = tpu.matmul %190, %192, %cst_154 {dimension_numbers = #tpu.dot_dimension_numbers<[1], [0], [0], [1], [0, 0, 1, 1], [], []>} : vector<1x64xf32>, vector<64x15xf32>, vector<1x15xf32> -> vector<1x15xf32>
    %194 = arith.addf %189, %193 : vector<1x15xf32>
    %195 = vector.extract_strided_slice %73 {offsets = [24, 0], sizes = [1, 64], strides = [1, 1]} : vector<32x64xf32> to vector<1x64xf32>
    %c24 = arith.constant 24 : index
    %c0_155 = arith.constant 0 : index
    %c0_156 = arith.constant 0 : index
    %196 = vector.load %arg7[%c24, %c0_155, %c0_156] : memref<32x64x15xf32, #tpu.memory_space<vmem>>, vector<1x64x15xf32>
    %197 = vector.shape_cast %196 : vector<1x64x15xf32> to vector<64x15xf32>
    %cst_157 = arith.constant dense<0.000000e+00> : vector<1x15xf32>
    %198 = tpu.matmul %195, %197, %cst_157 {dimension_numbers = #tpu.dot_dimension_numbers<[1], [0], [0], [1], [0, 0, 1, 1], [], []>} : vector<1x64xf32>, vector<64x15xf32>, vector<1x15xf32> -> vector<1x15xf32>
    %199 = arith.addf %194, %198 : vector<1x15xf32>
    %200 = vector.extract_strided_slice %73 {offsets = [25, 0], sizes = [1, 64], strides = [1, 1]} : vector<32x64xf32> to vector<1x64xf32>
    %c25 = arith.constant 25 : index
    %c0_158 = arith.constant 0 : index
    %c0_159 = arith.constant 0 : index
    %201 = vector.load %arg7[%c25, %c0_158, %c0_159] : memref<32x64x15xf32, #tpu.memory_space<vmem>>, vector<1x64x15xf32>
    %202 = vector.shape_cast %201 : vector<1x64x15xf32> to vector<64x15xf32>
    %cst_160 = arith.constant dense<0.000000e+00> : vector<1x15xf32>
    %203 = tpu.matmul %200, %202, %cst_160 {dimension_numbers = #tpu.dot_dimension_numbers<[1], [0], [0], [1], [0, 0, 1, 1], [], []>} : vector<1x64xf32>, vector<64x15xf32>, vector<1x15xf32> -> vector<1x15xf32>
    %204 = arith.addf %199, %203 : vector<1x15xf32>
    %205 = vector.extract_strided_slice %73 {offsets = [26, 0], sizes = [1, 64], strides = [1, 1]} : vector<32x64xf32> to vector<1x64xf32>
    %c26 = arith.constant 26 : index
    %c0_161 = arith.constant 0 : index
    %c0_162 = arith.constant 0 : index
    %206 = vector.load %arg7[%c26, %c0_161, %c0_162] : memref<32x64x15xf32, #tpu.memory_space<vmem>>, vector<1x64x15xf32>
    %207 = vector.shape_cast %206 : vector<1x64x15xf32> to vector<64x15xf32>
    %cst_163 = arith.constant dense<0.000000e+00> : vector<1x15xf32>
    %208 = tpu.matmul %205, %207, %cst_163 {dimension_numbers = #tpu.dot_dimension_numbers<[1], [0], [0], [1], [0, 0, 1, 1], [], []>} : vector<1x64xf32>, vector<64x15xf32>, vector<1x15xf32> -> vector<1x15xf32>
    %209 = arith.addf %204, %208 : vector<1x15xf32>
    %210 = vector.extract_strided_slice %73 {offsets = [27, 0], sizes = [1, 64], strides = [1, 1]} : vector<32x64xf32> to vector<1x64xf32>
    %c27 = arith.constant 27 : index
    %c0_164 = arith.constant 0 : index
    %c0_165 = arith.constant 0 : index
    %211 = vector.load %arg7[%c27, %c0_164, %c0_165] : memref<32x64x15xf32, #tpu.memory_space<vmem>>, vector<1x64x15xf32>
    %212 = vector.shape_cast %211 : vector<1x64x15xf32> to vector<64x15xf32>
    %cst_166 = arith.constant dense<0.000000e+00> : vector<1x15xf32>
    %213 = tpu.matmul %210, %212, %cst_166 {dimension_numbers = #tpu.dot_dimension_numbers<[1], [0], [0], [1], [0, 0, 1, 1], [], []>} : vector<1x64xf32>, vector<64x15xf32>, vector<1x15xf32> -> vector<1x15xf32>
    %214 = arith.addf %209, %213 : vector<1x15xf32>
    %215 = vector.extract_strided_slice %73 {offsets = [28, 0], sizes = [1, 64], strides = [1, 1]} : vector<32x64xf32> to vector<1x64xf32>
    %c28 = arith.constant 28 : index
    %c0_167 = arith.constant 0 : index
    %c0_168 = arith.constant 0 : index
    %216 = vector.load %arg7[%c28, %c0_167, %c0_168] : memref<32x64x15xf32, #tpu.memory_space<vmem>>, vector<1x64x15xf32>
    %217 = vector.shape_cast %216 : vector<1x64x15xf32> to vector<64x15xf32>
    %cst_169 = arith.constant dense<0.000000e+00> : vector<1x15xf32>
    %218 = tpu.matmul %215, %217, %cst_169 {dimension_numbers = #tpu.dot_dimension_numbers<[1], [0], [0], [1], [0, 0, 1, 1], [], []>} : vector<1x64xf32>, vector<64x15xf32>, vector<1x15xf32> -> vector<1x15xf32>
    %219 = arith.addf %214, %218 : vector<1x15xf32>
    %220 = vector.extract_strided_slice %73 {offsets = [29, 0], sizes = [1, 64], strides = [1, 1]} : vector<32x64xf32> to vector<1x64xf32>
    %c29 = arith.constant 29 : index
    %c0_170 = arith.constant 0 : index
    %c0_171 = arith.constant 0 : index
    %221 = vector.load %arg7[%c29, %c0_170, %c0_171] : memref<32x64x15xf32, #tpu.memory_space<vmem>>, vector<1x64x15xf32>
    %222 = vector.shape_cast %221 : vector<1x64x15xf32> to vector<64x15xf32>
    %cst_172 = arith.constant dense<0.000000e+00> : vector<1x15xf32>
    %223 = tpu.matmul %220, %222, %cst_172 {dimension_numbers = #tpu.dot_dimension_numbers<[1], [0], [0], [1], [0, 0, 1, 1], [], []>} : vector<1x64xf32>, vector<64x15xf32>, vector<1x15xf32> -> vector<1x15xf32>
    %224 = arith.addf %219, %223 : vector<1x15xf32>
    %225 = vector.extract_strided_slice %73 {offsets = [30, 0], sizes = [1, 64], strides = [1, 1]} : vector<32x64xf32> to vector<1x64xf32>
    %c30 = arith.constant 30 : index
    %c0_173 = arith.constant 0 : index
    %c0_174 = arith.constant 0 : index
    %226 = vector.load %arg7[%c30, %c0_173, %c0_174] : memref<32x64x15xf32, #tpu.memory_space<vmem>>, vector<1x64x15xf32>
    %227 = vector.shape_cast %226 : vector<1x64x15xf32> to vector<64x15xf32>
    %cst_175 = arith.constant dense<0.000000e+00> : vector<1x15xf32>
    %228 = tpu.matmul %225, %227, %cst_175 {dimension_numbers = #tpu.dot_dimension_numbers<[1], [0], [0], [1], [0, 0, 1, 1], [], []>} : vector<1x64xf32>, vector<64x15xf32>, vector<1x15xf32> -> vector<1x15xf32>
    %229 = arith.addf %224, %228 : vector<1x15xf32>
    %230 = vector.extract_strided_slice %73 {offsets = [31, 0], sizes = [1, 64], strides = [1, 1]} : vector<32x64xf32> to vector<1x64xf32>
    %c31 = arith.constant 31 : index
    %c0_176 = arith.constant 0 : index
    %c0_177 = arith.constant 0 : index
    %231 = vector.load %arg7[%c31, %c0_176, %c0_177] : memref<32x64x15xf32, #tpu.memory_space<vmem>>, vector<1x64x15xf32>
    %232 = vector.shape_cast %231 : vector<1x64x15xf32> to vector<64x15xf32>
    %cst_178 = arith.constant dense<0.000000e+00> : vector<1x15xf32>
    %233 = tpu.matmul %230, %232, %cst_178 {dimension_numbers = #tpu.dot_dimension_numbers<[1], [0], [0], [1], [0, 0, 1, 1], [], []>} : vector<1x64xf32>, vector<64x15xf32>, vector<1x15xf32> -> vector<1x15xf32>
    %234 = arith.addf %229, %233 : vector<1x15xf32>
    %c0_179 = arith.constant 0 : index
    %c0_180 = arith.constant 0 : index
    %235 = vector.load %arg9[%c0_179, %c0_180] : memref<2x15xf32, #tpu.memory_space<vmem>>, vector<1x15xf32>
    tpu.vector_store %arg9[%c0_179, %c0_180], %234 {strides = array<i32>} : memref<2x15xf32, #tpu.memory_space<vmem>>, vector<1x15xf32>,
    %236 = vector.extract_strided_slice %5 {offsets = [0, 256], sizes = [16, 256], strides = [1, 1]} : vector<16x512xf32> to vector<16x256xf32>
    %cst_181 = arith.constant 0.000000e+00 : f32
    %237 = vector.broadcast %cst_181 : f32 to vector<32x64xf32>
    %c0_182 = arith.constant 0 : index
    %c0_183 = arith.constant 0 : index
    %c0_184 = arith.constant 0 : index
    %238 = vector.load %arg4[%c0_182, %c0_183, %c0_184] : memref<9x256x64xf32, #tpu.memory_space<vmem>>, vector<1x256x64xf32>
    %239 = vector.shape_cast %238 : vector<1x256x64xf32> to vector<256x64xf32>
    %cst_185 = arith.constant dense<0.000000e+00> : vector<16x64xf32>
    %240 = tpu.matmul %236, %239, %cst_185 {dimension_numbers = #tpu.dot_dimension_numbers<[1], [0], [0], [1], [0, 0, 1, 1], [], []>} : vector<16x256xf32>, vector<256x64xf32>, vector<16x64xf32> -> vector<16x64xf32>
    %c0_186 = arith.constant 0 : index
    %c0_187 = arith.constant 0 : index
    %c0_188 = arith.constant 0 : index
    %241 = vector.load %arg5[%c0_186, %c0_187, %c0_188] : memref<9x32x16xf32, #tpu.memory_space<vmem>>, vector<1x32x16xf32>
    %242 = vector.shape_cast %241 : vector<1x32x16xf32> to vector<32x16xf32>
    %cst_189 = arith.constant dense<0.000000e+00> : vector<32x64xf32>
    %243 = tpu.matmul %242, %240, %cst_189 {dimension_numbers = #tpu.dot_dimension_numbers<[1], [0], [0], [1], [0, 0, 1, 1], [], []>} : vector<32x16xf32>, vector<16x64xf32>, vector<32x64xf32> -> vector<32x64xf32>
    %244 = arith.addf %237, %243 : vector<32x64xf32>
    %c1_190 = arith.constant 1 : index
    %c0_191 = arith.constant 0 : index
    %c0_192 = arith.constant 0 : index
    %245 = vector.load %arg4[%c1_190, %c0_191, %c0_192] : memref<9x256x64xf32, #tpu.memory_space<vmem>>, vector<1x256x64xf32>
    %246 = vector.shape_cast %245 : vector<1x256x64xf32> to vector<256x64xf32>
    %cst_193 = arith.constant dense<0.000000e+00> : vector<16x64xf32>
    %247 = tpu.matmul %236, %246, %cst_193 {dimension_numbers = #tpu.dot_dimension_numbers<[1], [0], [0], [1], [0, 0, 1, 1], [], []>} : vector<16x256xf32>, vector<256x64xf32>, vector<16x64xf32> -> vector<16x64xf32>
    %c1_194 = arith.constant 1 : index
    %c0_195 = arith.constant 0 : index
    %c0_196 = arith.constant 0 : index
    %248 = vector.load %arg5[%c1_194, %c0_195, %c0_196] : memref<9x32x16xf32, #tpu.memory_space<vmem>>, vector<1x32x16xf32>
    %249 = vector.shape_cast %248 : vector<1x32x16xf32> to vector<32x16xf32>
    %cst_197 = arith.constant dense<0.000000e+00> : vector<32x64xf32>
    %250 = tpu.matmul %249, %247, %cst_197 {dimension_numbers = #tpu.dot_dimension_numbers<[1], [0], [0], [1], [0, 0, 1, 1], [], []>} : vector<32x16xf32>, vector<16x64xf32>, vector<32x64xf32> -> vector<32x64xf32>
    %251 = arith.addf %244, %250 : vector<32x64xf32>
    %c2_198 = arith.constant 2 : index
    %c0_199 = arith.constant 0 : index
    %c0_200 = arith.constant 0 : index
    %252 = vector.load %arg4[%c2_198, %c0_199, %c0_200] : memref<9x256x64xf32, #tpu.memory_space<vmem>>, vector<1x256x64xf32>
    %253 = vector.shape_cast %252 : vector<1x256x64xf32> to vector<256x64xf32>
    %cst_201 = arith.constant dense<0.000000e+00> : vector<16x64xf32>
    %254 = tpu.matmul %236, %253, %cst_201 {dimension_numbers = #tpu.dot_dimension_numbers<[1], [0], [0], [1], [0, 0, 1, 1], [], []>} : vector<16x256xf32>, vector<256x64xf32>, vector<16x64xf32> -> vector<16x64xf32>
    %c2_202 = arith.constant 2 : index
    %c0_203 = arith.constant 0 : index
    %c0_204 = arith.constant 0 : index
    %255 = vector.load %arg5[%c2_202, %c0_203, %c0_204] : memref<9x32x16xf32, #tpu.memory_space<vmem>>, vector<1x32x16xf32>
    %256 = vector.shape_cast %255 : vector<1x32x16xf32> to vector<32x16xf32>
    %cst_205 = arith.constant dense<0.000000e+00> : vector<32x64xf32>
    %257 = tpu.matmul %256, %254, %cst_205 {dimension_numbers = #tpu.dot_dimension_numbers<[1], [0], [0], [1], [0, 0, 1, 1], [], []>} : vector<32x16xf32>, vector<16x64xf32>, vector<32x64xf32> -> vector<32x64xf32>
    %258 = arith.addf %251, %257 : vector<32x64xf32>
    %c3_206 = arith.constant 3 : index
    %c0_207 = arith.constant 0 : index
    %c0_208 = arith.constant 0 : index
    %259 = vector.load %arg4[%c3_206, %c0_207, %c0_208] : memref<9x256x64xf32, #tpu.memory_space<vmem>>, vector<1x256x64xf32>
    %260 = vector.shape_cast %259 : vector<1x256x64xf32> to vector<256x64xf32>
    %cst_209 = arith.constant dense<0.000000e+00> : vector<16x64xf32>
    %261 = tpu.matmul %236, %260, %cst_209 {dimension_numbers = #tpu.dot_dimension_numbers<[1], [0], [0], [1], [0, 0, 1, 1], [], []>} : vector<16x256xf32>, vector<256x64xf32>, vector<16x64xf32> -> vector<16x64xf32>
    %c3_210 = arith.constant 3 : index
    %c0_211 = arith.constant 0 : index
    %c0_212 = arith.constant 0 : index
    %262 = vector.load %arg5[%c3_210, %c0_211, %c0_212] : memref<9x32x16xf32, #tpu.memory_space<vmem>>, vector<1x32x16xf32>
    %263 = vector.shape_cast %262 : vector<1x32x16xf32> to vector<32x16xf32>
    %cst_213 = arith.constant dense<0.000000e+00> : vector<32x64xf32>
    %264 = tpu.matmul %263, %261, %cst_213 {dimension_numbers = #tpu.dot_dimension_numbers<[1], [0], [0], [1], [0, 0, 1, 1], [], []>} : vector<32x16xf32>, vector<16x64xf32>, vector<32x64xf32> -> vector<32x64xf32>
    %265 = arith.addf %258, %264 : vector<32x64xf32>
    %c4_214 = arith.constant 4 : index
    %c0_215 = arith.constant 0 : index
    %c0_216 = arith.constant 0 : index
    %266 = vector.load %arg4[%c4_214, %c0_215, %c0_216] : memref<9x256x64xf32, #tpu.memory_space<vmem>>, vector<1x256x64xf32>
    %267 = vector.shape_cast %266 : vector<1x256x64xf32> to vector<256x64xf32>
    %cst_217 = arith.constant dense<0.000000e+00> : vector<16x64xf32>
    %268 = tpu.matmul %236, %267, %cst_217 {dimension_numbers = #tpu.dot_dimension_numbers<[1], [0], [0], [1], [0, 0, 1, 1], [], []>} : vector<16x256xf32>, vector<256x64xf32>, vector<16x64xf32> -> vector<16x64xf32>
    %c4_218 = arith.constant 4 : index
    %c0_219 = arith.constant 0 : index
    %c0_220 = arith.constant 0 : index
    %269 = vector.load %arg5[%c4_218, %c0_219, %c0_220] : memref<9x32x16xf32, #tpu.memory_space<vmem>>, vector<1x32x16xf32>
    %270 = vector.shape_cast %269 : vector<1x32x16xf32> to vector<32x16xf32>
    %cst_221 = arith.constant dense<0.000000e+00> : vector<32x64xf32>
    %271 = tpu.matmul %270, %268, %cst_221 {dimension_numbers = #tpu.dot_dimension_numbers<[1], [0], [0], [1], [0, 0, 1, 1], [], []>} : vector<32x16xf32>, vector<16x64xf32>, vector<32x64xf32> -> vector<32x64xf32>
    %272 = arith.addf %265, %271 : vector<32x64xf32>
    %c5_222 = arith.constant 5 : index
    %c0_223 = arith.constant 0 : index
    %c0_224 = arith.constant 0 : index
    %273 = vector.load %arg4[%c5_222, %c0_223, %c0_224] : memref<9x256x64xf32, #tpu.memory_space<vmem>>, vector<1x256x64xf32>
    %274 = vector.shape_cast %273 : vector<1x256x64xf32> to vector<256x64xf32>
    %cst_225 = arith.constant dense<0.000000e+00> : vector<16x64xf32>
    %275 = tpu.matmul %236, %274, %cst_225 {dimension_numbers = #tpu.dot_dimension_numbers<[1], [0], [0], [1], [0, 0, 1, 1], [], []>} : vector<16x256xf32>, vector<256x64xf32>, vector<16x64xf32> -> vector<16x64xf32>
    %c5_226 = arith.constant 5 : index
    %c0_227 = arith.constant 0 : index
    %c0_228 = arith.constant 0 : index
    %276 = vector.load %arg5[%c5_226, %c0_227, %c0_228] : memref<9x32x16xf32, #tpu.memory_space<vmem>>, vector<1x32x16xf32>
    %277 = vector.shape_cast %276 : vector<1x32x16xf32> to vector<32x16xf32>
    %cst_229 = arith.constant dense<0.000000e+00> : vector<32x64xf32>
    %278 = tpu.matmul %277, %275, %cst_229 {dimension_numbers = #tpu.dot_dimension_numbers<[1], [0], [0], [1], [0, 0, 1, 1], [], []>} : vector<32x16xf32>, vector<16x64xf32>, vector<32x64xf32> -> vector<32x64xf32>
    %279 = arith.addf %272, %278 : vector<32x64xf32>
    %c6_230 = arith.constant 6 : index
    %c0_231 = arith.constant 0 : index
    %c0_232 = arith.constant 0 : index
    %280 = vector.load %arg4[%c6_230, %c0_231, %c0_232] : memref<9x256x64xf32, #tpu.memory_space<vmem>>, vector<1x256x64xf32>
    %281 = vector.shape_cast %280 : vector<1x256x64xf32> to vector<256x64xf32>
    %cst_233 = arith.constant dense<0.000000e+00> : vector<16x64xf32>
    %282 = tpu.matmul %236, %281, %cst_233 {dimension_numbers = #tpu.dot_dimension_numbers<[1], [0], [0], [1], [0, 0, 1, 1], [], []>} : vector<16x256xf32>, vector<256x64xf32>, vector<16x64xf32> -> vector<16x64xf32>
    %c6_234 = arith.constant 6 : index
    %c0_235 = arith.constant 0 : index
    %c0_236 = arith.constant 0 : index
    %283 = vector.load %arg5[%c6_234, %c0_235, %c0_236] : memref<9x32x16xf32, #tpu.memory_space<vmem>>, vector<1x32x16xf32>
    %284 = vector.shape_cast %283 : vector<1x32x16xf32> to vector<32x16xf32>
    %cst_237 = arith.constant dense<0.000000e+00> : vector<32x64xf32>
    %285 = tpu.matmul %284, %282, %cst_237 {dimension_numbers = #tpu.dot_dimension_numbers<[1], [0], [0], [1], [0, 0, 1, 1], [], []>} : vector<32x16xf32>, vector<16x64xf32>, vector<32x64xf32> -> vector<32x64xf32>
    %286 = arith.addf %279, %285 : vector<32x64xf32>
    %c7_238 = arith.constant 7 : index
    %c0_239 = arith.constant 0 : index
    %c0_240 = arith.constant 0 : index
    %287 = vector.load %arg4[%c7_238, %c0_239, %c0_240] : memref<9x256x64xf32, #tpu.memory_space<vmem>>, vector<1x256x64xf32>
    %288 = vector.shape_cast %287 : vector<1x256x64xf32> to vector<256x64xf32>
    %cst_241 = arith.constant dense<0.000000e+00> : vector<16x64xf32>
    %289 = tpu.matmul %236, %288, %cst_241 {dimension_numbers = #tpu.dot_dimension_numbers<[1], [0], [0], [1], [0, 0, 1, 1], [], []>} : vector<16x256xf32>, vector<256x64xf32>, vector<16x64xf32> -> vector<16x64xf32>
    %c7_242 = arith.constant 7 : index
    %c0_243 = arith.constant 0 : index
    %c0_244 = arith.constant 0 : index
    %290 = vector.load %arg5[%c7_242, %c0_243, %c0_244] : memref<9x32x16xf32, #tpu.memory_space<vmem>>, vector<1x32x16xf32>
    %291 = vector.shape_cast %290 : vector<1x32x16xf32> to vector<32x16xf32>
    %cst_245 = arith.constant dense<0.000000e+00> : vector<32x64xf32>
    %292 = tpu.matmul %291, %289, %cst_245 {dimension_numbers = #tpu.dot_dimension_numbers<[1], [0], [0], [1], [0, 0, 1, 1], [], []>} : vector<32x16xf32>, vector<16x64xf32>, vector<32x64xf32> -> vector<32x64xf32>
    %293 = arith.addf %286, %292 : vector<32x64xf32>
    %c8_246 = arith.constant 8 : index
    %c0_247 = arith.constant 0 : index
    %c0_248 = arith.constant 0 : index
    %294 = vector.load %arg4[%c8_246, %c0_247, %c0_248] : memref<9x256x64xf32, #tpu.memory_space<vmem>>, vector<1x256x64xf32>
    %295 = vector.shape_cast %294 : vector<1x256x64xf32> to vector<256x64xf32>
    %cst_249 = arith.constant dense<0.000000e+00> : vector<16x64xf32>
    %296 = tpu.matmul %236, %295, %cst_249 {dimension_numbers = #tpu.dot_dimension_numbers<[1], [0], [0], [1], [0, 0, 1, 1], [], []>} : vector<16x256xf32>, vector<256x64xf32>, vector<16x64xf32> -> vector<16x64xf32>
    %c8_250 = arith.constant 8 : index
    %c0_251 = arith.constant 0 : index
    %c0_252 = arith.constant 0 : index
    %297 = vector.load %arg5[%c8_250, %c0_251, %c0_252] : memref<9x32x16xf32, #tpu.memory_space<vmem>>, vector<1x32x16xf32>
    %298 = vector.shape_cast %297 : vector<1x32x16xf32> to vector<32x16xf32>
    %cst_253 = arith.constant dense<0.000000e+00> : vector<32x64xf32>
    %299 = tpu.matmul %298, %296, %cst_253 {dimension_numbers = #tpu.dot_dimension_numbers<[1], [0], [0], [1], [0, 0, 1, 1], [], []>} : vector<32x16xf32>, vector<16x64xf32>, vector<32x64xf32> -> vector<32x64xf32>
    %300 = arith.addf %293, %299 : vector<32x64xf32>
    %c0_254 = arith.constant 0 : index
    %c0_255 = arith.constant 0 : index
    %301 = vector.load %arg6[%c0_254, %c0_255] : memref<32x1xf32, #tpu.memory_space<vmem>>, vector<32x1xf32>
    %302 = vector.broadcast %301 : vector<32x1xf32> to vector<32x64xf32>
    %303 = arith.addf %300, %302 : vector<32x64xf32>
    %c0_256 = arith.constant 0 : index
    %c0_257 = arith.constant 0 : index
    %304 = vector.load %arg8[%c0_256, %c0_257] : memref<1x15xf32, #tpu.memory_space<vmem>>, vector<1x15xf32>
    %305 = vector.extract_strided_slice %303 {offsets = [0, 0], sizes = [1, 64], strides = [1, 1]} : vector<32x64xf32> to vector<1x64xf32>
    %c0_258 = arith.constant 0 : index
    %c0_259 = arith.constant 0 : index
    %c0_260 = arith.constant 0 : index
    %306 = vector.load %arg7[%c0_258, %c0_259, %c0_260] : memref<32x64x15xf32, #tpu.memory_space<vmem>>, vector<1x64x15xf32>
    %307 = vector.shape_cast %306 : vector<1x64x15xf32> to vector<64x15xf32>
    %cst_261 = arith.constant dense<0.000000e+00> : vector<1x15xf32>
    %308 = tpu.matmul %305, %307, %cst_261 {dimension_numbers = #tpu.dot_dimension_numbers<[1], [0], [0], [1], [0, 0, 1, 1], [], []>} : vector<1x64xf32>, vector<64x15xf32>, vector<1x15xf32> -> vector<1x15xf32>
    %309 = arith.addf %304, %308 : vector<1x15xf32>
    %310 = vector.extract_strided_slice %303 {offsets = [1, 0], sizes = [1, 64], strides = [1, 1]} : vector<32x64xf32> to vector<1x64xf32>
    %c1_262 = arith.constant 1 : index
    %c0_263 = arith.constant 0 : index
    %c0_264 = arith.constant 0 : index
    %311 = vector.load %arg7[%c1_262, %c0_263, %c0_264] : memref<32x64x15xf32, #tpu.memory_space<vmem>>, vector<1x64x15xf32>
    %312 = vector.shape_cast %311 : vector<1x64x15xf32> to vector<64x15xf32>
    %cst_265 = arith.constant dense<0.000000e+00> : vector<1x15xf32>
    %313 = tpu.matmul %310, %312, %cst_265 {dimension_numbers = #tpu.dot_dimension_numbers<[1], [0], [0], [1], [0, 0, 1, 1], [], []>} : vector<1x64xf32>, vector<64x15xf32>, vector<1x15xf32> -> vector<1x15xf32>
    %314 = arith.addf %309, %313 : vector<1x15xf32>
    %315 = vector.extract_strided_slice %303 {offsets = [2, 0], sizes = [1, 64], strides = [1, 1]} : vector<32x64xf32> to vector<1x64xf32>
    %c2_266 = arith.constant 2 : index
    %c0_267 = arith.constant 0 : index
    %c0_268 = arith.constant 0 : index
    %316 = vector.load %arg7[%c2_266, %c0_267, %c0_268] : memref<32x64x15xf32, #tpu.memory_space<vmem>>, vector<1x64x15xf32>
    %317 = vector.shape_cast %316 : vector<1x64x15xf32> to vector<64x15xf32>
    %cst_269 = arith.constant dense<0.000000e+00> : vector<1x15xf32>
    %318 = tpu.matmul %315, %317, %cst_269 {dimension_numbers = #tpu.dot_dimension_numbers<[1], [0], [0], [1], [0, 0, 1, 1], [], []>} : vector<1x64xf32>, vector<64x15xf32>, vector<1x15xf32> -> vector<1x15xf32>
    %319 = arith.addf %314, %318 : vector<1x15xf32>
    %320 = vector.extract_strided_slice %303 {offsets = [3, 0], sizes = [1, 64], strides = [1, 1]} : vector<32x64xf32> to vector<1x64xf32>
    %c3_270 = arith.constant 3 : index
    %c0_271 = arith.constant 0 : index
    %c0_272 = arith.constant 0 : index
    %321 = vector.load %arg7[%c3_270, %c0_271, %c0_272] : memref<32x64x15xf32, #tpu.memory_space<vmem>>, vector<1x64x15xf32>
    %322 = vector.shape_cast %321 : vector<1x64x15xf32> to vector<64x15xf32>
    %cst_273 = arith.constant dense<0.000000e+00> : vector<1x15xf32>
    %323 = tpu.matmul %320, %322, %cst_273 {dimension_numbers = #tpu.dot_dimension_numbers<[1], [0], [0], [1], [0, 0, 1, 1], [], []>} : vector<1x64xf32>, vector<64x15xf32>, vector<1x15xf32> -> vector<1x15xf32>
    %324 = arith.addf %319, %323 : vector<1x15xf32>
    %325 = vector.extract_strided_slice %303 {offsets = [4, 0], sizes = [1, 64], strides = [1, 1]} : vector<32x64xf32> to vector<1x64xf32>
    %c4_274 = arith.constant 4 : index
    %c0_275 = arith.constant 0 : index
    %c0_276 = arith.constant 0 : index
    %326 = vector.load %arg7[%c4_274, %c0_275, %c0_276] : memref<32x64x15xf32, #tpu.memory_space<vmem>>, vector<1x64x15xf32>
    %327 = vector.shape_cast %326 : vector<1x64x15xf32> to vector<64x15xf32>
    %cst_277 = arith.constant dense<0.000000e+00> : vector<1x15xf32>
    %328 = tpu.matmul %325, %327, %cst_277 {dimension_numbers = #tpu.dot_dimension_numbers<[1], [0], [0], [1], [0, 0, 1, 1], [], []>} : vector<1x64xf32>, vector<64x15xf32>, vector<1x15xf32> -> vector<1x15xf32>
    %329 = arith.addf %324, %328 : vector<1x15xf32>
    %330 = vector.extract_strided_slice %303 {offsets = [5, 0], sizes = [1, 64], strides = [1, 1]} : vector<32x64xf32> to vector<1x64xf32>
    %c5_278 = arith.constant 5 : index
    %c0_279 = arith.constant 0 : index
    %c0_280 = arith.constant 0 : index
    %331 = vector.load %arg7[%c5_278, %c0_279, %c0_280] : memref<32x64x15xf32, #tpu.memory_space<vmem>>, vector<1x64x15xf32>
    %332 = vector.shape_cast %331 : vector<1x64x15xf32> to vector<64x15xf32>
    %cst_281 = arith.constant dense<0.000000e+00> : vector<1x15xf32>
    %333 = tpu.matmul %330, %332, %cst_281 {dimension_numbers = #tpu.dot_dimension_numbers<[1], [0], [0], [1], [0, 0, 1, 1], [], []>} : vector<1x64xf32>, vector<64x15xf32>, vector<1x15xf32> -> vector<1x15xf32>
    %334 = arith.addf %329, %333 : vector<1x15xf32>
    %335 = vector.extract_strided_slice %303 {offsets = [6, 0], sizes = [1, 64], strides = [1, 1]} : vector<32x64xf32> to vector<1x64xf32>
    %c6_282 = arith.constant 6 : index
    %c0_283 = arith.constant 0 : index
    %c0_284 = arith.constant 0 : index
    %336 = vector.load %arg7[%c6_282, %c0_283, %c0_284] : memref<32x64x15xf32, #tpu.memory_space<vmem>>, vector<1x64x15xf32>
    %337 = vector.shape_cast %336 : vector<1x64x15xf32> to vector<64x15xf32>
    %cst_285 = arith.constant dense<0.000000e+00> : vector<1x15xf32>
    %338 = tpu.matmul %335, %337, %cst_285 {dimension_numbers = #tpu.dot_dimension_numbers<[1], [0], [0], [1], [0, 0, 1, 1], [], []>} : vector<1x64xf32>, vector<64x15xf32>, vector<1x15xf32> -> vector<1x15xf32>
    %339 = arith.addf %334, %338 : vector<1x15xf32>
    %340 = vector.extract_strided_slice %303 {offsets = [7, 0], sizes = [1, 64], strides = [1, 1]} : vector<32x64xf32> to vector<1x64xf32>
    %c7_286 = arith.constant 7 : index
    %c0_287 = arith.constant 0 : index
    %c0_288 = arith.constant 0 : index
    %341 = vector.load %arg7[%c7_286, %c0_287, %c0_288] : memref<32x64x15xf32, #tpu.memory_space<vmem>>, vector<1x64x15xf32>
    %342 = vector.shape_cast %341 : vector<1x64x15xf32> to vector<64x15xf32>
    %cst_289 = arith.constant dense<0.000000e+00> : vector<1x15xf32>
    %343 = tpu.matmul %340, %342, %cst_289 {dimension_numbers = #tpu.dot_dimension_numbers<[1], [0], [0], [1], [0, 0, 1, 1], [], []>} : vector<1x64xf32>, vector<64x15xf32>, vector<1x15xf32> -> vector<1x15xf32>
    %344 = arith.addf %339, %343 : vector<1x15xf32>
    %345 = vector.extract_strided_slice %303 {offsets = [8, 0], sizes = [1, 64], strides = [1, 1]} : vector<32x64xf32> to vector<1x64xf32>
    %c8_290 = arith.constant 8 : index
    %c0_291 = arith.constant 0 : index
    %c0_292 = arith.constant 0 : index
    %346 = vector.load %arg7[%c8_290, %c0_291, %c0_292] : memref<32x64x15xf32, #tpu.memory_space<vmem>>, vector<1x64x15xf32>
    %347 = vector.shape_cast %346 : vector<1x64x15xf32> to vector<64x15xf32>
    %cst_293 = arith.constant dense<0.000000e+00> : vector<1x15xf32>
    %348 = tpu.matmul %345, %347, %cst_293 {dimension_numbers = #tpu.dot_dimension_numbers<[1], [0], [0], [1], [0, 0, 1, 1], [], []>} : vector<1x64xf32>, vector<64x15xf32>, vector<1x15xf32> -> vector<1x15xf32>
    %349 = arith.addf %344, %348 : vector<1x15xf32>
    %350 = vector.extract_strided_slice %303 {offsets = [9, 0], sizes = [1, 64], strides = [1, 1]} : vector<32x64xf32> to vector<1x64xf32>
    %c9_294 = arith.constant 9 : index
    %c0_295 = arith.constant 0 : index
    %c0_296 = arith.constant 0 : index
    %351 = vector.load %arg7[%c9_294, %c0_295, %c0_296] : memref<32x64x15xf32, #tpu.memory_space<vmem>>, vector<1x64x15xf32>
    %352 = vector.shape_cast %351 : vector<1x64x15xf32> to vector<64x15xf32>
    %cst_297 = arith.constant dense<0.000000e+00> : vector<1x15xf32>
    %353 = tpu.matmul %350, %352, %cst_297 {dimension_numbers = #tpu.dot_dimension_numbers<[1], [0], [0], [1], [0, 0, 1, 1], [], []>} : vector<1x64xf32>, vector<64x15xf32>, vector<1x15xf32> -> vector<1x15xf32>
    %354 = arith.addf %349, %353 : vector<1x15xf32>
    %355 = vector.extract_strided_slice %303 {offsets = [10, 0], sizes = [1, 64], strides = [1, 1]} : vector<32x64xf32> to vector<1x64xf32>
    %c10_298 = arith.constant 10 : index
    %c0_299 = arith.constant 0 : index
    %c0_300 = arith.constant 0 : index
    %356 = vector.load %arg7[%c10_298, %c0_299, %c0_300] : memref<32x64x15xf32, #tpu.memory_space<vmem>>, vector<1x64x15xf32>
    %357 = vector.shape_cast %356 : vector<1x64x15xf32> to vector<64x15xf32>
    %cst_301 = arith.constant dense<0.000000e+00> : vector<1x15xf32>
    %358 = tpu.matmul %355, %357, %cst_301 {dimension_numbers = #tpu.dot_dimension_numbers<[1], [0], [0], [1], [0, 0, 1, 1], [], []>} : vector<1x64xf32>, vector<64x15xf32>, vector<1x15xf32> -> vector<1x15xf32>
    %359 = arith.addf %354, %358 : vector<1x15xf32>
    %360 = vector.extract_strided_slice %303 {offsets = [11, 0], sizes = [1, 64], strides = [1, 1]} : vector<32x64xf32> to vector<1x64xf32>
    %c11_302 = arith.constant 11 : index
    %c0_303 = arith.constant 0 : index
    %c0_304 = arith.constant 0 : index
    %361 = vector.load %arg7[%c11_302, %c0_303, %c0_304] : memref<32x64x15xf32, #tpu.memory_space<vmem>>, vector<1x64x15xf32>
    %362 = vector.shape_cast %361 : vector<1x64x15xf32> to vector<64x15xf32>
    %cst_305 = arith.constant dense<0.000000e+00> : vector<1x15xf32>
    %363 = tpu.matmul %360, %362, %cst_305 {dimension_numbers = #tpu.dot_dimension_numbers<[1], [0], [0], [1], [0, 0, 1, 1], [], []>} : vector<1x64xf32>, vector<64x15xf32>, vector<1x15xf32> -> vector<1x15xf32>
    %364 = arith.addf %359, %363 : vector<1x15xf32>
    %365 = vector.extract_strided_slice %303 {offsets = [12, 0], sizes = [1, 64], strides = [1, 1]} : vector<32x64xf32> to vector<1x64xf32>
    %c12_306 = arith.constant 12 : index
    %c0_307 = arith.constant 0 : index
    %c0_308 = arith.constant 0 : index
    %366 = vector.load %arg7[%c12_306, %c0_307, %c0_308] : memref<32x64x15xf32, #tpu.memory_space<vmem>>, vector<1x64x15xf32>
    %367 = vector.shape_cast %366 : vector<1x64x15xf32> to vector<64x15xf32>
    %cst_309 = arith.constant dense<0.000000e+00> : vector<1x15xf32>
    %368 = tpu.matmul %365, %367, %cst_309 {dimension_numbers = #tpu.dot_dimension_numbers<[1], [0], [0], [1], [0, 0, 1, 1], [], []>} : vector<1x64xf32>, vector<64x15xf32>, vector<1x15xf32> -> vector<1x15xf32>
    %369 = arith.addf %364, %368 : vector<1x15xf32>
    %370 = vector.extract_strided_slice %303 {offsets = [13, 0], sizes = [1, 64], strides = [1, 1]} : vector<32x64xf32> to vector<1x64xf32>
    %c13_310 = arith.constant 13 : index
    %c0_311 = arith.constant 0 : index
    %c0_312 = arith.constant 0 : index
    %371 = vector.load %arg7[%c13_310, %c0_311, %c0_312] : memref<32x64x15xf32, #tpu.memory_space<vmem>>, vector<1x64x15xf32>
    %372 = vector.shape_cast %371 : vector<1x64x15xf32> to vector<64x15xf32>
    %cst_313 = arith.constant dense<0.000000e+00> : vector<1x15xf32>
    %373 = tpu.matmul %370, %372, %cst_313 {dimension_numbers = #tpu.dot_dimension_numbers<[1], [0], [0], [1], [0, 0, 1, 1], [], []>} : vector<1x64xf32>, vector<64x15xf32>, vector<1x15xf32> -> vector<1x15xf32>
    %374 = arith.addf %369, %373 : vector<1x15xf32>
    %375 = vector.extract_strided_slice %303 {offsets = [14, 0], sizes = [1, 64], strides = [1, 1]} : vector<32x64xf32> to vector<1x64xf32>
    %c14_314 = arith.constant 14 : index
    %c0_315 = arith.constant 0 : index
    %c0_316 = arith.constant 0 : index
    %376 = vector.load %arg7[%c14_314, %c0_315, %c0_316] : memref<32x64x15xf32, #tpu.memory_space<vmem>>, vector<1x64x15xf32>
    %377 = vector.shape_cast %376 : vector<1x64x15xf32> to vector<64x15xf32>
    %cst_317 = arith.constant dense<0.000000e+00> : vector<1x15xf32>
    %378 = tpu.matmul %375, %377, %cst_317 {dimension_numbers = #tpu.dot_dimension_numbers<[1], [0], [0], [1], [0, 0, 1, 1], [], []>} : vector<1x64xf32>, vector<64x15xf32>, vector<1x15xf32> -> vector<1x15xf32>
    %379 = arith.addf %374, %378 : vector<1x15xf32>
    %380 = vector.extract_strided_slice %303 {offsets = [15, 0], sizes = [1, 64], strides = [1, 1]} : vector<32x64xf32> to vector<1x64xf32>
    %c15_318 = arith.constant 15 : index
    %c0_319 = arith.constant 0 : index
    %c0_320 = arith.constant 0 : index
    %381 = vector.load %arg7[%c15_318, %c0_319, %c0_320] : memref<32x64x15xf32, #tpu.memory_space<vmem>>, vector<1x64x15xf32>
    %382 = vector.shape_cast %381 : vector<1x64x15xf32> to vector<64x15xf32>
    %cst_321 = arith.constant dense<0.000000e+00> : vector<1x15xf32>
    %383 = tpu.matmul %380, %382, %cst_321 {dimension_numbers = #tpu.dot_dimension_numbers<[1], [0], [0], [1], [0, 0, 1, 1], [], []>} : vector<1x64xf32>, vector<64x15xf32>, vector<1x15xf32> -> vector<1x15xf32>
    %384 = arith.addf %379, %383 : vector<1x15xf32>
    %385 = vector.extract_strided_slice %303 {offsets = [16, 0], sizes = [1, 64], strides = [1, 1]} : vector<32x64xf32> to vector<1x64xf32>
    %c16_322 = arith.constant 16 : index
    %c0_323 = arith.constant 0 : index
    %c0_324 = arith.constant 0 : index
    %386 = vector.load %arg7[%c16_322, %c0_323, %c0_324] : memref<32x64x15xf32, #tpu.memory_space<vmem>>, vector<1x64x15xf32>
    %387 = vector.shape_cast %386 : vector<1x64x15xf32> to vector<64x15xf32>
    %cst_325 = arith.constant dense<0.000000e+00> : vector<1x15xf32>
    %388 = tpu.matmul %385, %387, %cst_325 {dimension_numbers = #tpu.dot_dimension_numbers<[1], [0], [0], [1], [0, 0, 1, 1], [], []>} : vector<1x64xf32>, vector<64x15xf32>, vector<1x15xf32> -> vector<1x15xf32>
    %389 = arith.addf %384, %388 : vector<1x15xf32>
    %390 = vector.extract_strided_slice %303 {offsets = [17, 0], sizes = [1, 64], strides = [1, 1]} : vector<32x64xf32> to vector<1x64xf32>
    %c17_326 = arith.constant 17 : index
    %c0_327 = arith.constant 0 : index
    %c0_328 = arith.constant 0 : index
    %391 = vector.load %arg7[%c17_326, %c0_327, %c0_328] : memref<32x64x15xf32, #tpu.memory_space<vmem>>, vector<1x64x15xf32>
    %392 = vector.shape_cast %391 : vector<1x64x15xf32> to vector<64x15xf32>
    %cst_329 = arith.constant dense<0.000000e+00> : vector<1x15xf32>
    %393 = tpu.matmul %390, %392, %cst_329 {dimension_numbers = #tpu.dot_dimension_numbers<[1], [0], [0], [1], [0, 0, 1, 1], [], []>} : vector<1x64xf32>, vector<64x15xf32>, vector<1x15xf32> -> vector<1x15xf32>
    %394 = arith.addf %389, %393 : vector<1x15xf32>
    %395 = vector.extract_strided_slice %303 {offsets = [18, 0], sizes = [1, 64], strides = [1, 1]} : vector<32x64xf32> to vector<1x64xf32>
    %c18_330 = arith.constant 18 : index
    %c0_331 = arith.constant 0 : index
    %c0_332 = arith.constant 0 : index
    %396 = vector.load %arg7[%c18_330, %c0_331, %c0_332] : memref<32x64x15xf32, #tpu.memory_space<vmem>>, vector<1x64x15xf32>
    %397 = vector.shape_cast %396 : vector<1x64x15xf32> to vector<64x15xf32>
    %cst_333 = arith.constant dense<0.000000e+00> : vector<1x15xf32>
    %398 = tpu.matmul %395, %397, %cst_333 {dimension_numbers = #tpu.dot_dimension_numbers<[1], [0], [0], [1], [0, 0, 1, 1], [], []>} : vector<1x64xf32>, vector<64x15xf32>, vector<1x15xf32> -> vector<1x15xf32>
    %399 = arith.addf %394, %398 : vector<1x15xf32>
    %400 = vector.extract_strided_slice %303 {offsets = [19, 0], sizes = [1, 64], strides = [1, 1]} : vector<32x64xf32> to vector<1x64xf32>
    %c19_334 = arith.constant 19 : index
    %c0_335 = arith.constant 0 : index
    %c0_336 = arith.constant 0 : index
    %401 = vector.load %arg7[%c19_334, %c0_335, %c0_336] : memref<32x64x15xf32, #tpu.memory_space<vmem>>, vector<1x64x15xf32>
    %402 = vector.shape_cast %401 : vector<1x64x15xf32> to vector<64x15xf32>
    %cst_337 = arith.constant dense<0.000000e+00> : vector<1x15xf32>
    %403 = tpu.matmul %400, %402, %cst_337 {dimension_numbers = #tpu.dot_dimension_numbers<[1], [0], [0], [1], [0, 0, 1, 1], [], []>} : vector<1x64xf32>, vector<64x15xf32>, vector<1x15xf32> -> vector<1x15xf32>
    %404 = arith.addf %399, %403 : vector<1x15xf32>
    %405 = vector.extract_strided_slice %303 {offsets = [20, 0], sizes = [1, 64], strides = [1, 1]} : vector<32x64xf32> to vector<1x64xf32>
    %c20_338 = arith.constant 20 : index
    %c0_339 = arith.constant 0 : index
    %c0_340 = arith.constant 0 : index
    %406 = vector.load %arg7[%c20_338, %c0_339, %c0_340] : memref<32x64x15xf32, #tpu.memory_space<vmem>>, vector<1x64x15xf32>
    %407 = vector.shape_cast %406 : vector<1x64x15xf32> to vector<64x15xf32>
    %cst_341 = arith.constant dense<0.000000e+00> : vector<1x15xf32>
    %408 = tpu.matmul %405, %407, %cst_341 {dimension_numbers = #tpu.dot_dimension_numbers<[1], [0], [0], [1], [0, 0, 1, 1], [], []>} : vector<1x64xf32>, vector<64x15xf32>, vector<1x15xf32> -> vector<1x15xf32>
    %409 = arith.addf %404, %408 : vector<1x15xf32>
    %410 = vector.extract_strided_slice %303 {offsets = [21, 0], sizes = [1, 64], strides = [1, 1]} : vector<32x64xf32> to vector<1x64xf32>
    %c21_342 = arith.constant 21 : index
    %c0_343 = arith.constant 0 : index
    %c0_344 = arith.constant 0 : index
    %411 = vector.load %arg7[%c21_342, %c0_343, %c0_344] : memref<32x64x15xf32, #tpu.memory_space<vmem>>, vector<1x64x15xf32>
    %412 = vector.shape_cast %411 : vector<1x64x15xf32> to vector<64x15xf32>
    %cst_345 = arith.constant dense<0.000000e+00> : vector<1x15xf32>
    %413 = tpu.matmul %410, %412, %cst_345 {dimension_numbers = #tpu.dot_dimension_numbers<[1], [0], [0], [1], [0, 0, 1, 1], [], []>} : vector<1x64xf32>, vector<64x15xf32>, vector<1x15xf32> -> vector<1x15xf32>
    %414 = arith.addf %409, %413 : vector<1x15xf32>
    %415 = vector.extract_strided_slice %303 {offsets = [22, 0], sizes = [1, 64], strides = [1, 1]} : vector<32x64xf32> to vector<1x64xf32>
    %c22_346 = arith.constant 22 : index
    %c0_347 = arith.constant 0 : index
    %c0_348 = arith.constant 0 : index
    %416 = vector.load %arg7[%c22_346, %c0_347, %c0_348] : memref<32x64x15xf32, #tpu.memory_space<vmem>>, vector<1x64x15xf32>
    %417 = vector.shape_cast %416 : vector<1x64x15xf32> to vector<64x15xf32>
    %cst_349 = arith.constant dense<0.000000e+00> : vector<1x15xf32>
    %418 = tpu.matmul %415, %417, %cst_349 {dimension_numbers = #tpu.dot_dimension_numbers<[1], [0], [0], [1], [0, 0, 1, 1], [], []>} : vector<1x64xf32>, vector<64x15xf32>, vector<1x15xf32> -> vector<1x15xf32>
    %419 = arith.addf %414, %418 : vector<1x15xf32>
    %420 = vector.extract_strided_slice %303 {offsets = [23, 0], sizes = [1, 64], strides = [1, 1]} : vector<32x64xf32> to vector<1x64xf32>
    %c23_350 = arith.constant 23 : index
    %c0_351 = arith.constant 0 : index
    %c0_352 = arith.constant 0 : index
    %421 = vector.load %arg7[%c23_350, %c0_351, %c0_352] : memref<32x64x15xf32, #tpu.memory_space<vmem>>, vector<1x64x15xf32>
    %422 = vector.shape_cast %421 : vector<1x64x15xf32> to vector<64x15xf32>
    %cst_353 = arith.constant dense<0.000000e+00> : vector<1x15xf32>
    %423 = tpu.matmul %420, %422, %cst_353 {dimension_numbers = #tpu.dot_dimension_numbers<[1], [0], [0], [1], [0, 0, 1, 1], [], []>} : vector<1x64xf32>, vector<64x15xf32>, vector<1x15xf32> -> vector<1x15xf32>
    %424 = arith.addf %419, %423 : vector<1x15xf32>
    %425 = vector.extract_strided_slice %303 {offsets = [24, 0], sizes = [1, 64], strides = [1, 1]} : vector<32x64xf32> to vector<1x64xf32>
    %c24_354 = arith.constant 24 : index
    %c0_355 = arith.constant 0 : index
    %c0_356 = arith.constant 0 : index
    %426 = vector.load %arg7[%c24_354, %c0_355, %c0_356] : memref<32x64x15xf32, #tpu.memory_space<vmem>>, vector<1x64x15xf32>
    %427 = vector.shape_cast %426 : vector<1x64x15xf32> to vector<64x15xf32>
    %cst_357 = arith.constant dense<0.000000e+00> : vector<1x15xf32>
    %428 = tpu.matmul %425, %427, %cst_357 {dimension_numbers = #tpu.dot_dimension_numbers<[1], [0], [0], [1], [0, 0, 1, 1], [], []>} : vector<1x64xf32>, vector<64x15xf32>, vector<1x15xf32> -> vector<1x15xf32>
    %429 = arith.addf %424, %428 : vector<1x15xf32>
    %430 = vector.extract_strided_slice %303 {offsets = [25, 0], sizes = [1, 64], strides = [1, 1]} : vector<32x64xf32> to vector<1x64xf32>
    %c25_358 = arith.constant 25 : index
    %c0_359 = arith.constant 0 : index
    %c0_360 = arith.constant 0 : index
    %431 = vector.load %arg7[%c25_358, %c0_359, %c0_360] : memref<32x64x15xf32, #tpu.memory_space<vmem>>, vector<1x64x15xf32>
    %432 = vector.shape_cast %431 : vector<1x64x15xf32> to vector<64x15xf32>
    %cst_361 = arith.constant dense<0.000000e+00> : vector<1x15xf32>
    %433 = tpu.matmul %430, %432, %cst_361 {dimension_numbers = #tpu.dot_dimension_numbers<[1], [0], [0], [1], [0, 0, 1, 1], [], []>} : vector<1x64xf32>, vector<64x15xf32>, vector<1x15xf32> -> vector<1x15xf32>
    %434 = arith.addf %429, %433 : vector<1x15xf32>
    %435 = vector.extract_strided_slice %303 {offsets = [26, 0], sizes = [1, 64], strides = [1, 1]} : vector<32x64xf32> to vector<1x64xf32>
    %c26_362 = arith.constant 26 : index
    %c0_363 = arith.constant 0 : index
    %c0_364 = arith.constant 0 : index
    %436 = vector.load %arg7[%c26_362, %c0_363, %c0_364] : memref<32x64x15xf32, #tpu.memory_space<vmem>>, vector<1x64x15xf32>
    %437 = vector.shape_cast %436 : vector<1x64x15xf32> to vector<64x15xf32>
    %cst_365 = arith.constant dense<0.000000e+00> : vector<1x15xf32>
    %438 = tpu.matmul %435, %437, %cst_365 {dimension_numbers = #tpu.dot_dimension_numbers<[1], [0], [0], [1], [0, 0, 1, 1], [], []>} : vector<1x64xf32>, vector<64x15xf32>, vector<1x15xf32> -> vector<1x15xf32>
    %439 = arith.addf %434, %438 : vector<1x15xf32>
    %440 = vector.extract_strided_slice %303 {offsets = [27, 0], sizes = [1, 64], strides = [1, 1]} : vector<32x64xf32> to vector<1x64xf32>
    %c27_366 = arith.constant 27 : index
    %c0_367 = arith.constant 0 : index
    %c0_368 = arith.constant 0 : index
    %441 = vector.load %arg7[%c27_366, %c0_367, %c0_368] : memref<32x64x15xf32, #tpu.memory_space<vmem>>, vector<1x64x15xf32>
    %442 = vector.shape_cast %441 : vector<1x64x15xf32> to vector<64x15xf32>
    %cst_369 = arith.constant dense<0.000000e+00> : vector<1x15xf32>
    %443 = tpu.matmul %440, %442, %cst_369 {dimension_numbers = #tpu.dot_dimension_numbers<[1], [0], [0], [1], [0, 0, 1, 1], [], []>} : vector<1x64xf32>, vector<64x15xf32>, vector<1x15xf32> -> vector<1x15xf32>
    %444 = arith.addf %439, %443 : vector<1x15xf32>
    %445 = vector.extract_strided_slice %303 {offsets = [28, 0], sizes = [1, 64], strides = [1, 1]} : vector<32x64xf32> to vector<1x64xf32>
    %c28_370 = arith.constant 28 : index
    %c0_371 = arith.constant 0 : index
    %c0_372 = arith.constant 0 : index
    %446 = vector.load %arg7[%c28_370, %c0_371, %c0_372] : memref<32x64x15xf32, #tpu.memory_space<vmem>>, vector<1x64x15xf32>
    %447 = vector.shape_cast %446 : vector<1x64x15xf32> to vector<64x15xf32>
    %cst_373 = arith.constant dense<0.000000e+00> : vector<1x15xf32>
    %448 = tpu.matmul %445, %447, %cst_373 {dimension_numbers = #tpu.dot_dimension_numbers<[1], [0], [0], [1], [0, 0, 1, 1], [], []>} : vector<1x64xf32>, vector<64x15xf32>, vector<1x15xf32> -> vector<1x15xf32>
    %449 = arith.addf %444, %448 : vector<1x15xf32>
    %450 = vector.extract_strided_slice %303 {offsets = [29, 0], sizes = [1, 64], strides = [1, 1]} : vector<32x64xf32> to vector<1x64xf32>
    %c29_374 = arith.constant 29 : index
    %c0_375 = arith.constant 0 : index
    %c0_376 = arith.constant 0 : index
    %451 = vector.load %arg7[%c29_374, %c0_375, %c0_376] : memref<32x64x15xf32, #tpu.memory_space<vmem>>, vector<1x64x15xf32>
    %452 = vector.shape_cast %451 : vector<1x64x15xf32> to vector<64x15xf32>
    %cst_377 = arith.constant dense<0.000000e+00> : vector<1x15xf32>
    %453 = tpu.matmul %450, %452, %cst_377 {dimension_numbers = #tpu.dot_dimension_numbers<[1], [0], [0], [1], [0, 0, 1, 1], [], []>} : vector<1x64xf32>, vector<64x15xf32>, vector<1x15xf32> -> vector<1x15xf32>
    %454 = arith.addf %449, %453 : vector<1x15xf32>
    %455 = vector.extract_strided_slice %303 {offsets = [30, 0], sizes = [1, 64], strides = [1, 1]} : vector<32x64xf32> to vector<1x64xf32>
    %c30_378 = arith.constant 30 : index
    %c0_379 = arith.constant 0 : index
    %c0_380 = arith.constant 0 : index
    %456 = vector.load %arg7[%c30_378, %c0_379, %c0_380] : memref<32x64x15xf32, #tpu.memory_space<vmem>>, vector<1x64x15xf32>
    %457 = vector.shape_cast %456 : vector<1x64x15xf32> to vector<64x15xf32>
    %cst_381 = arith.constant dense<0.000000e+00> : vector<1x15xf32>
    %458 = tpu.matmul %455, %457, %cst_381 {dimension_numbers = #tpu.dot_dimension_numbers<[1], [0], [0], [1], [0, 0, 1, 1], [], []>} : vector<1x64xf32>, vector<64x15xf32>, vector<1x15xf32> -> vector<1x15xf32>
    %459 = arith.addf %454, %458 : vector<1x15xf32>
    %460 = vector.extract_strided_slice %303 {offsets = [31, 0], sizes = [1, 64], strides = [1, 1]} : vector<32x64xf32> to vector<1x64xf32>
    %c31_382 = arith.constant 31 : index
    %c0_383 = arith.constant 0 : index
    %c0_384 = arith.constant 0 : index
    %461 = vector.load %arg7[%c31_382, %c0_383, %c0_384] : memref<32x64x15xf32, #tpu.memory_space<vmem>>, vector<1x64x15xf32>
    %462 = vector.shape_cast %461 : vector<1x64x15xf32> to vector<64x15xf32>
    %cst_385 = arith.constant dense<0.000000e+00> : vector<1x15xf32>
    %463 = tpu.matmul %460, %462, %cst_385 {dimension_numbers = #tpu.dot_dimension_numbers<[1], [0], [0], [1], [0, 0, 1, 1], [], []>} : vector<1x64xf32>, vector<64x15xf32>, vector<1x15xf32> -> vector<1x15xf32>
    %464 = arith.addf %459, %463 : vector<1x15xf32>
    %c1_386 = arith.constant 1 : index
    %c0_387 = arith.constant 0 : index
    %465 = vector.load %arg9[%c1_386, %c0_387] : memref<2x15xf32, #tpu.memory_space<vmem>>, vector<1x15xf32>
    tpu.vector_store %arg9[%c1_386, %c0_387], %464 {strides = array<i32>} : memref<2x15xf32, #tpu.memory_space<vmem>>, vector<1x15xf32>,
    return
  }
  func.func @transform_0(%arg0: i32) -> (i32, i32) {
    %c0_i32 = arith.constant 0 : i32
    %c0_i32_0 = arith.constant 0 : i32
    %c0_i32_1 = arith.constant 0 : i32
    return %c0_i32, %c0_i32_0 : i32, i32
  }
  func.func @transform_1(%arg0: i32) -> (i32, i32) {
    %c0_i32 = arith.constant 0 : i32
    %c0_i32_0 = arith.constant 0 : i32
    %c0_i32_1 = arith.constant 0 : i32
    return %c0_i32, %c0_i32_0 : i32, i32
  }
  func.func @transform_2(%arg0: i32) -> (i32, i32) {
    %c0_i32 = arith.constant 0 : i32
    %c0_i32_0 = arith.constant 0 : i32
    %c0_i32_1 = arith.constant 0 : i32
    return %c0_i32, %c0_i32_0 : i32, i32
  }
  func.func @transform_3(%arg0: i32) -> (i32, i32, i32) {
    %c0_i32 = arith.constant 0 : i32
    %c0_i32_0 = arith.constant 0 : i32
    %c0_i32_1 = arith.constant 0 : i32
    %c0_i32_2 = arith.constant 0 : i32
    return %c0_i32, %c0_i32_0, %c0_i32_1 : i32, i32, i32
  }
  func.func @transform_4(%arg0: i32) -> (i32, i32, i32) {
    %c0_i32 = arith.constant 0 : i32
    %c0_i32_0 = arith.constant 0 : i32
    %c0_i32_1 = arith.constant 0 : i32
    %c0_i32_2 = arith.constant 0 : i32
    return %c0_i32, %c0_i32_0, %c0_i32_1 : i32, i32, i32
  }
  func.func @transform_5(%arg0: i32) -> (i32, i32) {
    %c0_i32 = arith.constant 0 : i32
    %c0_i32_0 = arith.constant 0 : i32
    %c0_i32_1 = arith.constant 0 : i32
    return %c0_i32, %c0_i32_0 : i32, i32
  }
  func.func @transform_6(%arg0: i32) -> (i32, i32, i32) {
    %c0_i32 = arith.constant 0 : i32
    %c0_i32_0 = arith.constant 0 : i32
    %c0_i32_1 = arith.constant 0 : i32
    %c0_i32_2 = arith.constant 0 : i32
    return %c0_i32, %c0_i32_0, %c0_i32_1 : i32, i32, i32
  }
  func.func @transform_7(%arg0: i32) -> (i32, i32) {
    %c0_i32 = arith.constant 0 : i32
    %c0_i32_0 = arith.constant 0 : i32
    %c0_i32_1 = arith.constant 0 : i32
    return %c0_i32, %c0_i32_0 : i32, i32
  }
  func.func @transform_8(%arg0: i32) -> (i32, i32) {
    %c0_i32 = arith.constant 0 : i32
    %c0_i32_0 = arith.constant 0 : i32
    %c0_i32_1 = arith.constant 0 : i32
    return %c0_i32, %c0_i32_0 : i32, i32
  }
}

</mosaic_0001>

<llo_original>
// kernel: multi_output_model.1
$region0: #{multi_output_model.1}
  #allocation0 [shape = 'u32[]', space=smem, size = 0x4, offset = 0x4, fixed_abs, tag = 'smem constant byte address 0x4 - core index']
  #allocation1 [shape = 'u32[144,128]{1,0:T(1,128)}', space=vmem, size = 0x12000, scoped, tag = 'internal scratch']
  %s0 = inlined_call_operand.vmem [shape: f32[27,512], index: 0, kind: input, shape index: {}]
  %s1 = inlined_call_operand.vmem [shape: f32[16,27], index: 1, kind: input, shape index: {}]
  %s2 = inlined_call_operand.vmem [shape: f32[16,1], index: 2, kind: input, shape index: {}]
  %s3 = inlined_call_operand.vmem [shape: f32[9,256,64], index: 3, kind: input, shape index: {}]
  %s4 = inlined_call_operand.vmem [shape: f32[9,32,16], index: 4, kind: input, shape index: {}]
  %s5 = inlined_call_operand.vmem [shape: f32[32,1], index: 5, kind: input, shape index: {}]
  %s6 = inlined_call_operand.vmem [shape: f32[32,64,15], index: 6, kind: input, shape index: {}]
  %s7 = inlined_call_operand.vmem [shape: f32[1,15], index: 7, kind: input, shape index: {}]
  %s8 = inlined_call_operand.vmem [shape: f32[2,15], index: 8, kind: output, shape index: {}]
  %s9 = sld [smem:[#allocation0]]
  $region42: #{multi_output_model.1} parent=0
    _
  %s11 = ssub.s32 1, %s9
  %s12 = scalar_select 0, %s11, %s9
  // Predicated region
  $region2: #{multi_output_model.1} parent=0 // pred_check
    _
  $region3: #{multi_output_model.1} parent=0 // pred_check_branch
    %14 = sbr.rel (0) target = $region5
  $region4: #{multi_output_model.1} parent=0 // pred_region
    _
  $region5: #{multi_output_model.1} parent=0 // pred_fallthru
    _
  // Predicated region
  $region6: #{multi_output_model.1} parent=0 // pred_check
    _
  $region7: #{multi_output_model.1} parent=0 // pred_check_branch
    %16 = sbr.rel (0) target = $region9
  $region8: #{multi_output_model.1} parent=0 // pred_region
    _
  $region9: #{multi_output_model.1} parent=0 // pred_fallthru
    _
  // Predicated region
  $region10: #{multi_output_model.1} parent=0 // pred_check
    _
  $region11: #{multi_output_model.1} parent=0 // pred_check_branch
    %18 = sbr.rel (0) target = $region13
  $region12: #{multi_output_model.1} parent=0 // pred_region
    _
  $region13: #{multi_output_model.1} parent=0 // pred_fallthru
    _
  // Predicated region
  $region14: #{multi_output_model.1} parent=0 // pred_check
    _
  $region15: #{multi_output_model.1} parent=0 // pred_check_branch
    %20 = sbr.rel (0) target = $region17
  $region16: #{multi_output_model.1} parent=0 // pred_region
    _
  $region17: #{multi_output_model.1} parent=0 // pred_fallthru
    _
  // Predicated region
  $region18: #{multi_output_model.1} parent=0 // pred_check
    _
  $region19: #{multi_output_model.1} parent=0 // pred_check_branch
    %22 = sbr.rel (0) target = $region21
  $region20: #{multi_output_model.1} parent=0 // pred_region
    _
  $region21: #{multi_output_model.1} parent=0 // pred_fallthru
    _
  // Predicated region
  $region22: #{multi_output_model.1} parent=0 // pred_check
    _
  $region23: #{multi_output_model.1} parent=0 // pred_check_branch
    %24 = sbr.rel (0) target = $region25
  $region24: #{multi_output_model.1} parent=0 // pred_region
    _
  $region25: #{multi_output_model.1} parent=0 // pred_fallthru
    _
  // Predicated region
  $region26: #{multi_output_model.1} parent=0 // pred_check
    _
  $region27: #{multi_output_model.1} parent=0 // pred_check_branch
    %26 = sbr.rel (0) target = $region29
  $region28: #{multi_output_model.1} parent=0 // pred_region
    _
  $region29: #{multi_output_model.1} parent=0 // pred_fallthru
    _
  // Predicated region
  $region30: #{multi_output_model.1} parent=0 // pred_check
    _
  $region31: #{multi_output_model.1} parent=0 // pred_check_branch
    %28 = sbr.rel (0) target = $region33
  $region32: #{multi_output_model.1} parent=0 // pred_region
    _
  $region33: #{multi_output_model.1} parent=0 // pred_fallthru
    _
  %v29 = vld [vmem:[%s1] sm:$0xff]
  %v30 = vld [vmem:[%s1 + $0x8] sm:$0xff]
  %v31 = vld [vmem:[%s0] sm:$0xff]
  %v32 = vld [vmem:[%s0 + $0x8] sm:$0xff]
  %v33 = vld [vmem:[%s0 + $0x10] sm:$0xff]
  %v34 = vld [vmem:[%s0 + $0x18] sm:$0xff]
  %v35 = vld [vmem:[%s0 + $0x20] sm:$0xff]
  %v36 = vld [vmem:[%s0 + $0x28] sm:$0xff]
  %v37 = vld [vmem:[%s0 + $0x30] sm:$0xff]
  %v38 = vld [vmem:[%s0 + $0x38] sm:$0xff]
  %v39 = vld [vmem:[%s0 + $0x40] sm:$0xff]
  %v40 = vld [vmem:[%s0 + $0x48] sm:$0xff]
  %v41 = vld [vmem:[%s0 + $0x50] sm:$0xff]
  %v42 = vld [vmem:[%s0 + $0x58] sm:$0xff]
  %v43 = vld [vmem:[%s0 + $0x60] sm:$0x7]
  %v44 = vld [vmem:[%s0 + $0x68] sm:$0x7]
  %v45 = vld [vmem:[%s0 + $0x70] sm:$0x7]
  %v46 = vld [vmem:[%s0 + $0x78] sm:$0x7]
  %v47 = vld [vmem:[%s2] sm:$0xff]
  %v48 = vld [vmem:[%s2 + $0x8] sm:$0xff]
  %50 = vset.pattern.permute.xlu0 0
  %51 = vperm.xlu0 %50, %v47
  %v52 = vpop.permute.xlu0 %51
  %55 = vset.pattern.permute.xlu0 0
  %56 = vperm.xlu0 %55, %v48
  %v57 = vpop.permute.xlu0 %56
  %vm59 = vcmask 220160
  %v61 = vsel %vm59, %v29, 0
  %v64 = vsel %vm59, %v30, 0
  %vm66 = vcmask 1042432
  %v68 = vsel %vm66, %v43, 0
  %v71 = vsel %vm66, %v44, 0
  %v74 = vsel %vm66, %v45, 0
  %v77 = vsel %vm66, %v46, 0
  %79 = vmatprep.subr.mxu0 %v32
  %80 = vmatpush1.msra.mxu0 %v31
  %81 = vmatprep.subr.mxu0 %v36
  %82 = vmatpush1.msra.mxu0 %v35
  %83 = vmatprep.subr.mxu0 %v40
  %84 = vmatpush1.msra.mxu0 %v39
  %85 = vmatprep.subr.mxu0 %v71
  %86 = vmatpush1.msra.mxu0 %v68
  %87 = vmatprep.subr.mxu0 0.0
  %88 = vmatpush1.msra.mxu0 0.0
  %89 = vmatprep.subr.mxu0 0.0
  %90 = vmatpush1.msra.mxu0 0.0
  %91 = vmatprep.subr.mxu0 0.0
  %92 = vmatpush1.msra.mxu0 0.0
  %93 = vmatprep.subr.mxu0 0.0
  %94 = vmatpush1.msra.mxu0 0.0
  %95 = vmatprep.subr.mxu0 0.0
  %96 = vmatpush1.msra.mxu0 0.0
  %97 = vmatprep.subr.mxu0 0.0
  %98 = vmatpush1.msra.mxu0 0.0
  %99 = vmatprep.subr.mxu0 0.0
  %100 = vmatpush1.msra.mxu0 0.0
  %101 = vmatprep.subr.mxu0 0.0
  %102 = vmatpush1.msra.mxu0 0.0
  %103 = vmatprep.subr.mxu0 0.0
  %104 = vmatpush1.msra.mxu0 0.0
  %105 = vmatprep.subr.mxu0 0.0
  %106 = vmatpush1.msra.mxu0 0.0
  %107 = vmatprep.subr.mxu0 0.0
  %108 = vmatpush1.msra.mxu0 0.0
  %109 = vmatprep.subr.mxu0 0.0
  %110 = vmatpush1.msra.mxu0 0.0
  %111 = vmatprep.subr.mxu0 0.0
  %112 = vmatpush1.msra.mxu0 0.0
  %113 = vmatprep.subr.mxu0 0.0
  %114 = vmatpush1.msra.mxu0 0.0
  %115 = vmatprep.subr.mxu0 0.0
  %116 = vmatpush1.msra.mxu0 0.0
  %117 = vmatprep.subr.mxu0 0.0
  %118 = vmatpush1.msra.mxu0 0.0
  %119 = vmatprep.subr.mxu0 0.0
  %120 = vmatpush1.msra.mxu0 0.0
  %121 = vmatprep.subr.mxu0 0.0
  %122 = vmatpush1.msra.mxu0 0.0
  %123 = vmatprep.subr.mxu0 0.0
  %124 = vmatpush1.msra.mxu0 0.0
  %125 = vmatprep.subr.mxu0 0.0
  %126 = vmatpush1.msra.mxu0 0.0
  %127 = vmatprep.subr.mxu0 0.0
  %128 = vmatpush1.msra.mxu0 0.0
  %129 = vmatprep.subr.mxu0 0.0
  %130 = vmatpush1.msra.mxu0 0.0
  %131 = vmatprep.subr.mxu0 0.0
  %132 = vmatpush1.msra.mxu0 0.0
  %133 = vmatprep.subr.mxu0 0.0
  %134 = vmatpush1.msra.mxu0 0.0
  %135 = vmatprep.subr.mxu0 0.0
  %136 = vmatpush1.msra.mxu0 0.0
  %137 = vmatprep.subr.mxu0 0.0
  %138 = vmatpush1.msra.mxu0 0.0
  %139 = vmatprep.subr.mxu0 0.0
  %140 = vmatpush1.msra.mxu0 0.0
  %141 = vmatprep.subr.mxu0 0.0
  %142 = vmatpush1.msra.mxu0 0.0
  %143 = vmatprep.mubr.f32.mxu0 0.0
  %144 = vmatmul.mubr.f32.gmra.mrb[0].mxu0 %v61
  %v145 = vpop.f32.mrb[0].mxu0
  %v146 = vadd.f32 %v52, %v145
  %v147 = vpop.f32.mrb[0].mxu0
  %v148 = vadd.f32 %v52, %v147
  %149 = vmatprep.mubr.f32.mxu0 0.0
  %150 = vmatmul.mubr.f32.gmra.mrb[0].mxu0 %v64
  %v151 = vpop.f32.mrb[0].mxu0
  %v152 = vadd.f32 %v57, %v151
  %v153 = vpop.f32.mrb[0].mxu0
  %v154 = vadd.f32 %v57, %v153
  %155 = vdwg.mxu0
  %156 = vmatprep.subr.mxu0 %v34
  %157 = vmatpush1.msra.mxu0 %v33
  %158 = vmatprep.subr.mxu0 %v38
  %159 = vmatpush1.msra.mxu0 %v37
  %160 = vmatprep.subr.mxu0 %v42
  %161 = vmatpush1.msra.mxu0 %v41
  %162 = vmatprep.subr.mxu0 %v77
  %163 = vmatpush1.msra.mxu0 %v74
  %164 = vmatprep.subr.mxu0 0.0
  %165 = vmatpush1.msra.mxu0 0.0
  %166 = vmatprep.subr.mxu0 0.0
  %167 = vmatpush1.msra.mxu0 0.0
  %168 = vmatprep.subr.mxu0 0.0
  %169 = vmatpush1.msra.mxu0 0.0
  %170 = vmatprep.subr.mxu0 0.0
  %171 = vmatpush1.msra.mxu0 0.0
  %172 = vmatprep.subr.mxu0 0.0
  %173 = vmatpush1.msra.mxu0 0.0
  %174 = vmatprep.subr.mxu0 0.0
  %175 = vmatpush1.msra.mxu0 0.0
  %176 = vmatprep.subr.mxu0 0.0
  %177 = vmatpush1.msra.mxu0 0.0
  %178 = vmatprep.subr.mxu0 0.0
  %179 = vmatpush1.msra.mxu0 0.0
  %180 = vmatprep.subr.mxu0 0.0
  %181 = vmatpush1.msra.mxu0 0.0
  %182 = vmatprep.subr.mxu0 0.0
  %183 = vmatpush1.msra.mxu0 0.0
  %184 = vmatprep.subr.mxu0 0.0
  %185 = vmatpush1.msra.mxu0 0.0
  %186 = vmatprep.subr.mxu0 0.0
  %187 = vmatpush1.msra.mxu0 0.0
  %188 = vmatprep.subr.mxu0 0.0
  %189 = vmatpush1.msra.mxu0 0.0
  %190 = vmatprep.subr.mxu0 0.0
  %191 = vmatpush1.msra.mxu0 0.0
  %192 = vmatprep.subr.mxu0 0.0
  %193 = vmatpush1.msra.mxu0 0.0
  %194 = vmatprep.subr.mxu0 0.0
  %195 = vmatpush1.msra.mxu0 0.0
  %196 = vmatprep.subr.mxu0 0.0
  %197 = vmatpush1.msra.mxu0 0.0
  %198 = vmatprep.subr.mxu0 0.0
  %199 = vmatpush1.msra.mxu0 0.0
  %200 = vmatprep.subr.mxu0 0.0
  %201 = vmatpush1.msra.mxu0 0.0
  %202 = vmatprep.subr.mxu0 0.0
  %203 = vmatpush1.msra.mxu0 0.0
  %204 = vmatprep.subr.mxu0 0.0
  %205 = vmatpush1.msra.mxu0 0.0
  %206 = vmatprep.subr.mxu0 0.0
  %207 = vmatpush1.msra.mxu0 0.0
  %208 = vmatprep.subr.mxu0 0.0
  %209 = vmatpush1.msra.mxu0 0.0
  %210 = vmatprep.subr.mxu0 0.0
  %211 = vmatpush1.msra.mxu0 0.0
  %212 = vmatprep.subr.mxu0 0.0
  %213 = vmatpush1.msra.mxu0 0.0
  %214 = vmatprep.subr.mxu0 0.0
  %215 = vmatpush1.msra.mxu0 0.0
  %216 = vmatprep.subr.mxu0 0.0
  %217 = vmatpush1.msra.mxu0 0.0
  %218 = vmatprep.subr.mxu0 0.0
  %219 = vmatpush1.msra.mxu0 0.0
  %220 = vmatprep.mubr.f32.mxu0 0.0
  %221 = vmatmul.mubr.f32.gmra.mrb[0].mxu0 %v61
  %v222 = vpop.f32.mrb[0].mxu0
  %v223 = vadd.f32 %v52, %v222
  %v224 = vpop.f32.mrb[0].mxu0
  %v225 = vadd.f32 %v52, %v224
  %226 = vmatprep.mubr.f32.mxu0 0.0
  %227 = vmatmul.mubr.f32.gmra.mrb[0].mxu0 %v64
  %v228 = vpop.f32.mrb[0].mxu0
  %v229 = vadd.f32 %v57, %v228
  %v230 = vpop.f32.mrb[0].mxu0
  %v231 = vadd.f32 %v57, %v230
  %232 = vdwg.mxu0
  %v233 = vld [vmem:[%s3] sm:$0xff]
  %v234 = vld [vmem:[%s3 + $0x8] sm:$0xff]
  %v235 = vld [vmem:[%s3 + $0x10] sm:$0xff]
  %v236 = vld [vmem:[%s3 + $0x18] sm:$0xff]
  %v237 = vld [vmem:[%s3 + $0x20] sm:$0xff]
  %v238 = vld [vmem:[%s3 + $0x28] sm:$0xff]
  %v239 = vld [vmem:[%s3 + $0x30] sm:$0xff]
  %v240 = vld [vmem:[%s3 + $0x38] sm:$0xff]
  %v241 = vld [vmem:[%s3 + $0x40] sm:$0xff]
  %v242 = vld [vmem:[%s3 + $0x48] sm:$0xff]
  %v243 = vld [vmem:[%s3 + $0x50] sm:$0xff]
  %v244 = vld [vmem:[%s3 + $0x58] sm:$0xff]
  %v245 = vld [vmem:[%s3 + $0x60] sm:$0xff]
  %v246 = vld [vmem:[%s3 + $0x68] sm:$0xff]
  %v247 = vld [vmem:[%s3 + $0x70] sm:$0xff]
  %v248 = vld [vmem:[%s3 + $0x78] sm:$0xff]
  %v249 = vld [vmem:[%s3 + $0x80] sm:$0xff]
  %v250 = vld [vmem:[%s3 + $0x88] sm:$0xff]
  %v251 = vld [vmem:[%s3 + $0x90] sm:$0xff]
  %v252 = vld [vmem:[%s3 + $0x98] sm:$0xff]
  %v253 = vld [vmem:[%s3 + $0xa0] sm:$0xff]
  %v254 = vld [vmem:[%s3 + $0xa8] sm:$0xff]
  %v255 = vld [vmem:[%s3 + $0xb0] sm:$0xff]
  %v256 = vld [vmem:[%s3 + $0xb8] sm:$0xff]
  %v257 = vld [vmem:[%s3 + $0xc0] sm:$0xff]
  %v258 = vld [vmem:[%s3 + $0xc8] sm:$0xff]
  %v259 = vld [vmem:[%s3 + $0xd0] sm:$0xff]
  %v260 = vld [vmem:[%s3 + $0xd8] sm:$0xff]
  %v261 = vld [vmem:[%s3 + $0xe0] sm:$0xff]
  %v262 = vld [vmem:[%s3 + $0xe8] sm:$0xff]
  %v263 = vld [vmem:[%s3 + $0xf0] sm:$0xff]
  %v264 = vld [vmem:[%s3 + $0xf8] sm:$0xff]
  %265 = vmatprep.subr.mxu0 0.0
  %266 = vmatpush1.msra.mxu0 %v233
  %267 = vmatprep.subr.mxu0 0.0
  %268 = vmatpush1.msra.mxu0 %v234
  %269 = vmatprep.subr.mxu0 0.0
  %270 = vmatpush1.msra.mxu0 %v235
  %271 = vmatprep.subr.mxu0 0.0
  %272 = vmatpush1.msra.mxu0 %v236
  %273 = vmatprep.subr.mxu0 0.0
  %274 = vmatpush1.msra.mxu0 %v237
  %275 = vmatprep.subr.mxu0 0.0
  %276 = vmatpush1.msra.mxu0 %v238
  %277 = vmatprep.subr.mxu0 0.0
  %278 = vmatpush1.msra.mxu0 %v239
  %279 = vmatprep.subr.mxu0 0.0
  %280 = vmatpush1.msra.mxu0 %v240
  %281 = vmatprep.subr.mxu0 0.0
  %282 = vmatpush1.msra.mxu0 %v241
  %283 = vmatprep.subr.mxu0 0.0
  %284 = vmatpush1.msra.mxu0 %v242
  %285 = vmatprep.subr.mxu0 0.0
  %286 = vmatpush1.msra.mxu0 %v243
  %287 = vmatprep.subr.mxu0 0.0
  %288 = vmatpush1.msra.mxu0 %v244
  %289 = vmatprep.subr.mxu0 0.0
  %290 = vmatpush1.msra.mxu0 %v245
  %291 = vmatprep.subr.mxu0 0.0
  %292 = vmatpush1.msra.mxu0 %v246
  %293 = vmatprep.subr.mxu0 0.0
  %294 = vmatpush1.msra.mxu0 %v247
  %295 = vmatprep.subr.mxu0 0.0
  %296 = vmatpush1.msra.mxu0 %v248
  %297 = vmatprep.subr.mxu0 0.0
  %298 = vmatpush1.msra.mxu0 %v249
  %299 = vmatprep.subr.mxu0 0.0
  %300 = vmatpush1.msra.mxu0 %v250
  %301 = vmatprep.subr.mxu0 0.0
  %302 = vmatpush1.msra.mxu0 %v251
  %303 = vmatprep.subr.mxu0 0.0
  %304 = vmatpush1.msra.mxu0 %v252
  %305 = vmatprep.subr.mxu0 0.0
  %306 = vmatpush1.msra.mxu0 %v253
  %307 = vmatprep.subr.mxu0 0.0
  %308 = vmatpush1.msra.mxu0 %v254
  %309 = vmatprep.subr.mxu0 0.0
  %310 = vmatpush1.msra.mxu0 %v255
  %311 = vmatprep.subr.mxu0 0.0
  %312 = vmatpush1.msra.mxu0 %v256
  %313 = vmatprep.subr.mxu0 0.0
  %314 = vmatpush1.msra.mxu0 %v257
  %315 = vmatprep.subr.mxu0 0.0
  %316 = vmatpush1.msra.mxu0 %v258
  %317 = vmatprep.subr.mxu0 0.0
  %318 = vmatpush1.msra.mxu0 %v259
  %319 = vmatprep.subr.mxu0 0.0
  %320 = vmatpush1.msra.mxu0 %v260
  %321 = vmatprep.subr.mxu0 0.0
  %322 = vmatpush1.msra.mxu0 %v261
  %323 = vmatprep.subr.mxu0 0.0
  %324 = vmatpush1.msra.mxu0 %v262
  %325 = vmatprep.subr.mxu0 0.0
  %326 = vmatpush1.msra.mxu0 %v263
  %327 = vmatprep.subr.mxu0 0.0
  %328 = vmatpush1.msra.mxu0 %v264
  %329 = vmatprep.mubr.f32.mxu0 %v148
  %330 = vmatmul.mubr.f32.gmra.mrb[0].mxu0 %v146
  %v331 = vpop.f32.mrb[0].mxu0
  %v332 = vadd.f32 0.0, %v331
  %v333 = vpop.f32.mrb[0].mxu0
  %334 = vmatprep.mubr.f32.mxu0 %v154
  %335 = vmatmul.mubr.f32.gmra.mrb[0].mxu0 %v152
  %v336 = vpop.f32.mrb[0].mxu0
  %v337 = vadd.f32 0.0, %v336
  %v338 = vpop.f32.mrb[0].mxu0
  %339 = vdwg.mxu0
  %v340 = vld [vmem:[%s4] sm:$0xff]
  %v341 = vld [vmem:[%s4 + $0x8] sm:$0xff]
  %v342 = vld [vmem:[%s4 + $0x10] sm:$0xff]
  %v343 = vld [vmem:[%s4 + $0x18] sm:$0xff]
  %s344 = scalar_lea.vmem %s3, 256
  %v345 = vld [vmem:[%s344] sm:$0xff]
  %v346 = vld [vmem:[%s344 + $0x8] sm:$0xff]
  %v347 = vld [vmem:[%s344 + $0x10] sm:$0xff]
  %v348 = vld [vmem:[%s344 + $0x18] sm:$0xff]
  %v349 = vld [vmem:[%s344 + $0x20] sm:$0xff]
  %v350 = vld [vmem:[%s344 + $0x28] sm:$0xff]
  %v351 = vld [vmem:[%s344 + $0x30] sm:$0xff]
  %v352 = vld [vmem:[%s344 + $0x38] sm:$0xff]
  %v353 = vld [vmem:[%s344 + $0x40] sm:$0xff]
  %v354 = vld [vmem:[%s344 + $0x48] sm:$0xff]
  %v355 = vld [vmem:[%s344 + $0x50] sm:$0xff]
  %v356 = vld [vmem:[%s344 + $0x58] sm:$0xff]
  %v357 = vld [vmem:[%s344 + $0x60] sm:$0xff]
  %v358 = vld [vmem:[%s344 + $0x68] sm:$0xff]
  %v359 = vld [vmem:[%s344 + $0x70] sm:$0xff]
  %v360 = vld [vmem:[%s344 + $0x78] sm:$0xff]
  %v361 = vld [vmem:[%s344 + $0x80] sm:$0xff]
  %v362 = vld [vmem:[%s344 + $0x88] sm:$0xff]
  %v363 = vld [vmem:[%s344 + $0x90] sm:$0xff]
  %v364 = vld [vmem:[%s344 + $0x98] sm:$0xff]
  %v365 = vld [vmem:[%s344 + $0xa0] sm:$0xff]
  %v366 = vld [vmem:[%s344 + $0xa8] sm:$0xff]
  %v367 = vld [vmem:[%s344 + $0xb0] sm:$0xff]
  %v368 = vld [vmem:[%s344 + $0xb8] sm:$0xff]
  %v369 = vld [vmem:[%s344 + $0xc0] sm:$0xff]
  %v370 = vld [vmem:[%s344 + $0xc8] sm:$0xff]
  %v371 = vld [vmem:[%s344 + $0xd0] sm:$0xff]
  %v372 = vld [vmem:[%s344 + $0xd8] sm:$0xff]
  %v373 = vld [vmem:[%s344 + $0xe0] sm:$0xff]
  %v374 = vld [vmem:[%s344 + $0xe8] sm:$0xff]
  %v375 = vld [vmem:[%s344 + $0xf0] sm:$0xff]
  %v376 = vld [vmem:[%s344 + $0xf8] sm:$0xff]
  %377 = vmatprep.subr.mxu0 0.0
  %378 = vmatpush1.msra.mxu0 %v345
  %379 = vmatprep.subr.mxu0 0.0
  %380 = vmatpush1.msra.mxu0 %v346
  %381 = vmatprep.subr.mxu0 0.0
  %382 = vmatpush1.msra.mxu0 %v347
  %383 = vmatprep.subr.mxu0 0.0
  %384 = vmatpush1.msra.mxu0 %v348
  %385 = vmatprep.subr.mxu0 0.0
  %386 = vmatpush1.msra.mxu0 %v349
  %387 = vmatprep.subr.mxu0 0.0
  %388 = vmatpush1.msra.mxu0 %v350
  %389 = vmatprep.subr.mxu0 0.0
  %390 = vmatpush1.msra.mxu0 %v351
  %391 = vmatprep.subr.mxu0 0.0
  %392 = vmatpush1.msra.mxu0 %v352
  %393 = vmatprep.subr.mxu0 0.0
  %394 = vmatpush1.msra.mxu0 %v353
  %395 = vmatprep.subr.mxu0 0.0
  %396 = vmatpush1.msra.mxu0 %v354
  %397 = vmatprep.subr.mxu0 0.0
  %398 = vmatpush1.msra.mxu0 %v355
  %399 = vmatprep.subr.mxu0 0.0
  %400 = vmatpush1.msra.mxu0 %v356
  %401 = vmatprep.subr.mxu0 0.0
  %402 = vmatpush1.msra.mxu0 %v357
  %403 = vmatprep.subr.mxu0 0.0
  %404 = vmatpush1.msra.mxu0 %v358
  %405 = vmatprep.subr.mxu0 0.0
  %406 = vmatpush1.msra.mxu0 %v359
  %407 = vmatprep.subr.mxu0 0.0
  %408 = vmatpush1.msra.mxu0 %v360
  %409 = vmatprep.subr.mxu0 0.0
  %410 = vmatpush1.msra.mxu0 %v361
  %411 = vmatprep.subr.mxu0 0.0
  %412 = vmatpush1.msra.mxu0 %v362
  %413 = vmatprep.subr.mxu0 0.0
  %414 = vmatpush1.msra.mxu0 %v363
  %415 = vmatprep.subr.mxu0 0.0
  %416 = vmatpush1.msra.mxu0 %v364
  %417 = vmatprep.subr.mxu0 0.0
  %418 = vmatpush1.msra.mxu0 %v365
  %419 = vmatprep.subr.mxu0 0.0
  %420 = vmatpush1.msra.mxu0 %v366
  %421 = vmatprep.subr.mxu0 0.0
  %422 = vmatpush1.msra.mxu0 %v367
  %423 = vmatprep.subr.mxu0 0.0
  %424 = vmatpush1.msra.mxu0 %v368
  %425 = vmatprep.subr.mxu0 0.0
  %426 = vmatpush1.msra.mxu0 %v369
  %427 = vmatprep.subr.mxu0 0.0
  %428 = vmatpush1.msra.mxu0 %v370
  %429 = vmatprep.subr.mxu0 0.0
  %430 = vmatpush1.msra.mxu0 %v371
  %431 = vmatprep.subr.mxu0 0.0
  %432 = vmatpush1.msra.mxu0 %v372
  %433 = vmatprep.subr.mxu0 0.0
  %434 = vmatpush1.msra.mxu0 %v373
  %435 = vmatprep.subr.mxu0 0.0
  %436 = vmatpush1.msra.mxu0 %v374
  %437 = vmatprep.subr.mxu0 0.0
  %438 = vmatpush1.msra.mxu0 %v375
  %439 = vmatprep.subr.mxu0 0.0
  %440 = vmatpush1.msra.mxu0 %v376
  %441 = vmatprep.mubr.f32.mxu0 %v148
  %442 = vmatmul.mubr.f32.gmra.mrb[0].mxu0 %v146
  %v443 = vpop.f32.mrb[0].mxu0
  %v444 = vadd.f32 0.0, %v443
  %v445 = vpop.f32.mrb[0].mxu0
  %446 = vmatprep.mubr.f32.mxu0 %v154
  %447 = vmatmul.mubr.f32.gmra.mrb[0].mxu0 %v152
  %v448 = vpop.f32.mrb[0].mxu0
  %v449 = vadd.f32 0.0, %v448
  %v450 = vpop.f32.mrb[0].mxu0
  %451 = vdwg.mxu0
  %s452 = scalar_lea.vmem %s4, 32
  %v453 = vld [vmem:[%s452] sm:$0xff]
  %v454 = vld [vmem:[%s452 + $0x8] sm:$0xff]
  %v455 = vld [vmem:[%s452 + $0x10] sm:$0xff]
  %v456 = vld [vmem:[%s452 + $0x18] sm:$0xff]
  %vm457 = vcmask 130048
  %v459 = vsel %vm457, %v453, 0
  %v462 = vsel %vm457, %v454, 0
  %v465 = vsel %vm457, %v455, 0
  %v468 = vsel %vm457, %v456, 0
  %470 = vmatprep.subr.mxu0 0.0
  %471 = vmatpush1.msra.mxu0 %v444
  %472 = vmatprep.subr.mxu0 0.0
  %473 = vmatpush1.msra.mxu0 %v449
  %474 = vmatprep.subr.mxu0 0.0
  %475 = vmatpush1.msra.mxu0 0.0
  %476 = vmatprep.subr.mxu0 0.0
  %477 = vmatpush1.msra.mxu0 0.0
  %478 = vmatprep.subr.mxu0 0.0
  %479 = vmatpush1.msra.mxu0 0.0
  %480 = vmatprep.subr.mxu0 0.0
  %481 = vmatpush1.msra.mxu0 0.0
  %482 = vmatprep.subr.mxu0 0.0
  %483 = vmatpush1.msra.mxu0 0.0
  %484 = vmatprep.subr.mxu0 0.0
  %485 = vmatpush1.msra.mxu0 0.0
  %486 = vmatprep.subr.mxu0 0.0
  %487 = vmatpush1.msra.mxu0 0.0
  %488 = vmatprep.subr.mxu0 0.0
  %489 = vmatpush1.msra.mxu0 0.0
  %490 = vmatprep.subr.mxu0 0.0
  %491 = vmatpush1.msra.mxu0 0.0
  %492 = vmatprep.subr.mxu0 0.0
  %493 = vmatpush1.msra.mxu0 0.0
  %494 = vmatprep.subr.mxu0 0.0
  %495 = vmatpush1.msra.mxu0 0.0
  %496 = vmatprep.subr.mxu0 0.0
  %497 = vmatpush1.msra.mxu0 0.0
  %498 = vmatprep.subr.mxu0 0.0
  %499 = vmatpush1.msra.mxu0 0.0
  %500 = vmatprep.subr.mxu0 0.0
  %501 = vmatpush1.msra.mxu0 0.0
  %502 = vmatprep.subr.mxu0 0.0
  %503 = vmatpush1.msra.mxu0 0.0
  %504 = vmatprep.subr.mxu0 0.0
  %505 = vmatpush1.msra.mxu0 0.0
  %506 = vmatprep.subr.mxu0 0.0
  %507 = vmatpush1.msra.mxu0 0.0
  %508 = vmatprep.subr.mxu0 0.0
  %509 = vmatpush1.msra.mxu0 0.0
  %510 = vmatprep.subr.mxu0 0.0
  %511 = vmatpush1.msra.mxu0 0.0
  %512 = vmatprep.subr.mxu0 0.0
  %513 = vmatpush1.msra.mxu0 0.0
  %514 = vmatprep.subr.mxu0 0.0
  %515 = vmatpush1.msra.mxu0 0.0
  %516 = vmatprep.subr.mxu0 0.0
  %517 = vmatpush1.msra.mxu0 0.0
  %518 = vmatprep.subr.mxu0 0.0
  %519 = vmatpush1.msra.mxu0 0.0
  %520 = vmatprep.subr.mxu0 0.0
  %521 = vmatpush1.msra.mxu0 0.0
  %522 = vmatprep.subr.mxu0 0.0
  %523 = vmatpush1.msra.mxu0 0.0
  %524 = vmatprep.subr.mxu0 0.0
  %525 = vmatpush1.msra.mxu0 0.0
  %526 = vmatprep.subr.mxu0 0.0
  %527 = vmatpush1.msra.mxu0 0.0
  %528 = vmatprep.subr.mxu0 0.0
  %529 = vmatpush1.msra.mxu0 0.0
  %530 = vmatprep.subr.mxu0 0.0
  %531 = vmatpush1.msra.mxu0 0.0
  %532 = vmatprep.subr.mxu0 0.0
  %533 = vmatpush1.msra.mxu0 0.0
  %534 = vmatprep.mubr.f32.mxu0 0.0
  %535 = vmatmul.mubr.f32.gmra.mrb[0].mxu0 %v459
  %v536 = vpop.f32.mrb[0].mxu0
  %v537 = vadd.f32 0.0, %v536
  %v538 = vpop.f32.mrb[0].mxu0
  %539 = vmatprep.mubr.f32.mxu0 0.0
  %540 = vmatmul.mubr.f32.gmra.mrb[0].mxu0 %v462
  %v541 = vpop.f32.mrb[0].mxu0
  %v542 = vadd.f32 0.0, %v541
  %v543 = vpop.f32.mrb[0].mxu0
  %544 = vmatprep.mubr.f32.mxu0 0.0
  %545 = vmatmul.mubr.f32.gmra.mrb[0].mxu0 %v465
  %v546 = vpop.f32.mrb[0].mxu0
  %v547 = vadd.f32 0.0, %v546
  %v548 = vpop.f32.mrb[0].mxu0
  %549 = vmatprep.mubr.f32.mxu0 0.0
  %550 = vmatmul.mubr.f32.gmra.mrb[0].mxu0 %v468
  %v551 = vpop.f32.mrb[0].mxu0
  %v552 = vadd.f32 0.0, %v551
  %v553 = vpop.f32.mrb[0].mxu0
  %554 = vdwg.mxu0
  %v556 = vsel %vm457, %v340, 0
  %v559 = vsel %vm457, %v341, 0
  %v562 = vsel %vm457, %v342, 0
  %v565 = vsel %vm457, %v343, 0
  %567 = vmatprep.subr.mxu0 0.0
  %568 = vmatpush1.msra.mxu0 %v332
  %569 = vmatprep.subr.mxu0 0.0
  %570 = vmatpush1.msra.mxu0 %v337
  %571 = vmatprep.subr.mxu0 0.0
  %572 = vmatpush1.msra.mxu0 0.0
  %573 = vmatprep.subr.mxu0 0.0
  %574 = vmatpush1.msra.mxu0 0.0
  %575 = vmatprep.subr.mxu0 0.0
  %576 = vmatpush1.msra.mxu0 0.0
  %577 = vmatprep.subr.mxu0 0.0
  %578 = vmatpush1.msra.mxu0 0.0
  %579 = vmatprep.subr.mxu0 0.0
  %580 = vmatpush1.msra.mxu0 0.0
  %581 = vmatprep.subr.mxu0 0.0
  %582 = vmatpush1.msra.mxu0 0.0
  %583 = vmatprep.subr.mxu0 0.0
  %584 = vmatpush1.msra.mxu0 0.0
  %585 = vmatprep.subr.mxu0 0.0
  %586 = vmatpush1.msra.mxu0 0.0
  %587 = vmatprep.subr.mxu0 0.0
  %588 = vmatpush1.msra.mxu0 0.0
  %589 = vmatprep.subr.mxu0 0.0
  %590 = vmatpush1.msra.mxu0 0.0
  %591 = vmatprep.subr.mxu0 0.0
  %592 = vmatpush1.msra.mxu0 0.0
  %593 = vmatprep.subr.mxu0 0.0
  %594 = vmatpush1.msra.mxu0 0.0
  %595 = vmatprep.subr.mxu0 0.0
  %596 = vmatpush1.msra.mxu0 0.0
  %597 = vmatprep.subr.mxu0 0.0
  %598 = vmatpush1.msra.mxu0 0.0
  %599 = vmatprep.subr.mxu0 0.0
  %600 = vmatpush1.msra.mxu0 0.0
  %601 = vmatprep.subr.mxu0 0.0
  %602 = vmatpush1.msra.mxu0 0.0
  %603 = vmatprep.subr.mxu0 0.0
  %604 = vmatpush1.msra.mxu0 0.0
  %605 = vmatprep.subr.mxu0 0.0
  %606 = vmatpush1.msra.mxu0 0.0
  %607 = vmatprep.subr.mxu0 0.0
  %608 = vmatpush1.msra.mxu0 0.0
  %609 = vmatprep.subr.mxu0 0.0
  %610 = vmatpush1.msra.mxu0 0.0
  %611 = vmatprep.subr.mxu0 0.0
  %612 = vmatpush1.msra.mxu0 0.0
  %613 = vmatprep.subr.mxu0 0.0
  %614 = vmatpush1.msra.mxu0 0.0
  %615 = vmatprep.subr.mxu0 0.0
  %616 = vmatpush1.msra.mxu0 0.0
  %617 = vmatprep.subr.mxu0 0.0
  %618 = vmatpush1.msra.mxu0 0.0
  %619 = vmatprep.subr.mxu0 0.0
  %620 = vmatpush1.msra.mxu0 0.0
  %621 = vmatprep.subr.mxu0 0.0
  %622 = vmatpush1.msra.mxu0 0.0
  %623 = vmatprep.subr.mxu0 0.0
  %624 = vmatpush1.msra.mxu0 0.0
  %625 = vmatprep.subr.mxu0 0.0
  %626 = vmatpush1.msra.mxu0 0.0
  %627 = vmatprep.subr.mxu0 0.0
  %628 = vmatpush1.msra.mxu0 0.0
  %629 = vmatprep.subr.mxu0 0.0
  %630 = vmatpush1.msra.mxu0 0.0
  %631 = vmatprep.mubr.f32.mxu0 0.0
  %632 = vmatmul.mubr.f32.gmra.mrb[0].mxu0 %v556
  %v633 = vpop.f32.mrb[0].mxu0
  %v634 = vadd.f32 %v537, %v633
  %v635 = vpop.f32.mrb[0].mxu0
  %636 = vmatprep.mubr.f32.mxu0 0.0
  %637 = vmatmul.mubr.f32.gmra.mrb[0].mxu0 %v559
  %v638 = vpop.f32.mrb[0].mxu0
  %v639 = vadd.f32 %v542, %v638
  %v640 = vpop.f32.mrb[0].mxu0
  %641 = vmatprep.mubr.f32.mxu0 0.0
  %642 = vmatmul.mubr.f32.gmra.mrb[0].mxu0 %v562
  %v643 = vpop.f32.mrb[0].mxu0
  %v644 = vadd.f32 %v547, %v643
  %v645 = vpop.f32.mrb[0].mxu0
  %646 = vmatprep.mubr.f32.mxu0 0.0
  %647 = vmatmul.mubr.f32.gmra.mrb[0].mxu0 %v565
  %v648 = vpop.f32.mrb[0].mxu0
  %v649 = vadd.f32 %v552, %v648
  %v650 = vpop.f32.mrb[0].mxu0
  %651 = vdwg.mxu0
  %s652 = scalar_lea.vmem %s3, 512
  %v653 = vld [vmem:[%s652] sm:$0xff]
  %v654 = vld [vmem:[%s652 + $0x8] sm:$0xff]
  %v655 = vld [vmem:[%s652 + $0x10] sm:$0xff]
  %v656 = vld [vmem:[%s652 + $0x18] sm:$0xff]
  %v657 = vld [vmem:[%s652 + $0x20] sm:$0xff]
  %v658 = vld [vmem:[%s652 + $0x28] sm:$0xff]
  %v659 = vld [vmem:[%s652 + $0x30] sm:$0xff]
  %v660 = vld [vmem:[%s652 + $0x38] sm:$0xff]
  %v661 = vld [vmem:[%s652 + $0x40] sm:$0xff]
  %v662 = vld [vmem:[%s652 + $0x48] sm:$0xff]
  %v663 = vld [vmem:[%s652 + $0x50] sm:$0xff]
  %v664 = vld [vmem:[%s652 + $0x58] sm:$0xff]
  %v665 = vld [vmem:[%s652 + $0x60] sm:$0xff]
  %v666 = vld [vmem:[%s652 + $0x68] sm:$0xff]
  %v667 = vld [vmem:[%s652 + $0x70] sm:$0xff]
  %v668 = vld [vmem:[%s652 + $0x78] sm:$0xff]
  %v669 = vld [vmem:[%s652 + $0x80] sm:$0xff]
  %v670 = vld [vmem:[%s652 + $0x88] sm:$0xff]
  %v671 = vld [vmem:[%s652 + $0x90] sm:$0xff]
  %v672 = vld [vmem:[%s652 + $0x98] sm:$0xff]
  %v673 = vld [vmem:[%s652 + $0xa0] sm:$0xff]
  %v674 = vld [vmem:[%s652 + $0xa8] sm:$0xff]
  %v675 = vld [vmem:[%s652 + $0xb0] sm:$0xff]
  %v676 = vld [vmem:[%s652 + $0xb8] sm:$0xff]
  %v677 = vld [vmem:[%s652 + $0xc0] sm:$0xff]
  %v678 = vld [vmem:[%s652 + $0xc8] sm:$0xff]
  %v679 = vld [vmem:[%s652 + $0xd0] sm:$0xff]
  %v680 = vld [vmem:[%s652 + $0xd8] sm:$0xff]
  %v681 = vld [vmem:[%s652 + $0xe0] sm:$0xff]
  %v682 = vld [vmem:[%s652 + $0xe8] sm:$0xff]
  %v683 = vld [vmem:[%s652 + $0xf0] sm:$0xff]
  %v684 = vld [vmem:[%s652 + $0xf8] sm:$0xff]
  %685 = vmatprep.subr.mxu0 0.0
  %686 = vmatpush1.msra.mxu0 %v653
  %687 = vmatprep.subr.mxu0 0.0
  %688 = vmatpush1.msra.mxu0 %v654
  %689 = vmatprep.subr.mxu0 0.0
  %690 = vmatpush1.msra.mxu0 %v655
  %691 = vmatprep.subr.mxu0 0.0
  %692 = vmatpush1.msra.mxu0 %v656
  %693 = vmatprep.subr.mxu0 0.0
  %694 = vmatpush1.msra.mxu0 %v657
  %695 = vmatprep.subr.mxu0 0.0
  %696 = vmatpush1.msra.mxu0 %v658
  %697 = vmatprep.subr.mxu0 0.0
  %698 = vmatpush1.msra.mxu0 %v659
  %699 = vmatprep.subr.mxu0 0.0
  %700 = vmatpush1.msra.mxu0 %v660
  %701 = vmatprep.subr.mxu0 0.0
  %702 = vmatpush1.msra.mxu0 %v661
  %703 = vmatprep.subr.mxu0 0.0
  %704 = vmatpush1.msra.mxu0 %v662
  %705 = vmatprep.subr.mxu0 0.0
  %706 = vmatpush1.msra.mxu0 %v663
  %707 = vmatprep.subr.mxu0 0.0
  %708 = vmatpush1.msra.mxu0 %v664
  %709 = vmatprep.subr.mxu0 0.0
  %710 = vmatpush1.msra.mxu0 %v665
  %711 = vmatprep.subr.mxu0 0.0
  %712 = vmatpush1.msra.mxu0 %v666
  %713 = vmatprep.subr.mxu0 0.0
  %714 = vmatpush1.msra.mxu0 %v667
  %715 = vmatprep.subr.mxu0 0.0
  %716 = vmatpush1.msra.mxu0 %v668
  %717 = vmatprep.subr.mxu0 0.0
  %718 = vmatpush1.msra.mxu0 %v669
  %719 = vmatprep.subr.mxu0 0.0
  %720 = vmatpush1.msra.mxu0 %v670
  %721 = vmatprep.subr.mxu0 0.0
  %722 = vmatpush1.msra.mxu0 %v671
  %723 = vmatprep.subr.mxu0 0.0
  %724 = vmatpush1.msra.mxu0 %v672
  %725 = vmatprep.subr.mxu0 0.0
  %726 = vmatpush1.msra.mxu0 %v673
  %727 = vmatprep.subr.mxu0 0.0
  %728 = vmatpush1.msra.mxu0 %v674
  %729 = vmatprep.subr.mxu0 0.0
  %730 = vmatpush1.msra.mxu0 %v675
  %731 = vmatprep.subr.mxu0 0.0
  %732 = vmatpush1.msra.mxu0 %v676
  %733 = vmatprep.subr.mxu0 0.0
  %734 = vmatpush1.msra.mxu0 %v677
  %735 = vmatprep.subr.mxu0 0.0
  %736 = vmatpush1.msra.mxu0 %v678
  %737 = vmatprep.subr.mxu0 0.0
  %738 = vmatpush1.msra.mxu0 %v679
  %739 = vmatprep.subr.mxu0 0.0
  %740 = vmatpush1.msra.mxu0 %v680
  %741 = vmatprep.subr.mxu0 0.0
  %742 = vmatpush1.msra.mxu0 %v681
  %743 = vmatprep.subr.mxu0 0.0
  %744 = vmatpush1.msra.mxu0 %v682
  %745 = vmatprep.subr.mxu0 0.0
  %746 = vmatpush1.msra.mxu0 %v683
  %747 = vmatprep.subr.mxu0 0.0
  %748 = vmatpush1.msra.mxu0 %v684
  %749 = vmatprep.mubr.f32.mxu0 %v148
  %750 = vmatmul.mubr.f32.gmra.mrb[0].mxu0 %v146
  %v751 = vpop.f32.mrb[0].mxu0
  %v752 = vadd.f32 0.0, %v751
  %v753 = vpop.f32.mrb[0].mxu0
  %754 = vmatprep.mubr.f32.mxu0 %v154
  %755 = vmatmul.mubr.f32.gmra.mrb[0].mxu0 %v152
  %v756 = vpop.f32.mrb[0].mxu0
  %v757 = vadd.f32 0.0, %v756
  %v758 = vpop.f32.mrb[0].mxu0
  %759 = vdwg.mxu0
  %s760 = scalar_lea.vmem %s4, 64
  %v761 = vld [vmem:[%s760] sm:$0xff]
  %v762 = vld [vmem:[%s760 + $0x8] sm:$0xff]
  %v763 = vld [vmem:[%s760 + $0x10] sm:$0xff]
  %v764 = vld [vmem:[%s760 + $0x18] sm:$0xff]
  %v766 = vsel %vm457, %v761, 0
  %v769 = vsel %vm457, %v762, 0
  %v772 = vsel %vm457, %v763, 0
  %v775 = vsel %vm457, %v764, 0
  %777 = vmatprep.subr.mxu0 0.0
  %778 = vmatpush1.msra.mxu0 %v752
  %779 = vmatprep.subr.mxu0 0.0
  %780 = vmatpush1.msra.mxu0 %v757
  %781 = vmatprep.subr.mxu0 0.0
  %782 = vmatpush1.msra.mxu0 0.0
  %783 = vmatprep.subr.mxu0 0.0
  %784 = vmatpush1.msra.mxu0 0.0
  %785 = vmatprep.subr.mxu0 0.0
  %786 = vmatpush1.msra.mxu0 0.0
  %787 = vmatprep.subr.mxu0 0.0
  %788 = vmatpush1.msra.mxu0 0.0
  %789 = vmatprep.subr.mxu0 0.0
  %790 = vmatpush1.msra.mxu0 0.0
  %791 = vmatprep.subr.mxu0 0.0
  %792 = vmatpush1.msra.mxu0 0.0
  %793 = vmatprep.subr.mxu0 0.0
  %794 = vmatpush1.msra.mxu0 0.0
  %795 = vmatprep.subr.mxu0 0.0
  %796 = vmatpush1.msra.mxu0 0.0
  %797 = vmatprep.subr.mxu0 0.0
  %798 = vmatpush1.msra.mxu0 0.0
  %799 = vmatprep.subr.mxu0 0.0
  %800 = vmatpush1.msra.mxu0 0.0
  %801 = vmatprep.subr.mxu0 0.0
  %802 = vmatpush1.msra.mxu0 0.0
  %803 = vmatprep.subr.mxu0 0.0
  %804 = vmatpush1.msra.mxu0 0.0
  %805 = vmatprep.subr.mxu0 0.0
  %806 = vmatpush1.msra.mxu0 0.0
  %807 = vmatprep.subr.mxu0 0.0
  %808 = vmatpush1.msra.mxu0 0.0
  %809 = vmatprep.subr.mxu0 0.0
  %810 = vmatpush1.msra.mxu0 0.0
  %811 = vmatprep.subr.mxu0 0.0
  %812 = vmatpush1.msra.mxu0 0.0
  %813 = vmatprep.subr.mxu0 0.0
  %814 = vmatpush1.msra.mxu0 0.0
  %815 = vmatprep.subr.mxu0 0.0
  %816 = vmatpush1.msra.mxu0 0.0
  %817 = vmatprep.subr.mxu0 0.0
  %818 = vmatpush1.msra.mxu0 0.0
  %819 = vmatprep.subr.mxu0 0.0
  %820 = vmatpush1.msra.mxu0 0.0
  %821 = vmatprep.subr.mxu0 0.0
  %822 = vmatpush1.msra.mxu0 0.0
  %823 = vmatprep.subr.mxu0 0.0
  %824 = vmatpush1.msra.mxu0 0.0
  %825 = vmatprep.subr.mxu0 0.0
  %826 = vmatpush1.msra.mxu0 0.0
  %827 = vmatprep.subr.mxu0 0.0
  %828 = vmatpush1.msra.mxu0 0.0
  %829 = vmatprep.subr.mxu0 0.0
  %830 = vmatpush1.msra.mxu0 0.0
  %831 = vmatprep.subr.mxu0 0.0
  %832 = vmatpush1.msra.mxu0 0.0
  %833 = vmatprep.subr.mxu0 0.0
  %834 = vmatpush1.msra.mxu0 0.0
  %835 = vmatprep.subr.mxu0 0.0
  %836 = vmatpush1.msra.mxu0 0.0
  %837 = vmatprep.subr.mxu0 0.0
  %838 = vmatpush1.msra.mxu0 0.0
  %839 = vmatprep.subr.mxu0 0.0
  %840 = vmatpush1.msra.mxu0 0.0
  %841 = vmatprep.mubr.f32.mxu0 0.0
  %842 = vmatmul.mubr.f32.gmra.mrb[0].mxu0 %v766
  %v843 = vpop.f32.mrb[0].mxu0
  %v844 = vadd.f32 0.0, %v843
  %v845 = vpop.f32.mrb[0].mxu0
  %846 = vmatprep.mubr.f32.mxu0 0.0
  %847 = vmatmul.mubr.f32.gmra.mrb[0].mxu0 %v769
  %v848 = vpop.f32.mrb[0].mxu0
  %v849 = vadd.f32 0.0, %v848
  %v850 = vpop.f32.mrb[0].mxu0
  %851 = vmatprep.mubr.f32.mxu0 0.0
  %852 = vmatmul.mubr.f32.gmra.mrb[0].mxu0 %v772
  %v853 = vpop.f32.mrb[0].mxu0
  %v854 = vadd.f32 0.0, %v853
  %v855 = vpop.f32.mrb[0].mxu0
  %856 = vmatprep.mubr.f32.mxu0 0.0
  %857 = vmatmul.mubr.f32.gmra.mrb[0].mxu0 %v775
  %v858 = vpop.f32.mrb[0].mxu0
  %v859 = vadd.f32 0.0, %v858
  %v860 = vpop.f32.mrb[0].mxu0
  %861 = vdwg.mxu0
  %v862 = vadd.f32 %v634, %v844
  %v863 = vadd.f32 %v639, %v849
  %v864 = vadd.f32 %v644, %v854
  %v865 = vadd.f32 %v649, %v859
  %s866 = scalar_lea.vmem %s3, 768
  %v867 = vld [vmem:[%s866] sm:$0xff]
  %v868 = vld [vmem:[%s866 + $0x8] sm:$0xff]
  %v869 = vld [vmem:[%s866 + $0x10] sm:$0xff]
  %v870 = vld [vmem:[%s866 + $0x18] sm:$0xff]
  %v871 = vld [vmem:[%s866 + $0x20] sm:$0xff]
  %v872 = vld [vmem:[%s866 + $0x28] sm:$0xff]
  %v873 = vld [vmem:[%s866 + $0x30] sm:$0xff]
  %v874 = vld [vmem:[%s866 + $0x38] sm:$0xff]
  %v875 = vld [vmem:[%s866 + $0x40] sm:$0xff]
  %v876 = vld [vmem:[%s866 + $0x48] sm:$0xff]
  %v877 = vld [vmem:[%s866 + $0x50] sm:$0xff]
  %v878 = vld [vmem:[%s866 + $0x58] sm:$0xff]
  %v879 = vld [vmem:[%s866 + $0x60] sm:$0xff]
  %v880 = vld [vmem:[%s866 + $0x68] sm:$0xff]
  %v881 = vld [vmem:[%s866 + $0x70] sm:$0xff]
  %v882 = vld [vmem:[%s866 + $0x78] sm:$0xff]
  %v883 = vld [vmem:[%s866 + $0x80] sm:$0xff]
  %v884 = vld [vmem:[%s866 + $0x88] sm:$0xff]
  %v885 = vld [vmem:[%s866 + $0x90] sm:$0xff]
  %v886 = vld [vmem:[%s866 + $0x98] sm:$0xff]
  %v887 = vld [vmem:[%s866 + $0xa0] sm:$0xff]
  %v888 = vld [vmem:[%s866 + $0xa8] sm:$0xff]
  %v889 = vld [vmem:[%s866 + $0xb0] sm:$0xff]
  %v890 = vld [vmem:[%s866 + $0xb8] sm:$0xff]
  %v891 = vld [vmem:[%s866 + $0xc0] sm:$0xff]
  %v892 = vld [vmem:[%s866 + $0xc8] sm:$0xff]
  %v893 = vld [vmem:[%s866 + $0xd0] sm:$0xff]
  %v894 = vld [vmem:[%s866 + $0xd8] sm:$0xff]
  %v895 = vld [vmem:[%s866 + $0xe0] sm:$0xff]
  %v896 = vld [vmem:[%s866 + $0xe8] sm:$0xff]
  %v897 = vld [vmem:[%s866 + $0xf0] sm:$0xff]
  %v898 = vld [vmem:[%s866 + $0xf8] sm:$0xff]
  %899 = vmatprep.subr.mxu0 0.0
  %900 = vmatpush1.msra.mxu0 %v867
  %901 = vmatprep.subr.mxu0 0.0
  %902 = vmatpush1.msra.mxu0 %v868
  %903 = vmatprep.subr.mxu0 0.0
  %904 = vmatpush1.msra.mxu0 %v869
  %905 = vmatprep.subr.mxu0 0.0
  %906 = vmatpush1.msra.mxu0 %v870
  %907 = vmatprep.subr.mxu0 0.0
  %908 = vmatpush1.msra.mxu0 %v871
  %909 = vmatprep.subr.mxu0 0.0
  %910 = vmatpush1.msra.mxu0 %v872
  %911 = vmatprep.subr.mxu0 0.0
  %912 = vmatpush1.msra.mxu0 %v873
  %913 = vmatprep.subr.mxu0 0.0
  %914 = vmatpush1.msra.mxu0 %v874
  %915 = vmatprep.subr.mxu0 0.0
  %916 = vmatpush1.msra.mxu0 %v875
  %917 = vmatprep.subr.mxu0 0.0
  %918 = vmatpush1.msra.mxu0 %v876
  %919 = vmatprep.subr.mxu0 0.0
  %920 = vmatpush1.msra.mxu0 %v877
  %921 = vmatprep.subr.mxu0 0.0
  %922 = vmatpush1.msra.mxu0 %v878
  %923 = vmatprep.subr.mxu0 0.0
  %924 = vmatpush1.msra.mxu0 %v879
  %925 = vmatprep.subr.mxu0 0.0
  %926 = vmatpush1.msra.mxu0 %v880
  %927 = vmatprep.subr.mxu0 0.0
  %928 = vmatpush1.msra.mxu0 %v881
  %929 = vmatprep.subr.mxu0 0.0
  %930 = vmatpush1.msra.mxu0 %v882
  %931 = vmatprep.subr.mxu0 0.0
  %932 = vmatpush1.msra.mxu0 %v883
  %933 = vmatprep.subr.mxu0 0.0
  %934 = vmatpush1.msra.mxu0 %v884
  %935 = vmatprep.subr.mxu0 0.0
  %936 = vmatpush1.msra.mxu0 %v885
  %937 = vmatprep.subr.mxu0 0.0
  %938 = vmatpush1.msra.mxu0 %v886
  %939 = vmatprep.subr.mxu0 0.0
  %940 = vmatpush1.msra.mxu0 %v887
  %941 = vmatprep.subr.mxu0 0.0
  %942 = vmatpush1.msra.mxu0 %v888
  %943 = vmatprep.subr.mxu0 0.0
  %944 = vmatpush1.msra.mxu0 %v889
  %945 = vmatprep.subr.mxu0 0.0
  %946 = vmatpush1.msra.mxu0 %v890
  %947 = vmatprep.subr.mxu0 0.0
  %948 = vmatpush1.msra.mxu0 %v891
  %949 = vmatprep.subr.mxu0 0.0
  %950 = vmatpush1.msra.mxu0 %v892
  %951 = vmatprep.subr.mxu0 0.0
  %952 = vmatpush1.msra.mxu0 %v893
  %953 = vmatprep.subr.mxu0 0.0
  %954 = vmatpush1.msra.mxu0 %v894
  %955 = vmatprep.subr.mxu0 0.0
  %956 = vmatpush1.msra.mxu0 %v895
  %957 = vmatprep.subr.mxu0 0.0
  %958 = vmatpush1.msra.mxu0 %v896
  %959 = vmatprep.subr.mxu0 0.0
  %960 = vmatpush1.msra.mxu0 %v897
  %961 = vmatprep.subr.mxu0 0.0
  %962 = vmatpush1.msra.mxu0 %v898
  %963 = vmatprep.mubr.f32.mxu0 %v148
  %964 = vmatmul.mubr.f32.gmra.mrb[0].mxu0 %v146
  %v965 = vpop.f32.mrb[0].mxu0
  %v966 = vadd.f32 0.0, %v965
  %v967 = vpop.f32.mrb[0].mxu0
  %968 = vmatprep.mubr.f32.mxu0 %v154
  %969 = vmatmul.mubr.f32.gmra.mrb[0].mxu0 %v152
  %v970 = vpop.f32.mrb[0].mxu0
  %v971 = vadd.f32 0.0, %v970
  %v972 = vpop.f32.mrb[0].mxu0
  %973 = vdwg.mxu0
  %s974 = scalar_lea.vmem %s4, 96
  %v975 = vld [vmem:[%s974] sm:$0xff]
  %v976 = vld [vmem:[%s974 + $0x8] sm:$0xff]
  %v977 = vld [vmem:[%s974 + $0x10] sm:$0xff]
  %v978 = vld [vmem:[%s974 + $0x18] sm:$0xff]
  %v980 = vsel %vm457, %v975, 0
  %v983 = vsel %vm457, %v976, 0
  %v986 = vsel %vm457, %v977, 0
  %v989 = vsel %vm457, %v978, 0
  %991 = vmatprep.subr.mxu0 0.0
  %992 = vmatpush1.msra.mxu0 %v966
  %993 = vmatprep.subr.mxu0 0.0
  %994 = vmatpush1.msra.mxu0 %v971
  %995 = vmatprep.subr.mxu0 0.0
  %996 = vmatpush1.msra.mxu0 0.0
  %997 = vmatprep.subr.mxu0 0.0
  %998 = vmatpush1.msra.mxu0 0.0
  %999 = vmatprep.subr.mxu0 0.0
  %1000 = vmatpush1.msra.mxu0 0.0
  %1001 = vmatprep.subr.mxu0 0.0
  %1002 = vmatpush1.msra.mxu0 0.0
  %1003 = vmatprep.subr.mxu0 0.0
  %1004 = vmatpush1.msra.mxu0 0.0
  %1005 = vmatprep.subr.mxu0 0.0
  %1006 = vmatpush1.msra.mxu0 0.0
  %1007 = vmatprep.subr.mxu0 0.0
  %1008 = vmatpush1.msra.mxu0 0.0
  %1009 = vmatprep.subr.mxu0 0.0
  %1010 = vmatpush1.msra.mxu0 0.0
  %1011 = vmatprep.subr.mxu0 0.0
  %1012 = vmatpush1.msra.mxu0 0.0
  %1013 = vmatprep.subr.mxu0 0.0
  %1014 = vmatpush1.msra.mxu0 0.0
  %1015 = vmatprep.subr.mxu0 0.0
  %1016 = vmatpush1.msra.mxu0 0.0
  %1017 = vmatprep.subr.mxu0 0.0
  %1018 = vmatpush1.msra.mxu0 0.0
  %1019 = vmatprep.subr.mxu0 0.0
  %1020 = vmatpush1.msra.mxu0 0.0
  %1021 = vmatprep.subr.mxu0 0.0
  %1022 = vmatpush1.msra.mxu0 0.0
  %1023 = vmatprep.subr.mxu0 0.0
  %1024 = vmatpush1.msra.mxu0 0.0
  %1025 = vmatprep.subr.mxu0 0.0
  %1026 = vmatpush1.msra.mxu0 0.0
  %1027 = vmatprep.subr.mxu0 0.0
  %1028 = vmatpush1.msra.mxu0 0.0
  %1029 = vmatprep.subr.mxu0 0.0
  %1030 = vmatpush1.msra.mxu0 0.0
  %1031 = vmatprep.subr.mxu0 0.0
  %1032 = vmatpush1.msra.mxu0 0.0
  %1033 = vmatprep.subr.mxu0 0.0
  %1034 = vmatpush1.msra.mxu0 0.0
  %1035 = vmatprep.subr.mxu0 0.0
  %1036 = vmatpush1.msra.mxu0 0.0
  %1037 = vmatprep.subr.mxu0 0.0
  %1038 = vmatpush1.msra.mxu0 0.0
  %1039 = vmatprep.subr.mxu0 0.0
  %1040 = vmatpush1.msra.mxu0 0.0
  %1041 = vmatprep.subr.mxu0 0.0
  %1042 = vmatpush1.msra.mxu0 0.0
  %1043 = vmatprep.subr.mxu0 0.0
  %1044 = vmatpush1.msra.mxu0 0.0
  %1045 = vmatprep.subr.mxu0 0.0
  %1046 = vmatpush1.msra.mxu0 0.0
  %1047 = vmatprep.subr.mxu0 0.0
  %1048 = vmatpush1.msra.mxu0 0.0
  %1049 = vmatprep.subr.mxu0 0.0
  %1050 = vmatpush1.msra.mxu0 0.0
  %1051 = vmatprep.subr.mxu0 0.0
  %1052 = vmatpush1.msra.mxu0 0.0
  %1053 = vmatprep.subr.mxu0 0.0
  %1054 = vmatpush1.msra.mxu0 0.0
  %1055 = vmatprep.mubr.f32.mxu0 0.0
  %1056 = vmatmul.mubr.f32.gmra.mrb[0].mxu0 %v980
  %v1057 = vpop.f32.mrb[0].mxu0
  %v1058 = vadd.f32 0.0, %v1057
  %v1059 = vpop.f32.mrb[0].mxu0
  %1060 = vmatprep.mubr.f32.mxu0 0.0
  %1061 = vmatmul.mubr.f32.gmra.mrb[0].mxu0 %v983
  %v1062 = vpop.f32.mrb[0].mxu0
  %v1063 = vadd.f32 0.0, %v1062
  %v1064 = vpop.f32.mrb[0].mxu0
  %1065 = vmatprep.mubr.f32.mxu0 0.0
  %1066 = vmatmul.mubr.f32.gmra.mrb[0].mxu0 %v986
  %v1067 = vpop.f32.mrb[0].mxu0
  %v1068 = vadd.f32 0.0, %v1067
  %v1069 = vpop.f32.mrb[0].mxu0
  %1070 = vmatprep.mubr.f32.mxu0 0.0
  %1071 = vmatmul.mubr.f32.gmra.mrb[0].mxu0 %v989
  %v1072 = vpop.f32.mrb[0].mxu0
  %v1073 = vadd.f32 0.0, %v1072
  %v1074 = vpop.f32.mrb[0].mxu0
  %1075 = vdwg.mxu0
  %v1076 = vadd.f32 %v862, %v1058
  %v1077 = vadd.f32 %v863, %v1063
  %v1078 = vadd.f32 %v864, %v1068
  %v1079 = vadd.f32 %v865, %v1073
  %s1080 = scalar_lea.vmem %s3, 1024
  %v1081 = vld [vmem:[%s1080] sm:$0xff]
  %v1082 = vld [vmem:[%s1080 + $0x8] sm:$0xff]
  %v1083 = vld [vmem:[%s1080 + $0x10] sm:$0xff]
  %v1084 = vld [vmem:[%s1080 + $0x18] sm:$0xff]
  %v1085 = vld [vmem:[%s1080 + $0x20] sm:$0xff]
  %v1086 = vld [vmem:[%s1080 + $0x28] sm:$0xff]
  %v1087 = vld [vmem:[%s1080 + $0x30] sm:$0xff]
  %v1088 = vld [vmem:[%s1080 + $0x38] sm:$0xff]
  %v1089 = vld [vmem:[%s1080 + $0x40] sm:$0xff]
  %v1090 = vld [vmem:[%s1080 + $0x48] sm:$0xff]
  %v1091 = vld [vmem:[%s1080 + $0x50] sm:$0xff]
  %v1092 = vld [vmem:[%s1080 + $0x58] sm:$0xff]
  %v1093 = vld [vmem:[%s1080 + $0x60] sm:$0xff]
  %v1094 = vld [vmem:[%s1080 + $0x68] sm:$0xff]
  %v1095 = vld [vmem:[%s1080 + $0x70] sm:$0xff]
  %v1096 = vld [vmem:[%s1080 + $0x78] sm:$0xff]
  %v1097 = vld [vmem:[%s1080 + $0x80] sm:$0xff]
  %v1098 = vld [vmem:[%s1080 + $0x88] sm:$0xff]
  %v1099 = vld [vmem:[%s1080 + $0x90] sm:$0xff]
  %v1100 = vld [vmem:[%s1080 + $0x98] sm:$0xff]
  %v1101 = vld [vmem:[%s1080 + $0xa0] sm:$0xff]
  %v1102 = vld [vmem:[%s1080 + $0xa8] sm:$0xff]
  %v1103 = vld [vmem:[%s1080 + $0xb0] sm:$0xff]
  %v1104 = vld [vmem:[%s1080 + $0xb8] sm:$0xff]
  %v1105 = vld [vmem:[%s1080 + $0xc0] sm:$0xff]
  %v1106 = vld [vmem:[%s1080 + $0xc8] sm:$0xff]
  %v1107 = vld [vmem:[%s1080 + $0xd0] sm:$0xff]
  %v1108 = vld [vmem:[%s1080 + $0xd8] sm:$0xff]
  %v1109 = vld [vmem:[%s1080 + $0xe0] sm:$0xff]
  %v1110 = vld [vmem:[%s1080 + $0xe8] sm:$0xff]
  %v1111 = vld [vmem:[%s1080 + $0xf0] sm:$0xff]
  %v1112 = vld [vmem:[%s1080 + $0xf8] sm:$0xff]
  %1113 = vmatprep.subr.mxu0 0.0
  %1114 = vmatpush1.msra.mxu0 %v1081
  %1115 = vmatprep.subr.mxu0 0.0
  %1116 = vmatpush1.msra.mxu0 %v1082
  %1117 = vmatprep.subr.mxu0 0.0
  %1118 = vmatpush1.msra.mxu0 %v1083
  %1119 = vmatprep.subr.mxu0 0.0
  %1120 = vmatpush1.msra.mxu0 %v1084
  %1121 = vmatprep.subr.mxu0 0.0
  %1122 = vmatpush1.msra.mxu0 %v1085
  %1123 = vmatprep.subr.mxu0 0.0
  %1124 = vmatpush1.msra.mxu0 %v1086
  %1125 = vmatprep.subr.mxu0 0.0
  %1126 = vmatpush1.msra.mxu0 %v1087
  %1127 = vmatprep.subr.mxu0 0.0
  %1128 = vmatpush1.msra.mxu0 %v1088
  %1129 = vmatprep.subr.mxu0 0.0
  %1130 = vmatpush1.msra.mxu0 %v1089
  %1131 = vmatprep.subr.mxu0 0.0
  %1132 = vmatpush1.msra.mxu0 %v1090
  %1133 = vmatprep.subr.mxu0 0.0
  %1134 = vmatpush1.msra.mxu0 %v1091
  %1135 = vmatprep.subr.mxu0 0.0
  %1136 = vmatpush1.msra.mxu0 %v1092
  %1137 = vmatprep.subr.mxu0 0.0
  %1138 = vmatpush1.msra.mxu0 %v1093
  %1139 = vmatprep.subr.mxu0 0.0
  %1140 = vmatpush1.msra.mxu0 %v1094
  %1141 = vmatprep.subr.mxu0 0.0
  %1142 = vmatpush1.msra.mxu0 %v1095
  %1143 = vmatprep.subr.mxu0 0.0
  %1144 = vmatpush1.msra.mxu0 %v1096
  %1145 = vmatprep.subr.mxu0 0.0
  %1146 = vmatpush1.msra.mxu0 %v1097
  %1147 = vmatprep.subr.mxu0 0.0
  %1148 = vmatpush1.msra.mxu0 %v1098
  %1149 = vmatprep.subr.mxu0 0.0
  %1150 = vmatpush1.msra.mxu0 %v1099
  %1151 = vmatprep.subr.mxu0 0.0
  %1152 = vmatpush1.msra.mxu0 %v1100
  %1153 = vmatprep.subr.mxu0 0.0
  %1154 = vmatpush1.msra.mxu0 %v1101
  %1155 = vmatprep.subr.mxu0 0.0
  %1156 = vmatpush1.msra.mxu0 %v1102
  %1157 = vmatprep.subr.mxu0 0.0
  %1158 = vmatpush1.msra.mxu0 %v1103
  %1159 = vmatprep.subr.mxu0 0.0
  %1160 = vmatpush1.msra.mxu0 %v1104
  %1161 = vmatprep.subr.mxu0 0.0
  %1162 = vmatpush1.msra.mxu0 %v1105
  %1163 = vmatprep.subr.mxu0 0.0
  %1164 = vmatpush1.msra.mxu0 %v1106
  %1165 = vmatprep.subr.mxu0 0.0
  %1166 = vmatpush1.msra.mxu0 %v1107
  %1167 = vmatprep.subr.mxu0 0.0
  %1168 = vmatpush1.msra.mxu0 %v1108
  %1169 = vmatprep.subr.mxu0 0.0
  %1170 = vmatpush1.msra.mxu0 %v1109
  %1171 = vmatprep.subr.mxu0 0.0
  %1172 = vmatpush1.msra.mxu0 %v1110
  %1173 = vmatprep.subr.mxu0 0.0
  %1174 = vmatpush1.msra.mxu0 %v1111
  %1175 = vmatprep.subr.mxu0 0.0
  %1176 = vmatpush1.msra.mxu0 %v1112
  %1177 = vmatprep.mubr.f32.mxu0 %v148
  %1178 = vmatmul.mubr.f32.gmra.mrb[0].mxu0 %v146
  %v1179 = vpop.f32.mrb[0].mxu0
  %v1180 = vadd.f32 0.0, %v1179
  %v1181 = vpop.f32.mrb[0].mxu0
  %1182 = vmatprep.mubr.f32.mxu0 %v154
  %1183 = vmatmul.mubr.f32.gmra.mrb[0].mxu0 %v152
  %v1184 = vpop.f32.mrb[0].mxu0
  %v1185 = vadd.f32 0.0, %v1184
  %v1186 = vpop.f32.mrb[0].mxu0
  %1187 = vdwg.mxu0
  %s1188 = scalar_lea.vmem %s4, 128
  %v1189 = vld [vmem:[%s1188] sm:$0xff]
  %v1190 = vld [vmem:[%s1188 + $0x8] sm:$0xff]
  %v1191 = vld [vmem:[%s1188 + $0x10] sm:$0xff]
  %v1192 = vld [vmem:[%s1188 + $0x18] sm:$0xff]
  %v1194 = vsel %vm457, %v1189, 0
  %v1197 = vsel %vm457, %v1190, 0
  %v1200 = vsel %vm457, %v1191, 0
  %v1203 = vsel %vm457, %v1192, 0
  %1205 = vmatprep.subr.mxu0 0.0
  %1206 = vmatpush1.msra.mxu0 %v1180
  %1207 = vmatprep.subr.mxu0 0.0
  %1208 = vmatpush1.msra.mxu0 %v1185
  %1209 = vmatprep.subr.mxu0 0.0
  %1210 = vmatpush1.msra.mxu0 0.0
  %1211 = vmatprep.subr.mxu0 0.0
  %1212 = vmatpush1.msra.mxu0 0.0
  %1213 = vmatprep.subr.mxu0 0.0
  %1214 = vmatpush1.msra.mxu0 0.0
  %1215 = vmatprep.subr.mxu0 0.0
  %1216 = vmatpush1.msra.mxu0 0.0
  %1217 = vmatprep.subr.mxu0 0.0
  %1218 = vmatpush1.msra.mxu0 0.0
  %1219 = vmatprep.subr.mxu0 0.0
  %1220 = vmatpush1.msra.mxu0 0.0
  %1221 = vmatprep.subr.mxu0 0.0
  %1222 = vmatpush1.msra.mxu0 0.0
  %1223 = vmatprep.subr.mxu0 0.0
  %1224 = vmatpush1.msra.mxu0 0.0
  %1225 = vmatprep.subr.mxu0 0.0
  %1226 = vmatpush1.msra.mxu0 0.0
  %1227 = vmatprep.subr.mxu0 0.0
  %1228 = vmatpush1.msra.mxu0 0.0
  %1229 = vmatprep.subr.mxu0 0.0
  %1230 = vmatpush1.msra.mxu0 0.0
  %1231 = vmatprep.subr.mxu0 0.0
  %1232 = vmatpush1.msra.mxu0 0.0
  %1233 = vmatprep.subr.mxu0 0.0
  %1234 = vmatpush1.msra.mxu0 0.0
  %1235 = vmatprep.subr.mxu0 0.0
  %1236 = vmatpush1.msra.mxu0 0.0
  %1237 = vmatprep.subr.mxu0 0.0
  %1238 = vmatpush1.msra.mxu0 0.0
  %1239 = vmatprep.subr.mxu0 0.0
  %1240 = vmatpush1.msra.mxu0 0.0
  %1241 = vmatprep.subr.mxu0 0.0
  %1242 = vmatpush1.msra.mxu0 0.0
  %1243 = vmatprep.subr.mxu0 0.0
  %1244 = vmatpush1.msra.mxu0 0.0
  %1245 = vmatprep.subr.mxu0 0.0
  %1246 = vmatpush1.msra.mxu0 0.0
  %1247 = vmatprep.subr.mxu0 0.0
  %1248 = vmatpush1.msra.mxu0 0.0
  %1249 = vmatprep.subr.mxu0 0.0
  %1250 = vmatpush1.msra.mxu0 0.0
  %1251 = vmatprep.subr.mxu0 0.0
  %1252 = vmatpush1.msra.mxu0 0.0
  %1253 = vmatprep.subr.mxu0 0.0
  %1254 = vmatpush1.msra.mxu0 0.0
  %1255 = vmatprep.subr.mxu0 0.0
  %1256 = vmatpush1.msra.mxu0 0.0
  %1257 = vmatprep.subr.mxu0 0.0
  %1258 = vmatpush1.msra.mxu0 0.0
  %1259 = vmatprep.subr.mxu0 0.0
  %1260 = vmatpush1.msra.mxu0 0.0
  %1261 = vmatprep.subr.mxu0 0.0
  %1262 = vmatpush1.msra.mxu0 0.0
  %1263 = vmatprep.subr.mxu0 0.0
  %1264 = vmatpush1.msra.mxu0 0.0
  %1265 = vmatprep.subr.mxu0 0.0
  %1266 = vmatpush1.msra.mxu0 0.0
  %1267 = vmatprep.subr.mxu0 0.0
  %1268 = vmatpush1.msra.mxu0 0.0
  %1269 = vmatprep.mubr.f32.mxu0 0.0
  %1270 = vmatmul.mubr.f32.gmra.mrb[0].mxu0 %v1194
  %v1271 = vpop.f32.mrb[0].mxu0
  %v1272 = vadd.f32 0.0, %v1271
  %v1273 = vpop.f32.mrb[0].mxu0
  %1274 = vmatprep.mubr.f32.mxu0 0.0
  %1275 = vmatmul.mubr.f32.gmra.mrb[0].mxu0 %v1197
  %v1276 = vpop.f32.mrb[0].mxu0
  %v1277 = vadd.f32 0.0, %v1276
  %v1278 = vpop.f32.mrb[0].mxu0
  %1279 = vmatprep.mubr.f32.mxu0 0.0
  %1280 = vmatmul.mubr.f32.gmra.mrb[0].mxu0 %v1200
  %v1281 = vpop.f32.mrb[0].mxu0
  %v1282 = vadd.f32 0.0, %v1281
  %v1283 = vpop.f32.mrb[0].mxu0
  %1284 = vmatprep.mubr.f32.mxu0 0.0
  %1285 = vmatmul.mubr.f32.gmra.mrb[0].mxu0 %v1203
  %v1286 = vpop.f32.mrb[0].mxu0
  %v1287 = vadd.f32 0.0, %v1286
  %v1288 = vpop.f32.mrb[0].mxu0
  %1289 = vdwg.mxu0
  %v1290 = vadd.f32 %v1076, %v1272
  %v1291 = vadd.f32 %v1077, %v1277
  %v1292 = vadd.f32 %v1078, %v1282
  %v1293 = vadd.f32 %v1079, %v1287
  %s1294 = scalar_lea.vmem %s3, 1280
  %v1295 = vld [vmem:[%s1294] sm:$0xff]
  %v1296 = vld [vmem:[%s1294 + $0x8] sm:$0xff]
  %v1297 = vld [vmem:[%s1294 + $0x10] sm:$0xff]
  %v1298 = vld [vmem:[%s1294 + $0x18] sm:$0xff]
  %v1299 = vld [vmem:[%s1294 + $0x20] sm:$0xff]
  %v1300 = vld [vmem:[%s1294 + $0x28] sm:$0xff]
  %v1301 = vld [vmem:[%s1294 + $0x30] sm:$0xff]
  %v1302 = vld [vmem:[%s1294 + $0x38] sm:$0xff]
  %v1303 = vld [vmem:[%s1294 + $0x40] sm:$0xff]
  %v1304 = vld [vmem:[%s1294 + $0x48] sm:$0xff]
  %v1305 = vld [vmem:[%s1294 + $0x50] sm:$0xff]
  %v1306 = vld [vmem:[%s1294 + $0x58] sm:$0xff]
  %v1307 = vld [vmem:[%s1294 + $0x60] sm:$0xff]
  %v1308 = vld [vmem:[%s1294 + $0x68] sm:$0xff]
  %v1309 = vld [vmem:[%s1294 + $0x70] sm:$0xff]
  %v1310 = vld [vmem:[%s1294 + $0x78] sm:$0xff]
  %v1311 = vld [vmem:[%s1294 + $0x80] sm:$0xff]
  %v1312 = vld [vmem:[%s1294 + $0x88] sm:$0xff]
  %v1313 = vld [vmem:[%s1294 + $0x90] sm:$0xff]
  %v1314 = vld [vmem:[%s1294 + $0x98] sm:$0xff]
  %v1315 = vld [vmem:[%s1294 + $0xa0] sm:$0xff]
  %v1316 = vld [vmem:[%s1294 + $0xa8] sm:$0xff]
  %v1317 = vld [vmem:[%s1294 + $0xb0] sm:$0xff]
  %v1318 = vld [vmem:[%s1294 + $0xb8] sm:$0xff]
  %v1319 = vld [vmem:[%s1294 + $0xc0] sm:$0xff]
  %v1320 = vld [vmem:[%s1294 + $0xc8] sm:$0xff]
  %v1321 = vld [vmem:[%s1294 + $0xd0] sm:$0xff]
  %v1322 = vld [vmem:[%s1294 + $0xd8] sm:$0xff]
  %v1323 = vld [vmem:[%s1294 + $0xe0] sm:$0xff]
  %v1324 = vld [vmem:[%s1294 + $0xe8] sm:$0xff]
  %v1325 = vld [vmem:[%s1294 + $0xf0] sm:$0xff]
  %v1326 = vld [vmem:[%s1294 + $0xf8] sm:$0xff]
  %1327 = vmatprep.subr.mxu0 0.0
  %1328 = vmatpush1.msra.mxu0 %v1295
  %1329 = vmatprep.subr.mxu0 0.0
  %1330 = vmatpush1.msra.mxu0 %v1296
  %1331 = vmatprep.subr.mxu0 0.0
  %1332 = vmatpush1.msra.mxu0 %v1297
  %1333 = vmatprep.subr.mxu0 0.0
  %1334 = vmatpush1.msra.mxu0 %v1298
  %1335 = vmatprep.subr.mxu0 0.0
  %1336 = vmatpush1.msra.mxu0 %v1299
  %1337 = vmatprep.subr.mxu0 0.0
  %1338 = vmatpush1.msra.mxu0 %v1300
  %1339 = vmatprep.subr.mxu0 0.0
  %1340 = vmatpush1.msra.mxu0 %v1301
  %1341 = vmatprep.subr.mxu0 0.0
  %1342 = vmatpush1.msra.mxu0 %v1302
  %1343 = vmatprep.subr.mxu0 0.0
  %1344 = vmatpush1.msra.mxu0 %v1303
  %1345 = vmatprep.subr.mxu0 0.0
  %1346 = vmatpush1.msra.mxu0 %v1304
  %1347 = vmatprep.subr.mxu0 0.0
  %1348 = vmatpush1.msra.mxu0 %v1305
  %1349 = vmatprep.subr.mxu0 0.0
  %1350 = vmatpush1.msra.mxu0 %v1306
  %1351 = vmatprep.subr.mxu0 0.0
  %1352 = vmatpush1.msra.mxu0 %v1307
  %1353 = vmatprep.subr.mxu0 0.0
  %1354 = vmatpush1.msra.mxu0 %v1308
  %1355 = vmatprep.subr.mxu0 0.0
  %1356 = vmatpush1.msra.mxu0 %v1309
  %1357 = vmatprep.subr.mxu0 0.0
  %1358 = vmatpush1.msra.mxu0 %v1310
  %1359 = vmatprep.subr.mxu0 0.0
  %1360 = vmatpush1.msra.mxu0 %v1311
  %1361 = vmatprep.subr.mxu0 0.0
  %1362 = vmatpush1.msra.mxu0 %v1312
  %1363 = vmatprep.subr.mxu0 0.0
  %1364 = vmatpush1.msra.mxu0 %v1313
  %1365 = vmatprep.subr.mxu0 0.0
  %1366 = vmatpush1.msra.mxu0 %v1314
  %1367 = vmatprep.subr.mxu0 0.0
  %1368 = vmatpush1.msra.mxu0 %v1315
  %1369 = vmatprep.subr.mxu0 0.0
  %1370 = vmatpush1.msra.mxu0 %v1316
  %1371 = vmatprep.subr.mxu0 0.0
  %1372 = vmatpush1.msra.mxu0 %v1317
  %1373 = vmatprep.subr.mxu0 0.0
  %1374 = vmatpush1.msra.mxu0 %v1318
  %1375 = vmatprep.subr.mxu0 0.0
  %1376 = vmatpush1.msra.mxu0 %v1319
  %1377 = vmatprep.subr.mxu0 0.0
  %1378 = vmatpush1.msra.mxu0 %v1320
  %1379 = vmatprep.subr.mxu0 0.0
  %1380 = vmatpush1.msra.mxu0 %v1321
  %1381 = vmatprep.subr.mxu0 0.0
  %1382 = vmatpush1.msra.mxu0 %v1322
  %1383 = vmatprep.subr.mxu0 0.0
  %1384 = vmatpush1.msra.mxu0 %v1323
  %1385 = vmatprep.subr.mxu0 0.0
  %1386 = vmatpush1.msra.mxu0 %v1324
  %1387 = vmatprep.subr.mxu0 0.0
  %1388 = vmatpush1.msra.mxu0 %v1325
  %1389 = vmatprep.subr.mxu0 0.0
  %1390 = vmatpush1.msra.mxu0 %v1326
  %1391 = vmatprep.mubr.f32.mxu0 %v148
  %1392 = vmatmul.mubr.f32.gmra.mrb[0].mxu0 %v146
  %v1393 = vpop.f32.mrb[0].mxu0
  %v1394 = vadd.f32 0.0, %v1393
  %v1395 = vpop.f32.mrb[0].mxu0
  %1396 = vmatprep.mubr.f32.mxu0 %v154
  %1397 = vmatmul.mubr.f32.gmra.mrb[0].mxu0 %v152
  %v1398 = vpop.f32.mrb[0].mxu0
  %v1399 = vadd.f32 0.0, %v1398
  %v1400 = vpop.f32.mrb[0].mxu0
  %1401 = vdwg.mxu0
  %s1402 = scalar_lea.vmem %s4, 160
  %v1403 = vld [vmem:[%s1402] sm:$0xff]
  %v1404 = vld [vmem:[%s1402 + $0x8] sm:$0xff]
  %v1405 = vld [vmem:[%s1402 + $0x10] sm:$0xff]
  %v1406 = vld [vmem:[%s1402 + $0x18] sm:$0xff]
  %v1408 = vsel %vm457, %v1403, 0
  %v1411 = vsel %vm457, %v1404, 0
  %v1414 = vsel %vm457, %v1405, 0
  %v1417 = vsel %vm457, %v1406, 0
  %1419 = vmatprep.subr.mxu0 0.0
  %1420 = vmatpush1.msra.mxu0 %v1394
  %1421 = vmatprep.subr.mxu0 0.0
  %1422 = vmatpush1.msra.mxu0 %v1399
  %1423 = vmatprep.subr.mxu0 0.0
  %1424 = vmatpush1.msra.mxu0 0.0
  %1425 = vmatprep.subr.mxu0 0.0
  %1426 = vmatpush1.msra.mxu0 0.0
  %1427 = vmatprep.subr.mxu0 0.0
  %1428 = vmatpush1.msra.mxu0 0.0
  %1429 = vmatprep.subr.mxu0 0.0
  %1430 = vmatpush1.msra.mxu0 0.0
  %1431 = vmatprep.subr.mxu0 0.0
  %1432 = vmatpush1.msra.mxu0 0.0
  %1433 = vmatprep.subr.mxu0 0.0
  %1434 = vmatpush1.msra.mxu0 0.0
  %1435 = vmatprep.subr.mxu0 0.0
  %1436 = vmatpush1.msra.mxu0 0.0
  %1437 = vmatprep.subr.mxu0 0.0
  %1438 = vmatpush1.msra.mxu0 0.0
  %1439 = vmatprep.subr.mxu0 0.0
  %1440 = vmatpush1.msra.mxu0 0.0
  %1441 = vmatprep.subr.mxu0 0.0
  %1442 = vmatpush1.msra.mxu0 0.0
  %1443 = vmatprep.subr.mxu0 0.0
  %1444 = vmatpush1.msra.mxu0 0.0
  %1445 = vmatprep.subr.mxu0 0.0
  %1446 = vmatpush1.msra.mxu0 0.0
  %1447 = vmatprep.subr.mxu0 0.0
  %1448 = vmatpush1.msra.mxu0 0.0
  %1449 = vmatprep.subr.mxu0 0.0
  %1450 = vmatpush1.msra.mxu0 0.0
  %1451 = vmatprep.subr.mxu0 0.0
  %1452 = vmatpush1.msra.mxu0 0.0
  %1453 = vmatprep.subr.mxu0 0.0
  %1454 = vmatpush1.msra.mxu0 0.0
  %1455 = vmatprep.subr.mxu0 0.0
  %1456 = vmatpush1.msra.mxu0 0.0
  %1457 = vmatprep.subr.mxu0 0.0
  %1458 = vmatpush1.msra.mxu0 0.0
  %1459 = vmatprep.subr.mxu0 0.0
  %1460 = vmatpush1.msra.mxu0 0.0
  %1461 = vmatprep.subr.mxu0 0.0
  %1462 = vmatpush1.msra.mxu0 0.0
  %1463 = vmatprep.subr.mxu0 0.0
  %1464 = vmatpush1.msra.mxu0 0.0
  %1465 = vmatprep.subr.mxu0 0.0
  %1466 = vmatpush1.msra.mxu0 0.0
  %1467 = vmatprep.subr.mxu0 0.0
  %1468 = vmatpush1.msra.mxu0 0.0
  %1469 = vmatprep.subr.mxu0 0.0
  %1470 = vmatpush1.msra.mxu0 0.0
  %1471 = vmatprep.subr.mxu0 0.0
  %1472 = vmatpush1.msra.mxu0 0.0
  %1473 = vmatprep.subr.mxu0 0.0
  %1474 = vmatpush1.msra.mxu0 0.0
  %1475 = vmatprep.subr.mxu0 0.0
  %1476 = vmatpush1.msra.mxu0 0.0
  %1477 = vmatprep.subr.mxu0 0.0
  %1478 = vmatpush1.msra.mxu0 0.0
  %1479 = vmatprep.subr.mxu0 0.0
  %1480 = vmatpush1.msra.mxu0 0.0
  %1481 = vmatprep.subr.mxu0 0.0
  %1482 = vmatpush1.msra.mxu0 0.0
  %1483 = vmatprep.mubr.f32.mxu0 0.0
  %1484 = vmatmul.mubr.f32.gmra.mrb[0].mxu0 %v1408
  %v1485 = vpop.f32.mrb[0].mxu0
  %v1486 = vadd.f32 0.0, %v1485
  %v1487 = vpop.f32.mrb[0].mxu0
  %1488 = vmatprep.mubr.f32.mxu0 0.0
  %1489 = vmatmul.mubr.f32.gmra.mrb[0].mxu0 %v1411
  %v1490 = vpop.f32.mrb[0].mxu0
  %v1491 = vadd.f32 0.0, %v1490
  %v1492 = vpop.f32.mrb[0].mxu0
  %1493 = vmatprep.mubr.f32.mxu0 0.0
  %1494 = vmatmul.mubr.f32.gmra.mrb[0].mxu0 %v1414
  %v1495 = vpop.f32.mrb[0].mxu0
  %v1496 = vadd.f32 0.0, %v1495
  %v1497 = vpop.f32.mrb[0].mxu0
  %1498 = vmatprep.mubr.f32.mxu0 0.0
  %1499 = vmatmul.mubr.f32.gmra.mrb[0].mxu0 %v1417
  %v1500 = vpop.f32.mrb[0].mxu0
  %v1501 = vadd.f32 0.0, %v1500
  %v1502 = vpop.f32.mrb[0].mxu0
  %1503 = vdwg.mxu0
  %v1504 = vadd.f32 %v1290, %v1486
  %v1505 = vadd.f32 %v1291, %v1491
  %v1506 = vadd.f32 %v1292, %v1496
  %v1507 = vadd.f32 %v1293, %v1501
  %s1508 = scalar_lea.vmem %s3, 1536
  %v1509 = vld [vmem:[%s1508] sm:$0xff]
  %v1510 = vld [vmem:[%s1508 + $0x8] sm:$0xff]
  %v1511 = vld [vmem:[%s1508 + $0x10] sm:$0xff]
  %v1512 = vld [vmem:[%s1508 + $0x18] sm:$0xff]
  %v1513 = vld [vmem:[%s1508 + $0x20] sm:$0xff]
  %v1514 = vld [vmem:[%s1508 + $0x28] sm:$0xff]
  %v1515 = vld [vmem:[%s1508 + $0x30] sm:$0xff]
  %v1516 = vld [vmem:[%s1508 + $0x38] sm:$0xff]
  %v1517 = vld [vmem:[%s1508 + $0x40] sm:$0xff]
  %v1518 = vld [vmem:[%s1508 + $0x48] sm:$0xff]
  %v1519 = vld [vmem:[%s1508 + $0x50] sm:$0xff]
  %v1520 = vld [vmem:[%s1508 + $0x58] sm:$0xff]
  %v1521 = vld [vmem:[%s1508 + $0x60] sm:$0xff]
  %v1522 = vld [vmem:[%s1508 + $0x68] sm:$0xff]
  %v1523 = vld [vmem:[%s1508 + $0x70] sm:$0xff]
  %v1524 = vld [vmem:[%s1508 + $0x78] sm:$0xff]
  %v1525 = vld [vmem:[%s1508 + $0x80] sm:$0xff]
  %v1526 = vld [vmem:[%s1508 + $0x88] sm:$0xff]
  %v1527 = vld [vmem:[%s1508 + $0x90] sm:$0xff]
  %v1528 = vld [vmem:[%s1508 + $0x98] sm:$0xff]
  %v1529 = vld [vmem:[%s1508 + $0xa0] sm:$0xff]
  %v1530 = vld [vmem:[%s1508 + $0xa8] sm:$0xff]
  %v1531 = vld [vmem:[%s1508 + $0xb0] sm:$0xff]
  %v1532 = vld [vmem:[%s1508 + $0xb8] sm:$0xff]
  %v1533 = vld [vmem:[%s1508 + $0xc0] sm:$0xff]
  %v1534 = vld [vmem:[%s1508 + $0xc8] sm:$0xff]
  %v1535 = vld [vmem:[%s1508 + $0xd0] sm:$0xff]
  %v1536 = vld [vmem:[%s1508 + $0xd8] sm:$0xff]
  %v1537 = vld [vmem:[%s1508 + $0xe0] sm:$0xff]
  %v1538 = vld [vmem:[%s1508 + $0xe8] sm:$0xff]
  %v1539 = vld [vmem:[%s1508 + $0xf0] sm:$0xff]
  %v1540 = vld [vmem:[%s1508 + $0xf8] sm:$0xff]
  %1541 = vmatprep.subr.mxu0 0.0
  %1542 = vmatpush1.msra.mxu0 %v1509
  %1543 = vmatprep.subr.mxu0 0.0
  %1544 = vmatpush1.msra.mxu0 %v1510
  %1545 = vmatprep.subr.mxu0 0.0
  %1546 = vmatpush1.msra.mxu0 %v1511
  %1547 = vmatprep.subr.mxu0 0.0
  %1548 = vmatpush1.msra.mxu0 %v1512
  %1549 = vmatprep.subr.mxu0 0.0
  %1550 = vmatpush1.msra.mxu0 %v1513
  %1551 = vmatprep.subr.mxu0 0.0
  %1552 = vmatpush1.msra.mxu0 %v1514
  %1553 = vmatprep.subr.mxu0 0.0
  %1554 = vmatpush1.msra.mxu0 %v1515
  %1555 = vmatprep.subr.mxu0 0.0
  %1556 = vmatpush1.msra.mxu0 %v1516
  %1557 = vmatprep.subr.mxu0 0.0
  %1558 = vmatpush1.msra.mxu0 %v1517
  %1559 = vmatprep.subr.mxu0 0.0
  %1560 = vmatpush1.msra.mxu0 %v1518
  %1561 = vmatprep.subr.mxu0 0.0
  %1562 = vmatpush1.msra.mxu0 %v1519
  %1563 = vmatprep.subr.mxu0 0.0
  %1564 = vmatpush1.msra.mxu0 %v1520
  %1565 = vmatprep.subr.mxu0 0.0
  %1566 = vmatpush1.msra.mxu0 %v1521
  %1567 = vmatprep.subr.mxu0 0.0
  %1568 = vmatpush1.msra.mxu0 %v1522
  %1569 = vmatprep.subr.mxu0 0.0
  %1570 = vmatpush1.msra.mxu0 %v1523
  %1571 = vmatprep.subr.mxu0 0.0
  %1572 = vmatpush1.msra.mxu0 %v1524
  %1573 = vmatprep.subr.mxu0 0.0
  %1574 = vmatpush1.msra.mxu0 %v1525
  %1575 = vmatprep.subr.mxu0 0.0
  %1576 = vmatpush1.msra.mxu0 %v1526
  %1577 = vmatprep.subr.mxu0 0.0
  %1578 = vmatpush1.msra.mxu0 %v1527
  %1579 = vmatprep.subr.mxu0 0.0
  %1580 = vmatpush1.msra.mxu0 %v1528
  %1581 = vmatprep.subr.mxu0 0.0
  %1582 = vmatpush1.msra.mxu0 %v1529
  %1583 = vmatprep.subr.mxu0 0.0
  %1584 = vmatpush1.msra.mxu0 %v1530
  %1585 = vmatprep.subr.mxu0 0.0
  %1586 = vmatpush1.msra.mxu0 %v1531
  %1587 = vmatprep.subr.mxu0 0.0
  %1588 = vmatpush1.msra.mxu0 %v1532
  %1589 = vmatprep.subr.mxu0 0.0
  %1590 = vmatpush1.msra.mxu0 %v1533
  %1591 = vmatprep.subr.mxu0 0.0
  %1592 = vmatpush1.msra.mxu0 %v1534
  %1593 = vmatprep.subr.mxu0 0.0
  %1594 = vmatpush1.msra.mxu0 %v1535
  %1595 = vmatprep.subr.mxu0 0.0
  %1596 = vmatpush1.msra.mxu0 %v1536
  %1597 = vmatprep.subr.mxu0 0.0
  %1598 = vmatpush1.msra.mxu0 %v1537
  %1599 = vmatprep.subr.mxu0 0.0
  %1600 = vmatpush1.msra.mxu0 %v1538
  %1601 = vmatprep.subr.mxu0 0.0
  %1602 = vmatpush1.msra.mxu0 %v1539
  %1603 = vmatprep.subr.mxu0 0.0
  %1604 = vmatpush1.msra.mxu0 %v1540
  %1605 = vmatprep.mubr.f32.mxu0 %v148
  %1606 = vmatmul.mubr.f32.gmra.mrb[0].mxu0 %v146
  %v1607 = vpop.f32.mrb[0].mxu0
  %v1608 = vadd.f32 0.0, %v1607
  %v1609 = vpop.f32.mrb[0].mxu0
  %1610 = vmatprep.mubr.f32.mxu0 %v154
  %1611 = vmatmul.mubr.f32.gmra.mrb[0].mxu0 %v152
  %v1612 = vpop.f32.mrb[0].mxu0
  %v1613 = vadd.f32 0.0, %v1612
  %v1614 = vpop.f32.mrb[0].mxu0
  %1615 = vdwg.mxu0
  %s1616 = scalar_lea.vmem %s4, 192
  %v1617 = vld [vmem:[%s1616] sm:$0xff]
  %v1618 = vld [vmem:[%s1616 + $0x8] sm:$0xff]
  %v1619 = vld [vmem:[%s1616 + $0x10] sm:$0xff]
  %v1620 = vld [vmem:[%s1616 + $0x18] sm:$0xff]
  %v1622 = vsel %vm457, %v1617, 0
  %v1625 = vsel %vm457, %v1618, 0
  %v1628 = vsel %vm457, %v1619, 0
  %v1631 = vsel %vm457, %v1620, 0
  %1633 = vmatprep.subr.mxu0 0.0
  %1634 = vmatpush1.msra.mxu0 %v1608
  %1635 = vmatprep.subr.mxu0 0.0
  %1636 = vmatpush1.msra.mxu0 %v1613
  %1637 = vmatprep.subr.mxu0 0.0
  %1638 = vmatpush1.msra.mxu0 0.0
  %1639 = vmatprep.subr.mxu0 0.0
  %1640 = vmatpush1.msra.mxu0 0.0
  %1641 = vmatprep.subr.mxu0 0.0
  %1642 = vmatpush1.msra.mxu0 0.0
  %1643 = vmatprep.subr.mxu0 0.0
  %1644 = vmatpush1.msra.mxu0 0.0
  %1645 = vmatprep.subr.mxu0 0.0
  %1646 = vmatpush1.msra.mxu0 0.0
  %1647 = vmatprep.subr.mxu0 0.0
  %1648 = vmatpush1.msra.mxu0 0.0
  %1649 = vmatprep.subr.mxu0 0.0
  %1650 = vmatpush1.msra.mxu0 0.0
  %1651 = vmatprep.subr.mxu0 0.0
  %1652 = vmatpush1.msra.mxu0 0.0
  %1653 = vmatprep.subr.mxu0 0.0
  %1654 = vmatpush1.msra.mxu0 0.0
  %1655 = vmatprep.subr.mxu0 0.0
  %1656 = vmatpush1.msra.mxu0 0.0
  %1657 = vmatprep.subr.mxu0 0.0
  %1658 = vmatpush1.msra.mxu0 0.0
  %1659 = vmatprep.subr.mxu0 0.0
  %1660 = vmatpush1.msra.mxu0 0.0
  %1661 = vmatprep.subr.mxu0 0.0
  %1662 = vmatpush1.msra.mxu0 0.0
  %1663 = vmatprep.subr.mxu0 0.0
  %1664 = vmatpush1.msra.mxu0 0.0
  %1665 = vmatprep.subr.mxu0 0.0
  %1666 = vmatpush1.msra.mxu0 0.0
  %1667 = vmatprep.subr.mxu0 0.0
  %1668 = vmatpush1.msra.mxu0 0.0
  %1669 = vmatprep.subr.mxu0 0.0
  %1670 = vmatpush1.msra.mxu0 0.0
  %1671 = vmatprep.subr.mxu0 0.0
  %1672 = vmatpush1.msra.mxu0 0.0
  %1673 = vmatprep.subr.mxu0 0.0
  %1674 = vmatpush1.msra.mxu0 0.0
  %1675 = vmatprep.subr.mxu0 0.0
  %1676 = vmatpush1.msra.mxu0 0.0
  %1677 = vmatprep.subr.mxu0 0.0
  %1678 = vmatpush1.msra.mxu0 0.0
  %1679 = vmatprep.subr.mxu0 0.0
  %1680 = vmatpush1.msra.mxu0 0.0
  %1681 = vmatprep.subr.mxu0 0.0
  %1682 = vmatpush1.msra.mxu0 0.0
  %1683 = vmatprep.subr.mxu0 0.0
  %1684 = vmatpush1.msra.mxu0 0.0
  %1685 = vmatprep.subr.mxu0 0.0
  %1686 = vmatpush1.msra.mxu0 0.0
  %1687 = vmatprep.subr.mxu0 0.0
  %1688 = vmatpush1.msra.mxu0 0.0
  %1689 = vmatprep.subr.mxu0 0.0
  %1690 = vmatpush1.msra.mxu0 0.0
  %1691 = vmatprep.subr.mxu0 0.0
  %1692 = vmatpush1.msra.mxu0 0.0
  %1693 = vmatprep.subr.mxu0 0.0
  %1694 = vmatpush1.msra.mxu0 0.0
  %1695 = vmatprep.subr.mxu0 0.0
  %1696 = vmatpush1.msra.mxu0 0.0
  %1697 = vmatprep.mubr.f32.mxu0 0.0
  %1698 = vmatmul.mubr.f32.gmra.mrb[0].mxu0 %v1622
  %v1699 = vpop.f32.mrb[0].mxu0
  %v1700 = vadd.f32 0.0, %v1699
  %v1701 = vpop.f32.mrb[0].mxu0
  %1702 = vmatprep.mubr.f32.mxu0 0.0
  %1703 = vmatmul.mubr.f32.gmra.mrb[0].mxu0 %v1625
  %v1704 = vpop.f32.mrb[0].mxu0
  %v1705 = vadd.f32 0.0, %v1704
  %v1706 = vpop.f32.mrb[0].mxu0
  %1707 = vmatprep.mubr.f32.mxu0 0.0
  %1708 = vmatmul.mubr.f32.gmra.mrb[0].mxu0 %v1628
  %v1709 = vpop.f32.mrb[0].mxu0
  %v1710 = vadd.f32 0.0, %v1709
  %v1711 = vpop.f32.mrb[0].mxu0
  %1712 = vmatprep.mubr.f32.mxu0 0.0
  %1713 = vmatmul.mubr.f32.gmra.mrb[0].mxu0 %v1631
  %v1714 = vpop.f32.mrb[0].mxu0
  %v1715 = vadd.f32 0.0, %v1714
  %v1716 = vpop.f32.mrb[0].mxu0
  %1717 = vdwg.mxu0
  %v1718 = vadd.f32 %v1504, %v1700
  %v1719 = vadd.f32 %v1505, %v1705
  %v1720 = vadd.f32 %v1506, %v1710
  %v1721 = vadd.f32 %v1507, %v1715
  %s1722 = scalar_lea.vmem %s3, 1792
  %v1723 = vld [vmem:[%s1722] sm:$0xff]
  %v1724 = vld [vmem:[%s1722 + $0x8] sm:$0xff]
  %v1725 = vld [vmem:[%s1722 + $0x10] sm:$0xff]
  %v1726 = vld [vmem:[%s1722 + $0x18] sm:$0xff]
  %v1727 = vld [vmem:[%s1722 + $0x20] sm:$0xff]
  %v1728 = vld [vmem:[%s1722 + $0x28] sm:$0xff]
  %v1729 = vld [vmem:[%s1722 + $0x30] sm:$0xff]
  %v1730 = vld [vmem:[%s1722 + $0x38] sm:$0xff]
  %v1731 = vld [vmem:[%s1722 + $0x40] sm:$0xff]
  %v1732 = vld [vmem:[%s1722 + $0x48] sm:$0xff]
  %v1733 = vld [vmem:[%s1722 + $0x50] sm:$0xff]
  %v1734 = vld [vmem:[%s1722 + $0x58] sm:$0xff]
  %v1735 = vld [vmem:[%s1722 + $0x60] sm:$0xff]
  %v1736 = vld [vmem:[%s1722 + $0x68] sm:$0xff]
  %v1737 = vld [vmem:[%s1722 + $0x70] sm:$0xff]
  %v1738 = vld [vmem:[%s1722 + $0x78] sm:$0xff]
  %v1739 = vld [vmem:[%s1722 + $0x80] sm:$0xff]
  %v1740 = vld [vmem:[%s1722 + $0x88] sm:$0xff]
  %v1741 = vld [vmem:[%s1722 + $0x90] sm:$0xff]
  %v1742 = vld [vmem:[%s1722 + $0x98] sm:$0xff]
  %v1743 = vld [vmem:[%s1722 + $0xa0] sm:$0xff]
  %v1744 = vld [vmem:[%s1722 + $0xa8] sm:$0xff]
  %v1745 = vld [vmem:[%s1722 + $0xb0] sm:$0xff]
  %v1746 = vld [vmem:[%s1722 + $0xb8] sm:$0xff]
  %v1747 = vld [vmem:[%s1722 + $0xc0] sm:$0xff]
  %v1748 = vld [vmem:[%s1722 + $0xc8] sm:$0xff]
  %v1749 = vld [vmem:[%s1722 + $0xd0] sm:$0xff]
  %v1750 = vld [vmem:[%s1722 + $0xd8] sm:$0xff]
  %v1751 = vld [vmem:[%s1722 + $0xe0] sm:$0xff]
  %v1752 = vld [vmem:[%s1722 + $0xe8] sm:$0xff]
  %v1753 = vld [vmem:[%s1722 + $0xf0] sm:$0xff]
  %v1754 = vld [vmem:[%s1722 + $0xf8] sm:$0xff]
  %1755 = vmatprep.subr.mxu0 0.0
  %1756 = vmatpush1.msra.mxu0 %v1723
  %1757 = vmatprep.subr.mxu0 0.0
  %1758 = vmatpush1.msra.mxu0 %v1724
  %1759 = vmatprep.subr.mxu0 0.0
  %1760 = vmatpush1.msra.mxu0 %v1725
  %1761 = vmatprep.subr.mxu0 0.0
  %1762 = vmatpush1.msra.mxu0 %v1726
  %1763 = vmatprep.subr.mxu0 0.0
  %1764 = vmatpush1.msra.mxu0 %v1727
  %1765 = vmatprep.subr.mxu0 0.0
  %1766 = vmatpush1.msra.mxu0 %v1728
  %1767 = vmatprep.subr.mxu0 0.0
  %1768 = vmatpush1.msra.mxu0 %v1729
  %1769 = vmatprep.subr.mxu0 0.0
  %1770 = vmatpush1.msra.mxu0 %v1730
  %1771 = vmatprep.subr.mxu0 0.0
  %1772 = vmatpush1.msra.mxu0 %v1731
  %1773 = vmatprep.subr.mxu0 0.0
  %1774 = vmatpush1.msra.mxu0 %v1732
  %1775 = vmatprep.subr.mxu0 0.0
  %1776 = vmatpush1.msra.mxu0 %v1733
  %1777 = vmatprep.subr.mxu0 0.0
  %1778 = vmatpush1.msra.mxu0 %v1734
  %1779 = vmatprep.subr.mxu0 0.0
  %1780 = vmatpush1.msra.mxu0 %v1735
  %1781 = vmatprep.subr.mxu0 0.0
  %1782 = vmatpush1.msra.mxu0 %v1736
  %1783 = vmatprep.subr.mxu0 0.0
  %1784 = vmatpush1.msra.mxu0 %v1737
  %1785 = vmatprep.subr.mxu0 0.0
  %1786 = vmatpush1.msra.mxu0 %v1738
  %1787 = vmatprep.subr.mxu0 0.0
  %1788 = vmatpush1.msra.mxu0 %v1739
  %1789 = vmatprep.subr.mxu0 0.0
  %1790 = vmatpush1.msra.mxu0 %v1740
  %1791 = vmatprep.subr.mxu0 0.0
  %1792 = vmatpush1.msra.mxu0 %v1741
  %1793 = vmatprep.subr.mxu0 0.0
  %1794 = vmatpush1.msra.mxu0 %v1742
  %1795 = vmatprep.subr.mxu0 0.0
  %1796 = vmatpush1.msra.mxu0 %v1743
  %1797 = vmatprep.subr.mxu0 0.0
  %1798 = vmatpush1.msra.mxu0 %v1744
  %1799 = vmatprep.subr.mxu0 0.0
  %1800 = vmatpush1.msra.mxu0 %v1745
  %1801 = vmatprep.subr.mxu0 0.0
  %1802 = vmatpush1.msra.mxu0 %v1746
  %1803 = vmatprep.subr.mxu0 0.0
  %1804 = vmatpush1.msra.mxu0 %v1747
  %1805 = vmatprep.subr.mxu0 0.0
  %1806 = vmatpush1.msra.mxu0 %v1748
  %1807 = vmatprep.subr.mxu0 0.0
  %1808 = vmatpush1.msra.mxu0 %v1749
  %1809 = vmatprep.subr.mxu0 0.0
  %1810 = vmatpush1.msra.mxu0 %v1750
  %1811 = vmatprep.subr.mxu0 0.0
  %1812 = vmatpush1.msra.mxu0 %v1751
  %1813 = vmatprep.subr.mxu0 0.0
  %1814 = vmatpush1.msra.mxu0 %v1752
  %1815 = vmatprep.subr.mxu0 0.0
  %1816 = vmatpush1.msra.mxu0 %v1753
  %1817 = vmatprep.subr.mxu0 0.0
  %1818 = vmatpush1.msra.mxu0 %v1754
  %1819 = vmatprep.mubr.f32.mxu0 %v148
  %1820 = vmatmul.mubr.f32.gmra.mrb[0].mxu0 %v146
  %v1821 = vpop.f32.mrb[0].mxu0
  %v1822 = vadd.f32 0.0, %v1821
  %v1823 = vpop.f32.mrb[0].mxu0
  %1824 = vmatprep.mubr.f32.mxu0 %v154
  %1825 = vmatmul.mubr.f32.gmra.mrb[0].mxu0 %v152
  %v1826 = vpop.f32.mrb[0].mxu0
  %v1827 = vadd.f32 0.0, %v1826
  %v1828 = vpop.f32.mrb[0].mxu0
  %1829 = vdwg.mxu0
  %s1830 = scalar_lea.vmem %s4, 224
  %v1831 = vld [vmem:[%s1830] sm:$0xff]
  %v1832 = vld [vmem:[%s1830 + $0x8] sm:$0xff]
  %v1833 = vld [vmem:[%s1830 + $0x10] sm:$0xff]
  %v1834 = vld [vmem:[%s1830 + $0x18] sm:$0xff]
  %v1836 = vsel %vm457, %v1831, 0
  %v1839 = vsel %vm457, %v1832, 0
  %v1842 = vsel %vm457, %v1833, 0
  %v1845 = vsel %vm457, %v1834, 0
  %1847 = vmatprep.subr.mxu0 0.0
  %1848 = vmatpush1.msra.mxu0 %v1822
  %1849 = vmatprep.subr.mxu0 0.0
  %1850 = vmatpush1.msra.mxu0 %v1827
  %1851 = vmatprep.subr.mxu0 0.0
  %1852 = vmatpush1.msra.mxu0 0.0
  %1853 = vmatprep.subr.mxu0 0.0
  %1854 = vmatpush1.msra.mxu0 0.0
  %1855 = vmatprep.subr.mxu0 0.0
  %1856 = vmatpush1.msra.mxu0 0.0
  %1857 = vmatprep.subr.mxu0 0.0
  %1858 = vmatpush1.msra.mxu0 0.0
  %1859 = vmatprep.subr.mxu0 0.0
  %1860 = vmatpush1.msra.mxu0 0.0
  %1861 = vmatprep.subr.mxu0 0.0
  %1862 = vmatpush1.msra.mxu0 0.0
  %1863 = vmatprep.subr.mxu0 0.0
  %1864 = vmatpush1.msra.mxu0 0.0
  %1865 = vmatprep.subr.mxu0 0.0
  %1866 = vmatpush1.msra.mxu0 0.0
  %1867 = vmatprep.subr.mxu0 0.0
  %1868 = vmatpush1.msra.mxu0 0.0
  %1869 = vmatprep.subr.mxu0 0.0
  %1870 = vmatpush1.msra.mxu0 0.0
  %1871 = vmatprep.subr.mxu0 0.0
  %1872 = vmatpush1.msra.mxu0 0.0
  %1873 = vmatprep.subr.mxu0 0.0
  %1874 = vmatpush1.msra.mxu0 0.0
  %1875 = vmatprep.subr.mxu0 0.0
  %1876 = vmatpush1.msra.mxu0 0.0
  %1877 = vmatprep.subr.mxu0 0.0
  %1878 = vmatpush1.msra.mxu0 0.0
  %1879 = vmatprep.subr.mxu0 0.0
  %1880 = vmatpush1.msra.mxu0 0.0
  %1881 = vmatprep.subr.mxu0 0.0
  %1882 = vmatpush1.msra.mxu0 0.0
  %1883 = vmatprep.subr.mxu0 0.0
  %1884 = vmatpush1.msra.mxu0 0.0
  %1885 = vmatprep.subr.mxu0 0.0
  %1886 = vmatpush1.msra.mxu0 0.0
  %1887 = vmatprep.subr.mxu0 0.0
  %1888 = vmatpush1.msra.mxu0 0.0
  %1889 = vmatprep.subr.mxu0 0.0
  %1890 = vmatpush1.msra.mxu0 0.0
  %1891 = vmatprep.subr.mxu0 0.0
  %1892 = vmatpush1.msra.mxu0 0.0
  %1893 = vmatprep.subr.mxu0 0.0
  %1894 = vmatpush1.msra.mxu0 0.0
  %1895 = vmatprep.subr.mxu0 0.0
  %1896 = vmatpush1.msra.mxu0 0.0
  %1897 = vmatprep.subr.mxu0 0.0
  %1898 = vmatpush1.msra.mxu0 0.0
  %1899 = vmatprep.subr.mxu0 0.0
  %1900 = vmatpush1.msra.mxu0 0.0
  %1901 = vmatprep.subr.mxu0 0.0
  %1902 = vmatpush1.msra.mxu0 0.0
  %1903 = vmatprep.subr.mxu0 0.0
  %1904 = vmatpush1.msra.mxu0 0.0
  %1905 = vmatprep.subr.mxu0 0.0
  %1906 = vmatpush1.msra.mxu0 0.0
  %1907 = vmatprep.subr.mxu0 0.0
  %1908 = vmatpush1.msra.mxu0 0.0
  %1909 = vmatprep.subr.mxu0 0.0
  %1910 = vmatpush1.msra.mxu0 0.0
  %1911 = vmatprep.mubr.f32.mxu0 0.0
  %1912 = vmatmul.mubr.f32.gmra.mrb[0].mxu0 %v1836
  %v1913 = vpop.f32.mrb[0].mxu0
  %v1914 = vadd.f32 0.0, %v1913
  %v1915 = vpop.f32.mrb[0].mxu0
  %1916 = vmatprep.mubr.f32.mxu0 0.0
  %1917 = vmatmul.mubr.f32.gmra.mrb[0].mxu0 %v1839
  %v1918 = vpop.f32.mrb[0].mxu0
  %v1919 = vadd.f32 0.0, %v1918
  %v1920 = vpop.f32.mrb[0].mxu0
  %1921 = vmatprep.mubr.f32.mxu0 0.0
  %1922 = vmatmul.mubr.f32.gmra.mrb[0].mxu0 %v1842
  %v1923 = vpop.f32.mrb[0].mxu0
  %v1924 = vadd.f32 0.0, %v1923
  %v1925 = vpop.f32.mrb[0].mxu0
  %1926 = vmatprep.mubr.f32.mxu0 0.0
  %1927 = vmatmul.mubr.f32.gmra.mrb[0].mxu0 %v1845
  %v1928 = vpop.f32.mrb[0].mxu0
  %v1929 = vadd.f32 0.0, %v1928
  %v1930 = vpop.f32.mrb[0].mxu0
  %1931 = vdwg.mxu0
  %v1932 = vadd.f32 %v1718, %v1914
  %v1933 = vadd.f32 %v1719, %v1919
  %v1934 = vadd.f32 %v1720, %v1924
  %v1935 = vadd.f32 %v1721, %v1929
  %s1936 = scalar_lea.vmem %s3, 2048
  %v1937 = vld [vmem:[%s1936] sm:$0xff]
  %v1938 = vld [vmem:[%s1936 + $0x8] sm:$0xff]
  %v1939 = vld [vmem:[%s1936 + $0x10] sm:$0xff]
  %v1940 = vld [vmem:[%s1936 + $0x18] sm:$0xff]
  %v1941 = vld [vmem:[%s1936 + $0x20] sm:$0xff]
  %v1942 = vld [vmem:[%s1936 + $0x28] sm:$0xff]
  %v1943 = vld [vmem:[%s1936 + $0x30] sm:$0xff]
  %v1944 = vld [vmem:[%s1936 + $0x38] sm:$0xff]
  %v1945 = vld [vmem:[%s1936 + $0x40] sm:$0xff]
  %v1946 = vld [vmem:[%s1936 + $0x48] sm:$0xff]
  %v1947 = vld [vmem:[%s1936 + $0x50] sm:$0xff]
  %v1948 = vld [vmem:[%s1936 + $0x58] sm:$0xff]
  %v1949 = vld [vmem:[%s1936 + $0x60] sm:$0xff]
  %v1950 = vld [vmem:[%s1936 + $0x68] sm:$0xff]
  %v1951 = vld [vmem:[%s1936 + $0x70] sm:$0xff]
  %v1952 = vld [vmem:[%s1936 + $0x78] sm:$0xff]
  %v1953 = vld [vmem:[%s1936 + $0x80] sm:$0xff]
  %v1954 = vld [vmem:[%s1936 + $0x88] sm:$0xff]
  %v1955 = vld [vmem:[%s1936 + $0x90] sm:$0xff]
  %v1956 = vld [vmem:[%s1936 + $0x98] sm:$0xff]
  %v1957 = vld [vmem:[%s1936 + $0xa0] sm:$0xff]
  %v1958 = vld [vmem:[%s1936 + $0xa8] sm:$0xff]
  %v1959 = vld [vmem:[%s1936 + $0xb0] sm:$0xff]
  %v1960 = vld [vmem:[%s1936 + $0xb8] sm:$0xff]
  %v1961 = vld [vmem:[%s1936 + $0xc0] sm:$0xff]
  %v1962 = vld [vmem:[%s1936 + $0xc8] sm:$0xff]
  %v1963 = vld [vmem:[%s1936 + $0xd0] sm:$0xff]
  %v1964 = vld [vmem:[%s1936 + $0xd8] sm:$0xff]
  %v1965 = vld [vmem:[%s1936 + $0xe0] sm:$0xff]
  %v1966 = vld [vmem:[%s1936 + $0xe8] sm:$0xff]
  %v1967 = vld [vmem:[%s1936 + $0xf0] sm:$0xff]
  %v1968 = vld [vmem:[%s1936 + $0xf8] sm:$0xff]
  %1969 = vmatprep.subr.mxu0 0.0
  %1970 = vmatpush1.msra.mxu0 %v1937
  %1971 = vmatprep.subr.mxu0 0.0
  %1972 = vmatpush1.msra.mxu0 %v1938
  %1973 = vmatprep.subr.mxu0 0.0
  %1974 = vmatpush1.msra.mxu0 %v1939
  %1975 = vmatprep.subr.mxu0 0.0
  %1976 = vmatpush1.msra.mxu0 %v1940
  %1977 = vmatprep.subr.mxu0 0.0
  %1978 = vmatpush1.msra.mxu0 %v1941
  %1979 = vmatprep.subr.mxu0 0.0
  %1980 = vmatpush1.msra.mxu0 %v1942
  %1981 = vmatprep.subr.mxu0 0.0
  %1982 = vmatpush1.msra.mxu0 %v1943
  %1983 = vmatprep.subr.mxu0 0.0
  %1984 = vmatpush1.msra.mxu0 %v1944
  %1985 = vmatprep.subr.mxu0 0.0
  %1986 = vmatpush1.msra.mxu0 %v1945
  %1987 = vmatprep.subr.mxu0 0.0
  %1988 = vmatpush1.msra.mxu0 %v1946
  %1989 = vmatprep.subr.mxu0 0.0
  %1990 = vmatpush1.msra.mxu0 %v1947
  %1991 = vmatprep.subr.mxu0 0.0
  %1992 = vmatpush1.msra.mxu0 %v1948
  %1993 = vmatprep.subr.mxu0 0.0
  %1994 = vmatpush1.msra.mxu0 %v1949
  %1995 = vmatprep.subr.mxu0 0.0
  %1996 = vmatpush1.msra.mxu0 %v1950
  %1997 = vmatprep.subr.mxu0 0.0
  %1998 = vmatpush1.msra.mxu0 %v1951
  %1999 = vmatprep.subr.mxu0 0.0
  %2000 = vmatpush1.msra.mxu0 %v1952
  %2001 = vmatprep.subr.mxu0 0.0
  %2002 = vmatpush1.msra.mxu0 %v1953
  %2003 = vmatprep.subr.mxu0 0.0
  %2004 = vmatpush1.msra.mxu0 %v1954
  %2005 = vmatprep.subr.mxu0 0.0
  %2006 = vmatpush1.msra.mxu0 %v1955
  %2007 = vmatprep.subr.mxu0 0.0
  %2008 = vmatpush1.msra.mxu0 %v1956
  %2009 = vmatprep.subr.mxu0 0.0
  %2010 = vmatpush1.msra.mxu0 %v1957
  %2011 = vmatprep.subr.mxu0 0.0
  %2012 = vmatpush1.msra.mxu0 %v1958
  %2013 = vmatprep.subr.mxu0 0.0
  %2014 = vmatpush1.msra.mxu0 %v1959
  %2015 = vmatprep.subr.mxu0 0.0
  %2016 = vmatpush1.msra.mxu0 %v1960
  %2017 = vmatprep.subr.mxu0 0.0
  %2018 = vmatpush1.msra.mxu0 %v1961
  %2019 = vmatprep.subr.mxu0 0.0
  %2020 = vmatpush1.msra.mxu0 %v1962
  %2021 = vmatprep.subr.mxu0 0.0
  %2022 = vmatpush1.msra.mxu0 %v1963
  %2023 = vmatprep.subr.mxu0 0.0
  %2024 = vmatpush1.msra.mxu0 %v1964
  %2025 = vmatprep.subr.mxu0 0.0
  %2026 = vmatpush1.msra.mxu0 %v1965
  %2027 = vmatprep.subr.mxu0 0.0
  %2028 = vmatpush1.msra.mxu0 %v1966
  %2029 = vmatprep.subr.mxu0 0.0
  %2030 = vmatpush1.msra.mxu0 %v1967
  %2031 = vmatprep.subr.mxu0 0.0
  %2032 = vmatpush1.msra.mxu0 %v1968
  %2033 = vmatprep.mubr.f32.mxu0 %v148
  %2034 = vmatmul.mubr.f32.gmra.mrb[0].mxu0 %v146
  %v2035 = vpop.f32.mrb[0].mxu0
  %v2036 = vadd.f32 0.0, %v2035
  %v2037 = vpop.f32.mrb[0].mxu0
  %2038 = vmatprep.mubr.f32.mxu0 %v154
  %2039 = vmatmul.mubr.f32.gmra.mrb[0].mxu0 %v152
  %v2040 = vpop.f32.mrb[0].mxu0
  %v2041 = vadd.f32 0.0, %v2040
  %v2042 = vpop.f32.mrb[0].mxu0
  %2043 = vdwg.mxu0
  %s2044 = scalar_lea.vmem %s4, 256
  %v2045 = vld [vmem:[%s2044] sm:$0xff]
  %v2046 = vld [vmem:[%s2044 + $0x8] sm:$0xff]
  %v2047 = vld [vmem:[%s2044 + $0x10] sm:$0xff]
  %v2048 = vld [vmem:[%s2044 + $0x18] sm:$0xff]
  %v2050 = vsel %vm457, %v2045, 0
  %v2053 = vsel %vm457, %v2046, 0
  %v2056 = vsel %vm457, %v2047, 0
  %v2059 = vsel %vm457, %v2048, 0
  %2061 = vmatprep.subr.mxu0 0.0
  %2062 = vmatpush1.msra.mxu0 %v2036
  %2063 = vmatprep.subr.mxu0 0.0
  %2064 = vmatpush1.msra.mxu0 %v2041
  %2065 = vmatprep.subr.mxu0 0.0
  %2066 = vmatpush1.msra.mxu0 0.0
  %2067 = vmatprep.subr.mxu0 0.0
  %2068 = vmatpush1.msra.mxu0 0.0
  %2069 = vmatprep.subr.mxu0 0.0
  %2070 = vmatpush1.msra.mxu0 0.0
  %2071 = vmatprep.subr.mxu0 0.0
  %2072 = vmatpush1.msra.mxu0 0.0
  %2073 = vmatprep.subr.mxu0 0.0
  %2074 = vmatpush1.msra.mxu0 0.0
  %2075 = vmatprep.subr.mxu0 0.0
  %2076 = vmatpush1.msra.mxu0 0.0
  %2077 = vmatprep.subr.mxu0 0.0
  %2078 = vmatpush1.msra.mxu0 0.0
  %2079 = vmatprep.subr.mxu0 0.0
  %2080 = vmatpush1.msra.mxu0 0.0
  %2081 = vmatprep.subr.mxu0 0.0
  %2082 = vmatpush1.msra.mxu0 0.0
  %2083 = vmatprep.subr.mxu0 0.0
  %2084 = vmatpush1.msra.mxu0 0.0
  %2085 = vmatprep.subr.mxu0 0.0
  %2086 = vmatpush1.msra.mxu0 0.0
  %2087 = vmatprep.subr.mxu0 0.0
  %2088 = vmatpush1.msra.mxu0 0.0
  %2089 = vmatprep.subr.mxu0 0.0
  %2090 = vmatpush1.msra.mxu0 0.0
  %2091 = vmatprep.subr.mxu0 0.0
  %2092 = vmatpush1.msra.mxu0 0.0
  %2093 = vmatprep.subr.mxu0 0.0
  %2094 = vmatpush1.msra.mxu0 0.0
  %2095 = vmatprep.subr.mxu0 0.0
  %2096 = vmatpush1.msra.mxu0 0.0
  %2097 = vmatprep.subr.mxu0 0.0
  %2098 = vmatpush1.msra.mxu0 0.0
  %2099 = vmatprep.subr.mxu0 0.0
  %2100 = vmatpush1.msra.mxu0 0.0
  %2101 = vmatprep.subr.mxu0 0.0
  %2102 = vmatpush1.msra.mxu0 0.0
  %2103 = vmatprep.subr.mxu0 0.0
  %2104 = vmatpush1.msra.mxu0 0.0
  %2105 = vmatprep.subr.mxu0 0.0
  %2106 = vmatpush1.msra.mxu0 0.0
  %2107 = vmatprep.subr.mxu0 0.0
  %2108 = vmatpush1.msra.mxu0 0.0
  %2109 = vmatprep.subr.mxu0 0.0
  %2110 = vmatpush1.msra.mxu0 0.0
  %2111 = vmatprep.subr.mxu0 0.0
  %2112 = vmatpush1.msra.mxu0 0.0
  %2113 = vmatprep.subr.mxu0 0.0
  %2114 = vmatpush1.msra.mxu0 0.0
  %2115 = vmatprep.subr.mxu0 0.0
  %2116 = vmatpush1.msra.mxu0 0.0
  %2117 = vmatprep.subr.mxu0 0.0
  %2118 = vmatpush1.msra.mxu0 0.0
  %2119 = vmatprep.subr.mxu0 0.0
  %2120 = vmatpush1.msra.mxu0 0.0
  %2121 = vmatprep.subr.mxu0 0.0
  %2122 = vmatpush1.msra.mxu0 0.0
  %2123 = vmatprep.subr.mxu0 0.0
  %2124 = vmatpush1.msra.mxu0 0.0
  %2125 = vmatprep.mubr.f32.mxu0 0.0
  %2126 = vmatmul.mubr.f32.gmra.mrb[0].mxu0 %v2050
  %v2127 = vpop.f32.mrb[0].mxu0
  %v2128 = vadd.f32 0.0, %v2127
  %v2129 = vpop.f32.mrb[0].mxu0
  %2130 = vmatprep.mubr.f32.mxu0 0.0
  %2131 = vmatmul.mubr.f32.gmra.mrb[0].mxu0 %v2053
  %v2132 = vpop.f32.mrb[0].mxu0
  %v2133 = vadd.f32 0.0, %v2132
  %v2134 = vpop.f32.mrb[0].mxu0
  %2135 = vmatprep.mubr.f32.mxu0 0.0
  %2136 = vmatmul.mubr.f32.gmra.mrb[0].mxu0 %v2056
  %v2137 = vpop.f32.mrb[0].mxu0
  %v2138 = vadd.f32 0.0, %v2137
  %v2139 = vpop.f32.mrb[0].mxu0
  %2140 = vmatprep.mubr.f32.mxu0 0.0
  %2141 = vmatmul.mubr.f32.gmra.mrb[0].mxu0 %v2059
  %v2142 = vpop.f32.mrb[0].mxu0
  %v2143 = vadd.f32 0.0, %v2142
  %v2144 = vpop.f32.mrb[0].mxu0
  %2145 = vdwg.mxu0
  %v2146 = vadd.f32 %v1932, %v2128
  %v2147 = vadd.f32 %v1933, %v2133
  %v2148 = vadd.f32 %v1934, %v2138
  %v2149 = vadd.f32 %v1935, %v2143
  %v2150 = vld [vmem:[%s5] sm:$0xff]
  %v2151 = vld [vmem:[%s5 + $0x8] sm:$0xff]
  %v2152 = vld [vmem:[%s5 + $0x10] sm:$0xff]
  %v2153 = vld [vmem:[%s5 + $0x18] sm:$0xff]
  %2155 = vset.pattern.permute.xlu0 0
  %2156 = vperm.xlu0 %2155, %v2150
  %v2157 = vpop.permute.xlu0 %2156
  %2160 = vset.pattern.permute.xlu0 0
  %2161 = vperm.xlu0 %2160, %v2151
  %v2162 = vpop.permute.xlu0 %2161
  %2165 = vset.pattern.permute.xlu0 0
  %2166 = vperm.xlu0 %2165, %v2152
  %v2167 = vpop.permute.xlu0 %2166
  %2170 = vset.pattern.permute.xlu0 0
  %2171 = vperm.xlu0 %2170, %v2153
  %v2172 = vpop.permute.xlu0 %2171
  %v2174 = vadd.f32 %v2146, %v2157
  %v2175 = vadd.f32 %v2147, %v2162
  %v2176 = vadd.f32 %v2148, %v2167
  %v2177 = vadd.f32 %v2149, %v2172
  %v2178 = vld [vmem:[%s7] sm:$0x1]
  %v2179 = vld [vmem:[%s6] sm:$0xff]
  %v2180 = vld [vmem:[%s6 + $0x8] sm:$0xff]
  %v2181 = vld [vmem:[%s6 + $0x10] sm:$0xff]
  %v2182 = vld [vmem:[%s6 + $0x18] sm:$0xff]
  %v2183 = vld [vmem:[%s6 + $0x20] sm:$0xff]
  %v2184 = vld [vmem:[%s6 + $0x28] sm:$0xff]
  %v2185 = vld [vmem:[%s6 + $0x30] sm:$0xff]
  %v2186 = vld [vmem:[%s6 + $0x38] sm:$0xff]
  %vm2187 = vcmask 523264
  %v2189 = vsel %vm2187, %v2174, 0
  %2191 = vmatprep.subr.mxu0 0.0
  %2192 = vmatpush1.msra.mxu0 %v2179
  %2193 = vmatprep.subr.mxu0 0.0
  %2194 = vmatpush1.msra.mxu0 %v2180
  %2195 = vmatprep.subr.mxu0 0.0
  %2196 = vmatpush1.msra.mxu0 %v2181
  %2197 = vmatprep.subr.mxu0 0.0
  %2198 = vmatpush1.msra.mxu0 %v2182
  %2199 = vmatprep.subr.mxu0 0.0
  %2200 = vmatpush1.msra.mxu0 %v2183
  %2201 = vmatprep.subr.mxu0 0.0
  %2202 = vmatpush1.msra.mxu0 %v2184
  %2203 = vmatprep.subr.mxu0 0.0
  %2204 = vmatpush1.msra.mxu0 %v2185
  %2205 = vmatprep.subr.mxu0 0.0
  %2206 = vmatpush1.msra.mxu0 %v2186
  %2207 = vmatprep.subr.mxu0 0.0
  %2208 = vmatpush1.msra.mxu0 0.0
  %2209 = vmatprep.subr.mxu0 0.0
  %2210 = vmatpush1.msra.mxu0 0.0
  %2211 = vmatprep.subr.mxu0 0.0
  %2212 = vmatpush1.msra.mxu0 0.0
  %2213 = vmatprep.subr.mxu0 0.0
  %2214 = vmatpush1.msra.mxu0 0.0
  %2215 = vmatprep.subr.mxu0 0.0
  %2216 = vmatpush1.msra.mxu0 0.0
  %2217 = vmatprep.subr.mxu0 0.0
  %2218 = vmatpush1.msra.mxu0 0.0
  %2219 = vmatprep.subr.mxu0 0.0
  %2220 = vmatpush1.msra.mxu0 0.0
  %2221 = vmatprep.subr.mxu0 0.0
  %2222 = vmatpush1.msra.mxu0 0.0
  %2223 = vmatprep.subr.mxu0 0.0
  %2224 = vmatpush1.msra.mxu0 0.0
  %2225 = vmatprep.subr.mxu0 0.0
  %2226 = vmatpush1.msra.mxu0 0.0
  %2227 = vmatprep.subr.mxu0 0.0
  %2228 = vmatpush1.msra.mxu0 0.0
  %2229 = vmatprep.subr.mxu0 0.0
  %2230 = vmatpush1.msra.mxu0 0.0
  %2231 = vmatprep.subr.mxu0 0.0
  %2232 = vmatpush1.msra.mxu0 0.0
  %2233 = vmatprep.subr.mxu0 0.0
  %2234 = vmatpush1.msra.mxu0 0.0
  %2235 = vmatprep.subr.mxu0 0.0
  %2236 = vmatpush1.msra.mxu0 0.0
  %2237 = vmatprep.subr.mxu0 0.0
  %2238 = vmatpush1.msra.mxu0 0.0
  %2239 = vmatprep.subr.mxu0 0.0
  %2240 = vmatpush1.msra.mxu0 0.0
  %2241 = vmatprep.subr.mxu0 0.0
  %2242 = vmatpush1.msra.mxu0 0.0
  %2243 = vmatprep.subr.mxu0 0.0
  %2244 = vmatpush1.msra.mxu0 0.0
  %2245 = vmatprep.subr.mxu0 0.0
  %2246 = vmatpush1.msra.mxu0 0.0
  %2247 = vmatprep.subr.mxu0 0.0
  %2248 = vmatpush1.msra.mxu0 0.0
  %2249 = vmatprep.subr.mxu0 0.0
  %2250 = vmatpush1.msra.mxu0 0.0
  %2251 = vmatprep.subr.mxu0 0.0
  %2252 = vmatpush1.msra.mxu0 0.0
  %2253 = vmatprep.subr.mxu0 0.0
  %2254 = vmatpush1.msra.mxu0 0.0
  %2255 = vmatprep.mubr.f32.mxu0 0.0
  %2256 = vmatmul.mubr.f32.gmra.mrb[0].mxu0 %v2189
  %v2257 = vpop.f32.mrb[0].mxu0
  %v2258 = vadd.f32 0.0, %v2257
  %v2259 = vpop.f32.mrb[0].mxu0
  %2260 = vdwg.mxu0
  %v2261 = vadd.f32 %v2178, %v2258
  %s2262 = scalar_lea.vmem %s6, 64
  %v2263 = vld [vmem:[%s2262] sm:$0xff]
  %v2264 = vld [vmem:[%s2262 + $0x8] sm:$0xff]
  %v2265 = vld [vmem:[%s2262 + $0x10] sm:$0xff]
  %v2266 = vld [vmem:[%s2262 + $0x18] sm:$0xff]
  %v2267 = vld [vmem:[%s2262 + $0x20] sm:$0xff]
  %v2268 = vld [vmem:[%s2262 + $0x28] sm:$0xff]
  %v2269 = vld [vmem:[%s2262 + $0x30] sm:$0xff]
  %v2270 = vld [vmem:[%s2262 + $0x38] sm:$0xff]
  %v2271 = vrot.slane %v2174, 1
  %v2272 = vsel %vm2187, %v2271, 0
  %2274 = vmatprep.subr.mxu0 0.0
  %2275 = vmatpush1.msra.mxu0 %v2263
  %2276 = vmatprep.subr.mxu0 0.0
  %2277 = vmatpush1.msra.mxu0 %v2264
  %2278 = vmatprep.subr.mxu0 0.0
  %2279 = vmatpush1.msra.mxu0 %v2265
  %2280 = vmatprep.subr.mxu0 0.0
  %2281 = vmatpush1.msra.mxu0 %v2266
  %2282 = vmatprep.subr.mxu0 0.0
  %2283 = vmatpush1.msra.mxu0 %v2267
  %2284 = vmatprep.subr.mxu0 0.0
  %2285 = vmatpush1.msra.mxu0 %v2268
  %2286 = vmatprep.subr.mxu0 0.0
  %2287 = vmatpush1.msra.mxu0 %v2269
  %2288 = vmatprep.subr.mxu0 0.0
  %2289 = vmatpush1.msra.mxu0 %v2270
  %2290 = vmatprep.subr.mxu0 0.0
  %2291 = vmatpush1.msra.mxu0 0.0
  %2292 = vmatprep.subr.mxu0 0.0
  %2293 = vmatpush1.msra.mxu0 0.0
  %2294 = vmatprep.subr.mxu0 0.0
  %2295 = vmatpush1.msra.mxu0 0.0
  %2296 = vmatprep.subr.mxu0 0.0
  %2297 = vmatpush1.msra.mxu0 0.0
  %2298 = vmatprep.subr.mxu0 0.0
  %2299 = vmatpush1.msra.mxu0 0.0
  %2300 = vmatprep.subr.mxu0 0.0
  %2301 = vmatpush1.msra.mxu0 0.0
  %2302 = vmatprep.subr.mxu0 0.0
  %2303 = vmatpush1.msra.mxu0 0.0
  %2304 = vmatprep.subr.mxu0 0.0
  %2305 = vmatpush1.msra.mxu0 0.0
  %2306 = vmatprep.subr.mxu0 0.0
  %2307 = vmatpush1.msra.mxu0 0.0
  %2308 = vmatprep.subr.mxu0 0.0
  %2309 = vmatpush1.msra.mxu0 0.0
  %2310 = vmatprep.subr.mxu0 0.0
  %2311 = vmatpush1.msra.mxu0 0.0
  %2312 = vmatprep.subr.mxu0 0.0
  %2313 = vmatpush1.msra.mxu0 0.0
  %2314 = vmatprep.subr.mxu0 0.0
  %2315 = vmatpush1.msra.mxu0 0.0
  %2316 = vmatprep.subr.mxu0 0.0
  %2317 = vmatpush1.msra.mxu0 0.0
  %2318 = vmatprep.subr.mxu0 0.0
  %2319 = vmatpush1.msra.mxu0 0.0
  %2320 = vmatprep.subr.mxu0 0.0
  %2321 = vmatpush1.msra.mxu0 0.0
  %2322 = vmatprep.subr.mxu0 0.0
  %2323 = vmatpush1.msra.mxu0 0.0
  %2324 = vmatprep.subr.mxu0 0.0
  %2325 = vmatpush1.msra.mxu0 0.0
  %2326 = vmatprep.subr.mxu0 0.0
  %2327 = vmatpush1.msra.mxu0 0.0
  %2328 = vmatprep.subr.mxu0 0.0
  %2329 = vmatpush1.msra.mxu0 0.0
  %2330 = vmatprep.subr.mxu0 0.0
  %2331 = vmatpush1.msra.mxu0 0.0
  %2332 = vmatprep.subr.mxu0 0.0
  %2333 = vmatpush1.msra.mxu0 0.0
  %2334 = vmatprep.subr.mxu0 0.0
  %2335 = vmatpush1.msra.mxu0 0.0
  %2336 = vmatprep.subr.mxu0 0.0
  %2337 = vmatpush1.msra.mxu0 0.0
  %2338 = vmatprep.mubr.f32.mxu0 0.0
  %2339 = vmatmul.mubr.f32.gmra.mrb[0].mxu0 %v2272
  %v2340 = vpop.f32.mrb[0].mxu0
  %v2341 = vadd.f32 0.0, %v2340
  %v2342 = vpop.f32.mrb[0].mxu0
  %2343 = vdwg.mxu0
  %v2344 = vadd.f32 %v2261, %v2341
  %s2345 = scalar_lea.vmem %s6, 128
  %v2346 = vld [vmem:[%s2345] sm:$0xff]
  %v2347 = vld [vmem:[%s2345 + $0x8] sm:$0xff]
  %v2348 = vld [vmem:[%s2345 + $0x10] sm:$0xff]
  %v2349 = vld [vmem:[%s2345 + $0x18] sm:$0xff]
  %v2350 = vld [vmem:[%s2345 + $0x20] sm:$0xff]
  %v2351 = vld [vmem:[%s2345 + $0x28] sm:$0xff]
  %v2352 = vld [vmem:[%s2345 + $0x30] sm:$0xff]
  %v2353 = vld [vmem:[%s2345 + $0x38] sm:$0xff]
  %v2354 = vrot.slane %v2174, 2
  %v2355 = vsel %vm2187, %v2354, 0
  %2357 = vmatprep.subr.mxu0 0.0
  %2358 = vmatpush1.msra.mxu0 %v2346
  %2359 = vmatprep.subr.mxu0 0.0
  %2360 = vmatpush1.msra.mxu0 %v2347
  %2361 = vmatprep.subr.mxu0 0.0
  %2362 = vmatpush1.msra.mxu0 %v2348
  %2363 = vmatprep.subr.mxu0 0.0
  %2364 = vmatpush1.msra.mxu0 %v2349
  %2365 = vmatprep.subr.mxu0 0.0
  %2366 = vmatpush1.msra.mxu0 %v2350
  %2367 = vmatprep.subr.mxu0 0.0
  %2368 = vmatpush1.msra.mxu0 %v2351
  %2369 = vmatprep.subr.mxu0 0.0
  %2370 = vmatpush1.msra.mxu0 %v2352
  %2371 = vmatprep.subr.mxu0 0.0
  %2372 = vmatpush1.msra.mxu0 %v2353
  %2373 = vmatprep.subr.mxu0 0.0
  %2374 = vmatpush1.msra.mxu0 0.0
  %2375 = vmatprep.subr.mxu0 0.0
  %2376 = vmatpush1.msra.mxu0 0.0
  %2377 = vmatprep.subr.mxu0 0.0
  %2378 = vmatpush1.msra.mxu0 0.0
  %2379 = vmatprep.subr.mxu0 0.0
  %2380 = vmatpush1.msra.mxu0 0.0
  %2381 = vmatprep.subr.mxu0 0.0
  %2382 = vmatpush1.msra.mxu0 0.0
  %2383 = vmatprep.subr.mxu0 0.0
  %2384 = vmatpush1.msra.mxu0 0.0
  %2385 = vmatprep.subr.mxu0 0.0
  %2386 = vmatpush1.msra.mxu0 0.0
  %2387 = vmatprep.subr.mxu0 0.0
  %2388 = vmatpush1.msra.mxu0 0.0
  %2389 = vmatprep.subr.mxu0 0.0
  %2390 = vmatpush1.msra.mxu0 0.0
  %2391 = vmatprep.subr.mxu0 0.0
  %2392 = vmatpush1.msra.mxu0 0.0
  %2393 = vmatprep.subr.mxu0 0.0
  %2394 = vmatpush1.msra.mxu0 0.0
  %2395 = vmatprep.subr.mxu0 0.0
  %2396 = vmatpush1.msra.mxu0 0.0
  %2397 = vmatprep.subr.mxu0 0.0
  %2398 = vmatpush1.msra.mxu0 0.0
  %2399 = vmatprep.subr.mxu0 0.0
  %2400 = vmatpush1.msra.mxu0 0.0
  %2401 = vmatprep.subr.mxu0 0.0
  %2402 = vmatpush1.msra.mxu0 0.0
  %2403 = vmatprep.subr.mxu0 0.0
  %2404 = vmatpush1.msra.mxu0 0.0
  %2405 = vmatprep.subr.mxu0 0.0
  %2406 = vmatpush1.msra.mxu0 0.0
  %2407 = vmatprep.subr.mxu0 0.0
  %2408 = vmatpush1.msra.mxu0 0.0
  %2409 = vmatprep.subr.mxu0 0.0
  %2410 = vmatpush1.msra.mxu0 0.0
  %2411 = vmatprep.subr.mxu0 0.0
  %2412 = vmatpush1.msra.mxu0 0.0
  %2413 = vmatprep.subr.mxu0 0.0
  %2414 = vmatpush1.msra.mxu0 0.0
  %2415 = vmatprep.subr.mxu0 0.0
  %2416 = vmatpush1.msra.mxu0 0.0
  %2417 = vmatprep.subr.mxu0 0.0
  %2418 = vmatpush1.msra.mxu0 0.0
  %2419 = vmatprep.subr.mxu0 0.0
  %2420 = vmatpush1.msra.mxu0 0.0
  %2421 = vmatprep.mubr.f32.mxu0 0.0
  %2422 = vmatmul.mubr.f32.gmra.mrb[0].mxu0 %v2355
  %v2423 = vpop.f32.mrb[0].mxu0
  %v2424 = vadd.f32 0.0, %v2423
  %v2425 = vpop.f32.mrb[0].mxu0
  %2426 = vdwg.mxu0
  %v2427 = vadd.f32 %v2344, %v2424
  %s2428 = scalar_lea.vmem %s6, 192
  %v2429 = vld [vmem:[%s2428] sm:$0xff]
  %v2430 = vld [vmem:[%s2428 + $0x8] sm:$0xff]
  %v2431 = vld [vmem:[%s2428 + $0x10] sm:$0xff]
  %v2432 = vld [vmem:[%s2428 + $0x18] sm:$0xff]
  %v2433 = vld [vmem:[%s2428 + $0x20] sm:$0xff]
  %v2434 = vld [vmem:[%s2428 + $0x28] sm:$0xff]
  %v2435 = vld [vmem:[%s2428 + $0x30] sm:$0xff]
  %v2436 = vld [vmem:[%s2428 + $0x38] sm:$0xff]
  %v2437 = vrot.slane %v2174, 3
  %v2438 = vsel %vm2187, %v2437, 0
  %2440 = vmatprep.subr.mxu0 0.0
  %2441 = vmatpush1.msra.mxu0 %v2429
  %2442 = vmatprep.subr.mxu0 0.0
  %2443 = vmatpush1.msra.mxu0 %v2430
  %2444 = vmatprep.subr.mxu0 0.0
  %2445 = vmatpush1.msra.mxu0 %v2431
  %2446 = vmatprep.subr.mxu0 0.0
  %2447 = vmatpush1.msra.mxu0 %v2432
  %2448 = vmatprep.subr.mxu0 0.0
  %2449 = vmatpush1.msra.mxu0 %v2433
  %2450 = vmatprep.subr.mxu0 0.0
  %2451 = vmatpush1.msra.mxu0 %v2434
  %2452 = vmatprep.subr.mxu0 0.0
  %2453 = vmatpush1.msra.mxu0 %v2435
  %2454 = vmatprep.subr.mxu0 0.0
  %2455 = vmatpush1.msra.mxu0 %v2436
  %2456 = vmatprep.subr.mxu0 0.0
  %2457 = vmatpush1.msra.mxu0 0.0
  %2458 = vmatprep.subr.mxu0 0.0
  %2459 = vmatpush1.msra.mxu0 0.0
  %2460 = vmatprep.subr.mxu0 0.0
  %2461 = vmatpush1.msra.mxu0 0.0
  %2462 = vmatprep.subr.mxu0 0.0
  %2463 = vmatpush1.msra.mxu0 0.0
  %2464 = vmatprep.subr.mxu0 0.0
  %2465 = vmatpush1.msra.mxu0 0.0
  %2466 = vmatprep.subr.mxu0 0.0
  %2467 = vmatpush1.msra.mxu0 0.0
  %2468 = vmatprep.subr.mxu0 0.0
  %2469 = vmatpush1.msra.mxu0 0.0
  %2470 = vmatprep.subr.mxu0 0.0
  %2471 = vmatpush1.msra.mxu0 0.0
  %2472 = vmatprep.subr.mxu0 0.0
  %2473 = vmatpush1.msra.mxu0 0.0
  %2474 = vmatprep.subr.mxu0 0.0
  %2475 = vmatpush1.msra.mxu0 0.0
  %2476 = vmatprep.subr.mxu0 0.0
  %2477 = vmatpush1.msra.mxu0 0.0
  %2478 = vmatprep.subr.mxu0 0.0
  %2479 = vmatpush1.msra.mxu0 0.0
  %2480 = vmatprep.subr.mxu0 0.0
  %2481 = vmatpush1.msra.mxu0 0.0
  %2482 = vmatprep.subr.mxu0 0.0
  %2483 = vmatpush1.msra.mxu0 0.0
  %2484 = vmatprep.subr.mxu0 0.0
  %2485 = vmatpush1.msra.mxu0 0.0
  %2486 = vmatprep.subr.mxu0 0.0
  %2487 = vmatpush1.msra.mxu0 0.0
  %2488 = vmatprep.subr.mxu0 0.0
  %2489 = vmatpush1.msra.mxu0 0.0
  %2490 = vmatprep.subr.mxu0 0.0
  %2491 = vmatpush1.msra.mxu0 0.0
  %2492 = vmatprep.subr.mxu0 0.0
  %2493 = vmatpush1.msra.mxu0 0.0
  %2494 = vmatprep.subr.mxu0 0.0
  %2495 = vmatpush1.msra.mxu0 0.0
  %2496 = vmatprep.subr.mxu0 0.0
  %2497 = vmatpush1.msra.mxu0 0.0
  %2498 = vmatprep.subr.mxu0 0.0
  %2499 = vmatpush1.msra.mxu0 0.0
  %2500 = vmatprep.subr.mxu0 0.0
  %2501 = vmatpush1.msra.mxu0 0.0
  %2502 = vmatprep.subr.mxu0 0.0
  %2503 = vmatpush1.msra.mxu0 0.0
  %2504 = vmatprep.mubr.f32.mxu0 0.0
  %2505 = vmatmul.mubr.f32.gmra.mrb[0].mxu0 %v2438
  %v2506 = vpop.f32.mrb[0].mxu0
  %v2507 = vadd.f32 0.0, %v2506
  %v2508 = vpop.f32.mrb[0].mxu0
  %2509 = vdwg.mxu0
  %v2510 = vadd.f32 %v2427, %v2507
  %s2511 = scalar_lea.vmem %s6, 256
  %v2512 = vld [vmem:[%s2511] sm:$0xff]
  %v2513 = vld [vmem:[%s2511 + $0x8] sm:$0xff]
  %v2514 = vld [vmem:[%s2511 + $0x10] sm:$0xff]
  %v2515 = vld [vmem:[%s2511 + $0x18] sm:$0xff]
  %v2516 = vld [vmem:[%s2511 + $0x20] sm:$0xff]
  %v2517 = vld [vmem:[%s2511 + $0x28] sm:$0xff]
  %v2518 = vld [vmem:[%s2511 + $0x30] sm:$0xff]
  %v2519 = vld [vmem:[%s2511 + $0x38] sm:$0xff]
  %v2520 = vrot.slane %v2174, 4
  %v2521 = vsel %vm2187, %v2520, 0
  %2523 = vmatprep.subr.mxu0 0.0
  %2524 = vmatpush1.msra.mxu0 %v2512
  %2525 = vmatprep.subr.mxu0 0.0
  %2526 = vmatpush1.msra.mxu0 %v2513
  %2527 = vmatprep.subr.mxu0 0.0
  %2528 = vmatpush1.msra.mxu0 %v2514
  %2529 = vmatprep.subr.mxu0 0.0
  %2530 = vmatpush1.msra.mxu0 %v2515
  %2531 = vmatprep.subr.mxu0 0.0
  %2532 = vmatpush1.msra.mxu0 %v2516
  %2533 = vmatprep.subr.mxu0 0.0
  %2534 = vmatpush1.msra.mxu0 %v2517
  %2535 = vmatprep.subr.mxu0 0.0
  %2536 = vmatpush1.msra.mxu0 %v2518
  %2537 = vmatprep.subr.mxu0 0.0
  %2538 = vmatpush1.msra.mxu0 %v2519
  %2539 = vmatprep.subr.mxu0 0.0
  %2540 = vmatpush1.msra.mxu0 0.0
  %2541 = vmatprep.subr.mxu0 0.0
  %2542 = vmatpush1.msra.mxu0 0.0
  %2543 = vmatprep.subr.mxu0 0.0
  %2544 = vmatpush1.msra.mxu0 0.0
  %2545 = vmatprep.subr.mxu0 0.0
  %2546 = vmatpush1.msra.mxu0 0.0
  %2547 = vmatprep.subr.mxu0 0.0
  %2548 = vmatpush1.msra.mxu0 0.0
  %2549 = vmatprep.subr.mxu0 0.0
  %2550 = vmatpush1.msra.mxu0 0.0
  %2551 = vmatprep.subr.mxu0 0.0
  %2552 = vmatpush1.msra.mxu0 0.0
  %2553 = vmatprep.subr.mxu0 0.0
  %2554 = vmatpush1.msra.mxu0 0.0
  %2555 = vmatprep.subr.mxu0 0.0
  %2556 = vmatpush1.msra.mxu0 0.0
  %2557 = vmatprep.subr.mxu0 0.0
  %2558 = vmatpush1.msra.mxu0 0.0
  %2559 = vmatprep.subr.mxu0 0.0
  %2560 = vmatpush1.msra.mxu0 0.0
  %2561 = vmatprep.subr.mxu0 0.0
  %2562 = vmatpush1.msra.mxu0 0.0
  %2563 = vmatprep.subr.mxu0 0.0
  %2564 = vmatpush1.msra.mxu0 0.0
  %2565 = vmatprep.subr.mxu0 0.0
  %2566 = vmatpush1.msra.mxu0 0.0
  %2567 = vmatprep.subr.mxu0 0.0
  %2568 = vmatpush1.msra.mxu0 0.0
  %2569 = vmatprep.subr.mxu0 0.0
  %2570 = vmatpush1.msra.mxu0 0.0
  %2571 = vmatprep.subr.mxu0 0.0
  %2572 = vmatpush1.msra.mxu0 0.0
  %2573 = vmatprep.subr.mxu0 0.0
  %2574 = vmatpush1.msra.mxu0 0.0
  %2575 = vmatprep.subr.mxu0 0.0
  %2576 = vmatpush1.msra.mxu0 0.0
  %2577 = vmatprep.subr.mxu0 0.0
  %2578 = vmatpush1.msra.mxu0 0.0
  %2579 = vmatprep.subr.mxu0 0.0
  %2580 = vmatpush1.msra.mxu0 0.0
  %2581 = vmatprep.subr.mxu0 0.0
  %2582 = vmatpush1.msra.mxu0 0.0
  %2583 = vmatprep.subr.mxu0 0.0
  %2584 = vmatpush1.msra.mxu0 0.0
  %2585 = vmatprep.subr.mxu0 0.0
  %2586 = vmatpush1.msra.mxu0 0.0
  %2587 = vmatprep.mubr.f32.mxu0 0.0
  %2588 = vmatmul.mubr.f32.gmra.mrb[0].mxu0 %v2521
  %v2589 = vpop.f32.mrb[0].mxu0
  %v2590 = vadd.f32 0.0, %v2589
  %v2591 = vpop.f32.mrb[0].mxu0
  %2592 = vdwg.mxu0
  %v2593 = vadd.f32 %v2510, %v2590
  %s2594 = scalar_lea.vmem %s6, 320
  %v2595 = vld [vmem:[%s2594] sm:$0xff]
  %v2596 = vld [vmem:[%s2594 + $0x8] sm:$0xff]
  %v2597 = vld [vmem:[%s2594 + $0x10] sm:$0xff]
  %v2598 = vld [vmem:[%s2594 + $0x18] sm:$0xff]
  %v2599 = vld [vmem:[%s2594 + $0x20] sm:$0xff]
  %v2600 = vld [vmem:[%s2594 + $0x28] sm:$0xff]
  %v2601 = vld [vmem:[%s2594 + $0x30] sm:$0xff]
  %v2602 = vld [vmem:[%s2594 + $0x38] sm:$0xff]
  %v2603 = vrot.slane %v2174, 5
  %v2604 = vsel %vm2187, %v2603, 0
  %2606 = vmatprep.subr.mxu0 0.0
  %2607 = vmatpush1.msra.mxu0 %v2595
  %2608 = vmatprep.subr.mxu0 0.0
  %2609 = vmatpush1.msra.mxu0 %v2596
  %2610 = vmatprep.subr.mxu0 0.0
  %2611 = vmatpush1.msra.mxu0 %v2597
  %2612 = vmatprep.subr.mxu0 0.0
  %2613 = vmatpush1.msra.mxu0 %v2598
  %2614 = vmatprep.subr.mxu0 0.0
  %2615 = vmatpush1.msra.mxu0 %v2599
  %2616 = vmatprep.subr.mxu0 0.0
  %2617 = vmatpush1.msra.mxu0 %v2600
  %2618 = vmatprep.subr.mxu0 0.0
  %2619 = vmatpush1.msra.mxu0 %v2601
  %2620 = vmatprep.subr.mxu0 0.0
  %2621 = vmatpush1.msra.mxu0 %v2602
  %2622 = vmatprep.subr.mxu0 0.0
  %2623 = vmatpush1.msra.mxu0 0.0
  %2624 = vmatprep.subr.mxu0 0.0
  %2625 = vmatpush1.msra.mxu0 0.0
  %2626 = vmatprep.subr.mxu0 0.0
  %2627 = vmatpush1.msra.mxu0 0.0
  %2628 = vmatprep.subr.mxu0 0.0
  %2629 = vmatpush1.msra.mxu0 0.0
  %2630 = vmatprep.subr.mxu0 0.0
  %2631 = vmatpush1.msra.mxu0 0.0
  %2632 = vmatprep.subr.mxu0 0.0
  %2633 = vmatpush1.msra.mxu0 0.0
  %2634 = vmatprep.subr.mxu0 0.0
  %2635 = vmatpush1.msra.mxu0 0.0
  %2636 = vmatprep.subr.mxu0 0.0
  %2637 = vmatpush1.msra.mxu0 0.0
  %2638 = vmatprep.subr.mxu0 0.0
  %2639 = vmatpush1.msra.mxu0 0.0
  %2640 = vmatprep.subr.mxu0 0.0
  %2641 = vmatpush1.msra.mxu0 0.0
  %2642 = vmatprep.subr.mxu0 0.0
  %2643 = vmatpush1.msra.mxu0 0.0
  %2644 = vmatprep.subr.mxu0 0.0
  %2645 = vmatpush1.msra.mxu0 0.0
  %2646 = vmatprep.subr.mxu0 0.0
  %2647 = vmatpush1.msra.mxu0 0.0
  %2648 = vmatprep.subr.mxu0 0.0
  %2649 = vmatpush1.msra.mxu0 0.0
  %2650 = vmatprep.subr.mxu0 0.0
  %2651 = vmatpush1.msra.mxu0 0.0
  %2652 = vmatprep.subr.mxu0 0.0
  %2653 = vmatpush1.msra.mxu0 0.0
  %2654 = vmatprep.subr.mxu0 0.0
  %2655 = vmatpush1.msra.mxu0 0.0
  %2656 = vmatprep.subr.mxu0 0.0
  %2657 = vmatpush1.msra.mxu0 0.0
  %2658 = vmatprep.subr.mxu0 0.0
  %2659 = vmatpush1.msra.mxu0 0.0
  %2660 = vmatprep.subr.mxu0 0.0
  %2661 = vmatpush1.msra.mxu0 0.0
  %2662 = vmatprep.subr.mxu0 0.0
  %2663 = vmatpush1.msra.mxu0 0.0
  %2664 = vmatprep.subr.mxu0 0.0
  %2665 = vmatpush1.msra.mxu0 0.0
  %2666 = vmatprep.subr.mxu0 0.0
  %2667 = vmatpush1.msra.mxu0 0.0
  %2668 = vmatprep.subr.mxu0 0.0
  %2669 = vmatpush1.msra.mxu0 0.0
  %2670 = vmatprep.mubr.f32.mxu0 0.0
  %2671 = vmatmul.mubr.f32.gmra.mrb[0].mxu0 %v2604
  %v2672 = vpop.f32.mrb[0].mxu0
  %v2673 = vadd.f32 0.0, %v2672
  %v2674 = vpop.f32.mrb[0].mxu0
  %2675 = vdwg.mxu0
  %v2676 = vadd.f32 %v2593, %v2673
  %s2677 = scalar_lea.vmem %s6, 384
  %v2678 = vld [vmem:[%s2677] sm:$0xff]
  %v2679 = vld [vmem:[%s2677 + $0x8] sm:$0xff]
  %v2680 = vld [vmem:[%s2677 + $0x10] sm:$0xff]
  %v2681 = vld [vmem:[%s2677 + $0x18] sm:$0xff]
  %v2682 = vld [vmem:[%s2677 + $0x20] sm:$0xff]
  %v2683 = vld [vmem:[%s2677 + $0x28] sm:$0xff]
  %v2684 = vld [vmem:[%s2677 + $0x30] sm:$0xff]
  %v2685 = vld [vmem:[%s2677 + $0x38] sm:$0xff]
  %v2686 = vrot.slane %v2174, 6
  %v2687 = vsel %vm2187, %v2686, 0
  %2689 = vmatprep.subr.mxu0 0.0
  %2690 = vmatpush1.msra.mxu0 %v2678
  %2691 = vmatprep.subr.mxu0 0.0
  %2692 = vmatpush1.msra.mxu0 %v2679
  %2693 = vmatprep.subr.mxu0 0.0
  %2694 = vmatpush1.msra.mxu0 %v2680
  %2695 = vmatprep.subr.mxu0 0.0
  %2696 = vmatpush1.msra.mxu0 %v2681
  %2697 = vmatprep.subr.mxu0 0.0
  %2698 = vmatpush1.msra.mxu0 %v2682
  %2699 = vmatprep.subr.mxu0 0.0
  %2700 = vmatpush1.msra.mxu0 %v2683
  %2701 = vmatprep.subr.mxu0 0.0
  %2702 = vmatpush1.msra.mxu0 %v2684
  %2703 = vmatprep.subr.mxu0 0.0
  %2704 = vmatpush1.msra.mxu0 %v2685
  %2705 = vmatprep.subr.mxu0 0.0
  %2706 = vmatpush1.msra.mxu0 0.0
  %2707 = vmatprep.subr.mxu0 0.0
  %2708 = vmatpush1.msra.mxu0 0.0
  %2709 = vmatprep.subr.mxu0 0.0
  %2710 = vmatpush1.msra.mxu0 0.0
  %2711 = vmatprep.subr.mxu0 0.0
  %2712 = vmatpush1.msra.mxu0 0.0
  %2713 = vmatprep.subr.mxu0 0.0
  %2714 = vmatpush1.msra.mxu0 0.0
  %2715 = vmatprep.subr.mxu0 0.0
  %2716 = vmatpush1.msra.mxu0 0.0
  %2717 = vmatprep.subr.mxu0 0.0
  %2718 = vmatpush1.msra.mxu0 0.0
  %2719 = vmatprep.subr.mxu0 0.0
  %2720 = vmatpush1.msra.mxu0 0.0
  %2721 = vmatprep.subr.mxu0 0.0
  %2722 = vmatpush1.msra.mxu0 0.0
  %2723 = vmatprep.subr.mxu0 0.0
  %2724 = vmatpush1.msra.mxu0 0.0
  %2725 = vmatprep.subr.mxu0 0.0
  %2726 = vmatpush1.msra.mxu0 0.0
  %2727 = vmatprep.subr.mxu0 0.0
  %2728 = vmatpush1.msra.mxu0 0.0
  %2729 = vmatprep.subr.mxu0 0.0
  %2730 = vmatpush1.msra.mxu0 0.0
  %2731 = vmatprep.subr.mxu0 0.0
  %2732 = vmatpush1.msra.mxu0 0.0
  %2733 = vmatprep.subr.mxu0 0.0
  %2734 = vmatpush1.msra.mxu0 0.0
  %2735 = vmatprep.subr.mxu0 0.0
  %2736 = vmatpush1.msra.mxu0 0.0
  %2737 = vmatprep.subr.mxu0 0.0
  %2738 = vmatpush1.msra.mxu0 0.0
  %2739 = vmatprep.subr.mxu0 0.0
  %2740 = vmatpush1.msra.mxu0 0.0
  %2741 = vmatprep.subr.mxu0 0.0
  %2742 = vmatpush1.msra.mxu0 0.0
  %2743 = vmatprep.subr.mxu0 0.0
  %2744 = vmatpush1.msra.mxu0 0.0
  %2745 = vmatprep.subr.mxu0 0.0
  %2746 = vmatpush1.msra.mxu0 0.0
  %2747 = vmatprep.subr.mxu0 0.0
  %2748 = vmatpush1.msra.mxu0 0.0
  %2749 = vmatprep.subr.mxu0 0.0
  %2750 = vmatpush1.msra.mxu0 0.0
  %2751 = vmatprep.subr.mxu0 0.0
  %2752 = vmatpush1.msra.mxu0 0.0
  %2753 = vmatprep.mubr.f32.mxu0 0.0
  %2754 = vmatmul.mubr.f32.gmra.mrb[0].mxu0 %v2687
  %v2755 = vpop.f32.mrb[0].mxu0
  %v2756 = vadd.f32 0.0, %v2755
  %v2757 = vpop.f32.mrb[0].mxu0
  %2758 = vdwg.mxu0
  %v2759 = vadd.f32 %v2676, %v2756
  %s2760 = scalar_lea.vmem %s6, 448
  %v2761 = vld [vmem:[%s2760] sm:$0xff]
  %v2762 = vld [vmem:[%s2760 + $0x8] sm:$0xff]
  %v2763 = vld [vmem:[%s2760 + $0x10] sm:$0xff]
  %v2764 = vld [vmem:[%s2760 + $0x18] sm:$0xff]
  %v2765 = vld [vmem:[%s2760 + $0x20] sm:$0xff]
  %v2766 = vld [vmem:[%s2760 + $0x28] sm:$0xff]
  %v2767 = vld [vmem:[%s2760 + $0x30] sm:$0xff]
  %v2768 = vld [vmem:[%s2760 + $0x38] sm:$0xff]
  %v2769 = vrot.slane %v2174, 7
  %v2770 = vsel %vm2187, %v2769, 0
  %2772 = vmatprep.subr.mxu0 0.0
  %2773 = vmatpush1.msra.mxu0 %v2761
  %2774 = vmatprep.subr.mxu0 0.0
  %2775 = vmatpush1.msra.mxu0 %v2762
  %2776 = vmatprep.subr.mxu0 0.0
  %2777 = vmatpush1.msra.mxu0 %v2763
  %2778 = vmatprep.subr.mxu0 0.0
  %2779 = vmatpush1.msra.mxu0 %v2764
  %2780 = vmatprep.subr.mxu0 0.0
  %2781 = vmatpush1.msra.mxu0 %v2765
  %2782 = vmatprep.subr.mxu0 0.0
  %2783 = vmatpush1.msra.mxu0 %v2766
  %2784 = vmatprep.subr.mxu0 0.0
  %2785 = vmatpush1.msra.mxu0 %v2767
  %2786 = vmatprep.subr.mxu0 0.0
  %2787 = vmatpush1.msra.mxu0 %v2768
  %2788 = vmatprep.subr.mxu0 0.0
  %2789 = vmatpush1.msra.mxu0 0.0
  %2790 = vmatprep.subr.mxu0 0.0
  %2791 = vmatpush1.msra.mxu0 0.0
  %2792 = vmatprep.subr.mxu0 0.0
  %2793 = vmatpush1.msra.mxu0 0.0
  %2794 = vmatprep.subr.mxu0 0.0
  %2795 = vmatpush1.msra.mxu0 0.0
  %2796 = vmatprep.subr.mxu0 0.0
  %2797 = vmatpush1.msra.mxu0 0.0
  %2798 = vmatprep.subr.mxu0 0.0
  %2799 = vmatpush1.msra.mxu0 0.0
  %2800 = vmatprep.subr.mxu0 0.0
  %2801 = vmatpush1.msra.mxu0 0.0
  %2802 = vmatprep.subr.mxu0 0.0
  %2803 = vmatpush1.msra.mxu0 0.0
  %2804 = vmatprep.subr.mxu0 0.0
  %2805 = vmatpush1.msra.mxu0 0.0
  %2806 = vmatprep.subr.mxu0 0.0
  %2807 = vmatpush1.msra.mxu0 0.0
  %2808 = vmatprep.subr.mxu0 0.0
  %2809 = vmatpush1.msra.mxu0 0.0
  %2810 = vmatprep.subr.mxu0 0.0
  %2811 = vmatpush1.msra.mxu0 0.0
  %2812 = vmatprep.subr.mxu0 0.0
  %2813 = vmatpush1.msra.mxu0 0.0
  %2814 = vmatprep.subr.mxu0 0.0
  %2815 = vmatpush1.msra.mxu0 0.0
  %2816 = vmatprep.subr.mxu0 0.0
  %2817 = vmatpush1.msra.mxu0 0.0
  %2818 = vmatprep.subr.mxu0 0.0
  %2819 = vmatpush1.msra.mxu0 0.0
  %2820 = vmatprep.subr.mxu0 0.0
  %2821 = vmatpush1.msra.mxu0 0.0
  %2822 = vmatprep.subr.mxu0 0.0
  %2823 = vmatpush1.msra.mxu0 0.0
  %2824 = vmatprep.subr.mxu0 0.0
  %2825 = vmatpush1.msra.mxu0 0.0
  %2826 = vmatprep.subr.mxu0 0.0
  %2827 = vmatpush1.msra.mxu0 0.0
  %2828 = vmatprep.subr.mxu0 0.0
  %2829 = vmatpush1.msra.mxu0 0.0
  %2830 = vmatprep.subr.mxu0 0.0
  %2831 = vmatpush1.msra.mxu0 0.0
  %2832 = vmatprep.subr.mxu0 0.0
  %2833 = vmatpush1.msra.mxu0 0.0
  %2834 = vmatprep.subr.mxu0 0.0
  %2835 = vmatpush1.msra.mxu0 0.0
  %2836 = vmatprep.mubr.f32.mxu0 0.0
  %2837 = vmatmul.mubr.f32.gmra.mrb[0].mxu0 %v2770
  %v2838 = vpop.f32.mrb[0].mxu0
  %v2839 = vadd.f32 0.0, %v2838
  %v2840 = vpop.f32.mrb[0].mxu0
  %2841 = vdwg.mxu0
  %v2842 = vadd.f32 %v2759, %v2839
  %s2843 = scalar_lea.vmem %s6, 512
  %v2844 = vld [vmem:[%s2843] sm:$0xff]
  %v2845 = vld [vmem:[%s2843 + $0x8] sm:$0xff]
  %v2846 = vld [vmem:[%s2843 + $0x10] sm:$0xff]
  %v2847 = vld [vmem:[%s2843 + $0x18] sm:$0xff]
  %v2848 = vld [vmem:[%s2843 + $0x20] sm:$0xff]
  %v2849 = vld [vmem:[%s2843 + $0x28] sm:$0xff]
  %v2850 = vld [vmem:[%s2843 + $0x30] sm:$0xff]
  %v2851 = vld [vmem:[%s2843 + $0x38] sm:$0xff]
  %v2853 = vsel %vm2187, %v2175, 0
  %2855 = vmatprep.subr.mxu0 0.0
  %2856 = vmatpush1.msra.mxu0 %v2844
  %2857 = vmatprep.subr.mxu0 0.0
  %2858 = vmatpush1.msra.mxu0 %v2845
  %2859 = vmatprep.subr.mxu0 0.0
  %2860 = vmatpush1.msra.mxu0 %v2846
  %2861 = vmatprep.subr.mxu0 0.0
  %2862 = vmatpush1.msra.mxu0 %v2847
  %2863 = vmatprep.subr.mxu0 0.0
  %2864 = vmatpush1.msra.mxu0 %v2848
  %2865 = vmatprep.subr.mxu0 0.0
  %2866 = vmatpush1.msra.mxu0 %v2849
  %2867 = vmatprep.subr.mxu0 0.0
  %2868 = vmatpush1.msra.mxu0 %v2850
  %2869 = vmatprep.subr.mxu0 0.0
  %2870 = vmatpush1.msra.mxu0 %v2851
  %2871 = vmatprep.subr.mxu0 0.0
  %2872 = vmatpush1.msra.mxu0 0.0
  %2873 = vmatprep.subr.mxu0 0.0
  %2874 = vmatpush1.msra.mxu0 0.0
  %2875 = vmatprep.subr.mxu0 0.0
  %2876 = vmatpush1.msra.mxu0 0.0
  %2877 = vmatprep.subr.mxu0 0.0
  %2878 = vmatpush1.msra.mxu0 0.0
  %2879 = vmatprep.subr.mxu0 0.0
  %2880 = vmatpush1.msra.mxu0 0.0
  %2881 = vmatprep.subr.mxu0 0.0
  %2882 = vmatpush1.msra.mxu0 0.0
  %2883 = vmatprep.subr.mxu0 0.0
  %2884 = vmatpush1.msra.mxu0 0.0
  %2885 = vmatprep.subr.mxu0 0.0
  %2886 = vmatpush1.msra.mxu0 0.0
  %2887 = vmatprep.subr.mxu0 0.0
  %2888 = vmatpush1.msra.mxu0 0.0
  %2889 = vmatprep.subr.mxu0 0.0
  %2890 = vmatpush1.msra.mxu0 0.0
  %2891 = vmatprep.subr.mxu0 0.0
  %2892 = vmatpush1.msra.mxu0 0.0
  %2893 = vmatprep.subr.mxu0 0.0
  %2894 = vmatpush1.msra.mxu0 0.0
  %2895 = vmatprep.subr.mxu0 0.0
  %2896 = vmatpush1.msra.mxu0 0.0
  %2897 = vmatprep.subr.mxu0 0.0
  %2898 = vmatpush1.msra.mxu0 0.0
  %2899 = vmatprep.subr.mxu0 0.0
  %2900 = vmatpush1.msra.mxu0 0.0
  %2901 = vmatprep.subr.mxu0 0.0
  %2902 = vmatpush1.msra.mxu0 0.0
  %2903 = vmatprep.subr.mxu0 0.0
  %2904 = vmatpush1.msra.mxu0 0.0
  %2905 = vmatprep.subr.mxu0 0.0
  %2906 = vmatpush1.msra.mxu0 0.0
  %2907 = vmatprep.subr.mxu0 0.0
  %2908 = vmatpush1.msra.mxu0 0.0
  %2909 = vmatprep.subr.mxu0 0.0
  %2910 = vmatpush1.msra.mxu0 0.0
  %2911 = vmatprep.subr.mxu0 0.0
  %2912 = vmatpush1.msra.mxu0 0.0
  %2913 = vmatprep.subr.mxu0 0.0
  %2914 = vmatpush1.msra.mxu0 0.0
  %2915 = vmatprep.subr.mxu0 0.0
  %2916 = vmatpush1.msra.mxu0 0.0
  %2917 = vmatprep.subr.mxu0 0.0
  %2918 = vmatpush1.msra.mxu0 0.0
  %2919 = vmatprep.mubr.f32.mxu0 0.0
  %2920 = vmatmul.mubr.f32.gmra.mrb[0].mxu0 %v2853
  %v2921 = vpop.f32.mrb[0].mxu0
  %v2922 = vadd.f32 0.0, %v2921
  %v2923 = vpop.f32.mrb[0].mxu0
  %2924 = vdwg.mxu0
  %v2925 = vadd.f32 %v2842, %v2922
  %s2926 = scalar_lea.vmem %s6, 576
  %v2927 = vld [vmem:[%s2926] sm:$0xff]
  %v2928 = vld [vmem:[%s2926 + $0x8] sm:$0xff]
  %v2929 = vld [vmem:[%s2926 + $0x10] sm:$0xff]
  %v2930 = vld [vmem:[%s2926 + $0x18] sm:$0xff]
  %v2931 = vld [vmem:[%s2926 + $0x20] sm:$0xff]
  %v2932 = vld [vmem:[%s2926 + $0x28] sm:$0xff]
  %v2933 = vld [vmem:[%s2926 + $0x30] sm:$0xff]
  %v2934 = vld [vmem:[%s2926 + $0x38] sm:$0xff]
  %v2935 = vrot.slane %v2175, 1
  %v2936 = vsel %vm2187, %v2935, 0
  %2938 = vmatprep.subr.mxu0 0.0
  %2939 = vmatpush1.msra.mxu0 %v2927
  %2940 = vmatprep.subr.mxu0 0.0
  %2941 = vmatpush1.msra.mxu0 %v2928
  %2942 = vmatprep.subr.mxu0 0.0
  %2943 = vmatpush1.msra.mxu0 %v2929
  %2944 = vmatprep.subr.mxu0 0.0
  %2945 = vmatpush1.msra.mxu0 %v2930
  %2946 = vmatprep.subr.mxu0 0.0
  %2947 = vmatpush1.msra.mxu0 %v2931
  %2948 = vmatprep.subr.mxu0 0.0
  %2949 = vmatpush1.msra.mxu0 %v2932
  %2950 = vmatprep.subr.mxu0 0.0
  %2951 = vmatpush1.msra.mxu0 %v2933
  %2952 = vmatprep.subr.mxu0 0.0
  %2953 = vmatpush1.msra.mxu0 %v2934
  %2954 = vmatprep.subr.mxu0 0.0
  %2955 = vmatpush1.msra.mxu0 0.0
  %2956 = vmatprep.subr.mxu0 0.0
  %2957 = vmatpush1.msra.mxu0 0.0
  %2958 = vmatprep.subr.mxu0 0.0
  %2959 = vmatpush1.msra.mxu0 0.0
  %2960 = vmatprep.subr.mxu0 0.0
  %2961 = vmatpush1.msra.mxu0 0.0
  %2962 = vmatprep.subr.mxu0 0.0
  %2963 = vmatpush1.msra.mxu0 0.0
  %2964 = vmatprep.subr.mxu0 0.0
  %2965 = vmatpush1.msra.mxu0 0.0
  %2966 = vmatprep.subr.mxu0 0.0
  %2967 = vmatpush1.msra.mxu0 0.0
  %2968 = vmatprep.subr.mxu0 0.0
  %2969 = vmatpush1.msra.mxu0 0.0
  %2970 = vmatprep.subr.mxu0 0.0
  %2971 = vmatpush1.msra.mxu0 0.0
  %2972 = vmatprep.subr.mxu0 0.0
  %2973 = vmatpush1.msra.mxu0 0.0
  %2974 = vmatprep.subr.mxu0 0.0
  %2975 = vmatpush1.msra.mxu0 0.0
  %2976 = vmatprep.subr.mxu0 0.0
  %2977 = vmatpush1.msra.mxu0 0.0
  %2978 = vmatprep.subr.mxu0 0.0
  %2979 = vmatpush1.msra.mxu0 0.0
  %2980 = vmatprep.subr.mxu0 0.0
  %2981 = vmatpush1.msra.mxu0 0.0
  %2982 = vmatprep.subr.mxu0 0.0
  %2983 = vmatpush1.msra.mxu0 0.0
  %2984 = vmatprep.subr.mxu0 0.0
  %2985 = vmatpush1.msra.mxu0 0.0
  %2986 = vmatprep.subr.mxu0 0.0
  %2987 = vmatpush1.msra.mxu0 0.0
  %2988 = vmatprep.subr.mxu0 0.0
  %2989 = vmatpush1.msra.mxu0 0.0
  %2990 = vmatprep.subr.mxu0 0.0
  %2991 = vmatpush1.msra.mxu0 0.0
  %2992 = vmatprep.subr.mxu0 0.0
  %2993 = vmatpush1.msra.mxu0 0.0
  %2994 = vmatprep.subr.mxu0 0.0
  %2995 = vmatpush1.msra.mxu0 0.0
  %2996 = vmatprep.subr.mxu0 0.0
  %2997 = vmatpush1.msra.mxu0 0.0
  %2998 = vmatprep.subr.mxu0 0.0
  %2999 = vmatpush1.msra.mxu0 0.0
  %3000 = vmatprep.subr.mxu0 0.0
  %3001 = vmatpush1.msra.mxu0 0.0
  %3002 = vmatprep.mubr.f32.mxu0 0.0
  %3003 = vmatmul.mubr.f32.gmra.mrb[0].mxu0 %v2936
  %v3004 = vpop.f32.mrb[0].mxu0
  %v3005 = vadd.f32 0.0, %v3004
  %v3006 = vpop.f32.mrb[0].mxu0
  %3007 = vdwg.mxu0
  %v3008 = vadd.f32 %v2925, %v3005
  %s3009 = scalar_lea.vmem %s6, 640
  %v3010 = vld [vmem:[%s3009] sm:$0xff]
  %v3011 = vld [vmem:[%s3009 + $0x8] sm:$0xff]
  %v3012 = vld [vmem:[%s3009 + $0x10] sm:$0xff]
  %v3013 = vld [vmem:[%s3009 + $0x18] sm:$0xff]
  %v3014 = vld [vmem:[%s3009 + $0x20] sm:$0xff]
  %v3015 = vld [vmem:[%s3009 + $0x28] sm:$0xff]
  %v3016 = vld [vmem:[%s3009 + $0x30] sm:$0xff]
  %v3017 = vld [vmem:[%s3009 + $0x38] sm:$0xff]
  %v3018 = vrot.slane %v2175, 2
  %v3019 = vsel %vm2187, %v3018, 0
  %3021 = vmatprep.subr.mxu0 0.0
  %3022 = vmatpush1.msra.mxu0 %v3010
  %3023 = vmatprep.subr.mxu0 0.0
  %3024 = vmatpush1.msra.mxu0 %v3011
  %3025 = vmatprep.subr.mxu0 0.0
  %3026 = vmatpush1.msra.mxu0 %v3012
  %3027 = vmatprep.subr.mxu0 0.0
  %3028 = vmatpush1.msra.mxu0 %v3013
  %3029 = vmatprep.subr.mxu0 0.0
  %3030 = vmatpush1.msra.mxu0 %v3014
  %3031 = vmatprep.subr.mxu0 0.0
  %3032 = vmatpush1.msra.mxu0 %v3015
  %3033 = vmatprep.subr.mxu0 0.0
  %3034 = vmatpush1.msra.mxu0 %v3016
  %3035 = vmatprep.subr.mxu0 0.0
  %3036 = vmatpush1.msra.mxu0 %v3017
  %3037 = vmatprep.subr.mxu0 0.0
  %3038 = vmatpush1.msra.mxu0 0.0
  %3039 = vmatprep.subr.mxu0 0.0
  %3040 = vmatpush1.msra.mxu0 0.0
  %3041 = vmatprep.subr.mxu0 0.0
  %3042 = vmatpush1.msra.mxu0 0.0
  %3043 = vmatprep.subr.mxu0 0.0
  %3044 = vmatpush1.msra.mxu0 0.0
  %3045 = vmatprep.subr.mxu0 0.0
  %3046 = vmatpush1.msra.mxu0 0.0
  %3047 = vmatprep.subr.mxu0 0.0
  %3048 = vmatpush1.msra.mxu0 0.0
  %3049 = vmatprep.subr.mxu0 0.0
  %3050 = vmatpush1.msra.mxu0 0.0
  %3051 = vmatprep.subr.mxu0 0.0
  %3052 = vmatpush1.msra.mxu0 0.0
  %3053 = vmatprep.subr.mxu0 0.0
  %3054 = vmatpush1.msra.mxu0 0.0
  %3055 = vmatprep.subr.mxu0 0.0
  %3056 = vmatpush1.msra.mxu0 0.0
  %3057 = vmatprep.subr.mxu0 0.0
  %3058 = vmatpush1.msra.mxu0 0.0
  %3059 = vmatprep.subr.mxu0 0.0
  %3060 = vmatpush1.msra.mxu0 0.0
  %3061 = vmatprep.subr.mxu0 0.0
  %3062 = vmatpush1.msra.mxu0 0.0
  %3063 = vmatprep.subr.mxu0 0.0
  %3064 = vmatpush1.msra.mxu0 0.0
  %3065 = vmatprep.subr.mxu0 0.0
  %3066 = vmatpush1.msra.mxu0 0.0
  %3067 = vmatprep.subr.mxu0 0.0
  %3068 = vmatpush1.msra.mxu0 0.0
  %3069 = vmatprep.subr.mxu0 0.0
  %3070 = vmatpush1.msra.mxu0 0.0
  %3071 = vmatprep.subr.mxu0 0.0
  %3072 = vmatpush1.msra.mxu0 0.0
  %3073 = vmatprep.subr.mxu0 0.0
  %3074 = vmatpush1.msra.mxu0 0.0
  %3075 = vmatprep.subr.mxu0 0.0
  %3076 = vmatpush1.msra.mxu0 0.0
  %3077 = vmatprep.subr.mxu0 0.0
  %3078 = vmatpush1.msra.mxu0 0.0
  %3079 = vmatprep.subr.mxu0 0.0
  %3080 = vmatpush1.msra.mxu0 0.0
  %3081 = vmatprep.subr.mxu0 0.0
  %3082 = vmatpush1.msra.mxu0 0.0
  %3083 = vmatprep.subr.mxu0 0.0
  %3084 = vmatpush1.msra.mxu0 0.0
  %3085 = vmatprep.mubr.f32.mxu0 0.0
  %3086 = vmatmul.mubr.f32.gmra.mrb[0].mxu0 %v3019
  %v3087 = vpop.f32.mrb[0].mxu0
  %v3088 = vadd.f32 0.0, %v3087
  %v3089 = vpop.f32.mrb[0].mxu0
  %3090 = vdwg.mxu0
  %v3091 = vadd.f32 %v3008, %v3088
  %s3092 = scalar_lea.vmem %s6, 704
  %v3093 = vld [vmem:[%s3092] sm:$0xff]
  %v3094 = vld [vmem:[%s3092 + $0x8] sm:$0xff]
  %v3095 = vld [vmem:[%s3092 + $0x10] sm:$0xff]
  %v3096 = vld [vmem:[%s3092 + $0x18] sm:$0xff]
  %v3097 = vld [vmem:[%s3092 + $0x20] sm:$0xff]
  %v3098 = vld [vmem:[%s3092 + $0x28] sm:$0xff]
  %v3099 = vld [vmem:[%s3092 + $0x30] sm:$0xff]
  %v3100 = vld [vmem:[%s3092 + $0x38] sm:$0xff]
  %v3101 = vrot.slane %v2175, 3
  %v3102 = vsel %vm2187, %v3101, 0
  %3104 = vmatprep.subr.mxu0 0.0
  %3105 = vmatpush1.msra.mxu0 %v3093
  %3106 = vmatprep.subr.mxu0 0.0
  %3107 = vmatpush1.msra.mxu0 %v3094
  %3108 = vmatprep.subr.mxu0 0.0
  %3109 = vmatpush1.msra.mxu0 %v3095
  %3110 = vmatprep.subr.mxu0 0.0
  %3111 = vmatpush1.msra.mxu0 %v3096
  %3112 = vmatprep.subr.mxu0 0.0
  %3113 = vmatpush1.msra.mxu0 %v3097
  %3114 = vmatprep.subr.mxu0 0.0
  %3115 = vmatpush1.msra.mxu0 %v3098
  %3116 = vmatprep.subr.mxu0 0.0
  %3117 = vmatpush1.msra.mxu0 %v3099
  %3118 = vmatprep.subr.mxu0 0.0
  %3119 = vmatpush1.msra.mxu0 %v3100
  %3120 = vmatprep.subr.mxu0 0.0
  %3121 = vmatpush1.msra.mxu0 0.0
  %3122 = vmatprep.subr.mxu0 0.0
  %3123 = vmatpush1.msra.mxu0 0.0
  %3124 = vmatprep.subr.mxu0 0.0
  %3125 = vmatpush1.msra.mxu0 0.0
  %3126 = vmatprep.subr.mxu0 0.0
  %3127 = vmatpush1.msra.mxu0 0.0
  %3128 = vmatprep.subr.mxu0 0.0
  %3129 = vmatpush1.msra.mxu0 0.0
  %3130 = vmatprep.subr.mxu0 0.0
  %3131 = vmatpush1.msra.mxu0 0.0
  %3132 = vmatprep.subr.mxu0 0.0
  %3133 = vmatpush1.msra.mxu0 0.0
  %3134 = vmatprep.subr.mxu0 0.0
  %3135 = vmatpush1.msra.mxu0 0.0
  %3136 = vmatprep.subr.mxu0 0.0
  %3137 = vmatpush1.msra.mxu0 0.0
  %3138 = vmatprep.subr.mxu0 0.0
  %3139 = vmatpush1.msra.mxu0 0.0
  %3140 = vmatprep.subr.mxu0 0.0
  %3141 = vmatpush1.msra.mxu0 0.0
  %3142 = vmatprep.subr.mxu0 0.0
  %3143 = vmatpush1.msra.mxu0 0.0
  %3144 = vmatprep.subr.mxu0 0.0
  %3145 = vmatpush1.msra.mxu0 0.0
  %3146 = vmatprep.subr.mxu0 0.0
  %3147 = vmatpush1.msra.mxu0 0.0
  %3148 = vmatprep.subr.mxu0 0.0
  %3149 = vmatpush1.msra.mxu0 0.0
  %3150 = vmatprep.subr.mxu0 0.0
  %3151 = vmatpush1.msra.mxu0 0.0
  %3152 = vmatprep.subr.mxu0 0.0
  %3153 = vmatpush1.msra.mxu0 0.0
  %3154 = vmatprep.subr.mxu0 0.0
  %3155 = vmatpush1.msra.mxu0 0.0
  %3156 = vmatprep.subr.mxu0 0.0
  %3157 = vmatpush1.msra.mxu0 0.0
  %3158 = vmatprep.subr.mxu0 0.0
  %3159 = vmatpush1.msra.mxu0 0.0
  %3160 = vmatprep.subr.mxu0 0.0
  %3161 = vmatpush1.msra.mxu0 0.0
  %3162 = vmatprep.subr.mxu0 0.0
  %3163 = vmatpush1.msra.mxu0 0.0
  %3164 = vmatprep.subr.mxu0 0.0
  %3165 = vmatpush1.msra.mxu0 0.0
  %3166 = vmatprep.subr.mxu0 0.0
  %3167 = vmatpush1.msra.mxu0 0.0
  %3168 = vmatprep.mubr.f32.mxu0 0.0
  %3169 = vmatmul.mubr.f32.gmra.mrb[0].mxu0 %v3102
  %v3170 = vpop.f32.mrb[0].mxu0
  %v3171 = vadd.f32 0.0, %v3170
  %v3172 = vpop.f32.mrb[0].mxu0
  %3173 = vdwg.mxu0
  %v3174 = vadd.f32 %v3091, %v3171
  %s3175 = scalar_lea.vmem %s6, 768
  %v3176 = vld [vmem:[%s3175] sm:$0xff]
  %v3177 = vld [vmem:[%s3175 + $0x8] sm:$0xff]
  %v3178 = vld [vmem:[%s3175 + $0x10] sm:$0xff]
  %v3179 = vld [vmem:[%s3175 + $0x18] sm:$0xff]
  %v3180 = vld [vmem:[%s3175 + $0x20] sm:$0xff]
  %v3181 = vld [vmem:[%s3175 + $0x28] sm:$0xff]
  %v3182 = vld [vmem:[%s3175 + $0x30] sm:$0xff]
  %v3183 = vld [vmem:[%s3175 + $0x38] sm:$0xff]
  %v3184 = vrot.slane %v2175, 4
  %v3185 = vsel %vm2187, %v3184, 0
  %3187 = vmatprep.subr.mxu0 0.0
  %3188 = vmatpush1.msra.mxu0 %v3176
  %3189 = vmatprep.subr.mxu0 0.0
  %3190 = vmatpush1.msra.mxu0 %v3177
  %3191 = vmatprep.subr.mxu0 0.0
  %3192 = vmatpush1.msra.mxu0 %v3178
  %3193 = vmatprep.subr.mxu0 0.0
  %3194 = vmatpush1.msra.mxu0 %v3179
  %3195 = vmatprep.subr.mxu0 0.0
  %3196 = vmatpush1.msra.mxu0 %v3180
  %3197 = vmatprep.subr.mxu0 0.0
  %3198 = vmatpush1.msra.mxu0 %v3181
  %3199 = vmatprep.subr.mxu0 0.0
  %3200 = vmatpush1.msra.mxu0 %v3182
  %3201 = vmatprep.subr.mxu0 0.0
  %3202 = vmatpush1.msra.mxu0 %v3183
  %3203 = vmatprep.subr.mxu0 0.0
  %3204 = vmatpush1.msra.mxu0 0.0
  %3205 = vmatprep.subr.mxu0 0.0
  %3206 = vmatpush1.msra.mxu0 0.0
  %3207 = vmatprep.subr.mxu0 0.0
  %3208 = vmatpush1.msra.mxu0 0.0
  %3209 = vmatprep.subr.mxu0 0.0
  %3210 = vmatpush1.msra.mxu0 0.0
  %3211 = vmatprep.subr.mxu0 0.0
  %3212 = vmatpush1.msra.mxu0 0.0
  %3213 = vmatprep.subr.mxu0 0.0
  %3214 = vmatpush1.msra.mxu0 0.0
  %3215 = vmatprep.subr.mxu0 0.0
  %3216 = vmatpush1.msra.mxu0 0.0
  %3217 = vmatprep.subr.mxu0 0.0
  %3218 = vmatpush1.msra.mxu0 0.0
  %3219 = vmatprep.subr.mxu0 0.0
  %3220 = vmatpush1.msra.mxu0 0.0
  %3221 = vmatprep.subr.mxu0 0.0
  %3222 = vmatpush1.msra.mxu0 0.0
  %3223 = vmatprep.subr.mxu0 0.0
  %3224 = vmatpush1.msra.mxu0 0.0
  %3225 = vmatprep.subr.mxu0 0.0
  %3226 = vmatpush1.msra.mxu0 0.0
  %3227 = vmatprep.subr.mxu0 0.0
  %3228 = vmatpush1.msra.mxu0 0.0
  %3229 = vmatprep.subr.mxu0 0.0
  %3230 = vmatpush1.msra.mxu0 0.0
  %3231 = vmatprep.subr.mxu0 0.0
  %3232 = vmatpush1.msra.mxu0 0.0
  %3233 = vmatprep.subr.mxu0 0.0
  %3234 = vmatpush1.msra.mxu0 0.0
  %3235 = vmatprep.subr.mxu0 0.0
  %3236 = vmatpush1.msra.mxu0 0.0
  %3237 = vmatprep.subr.mxu0 0.0
  %3238 = vmatpush1.msra.mxu0 0.0
  %3239 = vmatprep.subr.mxu0 0.0
  %3240 = vmatpush1.msra.mxu0 0.0
  %3241 = vmatprep.subr.mxu0 0.0
  %3242 = vmatpush1.msra.mxu0 0.0
  %3243 = vmatprep.subr.mxu0 0.0
  %3244 = vmatpush1.msra.mxu0 0.0
  %3245 = vmatprep.subr.mxu0 0.0
  %3246 = vmatpush1.msra.mxu0 0.0
  %3247 = vmatprep.subr.mxu0 0.0
  %3248 = vmatpush1.msra.mxu0 0.0
  %3249 = vmatprep.subr.mxu0 0.0
  %3250 = vmatpush1.msra.mxu0 0.0
  %3251 = vmatprep.mubr.f32.mxu0 0.0
  %3252 = vmatmul.mubr.f32.gmra.mrb[0].mxu0 %v3185
  %v3253 = vpop.f32.mrb[0].mxu0
  %v3254 = vadd.f32 0.0, %v3253
  %v3255 = vpop.f32.mrb[0].mxu0
  %3256 = vdwg.mxu0
  %v3257 = vadd.f32 %v3174, %v3254
  %s3258 = scalar_lea.vmem %s6, 832
  %v3259 = vld [vmem:[%s3258] sm:$0xff]
  %v3260 = vld [vmem:[%s3258 + $0x8] sm:$0xff]
  %v3261 = vld [vmem:[%s3258 + $0x10] sm:$0xff]
  %v3262 = vld [vmem:[%s3258 + $0x18] sm:$0xff]
  %v3263 = vld [vmem:[%s3258 + $0x20] sm:$0xff]
  %v3264 = vld [vmem:[%s3258 + $0x28] sm:$0xff]
  %v3265 = vld [vmem:[%s3258 + $0x30] sm:$0xff]
  %v3266 = vld [vmem:[%s3258 + $0x38] sm:$0xff]
  %v3267 = vrot.slane %v2175, 5
  %v3268 = vsel %vm2187, %v3267, 0
  %3270 = vmatprep.subr.mxu0 0.0
  %3271 = vmatpush1.msra.mxu0 %v3259
  %3272 = vmatprep.subr.mxu0 0.0
  %3273 = vmatpush1.msra.mxu0 %v3260
  %3274 = vmatprep.subr.mxu0 0.0
  %3275 = vmatpush1.msra.mxu0 %v3261
  %3276 = vmatprep.subr.mxu0 0.0
  %3277 = vmatpush1.msra.mxu0 %v3262
  %3278 = vmatprep.subr.mxu0 0.0
  %3279 = vmatpush1.msra.mxu0 %v3263
  %3280 = vmatprep.subr.mxu0 0.0
  %3281 = vmatpush1.msra.mxu0 %v3264
  %3282 = vmatprep.subr.mxu0 0.0
  %3283 = vmatpush1.msra.mxu0 %v3265
  %3284 = vmatprep.subr.mxu0 0.0
  %3285 = vmatpush1.msra.mxu0 %v3266
  %3286 = vmatprep.subr.mxu0 0.0
  %3287 = vmatpush1.msra.mxu0 0.0
  %3288 = vmatprep.subr.mxu0 0.0
  %3289 = vmatpush1.msra.mxu0 0.0
  %3290 = vmatprep.subr.mxu0 0.0
  %3291 = vmatpush1.msra.mxu0 0.0
  %3292 = vmatprep.subr.mxu0 0.0
  %3293 = vmatpush1.msra.mxu0 0.0
  %3294 = vmatprep.subr.mxu0 0.0
  %3295 = vmatpush1.msra.mxu0 0.0
  %3296 = vmatprep.subr.mxu0 0.0
  %3297 = vmatpush1.msra.mxu0 0.0
  %3298 = vmatprep.subr.mxu0 0.0
  %3299 = vmatpush1.msra.mxu0 0.0
  %3300 = vmatprep.subr.mxu0 0.0
  %3301 = vmatpush1.msra.mxu0 0.0
  %3302 = vmatprep.subr.mxu0 0.0
  %3303 = vmatpush1.msra.mxu0 0.0
  %3304 = vmatprep.subr.mxu0 0.0
  %3305 = vmatpush1.msra.mxu0 0.0
  %3306 = vmatprep.subr.mxu0 0.0
  %3307 = vmatpush1.msra.mxu0 0.0
  %3308 = vmatprep.subr.mxu0 0.0
  %3309 = vmatpush1.msra.mxu0 0.0
  %3310 = vmatprep.subr.mxu0 0.0
  %3311 = vmatpush1.msra.mxu0 0.0
  %3312 = vmatprep.subr.mxu0 0.0
  %3313 = vmatpush1.msra.mxu0 0.0
  %3314 = vmatprep.subr.mxu0 0.0
  %3315 = vmatpush1.msra.mxu0 0.0
  %3316 = vmatprep.subr.mxu0 0.0
  %3317 = vmatpush1.msra.mxu0 0.0
  %3318 = vmatprep.subr.mxu0 0.0
  %3319 = vmatpush1.msra.mxu0 0.0
  %3320 = vmatprep.subr.mxu0 0.0
  %3321 = vmatpush1.msra.mxu0 0.0
  %3322 = vmatprep.subr.mxu0 0.0
  %3323 = vmatpush1.msra.mxu0 0.0
  %3324 = vmatprep.subr.mxu0 0.0
  %3325 = vmatpush1.msra.mxu0 0.0
  %3326 = vmatprep.subr.mxu0 0.0
  %3327 = vmatpush1.msra.mxu0 0.0
  %3328 = vmatprep.subr.mxu0 0.0
  %3329 = vmatpush1.msra.mxu0 0.0
  %3330 = vmatprep.subr.mxu0 0.0
  %3331 = vmatpush1.msra.mxu0 0.0
  %3332 = vmatprep.subr.mxu0 0.0
  %3333 = vmatpush1.msra.mxu0 0.0
  %3334 = vmatprep.mubr.f32.mxu0 0.0
  %3335 = vmatmul.mubr.f32.gmra.mrb[0].mxu0 %v3268
  %v3336 = vpop.f32.mrb[0].mxu0
  %v3337 = vadd.f32 0.0, %v3336
  %v3338 = vpop.f32.mrb[0].mxu0
  %3339 = vdwg.mxu0
  %v3340 = vadd.f32 %v3257, %v3337
  %s3341 = scalar_lea.vmem %s6, 896
  %v3342 = vld [vmem:[%s3341] sm:$0xff]
  %v3343 = vld [vmem:[%s3341 + $0x8] sm:$0xff]
  %v3344 = vld [vmem:[%s3341 + $0x10] sm:$0xff]
  %v3345 = vld [vmem:[%s3341 + $0x18] sm:$0xff]
  %v3346 = vld [vmem:[%s3341 + $0x20] sm:$0xff]
  %v3347 = vld [vmem:[%s3341 + $0x28] sm:$0xff]
  %v3348 = vld [vmem:[%s3341 + $0x30] sm:$0xff]
  %v3349 = vld [vmem:[%s3341 + $0x38] sm:$0xff]
  %v3350 = vrot.slane %v2175, 6
  %v3351 = vsel %vm2187, %v3350, 0
  %3353 = vmatprep.subr.mxu0 0.0
  %3354 = vmatpush1.msra.mxu0 %v3342
  %3355 = vmatprep.subr.mxu0 0.0
  %3356 = vmatpush1.msra.mxu0 %v3343
  %3357 = vmatprep.subr.mxu0 0.0
  %3358 = vmatpush1.msra.mxu0 %v3344
  %3359 = vmatprep.subr.mxu0 0.0
  %3360 = vmatpush1.msra.mxu0 %v3345
  %3361 = vmatprep.subr.mxu0 0.0
  %3362 = vmatpush1.msra.mxu0 %v3346
  %3363 = vmatprep.subr.mxu0 0.0
  %3364 = vmatpush1.msra.mxu0 %v3347
  %3365 = vmatprep.subr.mxu0 0.0
  %3366 = vmatpush1.msra.mxu0 %v3348
  %3367 = vmatprep.subr.mxu0 0.0
  %3368 = vmatpush1.msra.mxu0 %v3349
  %3369 = vmatprep.subr.mxu0 0.0
  %3370 = vmatpush1.msra.mxu0 0.0
  %3371 = vmatprep.subr.mxu0 0.0
  %3372 = vmatpush1.msra.mxu0 0.0
  %3373 = vmatprep.subr.mxu0 0.0
  %3374 = vmatpush1.msra.mxu0 0.0
  %3375 = vmatprep.subr.mxu0 0.0
  %3376 = vmatpush1.msra.mxu0 0.0
  %3377 = vmatprep.subr.mxu0 0.0
  %3378 = vmatpush1.msra.mxu0 0.0
  %3379 = vmatprep.subr.mxu0 0.0
  %3380 = vmatpush1.msra.mxu0 0.0
  %3381 = vmatprep.subr.mxu0 0.0
  %3382 = vmatpush1.msra.mxu0 0.0
  %3383 = vmatprep.subr.mxu0 0.0
  %3384 = vmatpush1.msra.mxu0 0.0
  %3385 = vmatprep.subr.mxu0 0.0
  %3386 = vmatpush1.msra.mxu0 0.0
  %3387 = vmatprep.subr.mxu0 0.0
  %3388 = vmatpush1.msra.mxu0 0.0
  %3389 = vmatprep.subr.mxu0 0.0
  %3390 = vmatpush1.msra.mxu0 0.0
  %3391 = vmatprep.subr.mxu0 0.0
  %3392 = vmatpush1.msra.mxu0 0.0
  %3393 = vmatprep.subr.mxu0 0.0
  %3394 = vmatpush1.msra.mxu0 0.0
  %3395 = vmatprep.subr.mxu0 0.0
  %3396 = vmatpush1.msra.mxu0 0.0
  %3397 = vmatprep.subr.mxu0 0.0
  %3398 = vmatpush1.msra.mxu0 0.0
  %3399 = vmatprep.subr.mxu0 0.0
  %3400 = vmatpush1.msra.mxu0 0.0
  %3401 = vmatprep.subr.mxu0 0.0
  %3402 = vmatpush1.msra.mxu0 0.0
  %3403 = vmatprep.subr.mxu0 0.0
  %3404 = vmatpush1.msra.mxu0 0.0
  %3405 = vmatprep.subr.mxu0 0.0
  %3406 = vmatpush1.msra.mxu0 0.0
  %3407 = vmatprep.subr.mxu0 0.0
  %3408 = vmatpush1.msra.mxu0 0.0
  %3409 = vmatprep.subr.mxu0 0.0
  %3410 = vmatpush1.msra.mxu0 0.0
  %3411 = vmatprep.subr.mxu0 0.0
  %3412 = vmatpush1.msra.mxu0 0.0
  %3413 = vmatprep.subr.mxu0 0.0
  %3414 = vmatpush1.msra.mxu0 0.0
  %3415 = vmatprep.subr.mxu0 0.0
  %3416 = vmatpush1.msra.mxu0 0.0
  %3417 = vmatprep.mubr.f32.mxu0 0.0
  %3418 = vmatmul.mubr.f32.gmra.mrb[0].mxu0 %v3351
  %v3419 = vpop.f32.mrb[0].mxu0
  %v3420 = vadd.f32 0.0, %v3419
  %v3421 = vpop.f32.mrb[0].mxu0
  %3422 = vdwg.mxu0
  %v3423 = vadd.f32 %v3340, %v3420
  %s3424 = scalar_lea.vmem %s6, 960
  %v3425 = vld [vmem:[%s3424] sm:$0xff]
  %v3426 = vld [vmem:[%s3424 + $0x8] sm:$0xff]
  %v3427 = vld [vmem:[%s3424 + $0x10] sm:$0xff]
  %v3428 = vld [vmem:[%s3424 + $0x18] sm:$0xff]
  %v3429 = vld [vmem:[%s3424 + $0x20] sm:$0xff]
  %v3430 = vld [vmem:[%s3424 + $0x28] sm:$0xff]
  %v3431 = vld [vmem:[%s3424 + $0x30] sm:$0xff]
  %v3432 = vld [vmem:[%s3424 + $0x38] sm:$0xff]
  %v3433 = vrot.slane %v2175, 7
  %v3434 = vsel %vm2187, %v3433, 0
  %3436 = vmatprep.subr.mxu0 0.0
  %3437 = vmatpush1.msra.mxu0 %v3425
  %3438 = vmatprep.subr.mxu0 0.0
  %3439 = vmatpush1.msra.mxu0 %v3426
  %3440 = vmatprep.subr.mxu0 0.0
  %3441 = vmatpush1.msra.mxu0 %v3427
  %3442 = vmatprep.subr.mxu0 0.0
  %3443 = vmatpush1.msra.mxu0 %v3428
  %3444 = vmatprep.subr.mxu0 0.0
  %3445 = vmatpush1.msra.mxu0 %v3429
  %3446 = vmatprep.subr.mxu0 0.0
  %3447 = vmatpush1.msra.mxu0 %v3430
  %3448 = vmatprep.subr.mxu0 0.0
  %3449 = vmatpush1.msra.mxu0 %v3431
  %3450 = vmatprep.subr.mxu0 0.0
  %3451 = vmatpush1.msra.mxu0 %v3432
  %3452 = vmatprep.subr.mxu0 0.0
  %3453 = vmatpush1.msra.mxu0 0.0
  %3454 = vmatprep.subr.mxu0 0.0
  %3455 = vmatpush1.msra.mxu0 0.0
  %3456 = vmatprep.subr.mxu0 0.0
  %3457 = vmatpush1.msra.mxu0 0.0
  %3458 = vmatprep.subr.mxu0 0.0
  %3459 = vmatpush1.msra.mxu0 0.0
  %3460 = vmatprep.subr.mxu0 0.0
  %3461 = vmatpush1.msra.mxu0 0.0
  %3462 = vmatprep.subr.mxu0 0.0
  %3463 = vmatpush1.msra.mxu0 0.0
  %3464 = vmatprep.subr.mxu0 0.0
  %3465 = vmatpush1.msra.mxu0 0.0
  %3466 = vmatprep.subr.mxu0 0.0
  %3467 = vmatpush1.msra.mxu0 0.0
  %3468 = vmatprep.subr.mxu0 0.0
  %3469 = vmatpush1.msra.mxu0 0.0
  %3470 = vmatprep.subr.mxu0 0.0
  %3471 = vmatpush1.msra.mxu0 0.0
  %3472 = vmatprep.subr.mxu0 0.0
  %3473 = vmatpush1.msra.mxu0 0.0
  %3474 = vmatprep.subr.mxu0 0.0
  %3475 = vmatpush1.msra.mxu0 0.0
  %3476 = vmatprep.subr.mxu0 0.0
  %3477 = vmatpush1.msra.mxu0 0.0
  %3478 = vmatprep.subr.mxu0 0.0
  %3479 = vmatpush1.msra.mxu0 0.0
  %3480 = vmatprep.subr.mxu0 0.0
  %3481 = vmatpush1.msra.mxu0 0.0
  %3482 = vmatprep.subr.mxu0 0.0
  %3483 = vmatpush1.msra.mxu0 0.0
  %3484 = vmatprep.subr.mxu0 0.0
  %3485 = vmatpush1.msra.mxu0 0.0
  %3486 = vmatprep.subr.mxu0 0.0
  %3487 = vmatpush1.msra.mxu0 0.0
  %3488 = vmatprep.subr.mxu0 0.0
  %3489 = vmatpush1.msra.mxu0 0.0
  %3490 = vmatprep.subr.mxu0 0.0
  %3491 = vmatpush1.msra.mxu0 0.0
  %3492 = vmatprep.subr.mxu0 0.0
  %3493 = vmatpush1.msra.mxu0 0.0
  %3494 = vmatprep.subr.mxu0 0.0
  %3495 = vmatpush1.msra.mxu0 0.0
  %3496 = vmatprep.subr.mxu0 0.0
  %3497 = vmatpush1.msra.mxu0 0.0
  %3498 = vmatprep.subr.mxu0 0.0
  %3499 = vmatpush1.msra.mxu0 0.0
  %3500 = vmatprep.mubr.f32.mxu0 0.0
  %3501 = vmatmul.mubr.f32.gmra.mrb[0].mxu0 %v3434
  %v3502 = vpop.f32.mrb[0].mxu0
  %v3503 = vadd.f32 0.0, %v3502
  %v3504 = vpop.f32.mrb[0].mxu0
  %3505 = vdwg.mxu0
  %v3506 = vadd.f32 %v3423, %v3503
  %s3507 = scalar_lea.vmem %s6, 1024
  %v3508 = vld [vmem:[%s3507] sm:$0xff]
  %v3509 = vld [vmem:[%s3507 + $0x8] sm:$0xff]
  %v3510 = vld [vmem:[%s3507 + $0x10] sm:$0xff]
  %v3511 = vld [vmem:[%s3507 + $0x18] sm:$0xff]
  %v3512 = vld [vmem:[%s3507 + $0x20] sm:$0xff]
  %v3513 = vld [vmem:[%s3507 + $0x28] sm:$0xff]
  %v3514 = vld [vmem:[%s3507 + $0x30] sm:$0xff]
  %v3515 = vld [vmem:[%s3507 + $0x38] sm:$0xff]
  %v3517 = vsel %vm2187, %v2176, 0
  %3519 = vmatprep.subr.mxu0 0.0
  %3520 = vmatpush1.msra.mxu0 %v3508
  %3521 = vmatprep.subr.mxu0 0.0
  %3522 = vmatpush1.msra.mxu0 %v3509
  %3523 = vmatprep.subr.mxu0 0.0
  %3524 = vmatpush1.msra.mxu0 %v3510
  %3525 = vmatprep.subr.mxu0 0.0
  %3526 = vmatpush1.msra.mxu0 %v3511
  %3527 = vmatprep.subr.mxu0 0.0
  %3528 = vmatpush1.msra.mxu0 %v3512
  %3529 = vmatprep.subr.mxu0 0.0
  %3530 = vmatpush1.msra.mxu0 %v3513
  %3531 = vmatprep.subr.mxu0 0.0
  %3532 = vmatpush1.msra.mxu0 %v3514
  %3533 = vmatprep.subr.mxu0 0.0
  %3534 = vmatpush1.msra.mxu0 %v3515
  %3535 = vmatprep.subr.mxu0 0.0
  %3536 = vmatpush1.msra.mxu0 0.0
  %3537 = vmatprep.subr.mxu0 0.0
  %3538 = vmatpush1.msra.mxu0 0.0
  %3539 = vmatprep.subr.mxu0 0.0
  %3540 = vmatpush1.msra.mxu0 0.0
  %3541 = vmatprep.subr.mxu0 0.0
  %3542 = vmatpush1.msra.mxu0 0.0
  %3543 = vmatprep.subr.mxu0 0.0
  %3544 = vmatpush1.msra.mxu0 0.0
  %3545 = vmatprep.subr.mxu0 0.0
  %3546 = vmatpush1.msra.mxu0 0.0
  %3547 = vmatprep.subr.mxu0 0.0
  %3548 = vmatpush1.msra.mxu0 0.0
  %3549 = vmatprep.subr.mxu0 0.0
  %3550 = vmatpush1.msra.mxu0 0.0
  %3551 = vmatprep.subr.mxu0 0.0
  %3552 = vmatpush1.msra.mxu0 0.0
  %3553 = vmatprep.subr.mxu0 0.0
  %3554 = vmatpush1.msra.mxu0 0.0
  %3555 = vmatprep.subr.mxu0 0.0
  %3556 = vmatpush1.msra.mxu0 0.0
  %3557 = vmatprep.subr.mxu0 0.0
  %3558 = vmatpush1.msra.mxu0 0.0
  %3559 = vmatprep.subr.mxu0 0.0
  %3560 = vmatpush1.msra.mxu0 0.0
  %3561 = vmatprep.subr.mxu0 0.0
  %3562 = vmatpush1.msra.mxu0 0.0
  %3563 = vmatprep.subr.mxu0 0.0
  %3564 = vmatpush1.msra.mxu0 0.0
  %3565 = vmatprep.subr.mxu0 0.0
  %3566 = vmatpush1.msra.mxu0 0.0
  %3567 = vmatprep.subr.mxu0 0.0
  %3568 = vmatpush1.msra.mxu0 0.0
  %3569 = vmatprep.subr.mxu0 0.0
  %3570 = vmatpush1.msra.mxu0 0.0
  %3571 = vmatprep.subr.mxu0 0.0
  %3572 = vmatpush1.msra.mxu0 0.0
  %3573 = vmatprep.subr.mxu0 0.0
  %3574 = vmatpush1.msra.mxu0 0.0
  %3575 = vmatprep.subr.mxu0 0.0
  %3576 = vmatpush1.msra.mxu0 0.0
  %3577 = vmatprep.subr.mxu0 0.0
  %3578 = vmatpush1.msra.mxu0 0.0
  %3579 = vmatprep.subr.mxu0 0.0
  %3580 = vmatpush1.msra.mxu0 0.0
  %3581 = vmatprep.subr.mxu0 0.0
  %3582 = vmatpush1.msra.mxu0 0.0
  %3583 = vmatprep.mubr.f32.mxu0 0.0
  %3584 = vmatmul.mubr.f32.gmra.mrb[0].mxu0 %v3517
  %v3585 = vpop.f32.mrb[0].mxu0
  %v3586 = vadd.f32 0.0, %v3585
  %v3587 = vpop.f32.mrb[0].mxu0
  %3588 = vdwg.mxu0
  %v3589 = vadd.f32 %v3506, %v3586
  %s3590 = scalar_lea.vmem %s6, 1088
  %v3591 = vld [vmem:[%s3590] sm:$0xff]
  %v3592 = vld [vmem:[%s3590 + $0x8] sm:$0xff]
  %v3593 = vld [vmem:[%s3590 + $0x10] sm:$0xff]
  %v3594 = vld [vmem:[%s3590 + $0x18] sm:$0xff]
  %v3595 = vld [vmem:[%s3590 + $0x20] sm:$0xff]
  %v3596 = vld [vmem:[%s3590 + $0x28] sm:$0xff]
  %v3597 = vld [vmem:[%s3590 + $0x30] sm:$0xff]
  %v3598 = vld [vmem:[%s3590 + $0x38] sm:$0xff]
  %v3599 = vrot.slane %v2176, 1
  %v3600 = vsel %vm2187, %v3599, 0
  %3602 = vmatprep.subr.mxu0 0.0
  %3603 = vmatpush1.msra.mxu0 %v3591
  %3604 = vmatprep.subr.mxu0 0.0
  %3605 = vmatpush1.msra.mxu0 %v3592
  %3606 = vmatprep.subr.mxu0 0.0
  %3607 = vmatpush1.msra.mxu0 %v3593
  %3608 = vmatprep.subr.mxu0 0.0
  %3609 = vmatpush1.msra.mxu0 %v3594
  %3610 = vmatprep.subr.mxu0 0.0
  %3611 = vmatpush1.msra.mxu0 %v3595
  %3612 = vmatprep.subr.mxu0 0.0
  %3613 = vmatpush1.msra.mxu0 %v3596
  %3614 = vmatprep.subr.mxu0 0.0
  %3615 = vmatpush1.msra.mxu0 %v3597
  %3616 = vmatprep.subr.mxu0 0.0
  %3617 = vmatpush1.msra.mxu0 %v3598
  %3618 = vmatprep.subr.mxu0 0.0
  %3619 = vmatpush1.msra.mxu0 0.0
  %3620 = vmatprep.subr.mxu0 0.0
  %3621 = vmatpush1.msra.mxu0 0.0
  %3622 = vmatprep.subr.mxu0 0.0
  %3623 = vmatpush1.msra.mxu0 0.0
  %3624 = vmatprep.subr.mxu0 0.0
  %3625 = vmatpush1.msra.mxu0 0.0
  %3626 = vmatprep.subr.mxu0 0.0
  %3627 = vmatpush1.msra.mxu0 0.0
  %3628 = vmatprep.subr.mxu0 0.0
  %3629 = vmatpush1.msra.mxu0 0.0
  %3630 = vmatprep.subr.mxu0 0.0
  %3631 = vmatpush1.msra.mxu0 0.0
  %3632 = vmatprep.subr.mxu0 0.0
  %3633 = vmatpush1.msra.mxu0 0.0
  %3634 = vmatprep.subr.mxu0 0.0
  %3635 = vmatpush1.msra.mxu0 0.0
  %3636 = vmatprep.subr.mxu0 0.0
  %3637 = vmatpush1.msra.mxu0 0.0
  %3638 = vmatprep.subr.mxu0 0.0
  %3639 = vmatpush1.msra.mxu0 0.0
  %3640 = vmatprep.subr.mxu0 0.0
  %3641 = vmatpush1.msra.mxu0 0.0
  %3642 = vmatprep.subr.mxu0 0.0
  %3643 = vmatpush1.msra.mxu0 0.0
  %3644 = vmatprep.subr.mxu0 0.0
  %3645 = vmatpush1.msra.mxu0 0.0
  %3646 = vmatprep.subr.mxu0 0.0
  %3647 = vmatpush1.msra.mxu0 0.0
  %3648 = vmatprep.subr.mxu0 0.0
  %3649 = vmatpush1.msra.mxu0 0.0
  %3650 = vmatprep.subr.mxu0 0.0
  %3651 = vmatpush1.msra.mxu0 0.0
  %3652 = vmatprep.subr.mxu0 0.0
  %3653 = vmatpush1.msra.mxu0 0.0
  %3654 = vmatprep.subr.mxu0 0.0
  %3655 = vmatpush1.msra.mxu0 0.0
  %3656 = vmatprep.subr.mxu0 0.0
  %3657 = vmatpush1.msra.mxu0 0.0
  %3658 = vmatprep.subr.mxu0 0.0
  %3659 = vmatpush1.msra.mxu0 0.0
  %3660 = vmatprep.subr.mxu0 0.0
  %3661 = vmatpush1.msra.mxu0 0.0
  %3662 = vmatprep.subr.mxu0 0.0
  %3663 = vmatpush1.msra.mxu0 0.0
  %3664 = vmatprep.subr.mxu0 0.0
  %3665 = vmatpush1.msra.mxu0 0.0
  %3666 = vmatprep.mubr.f32.mxu0 0.0
  %3667 = vmatmul.mubr.f32.gmra.mrb[0].mxu0 %v3600
  %v3668 = vpop.f32.mrb[0].mxu0
  %v3669 = vadd.f32 0.0, %v3668
  %v3670 = vpop.f32.mrb[0].mxu0
  %3671 = vdwg.mxu0
  %v3672 = vadd.f32 %v3589, %v3669
  %s3673 = scalar_lea.vmem %s6, 1152
  %v3674 = vld [vmem:[%s3673] sm:$0xff]
  %v3675 = vld [vmem:[%s3673 + $0x8] sm:$0xff]
  %v3676 = vld [vmem:[%s3673 + $0x10] sm:$0xff]
  %v3677 = vld [vmem:[%s3673 + $0x18] sm:$0xff]
  %v3678 = vld [vmem:[%s3673 + $0x20] sm:$0xff]
  %v3679 = vld [vmem:[%s3673 + $0x28] sm:$0xff]
  %v3680 = vld [vmem:[%s3673 + $0x30] sm:$0xff]
  %v3681 = vld [vmem:[%s3673 + $0x38] sm:$0xff]
  %v3682 = vrot.slane %v2176, 2
  %v3683 = vsel %vm2187, %v3682, 0
  %3685 = vmatprep.subr.mxu0 0.0
  %3686 = vmatpush1.msra.mxu0 %v3674
  %3687 = vmatprep.subr.mxu0 0.0
  %3688 = vmatpush1.msra.mxu0 %v3675
  %3689 = vmatprep.subr.mxu0 0.0
  %3690 = vmatpush1.msra.mxu0 %v3676
  %3691 = vmatprep.subr.mxu0 0.0
  %3692 = vmatpush1.msra.mxu0 %v3677
  %3693 = vmatprep.subr.mxu0 0.0
  %3694 = vmatpush1.msra.mxu0 %v3678
  %3695 = vmatprep.subr.mxu0 0.0
  %3696 = vmatpush1.msra.mxu0 %v3679
  %3697 = vmatprep.subr.mxu0 0.0
  %3698 = vmatpush1.msra.mxu0 %v3680
  %3699 = vmatprep.subr.mxu0 0.0
  %3700 = vmatpush1.msra.mxu0 %v3681
  %3701 = vmatprep.subr.mxu0 0.0
  %3702 = vmatpush1.msra.mxu0 0.0
  %3703 = vmatprep.subr.mxu0 0.0
  %3704 = vmatpush1.msra.mxu0 0.0
  %3705 = vmatprep.subr.mxu0 0.0
  %3706 = vmatpush1.msra.mxu0 0.0
  %3707 = vmatprep.subr.mxu0 0.0
  %3708 = vmatpush1.msra.mxu0 0.0
  %3709 = vmatprep.subr.mxu0 0.0
  %3710 = vmatpush1.msra.mxu0 0.0
  %3711 = vmatprep.subr.mxu0 0.0
  %3712 = vmatpush1.msra.mxu0 0.0
  %3713 = vmatprep.subr.mxu0 0.0
  %3714 = vmatpush1.msra.mxu0 0.0
  %3715 = vmatprep.subr.mxu0 0.0
  %3716 = vmatpush1.msra.mxu0 0.0
  %3717 = vmatprep.subr.mxu0 0.0
  %3718 = vmatpush1.msra.mxu0 0.0
  %3719 = vmatprep.subr.mxu0 0.0
  %3720 = vmatpush1.msra.mxu0 0.0
  %3721 = vmatprep.subr.mxu0 0.0
  %3722 = vmatpush1.msra.mxu0 0.0
  %3723 = vmatprep.subr.mxu0 0.0
  %3724 = vmatpush1.msra.mxu0 0.0
  %3725 = vmatprep.subr.mxu0 0.0
  %3726 = vmatpush1.msra.mxu0 0.0
  %3727 = vmatprep.subr.mxu0 0.0
  %3728 = vmatpush1.msra.mxu0 0.0
  %3729 = vmatprep.subr.mxu0 0.0
  %3730 = vmatpush1.msra.mxu0 0.0
  %3731 = vmatprep.subr.mxu0 0.0
  %3732 = vmatpush1.msra.mxu0 0.0
  %3733 = vmatprep.subr.mxu0 0.0
  %3734 = vmatpush1.msra.mxu0 0.0
  %3735 = vmatprep.subr.mxu0 0.0
  %3736 = vmatpush1.msra.mxu0 0.0
  %3737 = vmatprep.subr.mxu0 0.0
  %3738 = vmatpush1.msra.mxu0 0.0
  %3739 = vmatprep.subr.mxu0 0.0
  %3740 = vmatpush1.msra.mxu0 0.0
  %3741 = vmatprep.subr.mxu0 0.0
  %3742 = vmatpush1.msra.mxu0 0.0
  %3743 = vmatprep.subr.mxu0 0.0
  %3744 = vmatpush1.msra.mxu0 0.0
  %3745 = vmatprep.subr.mxu0 0.0
  %3746 = vmatpush1.msra.mxu0 0.0
  %3747 = vmatprep.subr.mxu0 0.0
  %3748 = vmatpush1.msra.mxu0 0.0
  %3749 = vmatprep.mubr.f32.mxu0 0.0
  %3750 = vmatmul.mubr.f32.gmra.mrb[0].mxu0 %v3683
  %v3751 = vpop.f32.mrb[0].mxu0
  %v3752 = vadd.f32 0.0, %v3751
  %v3753 = vpop.f32.mrb[0].mxu0
  %3754 = vdwg.mxu0
  %v3755 = vadd.f32 %v3672, %v3752
  %s3756 = scalar_lea.vmem %s6, 1216
  %v3757 = vld [vmem:[%s3756] sm:$0xff]
  %v3758 = vld [vmem:[%s3756 + $0x8] sm:$0xff]
  %v3759 = vld [vmem:[%s3756 + $0x10] sm:$0xff]
  %v3760 = vld [vmem:[%s3756 + $0x18] sm:$0xff]
  %v3761 = vld [vmem:[%s3756 + $0x20] sm:$0xff]
  %v3762 = vld [vmem:[%s3756 + $0x28] sm:$0xff]
  %v3763 = vld [vmem:[%s3756 + $0x30] sm:$0xff]
  %v3764 = vld [vmem:[%s3756 + $0x38] sm:$0xff]
  %v3765 = vrot.slane %v2176, 3
  %v3766 = vsel %vm2187, %v3765, 0
  %3768 = vmatprep.subr.mxu0 0.0
  %3769 = vmatpush1.msra.mxu0 %v3757
  %3770 = vmatprep.subr.mxu0 0.0
  %3771 = vmatpush1.msra.mxu0 %v3758
  %3772 = vmatprep.subr.mxu0 0.0
  %3773 = vmatpush1.msra.mxu0 %v3759
  %3774 = vmatprep.subr.mxu0 0.0
  %3775 = vmatpush1.msra.mxu0 %v3760
  %3776 = vmatprep.subr.mxu0 0.0
  %3777 = vmatpush1.msra.mxu0 %v3761
  %3778 = vmatprep.subr.mxu0 0.0
  %3779 = vmatpush1.msra.mxu0 %v3762
  %3780 = vmatprep.subr.mxu0 0.0
  %3781 = vmatpush1.msra.mxu0 %v3763
  %3782 = vmatprep.subr.mxu0 0.0
  %3783 = vmatpush1.msra.mxu0 %v3764
  %3784 = vmatprep.subr.mxu0 0.0
  %3785 = vmatpush1.msra.mxu0 0.0
  %3786 = vmatprep.subr.mxu0 0.0
  %3787 = vmatpush1.msra.mxu0 0.0
  %3788 = vmatprep.subr.mxu0 0.0
  %3789 = vmatpush1.msra.mxu0 0.0
  %3790 = vmatprep.subr.mxu0 0.0
  %3791 = vmatpush1.msra.mxu0 0.0
  %3792 = vmatprep.subr.mxu0 0.0
  %3793 = vmatpush1.msra.mxu0 0.0
  %3794 = vmatprep.subr.mxu0 0.0
  %3795 = vmatpush1.msra.mxu0 0.0
  %3796 = vmatprep.subr.mxu0 0.0
  %3797 = vmatpush1.msra.mxu0 0.0
  %3798 = vmatprep.subr.mxu0 0.0
  %3799 = vmatpush1.msra.mxu0 0.0
  %3800 = vmatprep.subr.mxu0 0.0
  %3801 = vmatpush1.msra.mxu0 0.0
  %3802 = vmatprep.subr.mxu0 0.0
  %3803 = vmatpush1.msra.mxu0 0.0
  %3804 = vmatprep.subr.mxu0 0.0
  %3805 = vmatpush1.msra.mxu0 0.0
  %3806 = vmatprep.subr.mxu0 0.0
  %3807 = vmatpush1.msra.mxu0 0.0
  %3808 = vmatprep.subr.mxu0 0.0
  %3809 = vmatpush1.msra.mxu0 0.0
  %3810 = vmatprep.subr.mxu0 0.0
  %3811 = vmatpush1.msra.mxu0 0.0
  %3812 = vmatprep.subr.mxu0 0.0
  %3813 = vmatpush1.msra.mxu0 0.0
  %3814 = vmatprep.subr.mxu0 0.0
  %3815 = vmatpush1.msra.mxu0 0.0
  %3816 = vmatprep.subr.mxu0 0.0
  %3817 = vmatpush1.msra.mxu0 0.0
  %3818 = vmatprep.subr.mxu0 0.0
  %3819 = vmatpush1.msra.mxu0 0.0
  %3820 = vmatprep.subr.mxu0 0.0
  %3821 = vmatpush1.msra.mxu0 0.0
  %3822 = vmatprep.subr.mxu0 0.0
  %3823 = vmatpush1.msra.mxu0 0.0
  %3824 = vmatprep.subr.mxu0 0.0
  %3825 = vmatpush1.msra.mxu0 0.0
  %3826 = vmatprep.subr.mxu0 0.0
  %3827 = vmatpush1.msra.mxu0 0.0
  %3828 = vmatprep.subr.mxu0 0.0
  %3829 = vmatpush1.msra.mxu0 0.0
  %3830 = vmatprep.subr.mxu0 0.0
  %3831 = vmatpush1.msra.mxu0 0.0
  %3832 = vmatprep.mubr.f32.mxu0 0.0
  %3833 = vmatmul.mubr.f32.gmra.mrb[0].mxu0 %v3766
  %v3834 = vpop.f32.mrb[0].mxu0
  %v3835 = vadd.f32 0.0, %v3834
  %v3836 = vpop.f32.mrb[0].mxu0
  %3837 = vdwg.mxu0
  %v3838 = vadd.f32 %v3755, %v3835
  %s3839 = scalar_lea.vmem %s6, 1280
  %v3840 = vld [vmem:[%s3839] sm:$0xff]
  %v3841 = vld [vmem:[%s3839 + $0x8] sm:$0xff]
  %v3842 = vld [vmem:[%s3839 + $0x10] sm:$0xff]
  %v3843 = vld [vmem:[%s3839 + $0x18] sm:$0xff]
  %v3844 = vld [vmem:[%s3839 + $0x20] sm:$0xff]
  %v3845 = vld [vmem:[%s3839 + $0x28] sm:$0xff]
  %v3846 = vld [vmem:[%s3839 + $0x30] sm:$0xff]
  %v3847 = vld [vmem:[%s3839 + $0x38] sm:$0xff]
  %v3848 = vrot.slane %v2176, 4
  %v3849 = vsel %vm2187, %v3848, 0
  %3851 = vmatprep.subr.mxu0 0.0
  %3852 = vmatpush1.msra.mxu0 %v3840
  %3853 = vmatprep.subr.mxu0 0.0
  %3854 = vmatpush1.msra.mxu0 %v3841
  %3855 = vmatprep.subr.mxu0 0.0
  %3856 = vmatpush1.msra.mxu0 %v3842
  %3857 = vmatprep.subr.mxu0 0.0
  %3858 = vmatpush1.msra.mxu0 %v3843
  %3859 = vmatprep.subr.mxu0 0.0
  %3860 = vmatpush1.msra.mxu0 %v3844
  %3861 = vmatprep.subr.mxu0 0.0
  %3862 = vmatpush1.msra.mxu0 %v3845
  %3863 = vmatprep.subr.mxu0 0.0
  %3864 = vmatpush1.msra.mxu0 %v3846
  %3865 = vmatprep.subr.mxu0 0.0
  %3866 = vmatpush1.msra.mxu0 %v3847
  %3867 = vmatprep.subr.mxu0 0.0
  %3868 = vmatpush1.msra.mxu0 0.0
  %3869 = vmatprep.subr.mxu0 0.0
  %3870 = vmatpush1.msra.mxu0 0.0
  %3871 = vmatprep.subr.mxu0 0.0
  %3872 = vmatpush1.msra.mxu0 0.0
  %3873 = vmatprep.subr.mxu0 0.0
  %3874 = vmatpush1.msra.mxu0 0.0
  %3875 = vmatprep.subr.mxu0 0.0
  %3876 = vmatpush1.msra.mxu0 0.0
  %3877 = vmatprep.subr.mxu0 0.0
  %3878 = vmatpush1.msra.mxu0 0.0
  %3879 = vmatprep.subr.mxu0 0.0
  %3880 = vmatpush1.msra.mxu0 0.0
  %3881 = vmatprep.subr.mxu0 0.0
  %3882 = vmatpush1.msra.mxu0 0.0
  %3883 = vmatprep.subr.mxu0 0.0
  %3884 = vmatpush1.msra.mxu0 0.0
  %3885 = vmatprep.subr.mxu0 0.0
  %3886 = vmatpush1.msra.mxu0 0.0
  %3887 = vmatprep.subr.mxu0 0.0
  %3888 = vmatpush1.msra.mxu0 0.0
  %3889 = vmatprep.subr.mxu0 0.0
  %3890 = vmatpush1.msra.mxu0 0.0
  %3891 = vmatprep.subr.mxu0 0.0
  %3892 = vmatpush1.msra.mxu0 0.0
  %3893 = vmatprep.subr.mxu0 0.0
  %3894 = vmatpush1.msra.mxu0 0.0
  %3895 = vmatprep.subr.mxu0 0.0
  %3896 = vmatpush1.msra.mxu0 0.0
  %3897 = vmatprep.subr.mxu0 0.0
  %3898 = vmatpush1.msra.mxu0 0.0
  %3899 = vmatprep.subr.mxu0 0.0
  %3900 = vmatpush1.msra.mxu0 0.0
  %3901 = vmatprep.subr.mxu0 0.0
  %3902 = vmatpush1.msra.mxu0 0.0
  %3903 = vmatprep.subr.mxu0 0.0
  %3904 = vmatpush1.msra.mxu0 0.0
  %3905 = vmatprep.subr.mxu0 0.0
  %3906 = vmatpush1.msra.mxu0 0.0
  %3907 = vmatprep.subr.mxu0 0.0
  %3908 = vmatpush1.msra.mxu0 0.0
  %3909 = vmatprep.subr.mxu0 0.0
  %3910 = vmatpush1.msra.mxu0 0.0
  %3911 = vmatprep.subr.mxu0 0.0
  %3912 = vmatpush1.msra.mxu0 0.0
  %3913 = vmatprep.subr.mxu0 0.0
  %3914 = vmatpush1.msra.mxu0 0.0
  %3915 = vmatprep.mubr.f32.mxu0 0.0
  %3916 = vmatmul.mubr.f32.gmra.mrb[0].mxu0 %v3849
  %v3917 = vpop.f32.mrb[0].mxu0
  %v3918 = vadd.f32 0.0, %v3917
  %v3919 = vpop.f32.mrb[0].mxu0
  %3920 = vdwg.mxu0
  %v3921 = vadd.f32 %v3838, %v3918
  %s3922 = scalar_lea.vmem %s6, 1344
  %v3923 = vld [vmem:[%s3922] sm:$0xff]
  %v3924 = vld [vmem:[%s3922 + $0x8] sm:$0xff]
  %v3925 = vld [vmem:[%s3922 + $0x10] sm:$0xff]
  %v3926 = vld [vmem:[%s3922 + $0x18] sm:$0xff]
  %v3927 = vld [vmem:[%s3922 + $0x20] sm:$0xff]
  %v3928 = vld [vmem:[%s3922 + $0x28] sm:$0xff]
  %v3929 = vld [vmem:[%s3922 + $0x30] sm:$0xff]
  %v3930 = vld [vmem:[%s3922 + $0x38] sm:$0xff]
  %v3931 = vrot.slane %v2176, 5
  %v3932 = vsel %vm2187, %v3931, 0
  %3934 = vmatprep.subr.mxu0 0.0
  %3935 = vmatpush1.msra.mxu0 %v3923
  %3936 = vmatprep.subr.mxu0 0.0
  %3937 = vmatpush1.msra.mxu0 %v3924
  %3938 = vmatprep.subr.mxu0 0.0
  %3939 = vmatpush1.msra.mxu0 %v3925
  %3940 = vmatprep.subr.mxu0 0.0
  %3941 = vmatpush1.msra.mxu0 %v3926
  %3942 = vmatprep.subr.mxu0 0.0
  %3943 = vmatpush1.msra.mxu0 %v3927
  %3944 = vmatprep.subr.mxu0 0.0
  %3945 = vmatpush1.msra.mxu0 %v3928
  %3946 = vmatprep.subr.mxu0 0.0
  %3947 = vmatpush1.msra.mxu0 %v3929
  %3948 = vmatprep.subr.mxu0 0.0
  %3949 = vmatpush1.msra.mxu0 %v3930
  %3950 = vmatprep.subr.mxu0 0.0
  %3951 = vmatpush1.msra.mxu0 0.0
  %3952 = vmatprep.subr.mxu0 0.0
  %3953 = vmatpush1.msra.mxu0 0.0
  %3954 = vmatprep.subr.mxu0 0.0
  %3955 = vmatpush1.msra.mxu0 0.0
  %3956 = vmatprep.subr.mxu0 0.0
  %3957 = vmatpush1.msra.mxu0 0.0
  %3958 = vmatprep.subr.mxu0 0.0
  %3959 = vmatpush1.msra.mxu0 0.0
  %3960 = vmatprep.subr.mxu0 0.0
  %3961 = vmatpush1.msra.mxu0 0.0
  %3962 = vmatprep.subr.mxu0 0.0
  %3963 = vmatpush1.msra.mxu0 0.0
  %3964 = vmatprep.subr.mxu0 0.0
  %3965 = vmatpush1.msra.mxu0 0.0
  %3966 = vmatprep.subr.mxu0 0.0
  %3967 = vmatpush1.msra.mxu0 0.0
  %3968 = vmatprep.subr.mxu0 0.0
  %3969 = vmatpush1.msra.mxu0 0.0
  %3970 = vmatprep.subr.mxu0 0.0
  %3971 = vmatpush1.msra.mxu0 0.0
  %3972 = vmatprep.subr.mxu0 0.0
  %3973 = vmatpush1.msra.mxu0 0.0
  %3974 = vmatprep.subr.mxu0 0.0
  %3975 = vmatpush1.msra.mxu0 0.0
  %3976 = vmatprep.subr.mxu0 0.0
  %3977 = vmatpush1.msra.mxu0 0.0
  %3978 = vmatprep.subr.mxu0 0.0
  %3979 = vmatpush1.msra.mxu0 0.0
  %3980 = vmatprep.subr.mxu0 0.0
  %3981 = vmatpush1.msra.mxu0 0.0
  %3982 = vmatprep.subr.mxu0 0.0
  %3983 = vmatpush1.msra.mxu0 0.0
  %3984 = vmatprep.subr.mxu0 0.0
  %3985 = vmatpush1.msra.mxu0 0.0
  %3986 = vmatprep.subr.mxu0 0.0
  %3987 = vmatpush1.msra.mxu0 0.0
  %3988 = vmatprep.subr.mxu0 0.0
  %3989 = vmatpush1.msra.mxu0 0.0
  %3990 = vmatprep.subr.mxu0 0.0
  %3991 = vmatpush1.msra.mxu0 0.0
  %3992 = vmatprep.subr.mxu0 0.0
  %3993 = vmatpush1.msra.mxu0 0.0
  %3994 = vmatprep.subr.mxu0 0.0
  %3995 = vmatpush1.msra.mxu0 0.0
  %3996 = vmatprep.subr.mxu0 0.0
  %3997 = vmatpush1.msra.mxu0 0.0
  %3998 = vmatprep.mubr.f32.mxu0 0.0
  %3999 = vmatmul.mubr.f32.gmra.mrb[0].mxu0 %v3932
  %v4000 = vpop.f32.mrb[0].mxu0
  %v4001 = vadd.f32 0.0, %v4000
  %v4002 = vpop.f32.mrb[0].mxu0
  %4003 = vdwg.mxu0
  %v4004 = vadd.f32 %v3921, %v4001
  %s4005 = scalar_lea.vmem %s6, 1408
  %v4006 = vld [vmem:[%s4005] sm:$0xff]
  %v4007 = vld [vmem:[%s4005 + $0x8] sm:$0xff]
  %v4008 = vld [vmem:[%s4005 + $0x10] sm:$0xff]
  %v4009 = vld [vmem:[%s4005 + $0x18] sm:$0xff]
  %v4010 = vld [vmem:[%s4005 + $0x20] sm:$0xff]
  %v4011 = vld [vmem:[%s4005 + $0x28] sm:$0xff]
  %v4012 = vld [vmem:[%s4005 + $0x30] sm:$0xff]
  %v4013 = vld [vmem:[%s4005 + $0x38] sm:$0xff]
  %v4014 = vrot.slane %v2176, 6
  %v4015 = vsel %vm2187, %v4014, 0
  %4017 = vmatprep.subr.mxu0 0.0
  %4018 = vmatpush1.msra.mxu0 %v4006
  %4019 = vmatprep.subr.mxu0 0.0
  %4020 = vmatpush1.msra.mxu0 %v4007
  %4021 = vmatprep.subr.mxu0 0.0
  %4022 = vmatpush1.msra.mxu0 %v4008
  %4023 = vmatprep.subr.mxu0 0.0
  %4024 = vmatpush1.msra.mxu0 %v4009
  %4025 = vmatprep.subr.mxu0 0.0
  %4026 = vmatpush1.msra.mxu0 %v4010
  %4027 = vmatprep.subr.mxu0 0.0
  %4028 = vmatpush1.msra.mxu0 %v4011
  %4029 = vmatprep.subr.mxu0 0.0
  %4030 = vmatpush1.msra.mxu0 %v4012
  %4031 = vmatprep.subr.mxu0 0.0
  %4032 = vmatpush1.msra.mxu0 %v4013
  %4033 = vmatprep.subr.mxu0 0.0
  %4034 = vmatpush1.msra.mxu0 0.0
  %4035 = vmatprep.subr.mxu0 0.0
  %4036 = vmatpush1.msra.mxu0 0.0
  %4037 = vmatprep.subr.mxu0 0.0
  %4038 = vmatpush1.msra.mxu0 0.0
  %4039 = vmatprep.subr.mxu0 0.0
  %4040 = vmatpush1.msra.mxu0 0.0
  %4041 = vmatprep.subr.mxu0 0.0
  %4042 = vmatpush1.msra.mxu0 0.0
  %4043 = vmatprep.subr.mxu0 0.0
  %4044 = vmatpush1.msra.mxu0 0.0
  %4045 = vmatprep.subr.mxu0 0.0
  %4046 = vmatpush1.msra.mxu0 0.0
  %4047 = vmatprep.subr.mxu0 0.0
  %4048 = vmatpush1.msra.mxu0 0.0
  %4049 = vmatprep.subr.mxu0 0.0
  %4050 = vmatpush1.msra.mxu0 0.0
  %4051 = vmatprep.subr.mxu0 0.0
  %4052 = vmatpush1.msra.mxu0 0.0
  %4053 = vmatprep.subr.mxu0 0.0
  %4054 = vmatpush1.msra.mxu0 0.0
  %4055 = vmatprep.subr.mxu0 0.0
  %4056 = vmatpush1.msra.mxu0 0.0
  %4057 = vmatprep.subr.mxu0 0.0
  %4058 = vmatpush1.msra.mxu0 0.0
  %4059 = vmatprep.subr.mxu0 0.0
  %4060 = vmatpush1.msra.mxu0 0.0
  %4061 = vmatprep.subr.mxu0 0.0
  %4062 = vmatpush1.msra.mxu0 0.0
  %4063 = vmatprep.subr.mxu0 0.0
  %4064 = vmatpush1.msra.mxu0 0.0
  %4065 = vmatprep.subr.mxu0 0.0
  %4066 = vmatpush1.msra.mxu0 0.0
  %4067 = vmatprep.subr.mxu0 0.0
  %4068 = vmatpush1.msra.mxu0 0.0
  %4069 = vmatprep.subr.mxu0 0.0
  %4070 = vmatpush1.msra.mxu0 0.0
  %4071 = vmatprep.subr.mxu0 0.0
  %4072 = vmatpush1.msra.mxu0 0.0
  %4073 = vmatprep.subr.mxu0 0.0
  %4074 = vmatpush1.msra.mxu0 0.0
  %4075 = vmatprep.subr.mxu0 0.0
  %4076 = vmatpush1.msra.mxu0 0.0
  %4077 = vmatprep.subr.mxu0 0.0
  %4078 = vmatpush1.msra.mxu0 0.0
  %4079 = vmatprep.subr.mxu0 0.0
  %4080 = vmatpush1.msra.mxu0 0.0
  %4081 = vmatprep.mubr.f32.mxu0 0.0
  %4082 = vmatmul.mubr.f32.gmra.mrb[0].mxu0 %v4015
  %v4083 = vpop.f32.mrb[0].mxu0
  %v4084 = vadd.f32 0.0, %v4083
  %v4085 = vpop.f32.mrb[0].mxu0
  %4086 = vdwg.mxu0
  %v4087 = vadd.f32 %v4004, %v4084
  %s4088 = scalar_lea.vmem %s6, 1472
  %v4089 = vld [vmem:[%s4088] sm:$0xff]
  %v4090 = vld [vmem:[%s4088 + $0x8] sm:$0xff]
  %v4091 = vld [vmem:[%s4088 + $0x10] sm:$0xff]
  %v4092 = vld [vmem:[%s4088 + $0x18] sm:$0xff]
  %v4093 = vld [vmem:[%s4088 + $0x20] sm:$0xff]
  %v4094 = vld [vmem:[%s4088 + $0x28] sm:$0xff]
  %v4095 = vld [vmem:[%s4088 + $0x30] sm:$0xff]
  %v4096 = vld [vmem:[%s4088 + $0x38] sm:$0xff]
  %v4097 = vrot.slane %v2176, 7
  %v4098 = vsel %vm2187, %v4097, 0
  %4100 = vmatprep.subr.mxu0 0.0
  %4101 = vmatpush1.msra.mxu0 %v4089
  %4102 = vmatprep.subr.mxu0 0.0
  %4103 = vmatpush1.msra.mxu0 %v4090
  %4104 = vmatprep.subr.mxu0 0.0
  %4105 = vmatpush1.msra.mxu0 %v4091
  %4106 = vmatprep.subr.mxu0 0.0
  %4107 = vmatpush1.msra.mxu0 %v4092
  %4108 = vmatprep.subr.mxu0 0.0
  %4109 = vmatpush1.msra.mxu0 %v4093
  %4110 = vmatprep.subr.mxu0 0.0
  %4111 = vmatpush1.msra.mxu0 %v4094
  %4112 = vmatprep.subr.mxu0 0.0
  %4113 = vmatpush1.msra.mxu0 %v4095
  %4114 = vmatprep.subr.mxu0 0.0
  %4115 = vmatpush1.msra.mxu0 %v4096
  %4116 = vmatprep.subr.mxu0 0.0
  %4117 = vmatpush1.msra.mxu0 0.0
  %4118 = vmatprep.subr.mxu0 0.0
  %4119 = vmatpush1.msra.mxu0 0.0
  %4120 = vmatprep.subr.mxu0 0.0
  %4121 = vmatpush1.msra.mxu0 0.0
  %4122 = vmatprep.subr.mxu0 0.0
  %4123 = vmatpush1.msra.mxu0 0.0
  %4124 = vmatprep.subr.mxu0 0.0
  %4125 = vmatpush1.msra.mxu0 0.0
  %4126 = vmatprep.subr.mxu0 0.0
  %4127 = vmatpush1.msra.mxu0 0.0
  %4128 = vmatprep.subr.mxu0 0.0
  %4129 = vmatpush1.msra.mxu0 0.0
  %4130 = vmatprep.subr.mxu0 0.0
  %4131 = vmatpush1.msra.mxu0 0.0
  %4132 = vmatprep.subr.mxu0 0.0
  %4133 = vmatpush1.msra.mxu0 0.0
  %4134 = vmatprep.subr.mxu0 0.0
  %4135 = vmatpush1.msra.mxu0 0.0
  %4136 = vmatprep.subr.mxu0 0.0
  %4137 = vmatpush1.msra.mxu0 0.0
  %4138 = vmatprep.subr.mxu0 0.0
  %4139 = vmatpush1.msra.mxu0 0.0
  %4140 = vmatprep.subr.mxu0 0.0
  %4141 = vmatpush1.msra.mxu0 0.0
  %4142 = vmatprep.subr.mxu0 0.0
  %4143 = vmatpush1.msra.mxu0 0.0
  %4144 = vmatprep.subr.mxu0 0.0
  %4145 = vmatpush1.msra.mxu0 0.0
  %4146 = vmatprep.subr.mxu0 0.0
  %4147 = vmatpush1.msra.mxu0 0.0
  %4148 = vmatprep.subr.mxu0 0.0
  %4149 = vmatpush1.msra.mxu0 0.0
  %4150 = vmatprep.subr.mxu0 0.0
  %4151 = vmatpush1.msra.mxu0 0.0
  %4152 = vmatprep.subr.mxu0 0.0
  %4153 = vmatpush1.msra.mxu0 0.0
  %4154 = vmatprep.subr.mxu0 0.0
  %4155 = vmatpush1.msra.mxu0 0.0
  %4156 = vmatprep.subr.mxu0 0.0
  %4157 = vmatpush1.msra.mxu0 0.0
  %4158 = vmatprep.subr.mxu0 0.0
  %4159 = vmatpush1.msra.mxu0 0.0
  %4160 = vmatprep.subr.mxu0 0.0
  %4161 = vmatpush1.msra.mxu0 0.0
  %4162 = vmatprep.subr.mxu0 0.0
  %4163 = vmatpush1.msra.mxu0 0.0
  %4164 = vmatprep.mubr.f32.mxu0 0.0
  %4165 = vmatmul.mubr.f32.gmra.mrb[0].mxu0 %v4098
  %v4166 = vpop.f32.mrb[0].mxu0
  %v4167 = vadd.f32 0.0, %v4166
  %v4168 = vpop.f32.mrb[0].mxu0
  %4169 = vdwg.mxu0
  %v4170 = vadd.f32 %v4087, %v4167
  %s4171 = scalar_lea.vmem %s6, 1536
  %v4172 = vld [vmem:[%s4171] sm:$0xff]
  %v4173 = vld [vmem:[%s4171 + $0x8] sm:$0xff]
  %v4174 = vld [vmem:[%s4171 + $0x10] sm:$0xff]
  %v4175 = vld [vmem:[%s4171 + $0x18] sm:$0xff]
  %v4176 = vld [vmem:[%s4171 + $0x20] sm:$0xff]
  %v4177 = vld [vmem:[%s4171 + $0x28] sm:$0xff]
  %v4178 = vld [vmem:[%s4171 + $0x30] sm:$0xff]
  %v4179 = vld [vmem:[%s4171 + $0x38] sm:$0xff]
  %v4181 = vsel %vm2187, %v2177, 0
  %4183 = vmatprep.subr.mxu0 0.0
  %4184 = vmatpush1.msra.mxu0 %v4172
  %4185 = vmatprep.subr.mxu0 0.0
  %4186 = vmatpush1.msra.mxu0 %v4173
  %4187 = vmatprep.subr.mxu0 0.0
  %4188 = vmatpush1.msra.mxu0 %v4174
  %4189 = vmatprep.subr.mxu0 0.0
  %4190 = vmatpush1.msra.mxu0 %v4175
  %4191 = vmatprep.subr.mxu0 0.0
  %4192 = vmatpush1.msra.mxu0 %v4176
  %4193 = vmatprep.subr.mxu0 0.0
  %4194 = vmatpush1.msra.mxu0 %v4177
  %4195 = vmatprep.subr.mxu0 0.0
  %4196 = vmatpush1.msra.mxu0 %v4178
  %4197 = vmatprep.subr.mxu0 0.0
  %4198 = vmatpush1.msra.mxu0 %v4179
  %4199 = vmatprep.subr.mxu0 0.0
  %4200 = vmatpush1.msra.mxu0 0.0
  %4201 = vmatprep.subr.mxu0 0.0
  %4202 = vmatpush1.msra.mxu0 0.0
  %4203 = vmatprep.subr.mxu0 0.0
  %4204 = vmatpush1.msra.mxu0 0.0
  %4205 = vmatprep.subr.mxu0 0.0
  %4206 = vmatpush1.msra.mxu0 0.0
  %4207 = vmatprep.subr.mxu0 0.0
  %4208 = vmatpush1.msra.mxu0 0.0
  %4209 = vmatprep.subr.mxu0 0.0
  %4210 = vmatpush1.msra.mxu0 0.0
  %4211 = vmatprep.subr.mxu0 0.0
  %4212 = vmatpush1.msra.mxu0 0.0
  %4213 = vmatprep.subr.mxu0 0.0
  %4214 = vmatpush1.msra.mxu0 0.0
  %4215 = vmatprep.subr.mxu0 0.0
  %4216 = vmatpush1.msra.mxu0 0.0
  %4217 = vmatprep.subr.mxu0 0.0
  %4218 = vmatpush1.msra.mxu0 0.0
  %4219 = vmatprep.subr.mxu0 0.0
  %4220 = vmatpush1.msra.mxu0 0.0
  %4221 = vmatprep.subr.mxu0 0.0
  %4222 = vmatpush1.msra.mxu0 0.0
  %4223 = vmatprep.subr.mxu0 0.0
  %4224 = vmatpush1.msra.mxu0 0.0
  %4225 = vmatprep.subr.mxu0 0.0
  %4226 = vmatpush1.msra.mxu0 0.0
  %4227 = vmatprep.subr.mxu0 0.0
  %4228 = vmatpush1.msra.mxu0 0.0
  %4229 = vmatprep.subr.mxu0 0.0
  %4230 = vmatpush1.msra.mxu0 0.0
  %4231 = vmatprep.subr.mxu0 0.0
  %4232 = vmatpush1.msra.mxu0 0.0
  %4233 = vmatprep.subr.mxu0 0.0
  %4234 = vmatpush1.msra.mxu0 0.0
  %4235 = vmatprep.subr.mxu0 0.0
  %4236 = vmatpush1.msra.mxu0 0.0
  %4237 = vmatprep.subr.mxu0 0.0
  %4238 = vmatpush1.msra.mxu0 0.0
  %4239 = vmatprep.subr.mxu0 0.0
  %4240 = vmatpush1.msra.mxu0 0.0
  %4241 = vmatprep.subr.mxu0 0.0
  %4242 = vmatpush1.msra.mxu0 0.0
  %4243 = vmatprep.subr.mxu0 0.0
  %4244 = vmatpush1.msra.mxu0 0.0
  %4245 = vmatprep.subr.mxu0 0.0
  %4246 = vmatpush1.msra.mxu0 0.0
  %4247 = vmatprep.mubr.f32.mxu0 0.0
  %4248 = vmatmul.mubr.f32.gmra.mrb[0].mxu0 %v4181
  %v4249 = vpop.f32.mrb[0].mxu0
  %v4250 = vadd.f32 0.0, %v4249
  %v4251 = vpop.f32.mrb[0].mxu0
  %4252 = vdwg.mxu0
  %v4253 = vadd.f32 %v4170, %v4250
  %s4254 = scalar_lea.vmem %s6, 1600
  %v4255 = vld [vmem:[%s4254] sm:$0xff]
  %v4256 = vld [vmem:[%s4254 + $0x8] sm:$0xff]
  %v4257 = vld [vmem:[%s4254 + $0x10] sm:$0xff]
  %v4258 = vld [vmem:[%s4254 + $0x18] sm:$0xff]
  %v4259 = vld [vmem:[%s4254 + $0x20] sm:$0xff]
  %v4260 = vld [vmem:[%s4254 + $0x28] sm:$0xff]
  %v4261 = vld [vmem:[%s4254 + $0x30] sm:$0xff]
  %v4262 = vld [vmem:[%s4254 + $0x38] sm:$0xff]
  %v4263 = vrot.slane %v2177, 1
  %v4264 = vsel %vm2187, %v4263, 0
  %4266 = vmatprep.subr.mxu0 0.0
  %4267 = vmatpush1.msra.mxu0 %v4255
  %4268 = vmatprep.subr.mxu0 0.0
  %4269 = vmatpush1.msra.mxu0 %v4256
  %4270 = vmatprep.subr.mxu0 0.0
  %4271 = vmatpush1.msra.mxu0 %v4257
  %4272 = vmatprep.subr.mxu0 0.0
  %4273 = vmatpush1.msra.mxu0 %v4258
  %4274 = vmatprep.subr.mxu0 0.0
  %4275 = vmatpush1.msra.mxu0 %v4259
  %4276 = vmatprep.subr.mxu0 0.0
  %4277 = vmatpush1.msra.mxu0 %v4260
  %4278 = vmatprep.subr.mxu0 0.0
  %4279 = vmatpush1.msra.mxu0 %v4261
  %4280 = vmatprep.subr.mxu0 0.0
  %4281 = vmatpush1.msra.mxu0 %v4262
  %4282 = vmatprep.subr.mxu0 0.0
  %4283 = vmatpush1.msra.mxu0 0.0
  %4284 = vmatprep.subr.mxu0 0.0
  %4285 = vmatpush1.msra.mxu0 0.0
  %4286 = vmatprep.subr.mxu0 0.0
  %4287 = vmatpush1.msra.mxu0 0.0
  %4288 = vmatprep.subr.mxu0 0.0
  %4289 = vmatpush1.msra.mxu0 0.0
  %4290 = vmatprep.subr.mxu0 0.0
  %4291 = vmatpush1.msra.mxu0 0.0
  %4292 = vmatprep.subr.mxu0 0.0
  %4293 = vmatpush1.msra.mxu0 0.0
  %4294 = vmatprep.subr.mxu0 0.0
  %4295 = vmatpush1.msra.mxu0 0.0
  %4296 = vmatprep.subr.mxu0 0.0
  %4297 = vmatpush1.msra.mxu0 0.0
  %4298 = vmatprep.subr.mxu0 0.0
  %4299 = vmatpush1.msra.mxu0 0.0
  %4300 = vmatprep.subr.mxu0 0.0
  %4301 = vmatpush1.msra.mxu0 0.0
  %4302 = vmatprep.subr.mxu0 0.0
  %4303 = vmatpush1.msra.mxu0 0.0
  %4304 = vmatprep.subr.mxu0 0.0
  %4305 = vmatpush1.msra.mxu0 0.0
  %4306 = vmatprep.subr.mxu0 0.0
  %4307 = vmatpush1.msra.mxu0 0.0
  %4308 = vmatprep.subr.mxu0 0.0
  %4309 = vmatpush1.msra.mxu0 0.0
  %4310 = vmatprep.subr.mxu0 0.0
  %4311 = vmatpush1.msra.mxu0 0.0
  %4312 = vmatprep.subr.mxu0 0.0
  %4313 = vmatpush1.msra.mxu0 0.0
  %4314 = vmatprep.subr.mxu0 0.0
  %4315 = vmatpush1.msra.mxu0 0.0
  %4316 = vmatprep.subr.mxu0 0.0
  %4317 = vmatpush1.msra.mxu0 0.0
  %4318 = vmatprep.subr.mxu0 0.0
  %4319 = vmatpush1.msra.mxu0 0.0
  %4320 = vmatprep.subr.mxu0 0.0
  %4321 = vmatpush1.msra.mxu0 0.0
  %4322 = vmatprep.subr.mxu0 0.0
  %4323 = vmatpush1.msra.mxu0 0.0
  %4324 = vmatprep.subr.mxu0 0.0
  %4325 = vmatpush1.msra.mxu0 0.0
  %4326 = vmatprep.subr.mxu0 0.0
  %4327 = vmatpush1.msra.mxu0 0.0
  %4328 = vmatprep.subr.mxu0 0.0
  %4329 = vmatpush1.msra.mxu0 0.0
  %4330 = vmatprep.mubr.f32.mxu0 0.0
  %4331 = vmatmul.mubr.f32.gmra.mrb[0].mxu0 %v4264
  %v4332 = vpop.f32.mrb[0].mxu0
  %v4333 = vadd.f32 0.0, %v4332
  %v4334 = vpop.f32.mrb[0].mxu0
  %4335 = vdwg.mxu0
  %v4336 = vadd.f32 %v4253, %v4333
  %s4337 = scalar_lea.vmem %s6, 1664
  %v4338 = vld [vmem:[%s4337] sm:$0xff]
  %v4339 = vld [vmem:[%s4337 + $0x8] sm:$0xff]
  %v4340 = vld [vmem:[%s4337 + $0x10] sm:$0xff]
  %v4341 = vld [vmem:[%s4337 + $0x18] sm:$0xff]
  %v4342 = vld [vmem:[%s4337 + $0x20] sm:$0xff]
  %v4343 = vld [vmem:[%s4337 + $0x28] sm:$0xff]
  %v4344 = vld [vmem:[%s4337 + $0x30] sm:$0xff]
  %v4345 = vld [vmem:[%s4337 + $0x38] sm:$0xff]
  %v4346 = vrot.slane %v2177, 2
  %v4347 = vsel %vm2187, %v4346, 0
  %4349 = vmatprep.subr.mxu0 0.0
  %4350 = vmatpush1.msra.mxu0 %v4338
  %4351 = vmatprep.subr.mxu0 0.0
  %4352 = vmatpush1.msra.mxu0 %v4339
  %4353 = vmatprep.subr.mxu0 0.0
  %4354 = vmatpush1.msra.mxu0 %v4340
  %4355 = vmatprep.subr.mxu0 0.0
  %4356 = vmatpush1.msra.mxu0 %v4341
  %4357 = vmatprep.subr.mxu0 0.0
  %4358 = vmatpush1.msra.mxu0 %v4342
  %4359 = vmatprep.subr.mxu0 0.0
  %4360 = vmatpush1.msra.mxu0 %v4343
  %4361 = vmatprep.subr.mxu0 0.0
  %4362 = vmatpush1.msra.mxu0 %v4344
  %4363 = vmatprep.subr.mxu0 0.0
  %4364 = vmatpush1.msra.mxu0 %v4345
  %4365 = vmatprep.subr.mxu0 0.0
  %4366 = vmatpush1.msra.mxu0 0.0
  %4367 = vmatprep.subr.mxu0 0.0
  %4368 = vmatpush1.msra.mxu0 0.0
  %4369 = vmatprep.subr.mxu0 0.0
  %4370 = vmatpush1.msra.mxu0 0.0
  %4371 = vmatprep.subr.mxu0 0.0
  %4372 = vmatpush1.msra.mxu0 0.0
  %4373 = vmatprep.subr.mxu0 0.0
  %4374 = vmatpush1.msra.mxu0 0.0
  %4375 = vmatprep.subr.mxu0 0.0
  %4376 = vmatpush1.msra.mxu0 0.0
  %4377 = vmatprep.subr.mxu0 0.0
  %4378 = vmatpush1.msra.mxu0 0.0
  %4379 = vmatprep.subr.mxu0 0.0
  %4380 = vmatpush1.msra.mxu0 0.0
  %4381 = vmatprep.subr.mxu0 0.0
  %4382 = vmatpush1.msra.mxu0 0.0
  %4383 = vmatprep.subr.mxu0 0.0
  %4384 = vmatpush1.msra.mxu0 0.0
  %4385 = vmatprep.subr.mxu0 0.0
  %4386 = vmatpush1.msra.mxu0 0.0
  %4387 = vmatprep.subr.mxu0 0.0
  %4388 = vmatpush1.msra.mxu0 0.0
  %4389 = vmatprep.subr.mxu0 0.0
  %4390 = vmatpush1.msra.mxu0 0.0
  %4391 = vmatprep.subr.mxu0 0.0
  %4392 = vmatpush1.msra.mxu0 0.0
  %4393 = vmatprep.subr.mxu0 0.0
  %4394 = vmatpush1.msra.mxu0 0.0
  %4395 = vmatprep.subr.mxu0 0.0
  %4396 = vmatpush1.msra.mxu0 0.0
  %4397 = vmatprep.subr.mxu0 0.0
  %4398 = vmatpush1.msra.mxu0 0.0
  %4399 = vmatprep.subr.mxu0 0.0
  %4400 = vmatpush1.msra.mxu0 0.0
  %4401 = vmatprep.subr.mxu0 0.0
  %4402 = vmatpush1.msra.mxu0 0.0
  %4403 = vmatprep.subr.mxu0 0.0
  %4404 = vmatpush1.msra.mxu0 0.0
  %4405 = vmatprep.subr.mxu0 0.0
  %4406 = vmatpush1.msra.mxu0 0.0
  %4407 = vmatprep.subr.mxu0 0.0
  %4408 = vmatpush1.msra.mxu0 0.0
  %4409 = vmatprep.subr.mxu0 0.0
  %4410 = vmatpush1.msra.mxu0 0.0
  %4411 = vmatprep.subr.mxu0 0.0
  %4412 = vmatpush1.msra.mxu0 0.0
  %4413 = vmatprep.mubr.f32.mxu0 0.0
  %4414 = vmatmul.mubr.f32.gmra.mrb[0].mxu0 %v4347
  %v4415 = vpop.f32.mrb[0].mxu0
  %v4416 = vadd.f32 0.0, %v4415
  %v4417 = vpop.f32.mrb[0].mxu0
  %4418 = vdwg.mxu0
  %v4419 = vadd.f32 %v4336, %v4416
  %s4420 = scalar_lea.vmem %s6, 1728
  %v4421 = vld [vmem:[%s4420] sm:$0xff]
  %v4422 = vld [vmem:[%s4420 + $0x8] sm:$0xff]
  %v4423 = vld [vmem:[%s4420 + $0x10] sm:$0xff]
  %v4424 = vld [vmem:[%s4420 + $0x18] sm:$0xff]
  %v4425 = vld [vmem:[%s4420 + $0x20] sm:$0xff]
  %v4426 = vld [vmem:[%s4420 + $0x28] sm:$0xff]
  %v4427 = vld [vmem:[%s4420 + $0x30] sm:$0xff]
  %v4428 = vld [vmem:[%s4420 + $0x38] sm:$0xff]
  %v4429 = vrot.slane %v2177, 3
  %v4430 = vsel %vm2187, %v4429, 0
  %4432 = vmatprep.subr.mxu0 0.0
  %4433 = vmatpush1.msra.mxu0 %v4421
  %4434 = vmatprep.subr.mxu0 0.0
  %4435 = vmatpush1.msra.mxu0 %v4422
  %4436 = vmatprep.subr.mxu0 0.0
  %4437 = vmatpush1.msra.mxu0 %v4423
  %4438 = vmatprep.subr.mxu0 0.0
  %4439 = vmatpush1.msra.mxu0 %v4424
  %4440 = vmatprep.subr.mxu0 0.0
  %4441 = vmatpush1.msra.mxu0 %v4425
  %4442 = vmatprep.subr.mxu0 0.0
  %4443 = vmatpush1.msra.mxu0 %v4426
  %4444 = vmatprep.subr.mxu0 0.0
  %4445 = vmatpush1.msra.mxu0 %v4427
  %4446 = vmatprep.subr.mxu0 0.0
  %4447 = vmatpush1.msra.mxu0 %v4428
  %4448 = vmatprep.subr.mxu0 0.0
  %4449 = vmatpush1.msra.mxu0 0.0
  %4450 = vmatprep.subr.mxu0 0.0
  %4451 = vmatpush1.msra.mxu0 0.0
  %4452 = vmatprep.subr.mxu0 0.0
  %4453 = vmatpush1.msra.mxu0 0.0
  %4454 = vmatprep.subr.mxu0 0.0
  %4455 = vmatpush1.msra.mxu0 0.0
  %4456 = vmatprep.subr.mxu0 0.0
  %4457 = vmatpush1.msra.mxu0 0.0
  %4458 = vmatprep.subr.mxu0 0.0
  %4459 = vmatpush1.msra.mxu0 0.0
  %4460 = vmatprep.subr.mxu0 0.0
  %4461 = vmatpush1.msra.mxu0 0.0
  %4462 = vmatprep.subr.mxu0 0.0
  %4463 = vmatpush1.msra.mxu0 0.0
  %4464 = vmatprep.subr.mxu0 0.0
  %4465 = vmatpush1.msra.mxu0 0.0
  %4466 = vmatprep.subr.mxu0 0.0
  %4467 = vmatpush1.msra.mxu0 0.0
  %4468 = vmatprep.subr.mxu0 0.0
  %4469 = vmatpush1.msra.mxu0 0.0
  %4470 = vmatprep.subr.mxu0 0.0
  %4471 = vmatpush1.msra.mxu0 0.0
  %4472 = vmatprep.subr.mxu0 0.0
  %4473 = vmatpush1.msra.mxu0 0.0
  %4474 = vmatprep.subr.mxu0 0.0
  %4475 = vmatpush1.msra.mxu0 0.0
  %4476 = vmatprep.subr.mxu0 0.0
  %4477 = vmatpush1.msra.mxu0 0.0
  %4478 = vmatprep.subr.mxu0 0.0
  %4479 = vmatpush1.msra.mxu0 0.0
  %4480 = vmatprep.subr.mxu0 0.0
  %4481 = vmatpush1.msra.mxu0 0.0
  %4482 = vmatprep.subr.mxu0 0.0
  %4483 = vmatpush1.msra.mxu0 0.0
  %4484 = vmatprep.subr.mxu0 0.0
  %4485 = vmatpush1.msra.mxu0 0.0
  %4486 = vmatprep.subr.mxu0 0.0
  %4487 = vmatpush1.msra.mxu0 0.0
  %4488 = vmatprep.subr.mxu0 0.0
  %4489 = vmatpush1.msra.mxu0 0.0
  %4490 = vmatprep.subr.mxu0 0.0
  %4491 = vmatpush1.msra.mxu0 0.0
  %4492 = vmatprep.subr.mxu0 0.0
  %4493 = vmatpush1.msra.mxu0 0.0
  %4494 = vmatprep.subr.mxu0 0.0
  %4495 = vmatpush1.msra.mxu0 0.0
  %4496 = vmatprep.mubr.f32.mxu0 0.0
  %4497 = vmatmul.mubr.f32.gmra.mrb[0].mxu0 %v4430
  %v4498 = vpop.f32.mrb[0].mxu0
  %v4499 = vadd.f32 0.0, %v4498
  %v4500 = vpop.f32.mrb[0].mxu0
  %4501 = vdwg.mxu0
  %v4502 = vadd.f32 %v4419, %v4499
  %s4503 = scalar_lea.vmem %s6, 1792
  %v4504 = vld [vmem:[%s4503] sm:$0xff]
  %v4505 = vld [vmem:[%s4503 + $0x8] sm:$0xff]
  %v4506 = vld [vmem:[%s4503 + $0x10] sm:$0xff]
  %v4507 = vld [vmem:[%s4503 + $0x18] sm:$0xff]
  %v4508 = vld [vmem:[%s4503 + $0x20] sm:$0xff]
  %v4509 = vld [vmem:[%s4503 + $0x28] sm:$0xff]
  %v4510 = vld [vmem:[%s4503 + $0x30] sm:$0xff]
  %v4511 = vld [vmem:[%s4503 + $0x38] sm:$0xff]
  %v4512 = vrot.slane %v2177, 4
  %v4513 = vsel %vm2187, %v4512, 0
  %4515 = vmatprep.subr.mxu0 0.0
  %4516 = vmatpush1.msra.mxu0 %v4504
  %4517 = vmatprep.subr.mxu0 0.0
  %4518 = vmatpush1.msra.mxu0 %v4505
  %4519 = vmatprep.subr.mxu0 0.0
  %4520 = vmatpush1.msra.mxu0 %v4506
  %4521 = vmatprep.subr.mxu0 0.0
  %4522 = vmatpush1.msra.mxu0 %v4507
  %4523 = vmatprep.subr.mxu0 0.0
  %4524 = vmatpush1.msra.mxu0 %v4508
  %4525 = vmatprep.subr.mxu0 0.0
  %4526 = vmatpush1.msra.mxu0 %v4509
  %4527 = vmatprep.subr.mxu0 0.0
  %4528 = vmatpush1.msra.mxu0 %v4510
  %4529 = vmatprep.subr.mxu0 0.0
  %4530 = vmatpush1.msra.mxu0 %v4511
  %4531 = vmatprep.subr.mxu0 0.0
  %4532 = vmatpush1.msra.mxu0 0.0
  %4533 = vmatprep.subr.mxu0 0.0
  %4534 = vmatpush1.msra.mxu0 0.0
  %4535 = vmatprep.subr.mxu0 0.0
  %4536 = vmatpush1.msra.mxu0 0.0
  %4537 = vmatprep.subr.mxu0 0.0
  %4538 = vmatpush1.msra.mxu0 0.0
  %4539 = vmatprep.subr.mxu0 0.0
  %4540 = vmatpush1.msra.mxu0 0.0
  %4541 = vmatprep.subr.mxu0 0.0
  %4542 = vmatpush1.msra.mxu0 0.0
  %4543 = vmatprep.subr.mxu0 0.0
  %4544 = vmatpush1.msra.mxu0 0.0
  %4545 = vmatprep.subr.mxu0 0.0
  %4546 = vmatpush1.msra.mxu0 0.0
  %4547 = vmatprep.subr.mxu0 0.0
  %4548 = vmatpush1.msra.mxu0 0.0
  %4549 = vmatprep.subr.mxu0 0.0
  %4550 = vmatpush1.msra.mxu0 0.0
  %4551 = vmatprep.subr.mxu0 0.0
  %4552 = vmatpush1.msra.mxu0 0.0
  %4553 = vmatprep.subr.mxu0 0.0
  %4554 = vmatpush1.msra.mxu0 0.0
  %4555 = vmatprep.subr.mxu0 0.0
  %4556 = vmatpush1.msra.mxu0 0.0
  %4557 = vmatprep.subr.mxu0 0.0
  %4558 = vmatpush1.msra.mxu0 0.0
  %4559 = vmatprep.subr.mxu0 0.0
  %4560 = vmatpush1.msra.mxu0 0.0
  %4561 = vmatprep.subr.mxu0 0.0
  %4562 = vmatpush1.msra.mxu0 0.0
  %4563 = vmatprep.subr.mxu0 0.0
  %4564 = vmatpush1.msra.mxu0 0.0
  %4565 = vmatprep.subr.mxu0 0.0
  %4566 = vmatpush1.msra.mxu0 0.0
  %4567 = vmatprep.subr.mxu0 0.0
  %4568 = vmatpush1.msra.mxu0 0.0
  %4569 = vmatprep.subr.mxu0 0.0
  %4570 = vmatpush1.msra.mxu0 0.0
  %4571 = vmatprep.subr.mxu0 0.0
  %4572 = vmatpush1.msra.mxu0 0.0
  %4573 = vmatprep.subr.mxu0 0.0
  %4574 = vmatpush1.msra.mxu0 0.0
  %4575 = vmatprep.subr.mxu0 0.0
  %4576 = vmatpush1.msra.mxu0 0.0
  %4577 = vmatprep.subr.mxu0 0.0
  %4578 = vmatpush1.msra.mxu0 0.0
  %4579 = vmatprep.mubr.f32.mxu0 0.0
  %4580 = vmatmul.mubr.f32.gmra.mrb[0].mxu0 %v4513
  %v4581 = vpop.f32.mrb[0].mxu0
  %v4582 = vadd.f32 0.0, %v4581
  %v4583 = vpop.f32.mrb[0].mxu0
  %4584 = vdwg.mxu0
  %v4585 = vadd.f32 %v4502, %v4582
  %s4586 = scalar_lea.vmem %s6, 1856
  %v4587 = vld [vmem:[%s4586] sm:$0xff]
  %v4588 = vld [vmem:[%s4586 + $0x8] sm:$0xff]
  %v4589 = vld [vmem:[%s4586 + $0x10] sm:$0xff]
  %v4590 = vld [vmem:[%s4586 + $0x18] sm:$0xff]
  %v4591 = vld [vmem:[%s4586 + $0x20] sm:$0xff]
  %v4592 = vld [vmem:[%s4586 + $0x28] sm:$0xff]
  %v4593 = vld [vmem:[%s4586 + $0x30] sm:$0xff]
  %v4594 = vld [vmem:[%s4586 + $0x38] sm:$0xff]
  %v4595 = vrot.slane %v2177, 5
  %v4596 = vsel %vm2187, %v4595, 0
  %4598 = vmatprep.subr.mxu0 0.0
  %4599 = vmatpush1.msra.mxu0 %v4587
  %4600 = vmatprep.subr.mxu0 0.0
  %4601 = vmatpush1.msra.mxu0 %v4588
  %4602 = vmatprep.subr.mxu0 0.0
  %4603 = vmatpush1.msra.mxu0 %v4589
  %4604 = vmatprep.subr.mxu0 0.0
  %4605 = vmatpush1.msra.mxu0 %v4590
  %4606 = vmatprep.subr.mxu0 0.0
  %4607 = vmatpush1.msra.mxu0 %v4591
  %4608 = vmatprep.subr.mxu0 0.0
  %4609 = vmatpush1.msra.mxu0 %v4592
  %4610 = vmatprep.subr.mxu0 0.0
  %4611 = vmatpush1.msra.mxu0 %v4593
  %4612 = vmatprep.subr.mxu0 0.0
  %4613 = vmatpush1.msra.mxu0 %v4594
  %4614 = vmatprep.subr.mxu0 0.0
  %4615 = vmatpush1.msra.mxu0 0.0
  %4616 = vmatprep.subr.mxu0 0.0
  %4617 = vmatpush1.msra.mxu0 0.0
  %4618 = vmatprep.subr.mxu0 0.0
  %4619 = vmatpush1.msra.mxu0 0.0
  %4620 = vmatprep.subr.mxu0 0.0
  %4621 = vmatpush1.msra.mxu0 0.0
  %4622 = vmatprep.subr.mxu0 0.0
  %4623 = vmatpush1.msra.mxu0 0.0
  %4624 = vmatprep.subr.mxu0 0.0
  %4625 = vmatpush1.msra.mxu0 0.0
  %4626 = vmatprep.subr.mxu0 0.0
  %4627 = vmatpush1.msra.mxu0 0.0
  %4628 = vmatprep.subr.mxu0 0.0
  %4629 = vmatpush1.msra.mxu0 0.0
  %4630 = vmatprep.subr.mxu0 0.0
  %4631 = vmatpush1.msra.mxu0 0.0
  %4632 = vmatprep.subr.mxu0 0.0
  %4633 = vmatpush1.msra.mxu0 0.0
  %4634 = vmatprep.subr.mxu0 0.0
  %4635 = vmatpush1.msra.mxu0 0.0
  %4636 = vmatprep.subr.mxu0 0.0
  %4637 = vmatpush1.msra.mxu0 0.0
  %4638 = vmatprep.subr.mxu0 0.0
  %4639 = vmatpush1.msra.mxu0 0.0
  %4640 = vmatprep.subr.mxu0 0.0
  %4641 = vmatpush1.msra.mxu0 0.0
  %4642 = vmatprep.subr.mxu0 0.0
  %4643 = vmatpush1.msra.mxu0 0.0
  %4644 = vmatprep.subr.mxu0 0.0
  %4645 = vmatpush1.msra.mxu0 0.0
  %4646 = vmatprep.subr.mxu0 0.0
  %4647 = vmatpush1.msra.mxu0 0.0
  %4648 = vmatprep.subr.mxu0 0.0
  %4649 = vmatpush1.msra.mxu0 0.0
  %4650 = vmatprep.subr.mxu0 0.0
  %4651 = vmatpush1.msra.mxu0 0.0
  %4652 = vmatprep.subr.mxu0 0.0
  %4653 = vmatpush1.msra.mxu0 0.0
  %4654 = vmatprep.subr.mxu0 0.0
  %4655 = vmatpush1.msra.mxu0 0.0
  %4656 = vmatprep.subr.mxu0 0.0
  %4657 = vmatpush1.msra.mxu0 0.0
  %4658 = vmatprep.subr.mxu0 0.0
  %4659 = vmatpush1.msra.mxu0 0.0
  %4660 = vmatprep.subr.mxu0 0.0
  %4661 = vmatpush1.msra.mxu0 0.0
  %4662 = vmatprep.mubr.f32.mxu0 0.0
  %4663 = vmatmul.mubr.f32.gmra.mrb[0].mxu0 %v4596
  %v4664 = vpop.f32.mrb[0].mxu0
  %v4665 = vadd.f32 0.0, %v4664
  %v4666 = vpop.f32.mrb[0].mxu0
  %4667 = vdwg.mxu0
  %v4668 = vadd.f32 %v4585, %v4665
  %s4669 = scalar_lea.vmem %s6, 1920
  %v4670 = vld [vmem:[%s4669] sm:$0xff]
  %v4671 = vld [vmem:[%s4669 + $0x8] sm:$0xff]
  %v4672 = vld [vmem:[%s4669 + $0x10] sm:$0xff]
  %v4673 = vld [vmem:[%s4669 + $0x18] sm:$0xff]
  %v4674 = vld [vmem:[%s4669 + $0x20] sm:$0xff]
  %v4675 = vld [vmem:[%s4669 + $0x28] sm:$0xff]
  %v4676 = vld [vmem:[%s4669 + $0x30] sm:$0xff]
  %v4677 = vld [vmem:[%s4669 + $0x38] sm:$0xff]
  %v4678 = vrot.slane %v2177, 6
  %v4679 = vsel %vm2187, %v4678, 0
  %4681 = vmatprep.subr.mxu0 0.0
  %4682 = vmatpush1.msra.mxu0 %v4670
  %4683 = vmatprep.subr.mxu0 0.0
  %4684 = vmatpush1.msra.mxu0 %v4671
  %4685 = vmatprep.subr.mxu0 0.0
  %4686 = vmatpush1.msra.mxu0 %v4672
  %4687 = vmatprep.subr.mxu0 0.0
  %4688 = vmatpush1.msra.mxu0 %v4673
  %4689 = vmatprep.subr.mxu0 0.0
  %4690 = vmatpush1.msra.mxu0 %v4674
  %4691 = vmatprep.subr.mxu0 0.0
  %4692 = vmatpush1.msra.mxu0 %v4675
  %4693 = vmatprep.subr.mxu0 0.0
  %4694 = vmatpush1.msra.mxu0 %v4676
  %4695 = vmatprep.subr.mxu0 0.0
  %4696 = vmatpush1.msra.mxu0 %v4677
  %4697 = vmatprep.subr.mxu0 0.0
  %4698 = vmatpush1.msra.mxu0 0.0
  %4699 = vmatprep.subr.mxu0 0.0
  %4700 = vmatpush1.msra.mxu0 0.0
  %4701 = vmatprep.subr.mxu0 0.0
  %4702 = vmatpush1.msra.mxu0 0.0
  %4703 = vmatprep.subr.mxu0 0.0
  %4704 = vmatpush1.msra.mxu0 0.0
  %4705 = vmatprep.subr.mxu0 0.0
  %4706 = vmatpush1.msra.mxu0 0.0
  %4707 = vmatprep.subr.mxu0 0.0
  %4708 = vmatpush1.msra.mxu0 0.0
  %4709 = vmatprep.subr.mxu0 0.0
  %4710 = vmatpush1.msra.mxu0 0.0
  %4711 = vmatprep.subr.mxu0 0.0
  %4712 = vmatpush1.msra.mxu0 0.0
  %4713 = vmatprep.subr.mxu0 0.0
  %4714 = vmatpush1.msra.mxu0 0.0
  %4715 = vmatprep.subr.mxu0 0.0
  %4716 = vmatpush1.msra.mxu0 0.0
  %4717 = vmatprep.subr.mxu0 0.0
  %4718 = vmatpush1.msra.mxu0 0.0
  %4719 = vmatprep.subr.mxu0 0.0
  %4720 = vmatpush1.msra.mxu0 0.0
  %4721 = vmatprep.subr.mxu0 0.0
  %4722 = vmatpush1.msra.mxu0 0.0
  %4723 = vmatprep.subr.mxu0 0.0
  %4724 = vmatpush1.msra.mxu0 0.0
  %4725 = vmatprep.subr.mxu0 0.0
  %4726 = vmatpush1.msra.mxu0 0.0
  %4727 = vmatprep.subr.mxu0 0.0
  %4728 = vmatpush1.msra.mxu0 0.0
  %4729 = vmatprep.subr.mxu0 0.0
  %4730 = vmatpush1.msra.mxu0 0.0
  %4731 = vmatprep.subr.mxu0 0.0
  %4732 = vmatpush1.msra.mxu0 0.0
  %4733 = vmatprep.subr.mxu0 0.0
  %4734 = vmatpush1.msra.mxu0 0.0
  %4735 = vmatprep.subr.mxu0 0.0
  %4736 = vmatpush1.msra.mxu0 0.0
  %4737 = vmatprep.subr.mxu0 0.0
  %4738 = vmatpush1.msra.mxu0 0.0
  %4739 = vmatprep.subr.mxu0 0.0
  %4740 = vmatpush1.msra.mxu0 0.0
  %4741 = vmatprep.subr.mxu0 0.0
  %4742 = vmatpush1.msra.mxu0 0.0
  %4743 = vmatprep.subr.mxu0 0.0
  %4744 = vmatpush1.msra.mxu0 0.0
  %4745 = vmatprep.mubr.f32.mxu0 0.0
  %4746 = vmatmul.mubr.f32.gmra.mrb[0].mxu0 %v4679
  %v4747 = vpop.f32.mrb[0].mxu0
  %v4748 = vadd.f32 0.0, %v4747
  %v4749 = vpop.f32.mrb[0].mxu0
  %4750 = vdwg.mxu0
  %v4751 = vadd.f32 %v4668, %v4748
  %s4752 = scalar_lea.vmem %s6, 1984
  %v4753 = vld [vmem:[%s4752] sm:$0xff]
  %v4754 = vld [vmem:[%s4752 + $0x8] sm:$0xff]
  %v4755 = vld [vmem:[%s4752 + $0x10] sm:$0xff]
  %v4756 = vld [vmem:[%s4752 + $0x18] sm:$0xff]
  %v4757 = vld [vmem:[%s4752 + $0x20] sm:$0xff]
  %v4758 = vld [vmem:[%s4752 + $0x28] sm:$0xff]
  %v4759 = vld [vmem:[%s4752 + $0x30] sm:$0xff]
  %v4760 = vld [vmem:[%s4752 + $0x38] sm:$0xff]
  %v4761 = vrot.slane %v2177, 7
  %v4762 = vsel %vm2187, %v4761, 0
  %4764 = vmatprep.subr.mxu0 0.0
  %4765 = vmatpush1.msra.mxu0 %v4753
  %4766 = vmatprep.subr.mxu0 0.0
  %4767 = vmatpush1.msra.mxu0 %v4754
  %4768 = vmatprep.subr.mxu0 0.0
  %4769 = vmatpush1.msra.mxu0 %v4755
  %4770 = vmatprep.subr.mxu0 0.0
  %4771 = vmatpush1.msra.mxu0 %v4756
  %4772 = vmatprep.subr.mxu0 0.0
  %4773 = vmatpush1.msra.mxu0 %v4757
  %4774 = vmatprep.subr.mxu0 0.0
  %4775 = vmatpush1.msra.mxu0 %v4758
  %4776 = vmatprep.subr.mxu0 0.0
  %4777 = vmatpush1.msra.mxu0 %v4759
  %4778 = vmatprep.subr.mxu0 0.0
  %4779 = vmatpush1.msra.mxu0 %v4760
  %4780 = vmatprep.subr.mxu0 0.0
  %4781 = vmatpush1.msra.mxu0 0.0
  %4782 = vmatprep.subr.mxu0 0.0
  %4783 = vmatpush1.msra.mxu0 0.0
  %4784 = vmatprep.subr.mxu0 0.0
  %4785 = vmatpush1.msra.mxu0 0.0
  %4786 = vmatprep.subr.mxu0 0.0
  %4787 = vmatpush1.msra.mxu0 0.0
  %4788 = vmatprep.subr.mxu0 0.0
  %4789 = vmatpush1.msra.mxu0 0.0
  %4790 = vmatprep.subr.mxu0 0.0
  %4791 = vmatpush1.msra.mxu0 0.0
  %4792 = vmatprep.subr.mxu0 0.0
  %4793 = vmatpush1.msra.mxu0 0.0
  %4794 = vmatprep.subr.mxu0 0.0
  %4795 = vmatpush1.msra.mxu0 0.0
  %4796 = vmatprep.subr.mxu0 0.0
  %4797 = vmatpush1.msra.mxu0 0.0
  %4798 = vmatprep.subr.mxu0 0.0
  %4799 = vmatpush1.msra.mxu0 0.0
  %4800 = vmatprep.subr.mxu0 0.0
  %4801 = vmatpush1.msra.mxu0 0.0
  %4802 = vmatprep.subr.mxu0 0.0
  %4803 = vmatpush1.msra.mxu0 0.0
  %4804 = vmatprep.subr.mxu0 0.0
  %4805 = vmatpush1.msra.mxu0 0.0
  %4806 = vmatprep.subr.mxu0 0.0
  %4807 = vmatpush1.msra.mxu0 0.0
  %4808 = vmatprep.subr.mxu0 0.0
  %4809 = vmatpush1.msra.mxu0 0.0
  %4810 = vmatprep.subr.mxu0 0.0
  %4811 = vmatpush1.msra.mxu0 0.0
  %4812 = vmatprep.subr.mxu0 0.0
  %4813 = vmatpush1.msra.mxu0 0.0
  %4814 = vmatprep.subr.mxu0 0.0
  %4815 = vmatpush1.msra.mxu0 0.0
  %4816 = vmatprep.subr.mxu0 0.0
  %4817 = vmatpush1.msra.mxu0 0.0
  %4818 = vmatprep.subr.mxu0 0.0
  %4819 = vmatpush1.msra.mxu0 0.0
  %4820 = vmatprep.subr.mxu0 0.0
  %4821 = vmatpush1.msra.mxu0 0.0
  %4822 = vmatprep.subr.mxu0 0.0
  %4823 = vmatpush1.msra.mxu0 0.0
  %4824 = vmatprep.subr.mxu0 0.0
  %4825 = vmatpush1.msra.mxu0 0.0
  %4826 = vmatprep.subr.mxu0 0.0
  %4827 = vmatpush1.msra.mxu0 0.0
  %4828 = vmatprep.mubr.f32.mxu0 0.0
  %4829 = vmatmul.mubr.f32.gmra.mrb[0].mxu0 %v4762
  %v4830 = vpop.f32.mrb[0].mxu0
  %v4831 = vadd.f32 0.0, %v4830
  %v4832 = vpop.f32.mrb[0].mxu0
  %4833 = vdwg.mxu0
  %v4834 = vadd.f32 %v4751, %v4831
  %vm4835 = vcmask 114688
  %4836 = vst.msk [vmem:[%s8] sm:$0x1] %vm4835, %v4834
  %v4837 = vld [vmem:[%s3] sm:$0xff]
  %v4838 = vld [vmem:[%s3 + $0x8] sm:$0xff]
  %v4839 = vld [vmem:[%s3 + $0x10] sm:$0xff]
  %v4840 = vld [vmem:[%s3 + $0x18] sm:$0xff]
  %v4841 = vld [vmem:[%s3 + $0x20] sm:$0xff]
  %v4842 = vld [vmem:[%s3 + $0x28] sm:$0xff]
  %v4843 = vld [vmem:[%s3 + $0x30] sm:$0xff]
  %v4844 = vld [vmem:[%s3 + $0x38] sm:$0xff]
  %v4845 = vld [vmem:[%s3 + $0x40] sm:$0xff]
  %v4846 = vld [vmem:[%s3 + $0x48] sm:$0xff]
  %v4847 = vld [vmem:[%s3 + $0x50] sm:$0xff]
  %v4848 = vld [vmem:[%s3 + $0x58] sm:$0xff]
  %v4849 = vld [vmem:[%s3 + $0x60] sm:$0xff]
  %v4850 = vld [vmem:[%s3 + $0x68] sm:$0xff]
  %v4851 = vld [vmem:[%s3 + $0x70] sm:$0xff]
  %v4852 = vld [vmem:[%s3 + $0x78] sm:$0xff]
  %v4853 = vld [vmem:[%s3 + $0x80] sm:$0xff]
  %v4854 = vld [vmem:[%s3 + $0x88] sm:$0xff]
  %v4855 = vld [vmem:[%s3 + $0x90] sm:$0xff]
  %v4856 = vld [vmem:[%s3 + $0x98] sm:$0xff]
  %v4857 = vld [vmem:[%s3 + $0xa0] sm:$0xff]
  %v4858 = vld [vmem:[%s3 + $0xa8] sm:$0xff]
  %v4859 = vld [vmem:[%s3 + $0xb0] sm:$0xff]
  %v4860 = vld [vmem:[%s3 + $0xb8] sm:$0xff]
  %v4861 = vld [vmem:[%s3 + $0xc0] sm:$0xff]
  %v4862 = vld [vmem:[%s3 + $0xc8] sm:$0xff]
  %v4863 = vld [vmem:[%s3 + $0xd0] sm:$0xff]
  %v4864 = vld [vmem:[%s3 + $0xd8] sm:$0xff]
  %v4865 = vld [vmem:[%s3 + $0xe0] sm:$0xff]
  %v4866 = vld [vmem:[%s3 + $0xe8] sm:$0xff]
  %v4867 = vld [vmem:[%s3 + $0xf0] sm:$0xff]
  %v4868 = vld [vmem:[%s3 + $0xf8] sm:$0xff]
  %4869 = vmatprep.subr.mxu0 0.0
  %4870 = vmatpush1.msra.mxu0 %v4837
  %4871 = vmatprep.subr.mxu0 0.0
  %4872 = vmatpush1.msra.mxu0 %v4838
  %4873 = vmatprep.subr.mxu0 0.0
  %4874 = vmatpush1.msra.mxu0 %v4839
  %4875 = vmatprep.subr.mxu0 0.0
  %4876 = vmatpush1.msra.mxu0 %v4840
  %4877 = vmatprep.subr.mxu0 0.0
  %4878 = vmatpush1.msra.mxu0 %v4841
  %4879 = vmatprep.subr.mxu0 0.0
  %4880 = vmatpush1.msra.mxu0 %v4842
  %4881 = vmatprep.subr.mxu0 0.0
  %4882 = vmatpush1.msra.mxu0 %v4843
  %4883 = vmatprep.subr.mxu0 0.0
  %4884 = vmatpush1.msra.mxu0 %v4844
  %4885 = vmatprep.subr.mxu0 0.0
  %4886 = vmatpush1.msra.mxu0 %v4845
  %4887 = vmatprep.subr.mxu0 0.0
  %4888 = vmatpush1.msra.mxu0 %v4846
  %4889 = vmatprep.subr.mxu0 0.0
  %4890 = vmatpush1.msra.mxu0 %v4847
  %4891 = vmatprep.subr.mxu0 0.0
  %4892 = vmatpush1.msra.mxu0 %v4848
  %4893 = vmatprep.subr.mxu0 0.0
  %4894 = vmatpush1.msra.mxu0 %v4849
  %4895 = vmatprep.subr.mxu0 0.0
  %4896 = vmatpush1.msra.mxu0 %v4850
  %4897 = vmatprep.subr.mxu0 0.0
  %4898 = vmatpush1.msra.mxu0 %v4851
  %4899 = vmatprep.subr.mxu0 0.0
  %4900 = vmatpush1.msra.mxu0 %v4852
  %4901 = vmatprep.subr.mxu0 0.0
  %4902 = vmatpush1.msra.mxu0 %v4853
  %4903 = vmatprep.subr.mxu0 0.0
  %4904 = vmatpush1.msra.mxu0 %v4854
  %4905 = vmatprep.subr.mxu0 0.0
  %4906 = vmatpush1.msra.mxu0 %v4855
  %4907 = vmatprep.subr.mxu0 0.0
  %4908 = vmatpush1.msra.mxu0 %v4856
  %4909 = vmatprep.subr.mxu0 0.0
  %4910 = vmatpush1.msra.mxu0 %v4857
  %4911 = vmatprep.subr.mxu0 0.0
  %4912 = vmatpush1.msra.mxu0 %v4858
  %4913 = vmatprep.subr.mxu0 0.0
  %4914 = vmatpush1.msra.mxu0 %v4859
  %4915 = vmatprep.subr.mxu0 0.0
  %4916 = vmatpush1.msra.mxu0 %v4860
  %4917 = vmatprep.subr.mxu0 0.0
  %4918 = vmatpush1.msra.mxu0 %v4861
  %4919 = vmatprep.subr.mxu0 0.0
  %4920 = vmatpush1.msra.mxu0 %v4862
  %4921 = vmatprep.subr.mxu0 0.0
  %4922 = vmatpush1.msra.mxu0 %v4863
  %4923 = vmatprep.subr.mxu0 0.0
  %4924 = vmatpush1.msra.mxu0 %v4864
  %4925 = vmatprep.subr.mxu0 0.0
  %4926 = vmatpush1.msra.mxu0 %v4865
  %4927 = vmatprep.subr.mxu0 0.0
  %4928 = vmatpush1.msra.mxu0 %v4866
  %4929 = vmatprep.subr.mxu0 0.0
  %4930 = vmatpush1.msra.mxu0 %v4867
  %4931 = vmatprep.subr.mxu0 0.0
  %4932 = vmatpush1.msra.mxu0 %v4868
  %4933 = vmatprep.mubr.f32.mxu0 %v225
  %4934 = vmatmul.mubr.f32.gmra.mrb[0].mxu0 %v223
  %v4935 = vpop.f32.mrb[0].mxu0
  %v4936 = vadd.f32 0.0, %v4935
  %v4937 = vpop.f32.mrb[0].mxu0
  %4938 = vmatprep.mubr.f32.mxu0 %v231
  %4939 = vmatmul.mubr.f32.gmra.mrb[0].mxu0 %v229
  %v4940 = vpop.f32.mrb[0].mxu0
  %v4941 = vadd.f32 0.0, %v4940
  %v4942 = vpop.f32.mrb[0].mxu0
  %4943 = vdwg.mxu0
  %v4944 = vld [vmem:[%s4] sm:$0xff]
  %v4945 = vld [vmem:[%s4 + $0x8] sm:$0xff]
  %v4946 = vld [vmem:[%s4 + $0x10] sm:$0xff]
  %v4947 = vld [vmem:[%s4 + $0x18] sm:$0xff]
  %v4948 = vld [vmem:[%s344] sm:$0xff]
  %v4949 = vld [vmem:[%s344 + $0x8] sm:$0xff]
  %v4950 = vld [vmem:[%s344 + $0x10] sm:$0xff]
  %v4951 = vld [vmem:[%s344 + $0x18] sm:$0xff]
  %v4952 = vld [vmem:[%s344 + $0x20] sm:$0xff]
  %v4953 = vld [vmem:[%s344 + $0x28] sm:$0xff]
  %v4954 = vld [vmem:[%s344 + $0x30] sm:$0xff]
  %v4955 = vld [vmem:[%s344 + $0x38] sm:$0xff]
  %v4956 = vld [vmem:[%s344 + $0x40] sm:$0xff]
  %v4957 = vld [vmem:[%s344 + $0x48] sm:$0xff]
  %v4958 = vld [vmem:[%s344 + $0x50] sm:$0xff]
  %v4959 = vld [vmem:[%s344 + $0x58] sm:$0xff]
  %v4960 = vld [vmem:[%s344 + $0x60] sm:$0xff]
  %v4961 = vld [vmem:[%s344 + $0x68] sm:$0xff]
  %v4962 = vld [vmem:[%s344 + $0x70] sm:$0xff]
  %v4963 = vld [vmem:[%s344 + $0x78] sm:$0xff]
  %v4964 = vld [vmem:[%s344 + $0x80] sm:$0xff]
  %v4965 = vld [vmem:[%s344 + $0x88] sm:$0xff]
  %v4966 = vld [vmem:[%s344 + $0x90] sm:$0xff]
  %v4967 = vld [vmem:[%s344 + $0x98] sm:$0xff]
  %v4968 = vld [vmem:[%s344 + $0xa0] sm:$0xff]
  %v4969 = vld [vmem:[%s344 + $0xa8] sm:$0xff]
  %v4970 = vld [vmem:[%s344 + $0xb0] sm:$0xff]
  %v4971 = vld [vmem:[%s344 + $0xb8] sm:$0xff]
  %v4972 = vld [vmem:[%s344 + $0xc0] sm:$0xff]
  %v4973 = vld [vmem:[%s344 + $0xc8] sm:$0xff]
  %v4974 = vld [vmem:[%s344 + $0xd0] sm:$0xff]
  %v4975 = vld [vmem:[%s344 + $0xd8] sm:$0xff]
  %v4976 = vld [vmem:[%s344 + $0xe0] sm:$0xff]
  %v4977 = vld [vmem:[%s344 + $0xe8] sm:$0xff]
  %v4978 = vld [vmem:[%s344 + $0xf0] sm:$0xff]
  %v4979 = vld [vmem:[%s344 + $0xf8] sm:$0xff]
  %4980 = vmatprep.subr.mxu0 0.0
  %4981 = vmatpush1.msra.mxu0 %v4948
  %4982 = vmatprep.subr.mxu0 0.0
  %4983 = vmatpush1.msra.mxu0 %v4949
  %4984 = vmatprep.subr.mxu0 0.0
  %4985 = vmatpush1.msra.mxu0 %v4950
  %4986 = vmatprep.subr.mxu0 0.0
  %4987 = vmatpush1.msra.mxu0 %v4951
  %4988 = vmatprep.subr.mxu0 0.0
  %4989 = vmatpush1.msra.mxu0 %v4952
  %4990 = vmatprep.subr.mxu0 0.0
  %4991 = vmatpush1.msra.mxu0 %v4953
  %4992 = vmatprep.subr.mxu0 0.0
  %4993 = vmatpush1.msra.mxu0 %v4954
  %4994 = vmatprep.subr.mxu0 0.0
  %4995 = vmatpush1.msra.mxu0 %v4955
  %4996 = vmatprep.subr.mxu0 0.0
  %4997 = vmatpush1.msra.mxu0 %v4956
  %4998 = vmatprep.subr.mxu0 0.0
  %4999 = vmatpush1.msra.mxu0 %v4957
  %5000 = vmatprep.subr.mxu0 0.0
  %5001 = vmatpush1.msra.mxu0 %v4958
  %5002 = vmatprep.subr.mxu0 0.0
  %5003 = vmatpush1.msra.mxu0 %v4959
  %5004 = vmatprep.subr.mxu0 0.0
  %5005 = vmatpush1.msra.mxu0 %v4960
  %5006 = vmatprep.subr.mxu0 0.0
  %5007 = vmatpush1.msra.mxu0 %v4961
  %5008 = vmatprep.subr.mxu0 0.0
  %5009 = vmatpush1.msra.mxu0 %v4962
  %5010 = vmatprep.subr.mxu0 0.0
  %5011 = vmatpush1.msra.mxu0 %v4963
  %5012 = vmatprep.subr.mxu0 0.0
  %5013 = vmatpush1.msra.mxu0 %v4964
  %5014 = vmatprep.subr.mxu0 0.0
  %5015 = vmatpush1.msra.mxu0 %v4965
  %5016 = vmatprep.subr.mxu0 0.0
  %5017 = vmatpush1.msra.mxu0 %v4966
  %5018 = vmatprep.subr.mxu0 0.0
  %5019 = vmatpush1.msra.mxu0 %v4967
  %5020 = vmatprep.subr.mxu0 0.0
  %5021 = vmatpush1.msra.mxu0 %v4968
  %5022 = vmatprep.subr.mxu0 0.0
  %5023 = vmatpush1.msra.mxu0 %v4969
  %5024 = vmatprep.subr.mxu0 0.0
  %5025 = vmatpush1.msra.mxu0 %v4970
  %5026 = vmatprep.subr.mxu0 0.0
  %5027 = vmatpush1.msra.mxu0 %v4971
  %5028 = vmatprep.subr.mxu0 0.0
  %5029 = vmatpush1.msra.mxu0 %v4972
  %5030 = vmatprep.subr.mxu0 0.0
  %5031 = vmatpush1.msra.mxu0 %v4973
  %5032 = vmatprep.subr.mxu0 0.0
  %5033 = vmatpush1.msra.mxu0 %v4974
  %5034 = vmatprep.subr.mxu0 0.0
  %5035 = vmatpush1.msra.mxu0 %v4975
  %5036 = vmatprep.subr.mxu0 0.0
  %5037 = vmatpush1.msra.mxu0 %v4976
  %5038 = vmatprep.subr.mxu0 0.0
  %5039 = vmatpush1.msra.mxu0 %v4977
  %5040 = vmatprep.subr.mxu0 0.0
  %5041 = vmatpush1.msra.mxu0 %v4978
  %5042 = vmatprep.subr.mxu0 0.0
  %5043 = vmatpush1.msra.mxu0 %v4979
  %5044 = vmatprep.mubr.f32.mxu0 %v225
  %5045 = vmatmul.mubr.f32.gmra.mrb[0].mxu0 %v223
  %v5046 = vpop.f32.mrb[0].mxu0
  %v5047 = vadd.f32 0.0, %v5046
  %v5048 = vpop.f32.mrb[0].mxu0
  %5049 = vmatprep.mubr.f32.mxu0 %v231
  %5050 = vmatmul.mubr.f32.gmra.mrb[0].mxu0 %v229
  %v5051 = vpop.f32.mrb[0].mxu0
  %v5052 = vadd.f32 0.0, %v5051
  %v5053 = vpop.f32.mrb[0].mxu0
  %5054 = vdwg.mxu0
  %v5055 = vld [vmem:[%s452] sm:$0xff]
  %v5056 = vld [vmem:[%s452 + $0x8] sm:$0xff]
  %v5057 = vld [vmem:[%s452 + $0x10] sm:$0xff]
  %v5058 = vld [vmem:[%s452 + $0x18] sm:$0xff]
  %v5060 = vsel %vm457, %v5055, 0
  %v5063 = vsel %vm457, %v5056, 0
  %v5066 = vsel %vm457, %v5057, 0
  %v5069 = vsel %vm457, %v5058, 0
  %5071 = vmatprep.subr.mxu0 0.0
  %5072 = vmatpush1.msra.mxu0 %v5047
  %5073 = vmatprep.subr.mxu0 0.0
  %5074 = vmatpush1.msra.mxu0 %v5052
  %5075 = vmatprep.subr.mxu0 0.0
  %5076 = vmatpush1.msra.mxu0 0.0
  %5077 = vmatprep.subr.mxu0 0.0
  %5078 = vmatpush1.msra.mxu0 0.0
  %5079 = vmatprep.subr.mxu0 0.0
  %5080 = vmatpush1.msra.mxu0 0.0
  %5081 = vmatprep.subr.mxu0 0.0
  %5082 = vmatpush1.msra.mxu0 0.0
  %5083 = vmatprep.subr.mxu0 0.0
  %5084 = vmatpush1.msra.mxu0 0.0
  %5085 = vmatprep.subr.mxu0 0.0
  %5086 = vmatpush1.msra.mxu0 0.0
  %5087 = vmatprep.subr.mxu0 0.0
  %5088 = vmatpush1.msra.mxu0 0.0
  %5089 = vmatprep.subr.mxu0 0.0
  %5090 = vmatpush1.msra.mxu0 0.0
  %5091 = vmatprep.subr.mxu0 0.0
  %5092 = vmatpush1.msra.mxu0 0.0
  %5093 = vmatprep.subr.mxu0 0.0
  %5094 = vmatpush1.msra.mxu0 0.0
  %5095 = vmatprep.subr.mxu0 0.0
  %5096 = vmatpush1.msra.mxu0 0.0
  %5097 = vmatprep.subr.mxu0 0.0
  %5098 = vmatpush1.msra.mxu0 0.0
  %5099 = vmatprep.subr.mxu0 0.0
  %5100 = vmatpush1.msra.mxu0 0.0
  %5101 = vmatprep.subr.mxu0 0.0
  %5102 = vmatpush1.msra.mxu0 0.0
  %5103 = vmatprep.subr.mxu0 0.0
  %5104 = vmatpush1.msra.mxu0 0.0
  %5105 = vmatprep.subr.mxu0 0.0
  %5106 = vmatpush1.msra.mxu0 0.0
  %5107 = vmatprep.subr.mxu0 0.0
  %5108 = vmatpush1.msra.mxu0 0.0
  %5109 = vmatprep.subr.mxu0 0.0
  %5110 = vmatpush1.msra.mxu0 0.0
  %5111 = vmatprep.subr.mxu0 0.0
  %5112 = vmatpush1.msra.mxu0 0.0
  %5113 = vmatprep.subr.mxu0 0.0
  %5114 = vmatpush1.msra.mxu0 0.0
  %5115 = vmatprep.subr.mxu0 0.0
  %5116 = vmatpush1.msra.mxu0 0.0
  %5117 = vmatprep.subr.mxu0 0.0
  %5118 = vmatpush1.msra.mxu0 0.0
  %5119 = vmatprep.subr.mxu0 0.0
  %5120 = vmatpush1.msra.mxu0 0.0
  %5121 = vmatprep.subr.mxu0 0.0
  %5122 = vmatpush1.msra.mxu0 0.0
  %5123 = vmatprep.subr.mxu0 0.0
  %5124 = vmatpush1.msra.mxu0 0.0
  %5125 = vmatprep.subr.mxu0 0.0
  %5126 = vmatpush1.msra.mxu0 0.0
  %5127 = vmatprep.subr.mxu0 0.0
  %5128 = vmatpush1.msra.mxu0 0.0
  %5129 = vmatprep.subr.mxu0 0.0
  %5130 = vmatpush1.msra.mxu0 0.0
  %5131 = vmatprep.subr.mxu0 0.0
  %5132 = vmatpush1.msra.mxu0 0.0
  %5133 = vmatprep.subr.mxu0 0.0
  %5134 = vmatpush1.msra.mxu0 0.0
  %5135 = vmatprep.mubr.f32.mxu0 0.0
  %5136 = vmatmul.mubr.f32.gmra.mrb[0].mxu0 %v5060
  %v5137 = vpop.f32.mrb[0].mxu0
  %v5138 = vadd.f32 0.0, %v5137
  %v5139 = vpop.f32.mrb[0].mxu0
  %5140 = vmatprep.mubr.f32.mxu0 0.0
  %5141 = vmatmul.mubr.f32.gmra.mrb[0].mxu0 %v5063
  %v5142 = vpop.f32.mrb[0].mxu0
  %v5143 = vadd.f32 0.0, %v5142
  %v5144 = vpop.f32.mrb[0].mxu0
  %5145 = vmatprep.mubr.f32.mxu0 0.0
  %5146 = vmatmul.mubr.f32.gmra.mrb[0].mxu0 %v5066
  %v5147 = vpop.f32.mrb[0].mxu0
  %v5148 = vadd.f32 0.0, %v5147
  %v5149 = vpop.f32.mrb[0].mxu0
  %5150 = vmatprep.mubr.f32.mxu0 0.0
  %5151 = vmatmul.mubr.f32.gmra.mrb[0].mxu0 %v5069
  %v5152 = vpop.f32.mrb[0].mxu0
  %v5153 = vadd.f32 0.0, %v5152
  %v5154 = vpop.f32.mrb[0].mxu0
  %5155 = vdwg.mxu0
  %v5157 = vsel %vm457, %v4944, 0
  %v5160 = vsel %vm457, %v4945, 0
  %v5163 = vsel %vm457, %v4946, 0
  %v5166 = vsel %vm457, %v4947, 0
  %5168 = vmatprep.subr.mxu0 0.0
  %5169 = vmatpush1.msra.mxu0 %v4936
  %5170 = vmatprep.subr.mxu0 0.0
  %5171 = vmatpush1.msra.mxu0 %v4941
  %5172 = vmatprep.subr.mxu0 0.0
  %5173 = vmatpush1.msra.mxu0 0.0
  %5174 = vmatprep.subr.mxu0 0.0
  %5175 = vmatpush1.msra.mxu0 0.0
  %5176 = vmatprep.subr.mxu0 0.0
  %5177 = vmatpush1.msra.mxu0 0.0
  %5178 = vmatprep.subr.mxu0 0.0
  %5179 = vmatpush1.msra.mxu0 0.0
  %5180 = vmatprep.subr.mxu0 0.0
  %5181 = vmatpush1.msra.mxu0 0.0
  %5182 = vmatprep.subr.mxu0 0.0
  %5183 = vmatpush1.msra.mxu0 0.0
  %5184 = vmatprep.subr.mxu0 0.0
  %5185 = vmatpush1.msra.mxu0 0.0
  %5186 = vmatprep.subr.mxu0 0.0
  %5187 = vmatpush1.msra.mxu0 0.0
  %5188 = vmatprep.subr.mxu0 0.0
  %5189 = vmatpush1.msra.mxu0 0.0
  %5190 = vmatprep.subr.mxu0 0.0
  %5191 = vmatpush1.msra.mxu0 0.0
  %5192 = vmatprep.subr.mxu0 0.0
  %5193 = vmatpush1.msra.mxu0 0.0
  %5194 = vmatprep.subr.mxu0 0.0
  %5195 = vmatpush1.msra.mxu0 0.0
  %5196 = vmatprep.subr.mxu0 0.0
  %5197 = vmatpush1.msra.mxu0 0.0
  %5198 = vmatprep.subr.mxu0 0.0
  %5199 = vmatpush1.msra.mxu0 0.0
  %5200 = vmatprep.subr.mxu0 0.0
  %5201 = vmatpush1.msra.mxu0 0.0
  %5202 = vmatprep.subr.mxu0 0.0
  %5203 = vmatpush1.msra.mxu0 0.0
  %5204 = vmatprep.subr.mxu0 0.0
  %5205 = vmatpush1.msra.mxu0 0.0
  %5206 = vmatprep.subr.mxu0 0.0
  %5207 = vmatpush1.msra.mxu0 0.0
  %5208 = vmatprep.subr.mxu0 0.0
  %5209 = vmatpush1.msra.mxu0 0.0
  %5210 = vmatprep.subr.mxu0 0.0
  %5211 = vmatpush1.msra.mxu0 0.0
  %5212 = vmatprep.subr.mxu0 0.0
  %5213 = vmatpush1.msra.mxu0 0.0
  %5214 = vmatprep.subr.mxu0 0.0
  %5215 = vmatpush1.msra.mxu0 0.0
  %5216 = vmatprep.subr.mxu0 0.0
  %5217 = vmatpush1.msra.mxu0 0.0
  %5218 = vmatprep.subr.mxu0 0.0
  %5219 = vmatpush1.msra.mxu0 0.0
  %5220 = vmatprep.subr.mxu0 0.0
  %5221 = vmatpush1.msra.mxu0 0.0
  %5222 = vmatprep.subr.mxu0 0.0
  %5223 = vmatpush1.msra.mxu0 0.0
  %5224 = vmatprep.subr.mxu0 0.0
  %5225 = vmatpush1.msra.mxu0 0.0
  %5226 = vmatprep.subr.mxu0 0.0
  %5227 = vmatpush1.msra.mxu0 0.0
  %5228 = vmatprep.subr.mxu0 0.0
  %5229 = vmatpush1.msra.mxu0 0.0
  %5230 = vmatprep.subr.mxu0 0.0
  %5231 = vmatpush1.msra.mxu0 0.0
  %5232 = vmatprep.mubr.f32.mxu0 0.0
  %5233 = vmatmul.mubr.f32.gmra.mrb[0].mxu0 %v5157
  %v5234 = vpop.f32.mrb[0].mxu0
  %v5235 = vadd.f32 %v5138, %v5234
  %v5236 = vpop.f32.mrb[0].mxu0
  %5237 = vmatprep.mubr.f32.mxu0 0.0
  %5238 = vmatmul.mubr.f32.gmra.mrb[0].mxu0 %v5160
  %v5239 = vpop.f32.mrb[0].mxu0
  %v5240 = vadd.f32 %v5143, %v5239
  %v5241 = vpop.f32.mrb[0].mxu0
  %5242 = vmatprep.mubr.f32.mxu0 0.0
  %5243 = vmatmul.mubr.f32.gmra.mrb[0].mxu0 %v5163
  %v5244 = vpop.f32.mrb[0].mxu0
  %v5245 = vadd.f32 %v5148, %v5244
  %v5246 = vpop.f32.mrb[0].mxu0
  %5247 = vmatprep.mubr.f32.mxu0 0.0
  %5248 = vmatmul.mubr.f32.gmra.mrb[0].mxu0 %v5166
  %v5249 = vpop.f32.mrb[0].mxu0
  %v5250 = vadd.f32 %v5153, %v5249
  %v5251 = vpop.f32.mrb[0].mxu0
  %5252 = vdwg.mxu0
  %v5253 = vld [vmem:[%s652] sm:$0xff]
  %v5254 = vld [vmem:[%s652 + $0x8] sm:$0xff]
  %v5255 = vld [vmem:[%s652 + $0x10] sm:$0xff]
  %v5256 = vld [vmem:[%s652 + $0x18] sm:$0xff]
  %v5257 = vld [vmem:[%s652 + $0x20] sm:$0xff]
  %v5258 = vld [vmem:[%s652 + $0x28] sm:$0xff]
  %v5259 = vld [vmem:[%s652 + $0x30] sm:$0xff]
  %v5260 = vld [vmem:[%s652 + $0x38] sm:$0xff]
  %v5261 = vld [vmem:[%s652 + $0x40] sm:$0xff]
  %v5262 = vld [vmem:[%s652 + $0x48] sm:$0xff]
  %v5263 = vld [vmem:[%s652 + $0x50] sm:$0xff]
  %v5264 = vld [vmem:[%s652 + $0x58] sm:$0xff]
  %v5265 = vld [vmem:[%s652 + $0x60] sm:$0xff]
  %v5266 = vld [vmem:[%s652 + $0x68] sm:$0xff]
  %v5267 = vld [vmem:[%s652 + $0x70] sm:$0xff]
  %v5268 = vld [vmem:[%s652 + $0x78] sm:$0xff]
  %v5269 = vld [vmem:[%s652 + $0x80] sm:$0xff]
  %v5270 = vld [vmem:[%s652 + $0x88] sm:$0xff]
  %v5271 = vld [vmem:[%s652 + $0x90] sm:$0xff]
  %v5272 = vld [vmem:[%s652 + $0x98] sm:$0xff]
  %v5273 = vld [vmem:[%s652 + $0xa0] sm:$0xff]
  %v5274 = vld [vmem:[%s652 + $0xa8] sm:$0xff]
  %v5275 = vld [vmem:[%s652 + $0xb0] sm:$0xff]
  %v5276 = vld [vmem:[%s652 + $0xb8] sm:$0xff]
  %v5277 = vld [vmem:[%s652 + $0xc0] sm:$0xff]
  %v5278 = vld [vmem:[%s652 + $0xc8] sm:$0xff]
  %v5279 = vld [vmem:[%s652 + $0xd0] sm:$0xff]
  %v5280 = vld [vmem:[%s652 + $0xd8] sm:$0xff]
  %v5281 = vld [vmem:[%s652 + $0xe0] sm:$0xff]
  %v5282 = vld [vmem:[%s652 + $0xe8] sm:$0xff]
  %v5283 = vld [vmem:[%s652 + $0xf0] sm:$0xff]
  %v5284 = vld [vmem:[%s652 + $0xf8] sm:$0xff]
  %5285 = vmatprep.subr.mxu0 0.0
  %5286 = vmatpush1.msra.mxu0 %v5253
  %5287 = vmatprep.subr.mxu0 0.0
  %5288 = vmatpush1.msra.mxu0 %v5254
  %5289 = vmatprep.subr.mxu0 0.0
  %5290 = vmatpush1.msra.mxu0 %v5255
  %5291 = vmatprep.subr.mxu0 0.0
  %5292 = vmatpush1.msra.mxu0 %v5256
  %5293 = vmatprep.subr.mxu0 0.0
  %5294 = vmatpush1.msra.mxu0 %v5257
  %5295 = vmatprep.subr.mxu0 0.0
  %5296 = vmatpush1.msra.mxu0 %v5258
  %5297 = vmatprep.subr.mxu0 0.0
  %5298 = vmatpush1.msra.mxu0 %v5259
  %5299 = vmatprep.subr.mxu0 0.0
  %5300 = vmatpush1.msra.mxu0 %v5260
  %5301 = vmatprep.subr.mxu0 0.0
  %5302 = vmatpush1.msra.mxu0 %v5261
  %5303 = vmatprep.subr.mxu0 0.0
  %5304 = vmatpush1.msra.mxu0 %v5262
  %5305 = vmatprep.subr.mxu0 0.0
  %5306 = vmatpush1.msra.mxu0 %v5263
  %5307 = vmatprep.subr.mxu0 0.0
  %5308 = vmatpush1.msra.mxu0 %v5264
  %5309 = vmatprep.subr.mxu0 0.0
  %5310 = vmatpush1.msra.mxu0 %v5265
  %5311 = vmatprep.subr.mxu0 0.0
  %5312 = vmatpush1.msra.mxu0 %v5266
  %5313 = vmatprep.subr.mxu0 0.0
  %5314 = vmatpush1.msra.mxu0 %v5267
  %5315 = vmatprep.subr.mxu0 0.0
  %5316 = vmatpush1.msra.mxu0 %v5268
  %5317 = vmatprep.subr.mxu0 0.0
  %5318 = vmatpush1.msra.mxu0 %v5269
  %5319 = vmatprep.subr.mxu0 0.0
  %5320 = vmatpush1.msra.mxu0 %v5270
  %5321 = vmatprep.subr.mxu0 0.0
  %5322 = vmatpush1.msra.mxu0 %v5271
  %5323 = vmatprep.subr.mxu0 0.0
  %5324 = vmatpush1.msra.mxu0 %v5272
  %5325 = vmatprep.subr.mxu0 0.0
  %5326 = vmatpush1.msra.mxu0 %v5273
  %5327 = vmatprep.subr.mxu0 0.0
  %5328 = vmatpush1.msra.mxu0 %v5274
  %5329 = vmatprep.subr.mxu0 0.0
  %5330 = vmatpush1.msra.mxu0 %v5275
  %5331 = vmatprep.subr.mxu0 0.0
  %5332 = vmatpush1.msra.mxu0 %v5276
  %5333 = vmatprep.subr.mxu0 0.0
  %5334 = vmatpush1.msra.mxu0 %v5277
  %5335 = vmatprep.subr.mxu0 0.0
  %5336 = vmatpush1.msra.mxu0 %v5278
  %5337 = vmatprep.subr.mxu0 0.0
  %5338 = vmatpush1.msra.mxu0 %v5279
  %5339 = vmatprep.subr.mxu0 0.0
  %5340 = vmatpush1.msra.mxu0 %v5280
  %5341 = vmatprep.subr.mxu0 0.0
  %5342 = vmatpush1.msra.mxu0 %v5281
  %5343 = vmatprep.subr.mxu0 0.0
  %5344 = vmatpush1.msra.mxu0 %v5282
  %5345 = vmatprep.subr.mxu0 0.0
  %5346 = vmatpush1.msra.mxu0 %v5283
  %5347 = vmatprep.subr.mxu0 0.0
  %5348 = vmatpush1.msra.mxu0 %v5284
  %5349 = vmatprep.mubr.f32.mxu0 %v225
  %5350 = vmatmul.mubr.f32.gmra.mrb[0].mxu0 %v223
  %v5351 = vpop.f32.mrb[0].mxu0
  %v5352 = vadd.f32 0.0, %v5351
  %v5353 = vpop.f32.mrb[0].mxu0
  %5354 = vmatprep.mubr.f32.mxu0 %v231
  %5355 = vmatmul.mubr.f32.gmra.mrb[0].mxu0 %v229
  %v5356 = vpop.f32.mrb[0].mxu0
  %v5357 = vadd.f32 0.0, %v5356
  %v5358 = vpop.f32.mrb[0].mxu0
  %5359 = vdwg.mxu0
  %v5360 = vld [vmem:[%s760] sm:$0xff]
  %v5361 = vld [vmem:[%s760 + $0x8] sm:$0xff]
  %v5362 = vld [vmem:[%s760 + $0x10] sm:$0xff]
  %v5363 = vld [vmem:[%s760 + $0x18] sm:$0xff]
  %v5365 = vsel %vm457, %v5360, 0
  %v5368 = vsel %vm457, %v5361, 0
  %v5371 = vsel %vm457, %v5362, 0
  %v5374 = vsel %vm457, %v5363, 0
  %5376 = vmatprep.subr.mxu0 0.0
  %5377 = vmatpush1.msra.mxu0 %v5352
  %5378 = vmatprep.subr.mxu0 0.0
  %5379 = vmatpush1.msra.mxu0 %v5357
  %5380 = vmatprep.subr.mxu0 0.0
  %5381 = vmatpush1.msra.mxu0 0.0
  %5382 = vmatprep.subr.mxu0 0.0
  %5383 = vmatpush1.msra.mxu0 0.0
  %5384 = vmatprep.subr.mxu0 0.0
  %5385 = vmatpush1.msra.mxu0 0.0
  %5386 = vmatprep.subr.mxu0 0.0
  %5387 = vmatpush1.msra.mxu0 0.0
  %5388 = vmatprep.subr.mxu0 0.0
  %5389 = vmatpush1.msra.mxu0 0.0
  %5390 = vmatprep.subr.mxu0 0.0
  %5391 = vmatpush1.msra.mxu0 0.0
  %5392 = vmatprep.subr.mxu0 0.0
  %5393 = vmatpush1.msra.mxu0 0.0
  %5394 = vmatprep.subr.mxu0 0.0
  %5395 = vmatpush1.msra.mxu0 0.0
  %5396 = vmatprep.subr.mxu0 0.0
  %5397 = vmatpush1.msra.mxu0 0.0
  %5398 = vmatprep.subr.mxu0 0.0
  %5399 = vmatpush1.msra.mxu0 0.0
  %5400 = vmatprep.subr.mxu0 0.0
  %5401 = vmatpush1.msra.mxu0 0.0
  %5402 = vmatprep.subr.mxu0 0.0
  %5403 = vmatpush1.msra.mxu0 0.0
  %5404 = vmatprep.subr.mxu0 0.0
  %5405 = vmatpush1.msra.mxu0 0.0
  %5406 = vmatprep.subr.mxu0 0.0
  %5407 = vmatpush1.msra.mxu0 0.0
  %5408 = vmatprep.subr.mxu0 0.0
  %5409 = vmatpush1.msra.mxu0 0.0
  %5410 = vmatprep.subr.mxu0 0.0
  %5411 = vmatpush1.msra.mxu0 0.0
  %5412 = vmatprep.subr.mxu0 0.0
  %5413 = vmatpush1.msra.mxu0 0.0
  %5414 = vmatprep.subr.mxu0 0.0
  %5415 = vmatpush1.msra.mxu0 0.0
  %5416 = vmatprep.subr.mxu0 0.0
  %5417 = vmatpush1.msra.mxu0 0.0
  %5418 = vmatprep.subr.mxu0 0.0
  %5419 = vmatpush1.msra.mxu0 0.0
  %5420 = vmatprep.subr.mxu0 0.0
  %5421 = vmatpush1.msra.mxu0 0.0
  %5422 = vmatprep.subr.mxu0 0.0
  %5423 = vmatpush1.msra.mxu0 0.0
  %5424 = vmatprep.subr.mxu0 0.0
  %5425 = vmatpush1.msra.mxu0 0.0
  %5426 = vmatprep.subr.mxu0 0.0
  %5427 = vmatpush1.msra.mxu0 0.0
  %5428 = vmatprep.subr.mxu0 0.0
  %5429 = vmatpush1.msra.mxu0 0.0
  %5430 = vmatprep.subr.mxu0 0.0
  %5431 = vmatpush1.msra.mxu0 0.0
  %5432 = vmatprep.subr.mxu0 0.0
  %5433 = vmatpush1.msra.mxu0 0.0
  %5434 = vmatprep.subr.mxu0 0.0
  %5435 = vmatpush1.msra.mxu0 0.0
  %5436 = vmatprep.subr.mxu0 0.0
  %5437 = vmatpush1.msra.mxu0 0.0
  %5438 = vmatprep.subr.mxu0 0.0
  %5439 = vmatpush1.msra.mxu0 0.0
  %5440 = vmatprep.mubr.f32.mxu0 0.0
  %5441 = vmatmul.mubr.f32.gmra.mrb[0].mxu0 %v5365
  %v5442 = vpop.f32.mrb[0].mxu0
  %v5443 = vadd.f32 0.0, %v5442
  %v5444 = vpop.f32.mrb[0].mxu0
  %5445 = vmatprep.mubr.f32.mxu0 0.0
  %5446 = vmatmul.mubr.f32.gmra.mrb[0].mxu0 %v5368
  %v5447 = vpop.f32.mrb[0].mxu0
  %v5448 = vadd.f32 0.0, %v5447
  %v5449 = vpop.f32.mrb[0].mxu0
  %5450 = vmatprep.mubr.f32.mxu0 0.0
  %5451 = vmatmul.mubr.f32.gmra.mrb[0].mxu0 %v5371
  %v5452 = vpop.f32.mrb[0].mxu0
  %v5453 = vadd.f32 0.0, %v5452
  %v5454 = vpop.f32.mrb[0].mxu0
  %5455 = vmatprep.mubr.f32.mxu0 0.0
  %5456 = vmatmul.mubr.f32.gmra.mrb[0].mxu0 %v5374
  %v5457 = vpop.f32.mrb[0].mxu0
  %v5458 = vadd.f32 0.0, %v5457
  %v5459 = vpop.f32.mrb[0].mxu0
  %5460 = vdwg.mxu0
  %v5461 = vadd.f32 %v5235, %v5443
  %v5462 = vadd.f32 %v5240, %v5448
  %v5463 = vadd.f32 %v5245, %v5453
  %v5464 = vadd.f32 %v5250, %v5458
  %v5465 = vld [vmem:[%s866] sm:$0xff]
  %v5466 = vld [vmem:[%s866 + $0x8] sm:$0xff]
  %v5467 = vld [vmem:[%s866 + $0x10] sm:$0xff]
  %v5468 = vld [vmem:[%s866 + $0x18] sm:$0xff]
  %v5469 = vld [vmem:[%s866 + $0x20] sm:$0xff]
  %v5470 = vld [vmem:[%s866 + $0x28] sm:$0xff]
  %v5471 = vld [vmem:[%s866 + $0x30] sm:$0xff]
  %v5472 = vld [vmem:[%s866 + $0x38] sm:$0xff]
  %v5473 = vld [vmem:[%s866 + $0x40] sm:$0xff]
  %v5474 = vld [vmem:[%s866 + $0x48] sm:$0xff]
  %v5475 = vld [vmem:[%s866 + $0x50] sm:$0xff]
  %v5476 = vld [vmem:[%s866 + $0x58] sm:$0xff]
  %v5477 = vld [vmem:[%s866 + $0x60] sm:$0xff]
  %v5478 = vld [vmem:[%s866 + $0x68] sm:$0xff]
  %v5479 = vld [vmem:[%s866 + $0x70] sm:$0xff]
  %v5480 = vld [vmem:[%s866 + $0x78] sm:$0xff]
  %v5481 = vld [vmem:[%s866 + $0x80] sm:$0xff]
  %v5482 = vld [vmem:[%s866 + $0x88] sm:$0xff]
  %v5483 = vld [vmem:[%s866 + $0x90] sm:$0xff]
  %v5484 = vld [vmem:[%s866 + $0x98] sm:$0xff]
  %v5485 = vld [vmem:[%s866 + $0xa0] sm:$0xff]
  %v5486 = vld [vmem:[%s866 + $0xa8] sm:$0xff]
  %v5487 = vld [vmem:[%s866 + $0xb0] sm:$0xff]
  %v5488 = vld [vmem:[%s866 + $0xb8] sm:$0xff]
  %v5489 = vld [vmem:[%s866 + $0xc0] sm:$0xff]
  %v5490 = vld [vmem:[%s866 + $0xc8] sm:$0xff]
  %v5491 = vld [vmem:[%s866 + $0xd0] sm:$0xff]
  %v5492 = vld [vmem:[%s866 + $0xd8] sm:$0xff]
  %v5493 = vld [vmem:[%s866 + $0xe0] sm:$0xff]
  %v5494 = vld [vmem:[%s866 + $0xe8] sm:$0xff]
  %v5495 = vld [vmem:[%s866 + $0xf0] sm:$0xff]
  %v5496 = vld [vmem:[%s866 + $0xf8] sm:$0xff]
  %5497 = vmatprep.subr.mxu0 0.0
  %5498 = vmatpush1.msra.mxu0 %v5465
  %5499 = vmatprep.subr.mxu0 0.0
  %5500 = vmatpush1.msra.mxu0 %v5466
  %5501 = vmatprep.subr.mxu0 0.0
  %5502 = vmatpush1.msra.mxu0 %v5467
  %5503 = vmatprep.subr.mxu0 0.0
  %5504 = vmatpush1.msra.mxu0 %v5468
  %5505 = vmatprep.subr.mxu0 0.0
  %5506 = vmatpush1.msra.mxu0 %v5469
  %5507 = vmatprep.subr.mxu0 0.0
  %5508 = vmatpush1.msra.mxu0 %v5470
  %5509 = vmatprep.subr.mxu0 0.0
  %5510 = vmatpush1.msra.mxu0 %v5471
  %5511 = vmatprep.subr.mxu0 0.0
  %5512 = vmatpush1.msra.mxu0 %v5472
  %5513 = vmatprep.subr.mxu0 0.0
  %5514 = vmatpush1.msra.mxu0 %v5473
  %5515 = vmatprep.subr.mxu0 0.0
  %5516 = vmatpush1.msra.mxu0 %v5474
  %5517 = vmatprep.subr.mxu0 0.0
  %5518 = vmatpush1.msra.mxu0 %v5475
  %5519 = vmatprep.subr.mxu0 0.0
  %5520 = vmatpush1.msra.mxu0 %v5476
  %5521 = vmatprep.subr.mxu0 0.0
  %5522 = vmatpush1.msra.mxu0 %v5477
  %5523 = vmatprep.subr.mxu0 0.0
  %5524 = vmatpush1.msra.mxu0 %v5478
  %5525 = vmatprep.subr.mxu0 0.0
  %5526 = vmatpush1.msra.mxu0 %v5479
  %5527 = vmatprep.subr.mxu0 0.0
  %5528 = vmatpush1.msra.mxu0 %v5480
  %5529 = vmatprep.subr.mxu0 0.0
  %5530 = vmatpush1.msra.mxu0 %v5481
  %5531 = vmatprep.subr.mxu0 0.0
  %5532 = vmatpush1.msra.mxu0 %v5482
  %5533 = vmatprep.subr.mxu0 0.0
  %5534 = vmatpush1.msra.mxu0 %v5483
  %5535 = vmatprep.subr.mxu0 0.0
  %5536 = vmatpush1.msra.mxu0 %v5484
  %5537 = vmatprep.subr.mxu0 0.0
  %5538 = vmatpush1.msra.mxu0 %v5485
  %5539 = vmatprep.subr.mxu0 0.0
  %5540 = vmatpush1.msra.mxu0 %v5486
  %5541 = vmatprep.subr.mxu0 0.0
  %5542 = vmatpush1.msra.mxu0 %v5487
  %5543 = vmatprep.subr.mxu0 0.0
  %5544 = vmatpush1.msra.mxu0 %v5488
  %5545 = vmatprep.subr.mxu0 0.0
  %5546 = vmatpush1.msra.mxu0 %v5489
  %5547 = vmatprep.subr.mxu0 0.0
  %5548 = vmatpush1.msra.mxu0 %v5490
  %5549 = vmatprep.subr.mxu0 0.0
  %5550 = vmatpush1.msra.mxu0 %v5491
  %5551 = vmatprep.subr.mxu0 0.0
  %5552 = vmatpush1.msra.mxu0 %v5492
  %5553 = vmatprep.subr.mxu0 0.0
  %5554 = vmatpush1.msra.mxu0 %v5493
  %5555 = vmatprep.subr.mxu0 0.0
  %5556 = vmatpush1.msra.mxu0 %v5494
  %5557 = vmatprep.subr.mxu0 0.0
  %5558 = vmatpush1.msra.mxu0 %v5495
  %5559 = vmatprep.subr.mxu0 0.0
  %5560 = vmatpush1.msra.mxu0 %v5496
  %5561 = vmatprep.mubr.f32.mxu0 %v225
  %5562 = vmatmul.mubr.f32.gmra.mrb[0].mxu0 %v223
  %v5563 = vpop.f32.mrb[0].mxu0
  %v5564 = vadd.f32 0.0, %v5563
  %v5565 = vpop.f32.mrb[0].mxu0
  %5566 = vmatprep.mubr.f32.mxu0 %v231
  %5567 = vmatmul.mubr.f32.gmra.mrb[0].mxu0 %v229
  %v5568 = vpop.f32.mrb[0].mxu0
  %v5569 = vadd.f32 0.0, %v5568
  %v5570 = vpop.f32.mrb[0].mxu0
  %5571 = vdwg.mxu0
  %v5572 = vld [vmem:[%s974] sm:$0xff]
  %v5573 = vld [vmem:[%s974 + $0x8] sm:$0xff]
  %v5574 = vld [vmem:[%s974 + $0x10] sm:$0xff]
  %v5575 = vld [vmem:[%s974 + $0x18] sm:$0xff]
  %v5577 = vsel %vm457, %v5572, 0
  %v5580 = vsel %vm457, %v5573, 0
  %v5583 = vsel %vm457, %v5574, 0
  %v5586 = vsel %vm457, %v5575, 0
  %5588 = vmatprep.subr.mxu0 0.0
  %5589 = vmatpush1.msra.mxu0 %v5564
  %5590 = vmatprep.subr.mxu0 0.0
  %5591 = vmatpush1.msra.mxu0 %v5569
  %5592 = vmatprep.subr.mxu0 0.0
  %5593 = vmatpush1.msra.mxu0 0.0
  %5594 = vmatprep.subr.mxu0 0.0
  %5595 = vmatpush1.msra.mxu0 0.0
  %5596 = vmatprep.subr.mxu0 0.0
  %5597 = vmatpush1.msra.mxu0 0.0
  %5598 = vmatprep.subr.mxu0 0.0
  %5599 = vmatpush1.msra.mxu0 0.0
  %5600 = vmatprep.subr.mxu0 0.0
  %5601 = vmatpush1.msra.mxu0 0.0
  %5602 = vmatprep.subr.mxu0 0.0
  %5603 = vmatpush1.msra.mxu0 0.0
  %5604 = vmatprep.subr.mxu0 0.0
  %5605 = vmatpush1.msra.mxu0 0.0
  %5606 = vmatprep.subr.mxu0 0.0
  %5607 = vmatpush1.msra.mxu0 0.0
  %5608 = vmatprep.subr.mxu0 0.0
  %5609 = vmatpush1.msra.mxu0 0.0
  %5610 = vmatprep.subr.mxu0 0.0
  %5611 = vmatpush1.msra.mxu0 0.0
  %5612 = vmatprep.subr.mxu0 0.0
  %5613 = vmatpush1.msra.mxu0 0.0
  %5614 = vmatprep.subr.mxu0 0.0
  %5615 = vmatpush1.msra.mxu0 0.0
  %5616 = vmatprep.subr.mxu0 0.0
  %5617 = vmatpush1.msra.mxu0 0.0
  %5618 = vmatprep.subr.mxu0 0.0
  %5619 = vmatpush1.msra.mxu0 0.0
  %5620 = vmatprep.subr.mxu0 0.0
  %5621 = vmatpush1.msra.mxu0 0.0
  %5622 = vmatprep.subr.mxu0 0.0
  %5623 = vmatpush1.msra.mxu0 0.0
  %5624 = vmatprep.subr.mxu0 0.0
  %5625 = vmatpush1.msra.mxu0 0.0
  %5626 = vmatprep.subr.mxu0 0.0
  %5627 = vmatpush1.msra.mxu0 0.0
  %5628 = vmatprep.subr.mxu0 0.0
  %5629 = vmatpush1.msra.mxu0 0.0
  %5630 = vmatprep.subr.mxu0 0.0
  %5631 = vmatpush1.msra.mxu0 0.0
  %5632 = vmatprep.subr.mxu0 0.0
  %5633 = vmatpush1.msra.mxu0 0.0
  %5634 = vmatprep.subr.mxu0 0.0
  %5635 = vmatpush1.msra.mxu0 0.0
  %5636 = vmatprep.subr.mxu0 0.0
  %5637 = vmatpush1.msra.mxu0 0.0
  %5638 = vmatprep.subr.mxu0 0.0
  %5639 = vmatpush1.msra.mxu0 0.0
  %5640 = vmatprep.subr.mxu0 0.0
  %5641 = vmatpush1.msra.mxu0 0.0
  %5642 = vmatprep.subr.mxu0 0.0
  %5643 = vmatpush1.msra.mxu0 0.0
  %5644 = vmatprep.subr.mxu0 0.0
  %5645 = vmatpush1.msra.mxu0 0.0
  %5646 = vmatprep.subr.mxu0 0.0
  %5647 = vmatpush1.msra.mxu0 0.0
  %5648 = vmatprep.subr.mxu0 0.0
  %5649 = vmatpush1.msra.mxu0 0.0
  %5650 = vmatprep.subr.mxu0 0.0
  %5651 = vmatpush1.msra.mxu0 0.0
  %5652 = vmatprep.mubr.f32.mxu0 0.0
  %5653 = vmatmul.mubr.f32.gmra.mrb[0].mxu0 %v5577
  %v5654 = vpop.f32.mrb[0].mxu0
  %v5655 = vadd.f32 0.0, %v5654
  %v5656 = vpop.f32.mrb[0].mxu0
  %5657 = vmatprep.mubr.f32.mxu0 0.0
  %5658 = vmatmul.mubr.f32.gmra.mrb[0].mxu0 %v5580
  %v5659 = vpop.f32.mrb[0].mxu0
  %v5660 = vadd.f32 0.0, %v5659
  %v5661 = vpop.f32.mrb[0].mxu0
  %5662 = vmatprep.mubr.f32.mxu0 0.0
  %5663 = vmatmul.mubr.f32.gmra.mrb[0].mxu0 %v5583
  %v5664 = vpop.f32.mrb[0].mxu0
  %v5665 = vadd.f32 0.0, %v5664
  %v5666 = vpop.f32.mrb[0].mxu0
  %5667 = vmatprep.mubr.f32.mxu0 0.0
  %5668 = vmatmul.mubr.f32.gmra.mrb[0].mxu0 %v5586
  %v5669 = vpop.f32.mrb[0].mxu0
  %v5670 = vadd.f32 0.0, %v5669
  %v5671 = vpop.f32.mrb[0].mxu0
  %5672 = vdwg.mxu0
  %v5673 = vadd.f32 %v5461, %v5655
  %v5674 = vadd.f32 %v5462, %v5660
  %v5675 = vadd.f32 %v5463, %v5665
  %v5676 = vadd.f32 %v5464, %v5670
  %v5677 = vld [vmem:[%s1080] sm:$0xff]
  %v5678 = vld [vmem:[%s1080 + $0x8] sm:$0xff]
  %v5679 = vld [vmem:[%s1080 + $0x10] sm:$0xff]
  %v5680 = vld [vmem:[%s1080 + $0x18] sm:$0xff]
  %v5681 = vld [vmem:[%s1080 + $0x20] sm:$0xff]
  %v5682 = vld [vmem:[%s1080 + $0x28] sm:$0xff]
  %v5683 = vld [vmem:[%s1080 + $0x30] sm:$0xff]
  %v5684 = vld [vmem:[%s1080 + $0x38] sm:$0xff]
  %v5685 = vld [vmem:[%s1080 + $0x40] sm:$0xff]
  %v5686 = vld [vmem:[%s1080 + $0x48] sm:$0xff]
  %v5687 = vld [vmem:[%s1080 + $0x50] sm:$0xff]
  %v5688 = vld [vmem:[%s1080 + $0x58] sm:$0xff]
  %v5689 = vld [vmem:[%s1080 + $0x60] sm:$0xff]
  %v5690 = vld [vmem:[%s1080 + $0x68] sm:$0xff]
  %v5691 = vld [vmem:[%s1080 + $0x70] sm:$0xff]
  %v5692 = vld [vmem:[%s1080 + $0x78] sm:$0xff]
  %v5693 = vld [vmem:[%s1080 + $0x80] sm:$0xff]
  %v5694 = vld [vmem:[%s1080 + $0x88] sm:$0xff]
  %v5695 = vld [vmem:[%s1080 + $0x90] sm:$0xff]
  %v5696 = vld [vmem:[%s1080 + $0x98] sm:$0xff]
  %v5697 = vld [vmem:[%s1080 + $0xa0] sm:$0xff]
  %v5698 = vld [vmem:[%s1080 + $0xa8] sm:$0xff]
  %v5699 = vld [vmem:[%s1080 + $0xb0] sm:$0xff]
  %v5700 = vld [vmem:[%s1080 + $0xb8] sm:$0xff]
  %v5701 = vld [vmem:[%s1080 + $0xc0] sm:$0xff]
  %v5702 = vld [vmem:[%s1080 + $0xc8] sm:$0xff]
  %v5703 = vld [vmem:[%s1080 + $0xd0] sm:$0xff]
  %v5704 = vld [vmem:[%s1080 + $0xd8] sm:$0xff]
  %v5705 = vld [vmem:[%s1080 + $0xe0] sm:$0xff]
  %v5706 = vld [vmem:[%s1080 + $0xe8] sm:$0xff]
  %v5707 = vld [vmem:[%s1080 + $0xf0] sm:$0xff]
  %v5708 = vld [vmem:[%s1080 + $0xf8] sm:$0xff]
  %5709 = vmatprep.subr.mxu0 0.0
  %5710 = vmatpush1.msra.mxu0 %v5677
  %5711 = vmatprep.subr.mxu0 0.0
  %5712 = vmatpush1.msra.mxu0 %v5678
  %5713 = vmatprep.subr.mxu0 0.0
  %5714 = vmatpush1.msra.mxu0 %v5679
  %5715 = vmatprep.subr.mxu0 0.0
  %5716 = vmatpush1.msra.mxu0 %v5680
  %5717 = vmatprep.subr.mxu0 0.0
  %5718 = vmatpush1.msra.mxu0 %v5681
  %5719 = vmatprep.subr.mxu0 0.0
  %5720 = vmatpush1.msra.mxu0 %v5682
  %5721 = vmatprep.subr.mxu0 0.0
  %5722 = vmatpush1.msra.mxu0 %v5683
  %5723 = vmatprep.subr.mxu0 0.0
  %5724 = vmatpush1.msra.mxu0 %v5684
  %5725 = vmatprep.subr.mxu0 0.0
  %5726 = vmatpush1.msra.mxu0 %v5685
  %5727 = vmatprep.subr.mxu0 0.0
  %5728 = vmatpush1.msra.mxu0 %v5686
  %5729 = vmatprep.subr.mxu0 0.0
  %5730 = vmatpush1.msra.mxu0 %v5687
  %5731 = vmatprep.subr.mxu0 0.0
  %5732 = vmatpush1.msra.mxu0 %v5688
  %5733 = vmatprep.subr.mxu0 0.0
  %5734 = vmatpush1.msra.mxu0 %v5689
  %5735 = vmatprep.subr.mxu0 0.0
  %5736 = vmatpush1.msra.mxu0 %v5690
  %5737 = vmatprep.subr.mxu0 0.0
  %5738 = vmatpush1.msra.mxu0 %v5691
  %5739 = vmatprep.subr.mxu0 0.0
  %5740 = vmatpush1.msra.mxu0 %v5692
  %5741 = vmatprep.subr.mxu0 0.0
  %5742 = vmatpush1.msra.mxu0 %v5693
  %5743 = vmatprep.subr.mxu0 0.0
  %5744 = vmatpush1.msra.mxu0 %v5694
  %5745 = vmatprep.subr.mxu0 0.0
  %5746 = vmatpush1.msra.mxu0 %v5695
  %5747 = vmatprep.subr.mxu0 0.0
  %5748 = vmatpush1.msra.mxu0 %v5696
  %5749 = vmatprep.subr.mxu0 0.0
  %5750 = vmatpush1.msra.mxu0 %v5697
  %5751 = vmatprep.subr.mxu0 0.0
  %5752 = vmatpush1.msra.mxu0 %v5698
  %5753 = vmatprep.subr.mxu0 0.0
  %5754 = vmatpush1.msra.mxu0 %v5699
  %5755 = vmatprep.subr.mxu0 0.0
  %5756 = vmatpush1.msra.mxu0 %v5700
  %5757 = vmatprep.subr.mxu0 0.0
  %5758 = vmatpush1.msra.mxu0 %v5701
  %5759 = vmatprep.subr.mxu0 0.0
  %5760 = vmatpush1.msra.mxu0 %v5702
  %5761 = vmatprep.subr.mxu0 0.0
  %5762 = vmatpush1.msra.mxu0 %v5703
  %5763 = vmatprep.subr.mxu0 0.0
  %5764 = vmatpush1.msra.mxu0 %v5704
  %5765 = vmatprep.subr.mxu0 0.0
  %5766 = vmatpush1.msra.mxu0 %v5705
  %5767 = vmatprep.subr.mxu0 0.0
  %5768 = vmatpush1.msra.mxu0 %v5706
  %5769 = vmatprep.subr.mxu0 0.0
  %5770 = vmatpush1.msra.mxu0 %v5707
  %5771 = vmatprep.subr.mxu0 0.0
  %5772 = vmatpush1.msra.mxu0 %v5708
  %5773 = vmatprep.mubr.f32.mxu0 %v225
  %5774 = vmatmul.mubr.f32.gmra.mrb[0].mxu0 %v223
  %v5775 = vpop.f32.mrb[0].mxu0
  %v5776 = vadd.f32 0.0, %v5775
  %v5777 = vpop.f32.mrb[0].mxu0
  %5778 = vmatprep.mubr.f32.mxu0 %v231
  %5779 = vmatmul.mubr.f32.gmra.mrb[0].mxu0 %v229
  %v5780 = vpop.f32.mrb[0].mxu0
  %v5781 = vadd.f32 0.0, %v5780
  %v5782 = vpop.f32.mrb[0].mxu0
  %5783 = vdwg.mxu0
  %v5784 = vld [vmem:[%s1188] sm:$0xff]
  %v5785 = vld [vmem:[%s1188 + $0x8] sm:$0xff]
  %v5786 = vld [vmem:[%s1188 + $0x10] sm:$0xff]
  %v5787 = vld [vmem:[%s1188 + $0x18] sm:$0xff]
  %v5789 = vsel %vm457, %v5784, 0
  %v5792 = vsel %vm457, %v5785, 0
  %v5795 = vsel %vm457, %v5786, 0
  %v5798 = vsel %vm457, %v5787, 0
  %5800 = vmatprep.subr.mxu0 0.0
  %5801 = vmatpush1.msra.mxu0 %v5776
  %5802 = vmatprep.subr.mxu0 0.0
  %5803 = vmatpush1.msra.mxu0 %v5781
  %5804 = vmatprep.subr.mxu0 0.0
  %5805 = vmatpush1.msra.mxu0 0.0
  %5806 = vmatprep.subr.mxu0 0.0
  %5807 = vmatpush1.msra.mxu0 0.0
  %5808 = vmatprep.subr.mxu0 0.0
  %5809 = vmatpush1.msra.mxu0 0.0
  %5810 = vmatprep.subr.mxu0 0.0
  %5811 = vmatpush1.msra.mxu0 0.0
  %5812 = vmatprep.subr.mxu0 0.0
  %5813 = vmatpush1.msra.mxu0 0.0
  %5814 = vmatprep.subr.mxu0 0.0
  %5815 = vmatpush1.msra.mxu0 0.0
  %5816 = vmatprep.subr.mxu0 0.0
  %5817 = vmatpush1.msra.mxu0 0.0
  %5818 = vmatprep.subr.mxu0 0.0
  %5819 = vmatpush1.msra.mxu0 0.0
  %5820 = vmatprep.subr.mxu0 0.0
  %5821 = vmatpush1.msra.mxu0 0.0
  %5822 = vmatprep.subr.mxu0 0.0
  %5823 = vmatpush1.msra.mxu0 0.0
  %5824 = vmatprep.subr.mxu0 0.0
  %5825 = vmatpush1.msra.mxu0 0.0
  %5826 = vmatprep.subr.mxu0 0.0
  %5827 = vmatpush1.msra.mxu0 0.0
  %5828 = vmatprep.subr.mxu0 0.0
  %5829 = vmatpush1.msra.mxu0 0.0
  %5830 = vmatprep.subr.mxu0 0.0
  %5831 = vmatpush1.msra.mxu0 0.0
  %5832 = vmatprep.subr.mxu0 0.0
  %5833 = vmatpush1.msra.mxu0 0.0
  %5834 = vmatprep.subr.mxu0 0.0
  %5835 = vmatpush1.msra.mxu0 0.0
  %5836 = vmatprep.subr.mxu0 0.0
  %5837 = vmatpush1.msra.mxu0 0.0
  %5838 = vmatprep.subr.mxu0 0.0
  %5839 = vmatpush1.msra.mxu0 0.0
  %5840 = vmatprep.subr.mxu0 0.0
  %5841 = vmatpush1.msra.mxu0 0.0
  %5842 = vmatprep.subr.mxu0 0.0
  %5843 = vmatpush1.msra.mxu0 0.0
  %5844 = vmatprep.subr.mxu0 0.0
  %5845 = vmatpush1.msra.mxu0 0.0
  %5846 = vmatprep.subr.mxu0 0.0
  %5847 = vmatpush1.msra.mxu0 0.0
  %5848 = vmatprep.subr.mxu0 0.0
  %5849 = vmatpush1.msra.mxu0 0.0
  %5850 = vmatprep.subr.mxu0 0.0
  %5851 = vmatpush1.msra.mxu0 0.0
  %5852 = vmatprep.subr.mxu0 0.0
  %5853 = vmatpush1.msra.mxu0 0.0
  %5854 = vmatprep.subr.mxu0 0.0
  %5855 = vmatpush1.msra.mxu0 0.0
  %5856 = vmatprep.subr.mxu0 0.0
  %5857 = vmatpush1.msra.mxu0 0.0
  %5858 = vmatprep.subr.mxu0 0.0
  %5859 = vmatpush1.msra.mxu0 0.0
  %5860 = vmatprep.subr.mxu0 0.0
  %5861 = vmatpush1.msra.mxu0 0.0
  %5862 = vmatprep.subr.mxu0 0.0
  %5863 = vmatpush1.msra.mxu0 0.0
  %5864 = vmatprep.mubr.f32.mxu0 0.0
  %5865 = vmatmul.mubr.f32.gmra.mrb[0].mxu0 %v5789
  %v5866 = vpop.f32.mrb[0].mxu0
  %v5867 = vadd.f32 0.0, %v5866
  %v5868 = vpop.f32.mrb[0].mxu0
  %5869 = vmatprep.mubr.f32.mxu0 0.0
  %5870 = vmatmul.mubr.f32.gmra.mrb[0].mxu0 %v5792
  %v5871 = vpop.f32.mrb[0].mxu0
  %v5872 = vadd.f32 0.0, %v5871
  %v5873 = vpop.f32.mrb[0].mxu0
  %5874 = vmatprep.mubr.f32.mxu0 0.0
  %5875 = vmatmul.mubr.f32.gmra.mrb[0].mxu0 %v5795
  %v5876 = vpop.f32.mrb[0].mxu0
  %v5877 = vadd.f32 0.0, %v5876
  %v5878 = vpop.f32.mrb[0].mxu0
  %5879 = vmatprep.mubr.f32.mxu0 0.0
  %5880 = vmatmul.mubr.f32.gmra.mrb[0].mxu0 %v5798
  %v5881 = vpop.f32.mrb[0].mxu0
  %v5882 = vadd.f32 0.0, %v5881
  %v5883 = vpop.f32.mrb[0].mxu0
  %5884 = vdwg.mxu0
  %v5885 = vadd.f32 %v5673, %v5867
  %v5886 = vadd.f32 %v5674, %v5872
  %v5887 = vadd.f32 %v5675, %v5877
  %v5888 = vadd.f32 %v5676, %v5882
  %v5889 = vld [vmem:[%s1294] sm:$0xff]
  %v5890 = vld [vmem:[%s1294 + $0x8] sm:$0xff]
  %v5891 = vld [vmem:[%s1294 + $0x10] sm:$0xff]
  %v5892 = vld [vmem:[%s1294 + $0x18] sm:$0xff]
  %v5893 = vld [vmem:[%s1294 + $0x20] sm:$0xff]
  %v5894 = vld [vmem:[%s1294 + $0x28] sm:$0xff]
  %v5895 = vld [vmem:[%s1294 + $0x30] sm:$0xff]
  %v5896 = vld [vmem:[%s1294 + $0x38] sm:$0xff]
  %v5897 = vld [vmem:[%s1294 + $0x40] sm:$0xff]
  %v5898 = vld [vmem:[%s1294 + $0x48] sm:$0xff]
  %v5899 = vld [vmem:[%s1294 + $0x50] sm:$0xff]
  %v5900 = vld [vmem:[%s1294 + $0x58] sm:$0xff]
  %v5901 = vld [vmem:[%s1294 + $0x60] sm:$0xff]
  %v5902 = vld [vmem:[%s1294 + $0x68] sm:$0xff]
  %v5903 = vld [vmem:[%s1294 + $0x70] sm:$0xff]
  %v5904 = vld [vmem:[%s1294 + $0x78] sm:$0xff]
  %v5905 = vld [vmem:[%s1294 + $0x80] sm:$0xff]
  %v5906 = vld [vmem:[%s1294 + $0x88] sm:$0xff]
  %v5907 = vld [vmem:[%s1294 + $0x90] sm:$0xff]
  %v5908 = vld [vmem:[%s1294 + $0x98] sm:$0xff]
  %v5909 = vld [vmem:[%s1294 + $0xa0] sm:$0xff]
  %v5910 = vld [vmem:[%s1294 + $0xa8] sm:$0xff]
  %v5911 = vld [vmem:[%s1294 + $0xb0] sm:$0xff]
  %v5912 = vld [vmem:[%s1294 + $0xb8] sm:$0xff]
  %v5913 = vld [vmem:[%s1294 + $0xc0] sm:$0xff]
  %v5914 = vld [vmem:[%s1294 + $0xc8] sm:$0xff]
  %v5915 = vld [vmem:[%s1294 + $0xd0] sm:$0xff]
  %v5916 = vld [vmem:[%s1294 + $0xd8] sm:$0xff]
  %v5917 = vld [vmem:[%s1294 + $0xe0] sm:$0xff]
  %v5918 = vld [vmem:[%s1294 + $0xe8] sm:$0xff]
  %v5919 = vld [vmem:[%s1294 + $0xf0] sm:$0xff]
  %v5920 = vld [vmem:[%s1294 + $0xf8] sm:$0xff]
  %5921 = vmatprep.subr.mxu0 0.0
  %5922 = vmatpush1.msra.mxu0 %v5889
  %5923 = vmatprep.subr.mxu0 0.0
  %5924 = vmatpush1.msra.mxu0 %v5890
  %5925 = vmatprep.subr.mxu0 0.0
  %5926 = vmatpush1.msra.mxu0 %v5891
  %5927 = vmatprep.subr.mxu0 0.0
  %5928 = vmatpush1.msra.mxu0 %v5892
  %5929 = vmatprep.subr.mxu0 0.0
  %5930 = vmatpush1.msra.mxu0 %v5893
  %5931 = vmatprep.subr.mxu0 0.0
  %5932 = vmatpush1.msra.mxu0 %v5894
  %5933 = vmatprep.subr.mxu0 0.0
  %5934 = vmatpush1.msra.mxu0 %v5895
  %5935 = vmatprep.subr.mxu0 0.0
  %5936 = vmatpush1.msra.mxu0 %v5896
  %5937 = vmatprep.subr.mxu0 0.0
  %5938 = vmatpush1.msra.mxu0 %v5897
  %5939 = vmatprep.subr.mxu0 0.0
  %5940 = vmatpush1.msra.mxu0 %v5898
  %5941 = vmatprep.subr.mxu0 0.0
  %5942 = vmatpush1.msra.mxu0 %v5899
  %5943 = vmatprep.subr.mxu0 0.0
  %5944 = vmatpush1.msra.mxu0 %v5900
  %5945 = vmatprep.subr.mxu0 0.0
  %5946 = vmatpush1.msra.mxu0 %v5901
  %5947 = vmatprep.subr.mxu0 0.0
  %5948 = vmatpush1.msra.mxu0 %v5902
  %5949 = vmatprep.subr.mxu0 0.0
  %5950 = vmatpush1.msra.mxu0 %v5903
  %5951 = vmatprep.subr.mxu0 0.0
  %5952 = vmatpush1.msra.mxu0 %v5904
  %5953 = vmatprep.subr.mxu0 0.0
  %5954 = vmatpush1.msra.mxu0 %v5905
  %5955 = vmatprep.subr.mxu0 0.0
  %5956 = vmatpush1.msra.mxu0 %v5906
  %5957 = vmatprep.subr.mxu0 0.0
  %5958 = vmatpush1.msra.mxu0 %v5907
  %5959 = vmatprep.subr.mxu0 0.0
  %5960 = vmatpush1.msra.mxu0 %v5908
  %5961 = vmatprep.subr.mxu0 0.0
  %5962 = vmatpush1.msra.mxu0 %v5909
  %5963 = vmatprep.subr.mxu0 0.0
  %5964 = vmatpush1.msra.mxu0 %v5910
  %5965 = vmatprep.subr.mxu0 0.0
  %5966 = vmatpush1.msra.mxu0 %v5911
  %5967 = vmatprep.subr.mxu0 0.0
  %5968 = vmatpush1.msra.mxu0 %v5912
  %5969 = vmatprep.subr.mxu0 0.0
  %5970 = vmatpush1.msra.mxu0 %v5913
  %5971 = vmatprep.subr.mxu0 0.0
  %5972 = vmatpush1.msra.mxu0 %v5914
  %5973 = vmatprep.subr.mxu0 0.0
  %5974 = vmatpush1.msra.mxu0 %v5915
  %5975 = vmatprep.subr.mxu0 0.0
  %5976 = vmatpush1.msra.mxu0 %v5916
  %5977 = vmatprep.subr.mxu0 0.0
  %5978 = vmatpush1.msra.mxu0 %v5917
  %5979 = vmatprep.subr.mxu0 0.0
  %5980 = vmatpush1.msra.mxu0 %v5918
  %5981 = vmatprep.subr.mxu0 0.0
  %5982 = vmatpush1.msra.mxu0 %v5919
  %5983 = vmatprep.subr.mxu0 0.0
  %5984 = vmatpush1.msra.mxu0 %v5920
  %5985 = vmatprep.mubr.f32.mxu0 %v225
  %5986 = vmatmul.mubr.f32.gmra.mrb[0].mxu0 %v223
  %v5987 = vpop.f32.mrb[0].mxu0
  %v5988 = vadd.f32 0.0, %v5987
  %v5989 = vpop.f32.mrb[0].mxu0
  %5990 = vmatprep.mubr.f32.mxu0 %v231
  %5991 = vmatmul.mubr.f32.gmra.mrb[0].mxu0 %v229
  %v5992 = vpop.f32.mrb[0].mxu0
  %v5993 = vadd.f32 0.0, %v5992
  %v5994 = vpop.f32.mrb[0].mxu0
  %5995 = vdwg.mxu0
  %v5996 = vld [vmem:[%s1402] sm:$0xff]
  %v5997 = vld [vmem:[%s1402 + $0x8] sm:$0xff]
  %v5998 = vld [vmem:[%s1402 + $0x10] sm:$0xff]
  %v5999 = vld [vmem:[%s1402 + $0x18] sm:$0xff]
  %v6001 = vsel %vm457, %v5996, 0
  %v6004 = vsel %vm457, %v5997, 0
  %v6007 = vsel %vm457, %v5998, 0
  %v6010 = vsel %vm457, %v5999, 0
  %6012 = vmatprep.subr.mxu0 0.0
  %6013 = vmatpush1.msra.mxu0 %v5988
  %6014 = vmatprep.subr.mxu0 0.0
  %6015 = vmatpush1.msra.mxu0 %v5993
  %6016 = vmatprep.subr.mxu0 0.0
  %6017 = vmatpush1.msra.mxu0 0.0
  %6018 = vmatprep.subr.mxu0 0.0
  %6019 = vmatpush1.msra.mxu0 0.0
  %6020 = vmatprep.subr.mxu0 0.0
  %6021 = vmatpush1.msra.mxu0 0.0
  %6022 = vmatprep.subr.mxu0 0.0
  %6023 = vmatpush1.msra.mxu0 0.0
  %6024 = vmatprep.subr.mxu0 0.0
  %6025 = vmatpush1.msra.mxu0 0.0
  %6026 = vmatprep.subr.mxu0 0.0
  %6027 = vmatpush1.msra.mxu0 0.0
  %6028 = vmatprep.subr.mxu0 0.0
  %6029 = vmatpush1.msra.mxu0 0.0
  %6030 = vmatprep.subr.mxu0 0.0
  %6031 = vmatpush1.msra.mxu0 0.0
  %6032 = vmatprep.subr.mxu0 0.0
  %6033 = vmatpush1.msra.mxu0 0.0
  %6034 = vmatprep.subr.mxu0 0.0
  %6035 = vmatpush1.msra.mxu0 0.0
  %6036 = vmatprep.subr.mxu0 0.0
  %6037 = vmatpush1.msra.mxu0 0.0
  %6038 = vmatprep.subr.mxu0 0.0
  %6039 = vmatpush1.msra.mxu0 0.0
  %6040 = vmatprep.subr.mxu0 0.0
  %6041 = vmatpush1.msra.mxu0 0.0
  %6042 = vmatprep.subr.mxu0 0.0
  %6043 = vmatpush1.msra.mxu0 0.0
  %6044 = vmatprep.subr.mxu0 0.0
  %6045 = vmatpush1.msra.mxu0 0.0
  %6046 = vmatprep.subr.mxu0 0.0
  %6047 = vmatpush1.msra.mxu0 0.0
  %6048 = vmatprep.subr.mxu0 0.0
  %6049 = vmatpush1.msra.mxu0 0.0
  %6050 = vmatprep.subr.mxu0 0.0
  %6051 = vmatpush1.msra.mxu0 0.0
  %6052 = vmatprep.subr.mxu0 0.0
  %6053 = vmatpush1.msra.mxu0 0.0
  %6054 = vmatprep.subr.mxu0 0.0
  %6055 = vmatpush1.msra.mxu0 0.0
  %6056 = vmatprep.subr.mxu0 0.0
  %6057 = vmatpush1.msra.mxu0 0.0
  %6058 = vmatprep.subr.mxu0 0.0
  %6059 = vmatpush1.msra.mxu0 0.0
  %6060 = vmatprep.subr.mxu0 0.0
  %6061 = vmatpush1.msra.mxu0 0.0
  %6062 = vmatprep.subr.mxu0 0.0
  %6063 = vmatpush1.msra.mxu0 0.0
  %6064 = vmatprep.subr.mxu0 0.0
  %6065 = vmatpush1.msra.mxu0 0.0
  %6066 = vmatprep.subr.mxu0 0.0
  %6067 = vmatpush1.msra.mxu0 0.0
  %6068 = vmatprep.subr.mxu0 0.0
  %6069 = vmatpush1.msra.mxu0 0.0
  %6070 = vmatprep.subr.mxu0 0.0
  %6071 = vmatpush1.msra.mxu0 0.0
  %6072 = vmatprep.subr.mxu0 0.0
  %6073 = vmatpush1.msra.mxu0 0.0
  %6074 = vmatprep.subr.mxu0 0.0
  %6075 = vmatpush1.msra.mxu0 0.0
  %6076 = vmatprep.mubr.f32.mxu0 0.0
  %6077 = vmatmul.mubr.f32.gmra.mrb[0].mxu0 %v6001
  %v6078 = vpop.f32.mrb[0].mxu0
  %v6079 = vadd.f32 0.0, %v6078
  %v6080 = vpop.f32.mrb[0].mxu0
  %6081 = vmatprep.mubr.f32.mxu0 0.0
  %6082 = vmatmul.mubr.f32.gmra.mrb[0].mxu0 %v6004
  %v6083 = vpop.f32.mrb[0].mxu0
  %v6084 = vadd.f32 0.0, %v6083
  %v6085 = vpop.f32.mrb[0].mxu0
  %6086 = vmatprep.mubr.f32.mxu0 0.0
  %6087 = vmatmul.mubr.f32.gmra.mrb[0].mxu0 %v6007
  %v6088 = vpop.f32.mrb[0].mxu0
  %v6089 = vadd.f32 0.0, %v6088
  %v6090 = vpop.f32.mrb[0].mxu0
  %6091 = vmatprep.mubr.f32.mxu0 0.0
  %6092 = vmatmul.mubr.f32.gmra.mrb[0].mxu0 %v6010
  %v6093 = vpop.f32.mrb[0].mxu0
  %v6094 = vadd.f32 0.0, %v6093
  %v6095 = vpop.f32.mrb[0].mxu0
  %6096 = vdwg.mxu0
  %v6097 = vadd.f32 %v5885, %v6079
  %v6098 = vadd.f32 %v5886, %v6084
  %v6099 = vadd.f32 %v5887, %v6089
  %v6100 = vadd.f32 %v5888, %v6094
  %v6101 = vld [vmem:[%s1508] sm:$0xff]
  %v6102 = vld [vmem:[%s1508 + $0x8] sm:$0xff]
  %v6103 = vld [vmem:[%s1508 + $0x10] sm:$0xff]
  %v6104 = vld [vmem:[%s1508 + $0x18] sm:$0xff]
  %v6105 = vld [vmem:[%s1508 + $0x20] sm:$0xff]
  %v6106 = vld [vmem:[%s1508 + $0x28] sm:$0xff]
  %v6107 = vld [vmem:[%s1508 + $0x30] sm:$0xff]
  %v6108 = vld [vmem:[%s1508 + $0x38] sm:$0xff]
  %v6109 = vld [vmem:[%s1508 + $0x40] sm:$0xff]
  %v6110 = vld [vmem:[%s1508 + $0x48] sm:$0xff]
  %v6111 = vld [vmem:[%s1508 + $0x50] sm:$0xff]
  %v6112 = vld [vmem:[%s1508 + $0x58] sm:$0xff]
  %v6113 = vld [vmem:[%s1508 + $0x60] sm:$0xff]
  %v6114 = vld [vmem:[%s1508 + $0x68] sm:$0xff]
  %v6115 = vld [vmem:[%s1508 + $0x70] sm:$0xff]
  %v6116 = vld [vmem:[%s1508 + $0x78] sm:$0xff]
  %v6117 = vld [vmem:[%s1508 + $0x80] sm:$0xff]
  %v6118 = vld [vmem:[%s1508 + $0x88] sm:$0xff]
  %v6119 = vld [vmem:[%s1508 + $0x90] sm:$0xff]
  %v6120 = vld [vmem:[%s1508 + $0x98] sm:$0xff]
  %v6121 = vld [vmem:[%s1508 + $0xa0] sm:$0xff]
  %v6122 = vld [vmem:[%s1508 + $0xa8] sm:$0xff]
  %v6123 = vld [vmem:[%s1508 + $0xb0] sm:$0xff]
  %v6124 = vld [vmem:[%s1508 + $0xb8] sm:$0xff]
  %v6125 = vld [vmem:[%s1508 + $0xc0] sm:$0xff]
  %v6126 = vld [vmem:[%s1508 + $0xc8] sm:$0xff]
  %v6127 = vld [vmem:[%s1508 + $0xd0] sm:$0xff]
  %v6128 = vld [vmem:[%s1508 + $0xd8] sm:$0xff]
  %v6129 = vld [vmem:[%s1508 + $0xe0] sm:$0xff]
  %v6130 = vld [vmem:[%s1508 + $0xe8] sm:$0xff]
  %v6131 = vld [vmem:[%s1508 + $0xf0] sm:$0xff]
  %v6132 = vld [vmem:[%s1508 + $0xf8] sm:$0xff]
  %6133 = vmatprep.subr.mxu0 0.0
  %6134 = vmatpush1.msra.mxu0 %v6101
  %6135 = vmatprep.subr.mxu0 0.0
  %6136 = vmatpush1.msra.mxu0 %v6102
  %6137 = vmatprep.subr.mxu0 0.0
  %6138 = vmatpush1.msra.mxu0 %v6103
  %6139 = vmatprep.subr.mxu0 0.0
  %6140 = vmatpush1.msra.mxu0 %v6104
  %6141 = vmatprep.subr.mxu0 0.0
  %6142 = vmatpush1.msra.mxu0 %v6105
  %6143 = vmatprep.subr.mxu0 0.0
  %6144 = vmatpush1.msra.mxu0 %v6106
  %6145 = vmatprep.subr.mxu0 0.0
  %6146 = vmatpush1.msra.mxu0 %v6107
  %6147 = vmatprep.subr.mxu0 0.0
  %6148 = vmatpush1.msra.mxu0 %v6108
  %6149 = vmatprep.subr.mxu0 0.0
  %6150 = vmatpush1.msra.mxu0 %v6109
  %6151 = vmatprep.subr.mxu0 0.0
  %6152 = vmatpush1.msra.mxu0 %v6110
  %6153 = vmatprep.subr.mxu0 0.0
  %6154 = vmatpush1.msra.mxu0 %v6111
  %6155 = vmatprep.subr.mxu0 0.0
  %6156 = vmatpush1.msra.mxu0 %v6112
  %6157 = vmatprep.subr.mxu0 0.0
  %6158 = vmatpush1.msra.mxu0 %v6113
  %6159 = vmatprep.subr.mxu0 0.0
  %6160 = vmatpush1.msra.mxu0 %v6114
  %6161 = vmatprep.subr.mxu0 0.0
  %6162 = vmatpush1.msra.mxu0 %v6115
  %6163 = vmatprep.subr.mxu0 0.0
  %6164 = vmatpush1.msra.mxu0 %v6116
  %6165 = vmatprep.subr.mxu0 0.0
  %6166 = vmatpush1.msra.mxu0 %v6117
  %6167 = vmatprep.subr.mxu0 0.0
  %6168 = vmatpush1.msra.mxu0 %v6118
  %6169 = vmatprep.subr.mxu0 0.0
  %6170 = vmatpush1.msra.mxu0 %v6119
  %6171 = vmatprep.subr.mxu0 0.0
  %6172 = vmatpush1.msra.mxu0 %v6120
  %6173 = vmatprep.subr.mxu0 0.0
  %6174 = vmatpush1.msra.mxu0 %v6121
  %6175 = vmatprep.subr.mxu0 0.0
  %6176 = vmatpush1.msra.mxu0 %v6122
  %6177 = vmatprep.subr.mxu0 0.0
  %6178 = vmatpush1.msra.mxu0 %v6123
  %6179 = vmatprep.subr.mxu0 0.0
  %6180 = vmatpush1.msra.mxu0 %v6124
  %6181 = vmatprep.subr.mxu0 0.0
  %6182 = vmatpush1.msra.mxu0 %v6125
  %6183 = vmatprep.subr.mxu0 0.0
  %6184 = vmatpush1.msra.mxu0 %v6126
  %6185 = vmatprep.subr.mxu0 0.0
  %6186 = vmatpush1.msra.mxu0 %v6127
  %6187 = vmatprep.subr.mxu0 0.0
  %6188 = vmatpush1.msra.mxu0 %v6128
  %6189 = vmatprep.subr.mxu0 0.0
  %6190 = vmatpush1.msra.mxu0 %v6129
  %6191 = vmatprep.subr.mxu0 0.0
  %6192 = vmatpush1.msra.mxu0 %v6130
  %6193 = vmatprep.subr.mxu0 0.0
  %6194 = vmatpush1.msra.mxu0 %v6131
  %6195 = vmatprep.subr.mxu0 0.0
  %6196 = vmatpush1.msra.mxu0 %v6132
  %6197 = vmatprep.mubr.f32.mxu0 %v225
  %6198 = vmatmul.mubr.f32.gmra.mrb[0].mxu0 %v223
  %v6199 = vpop.f32.mrb[0].mxu0
  %v6200 = vadd.f32 0.0, %v6199
  %v6201 = vpop.f32.mrb[0].mxu0
  %6202 = vmatprep.mubr.f32.mxu0 %v231
  %6203 = vmatmul.mubr.f32.gmra.mrb[0].mxu0 %v229
  %v6204 = vpop.f32.mrb[0].mxu0
  %v6205 = vadd.f32 0.0, %v6204
  %v6206 = vpop.f32.mrb[0].mxu0
  %6207 = vdwg.mxu0
  %v6208 = vld [vmem:[%s1616] sm:$0xff]
  %v6209 = vld [vmem:[%s1616 + $0x8] sm:$0xff]
  %v6210 = vld [vmem:[%s1616 + $0x10] sm:$0xff]
  %v6211 = vld [vmem:[%s1616 + $0x18] sm:$0xff]
  %v6213 = vsel %vm457, %v6208, 0
  %v6216 = vsel %vm457, %v6209, 0
  %v6219 = vsel %vm457, %v6210, 0
  %v6222 = vsel %vm457, %v6211, 0
  %6224 = vmatprep.subr.mxu0 0.0
  %6225 = vmatpush1.msra.mxu0 %v6200
  %6226 = vmatprep.subr.mxu0 0.0
  %6227 = vmatpush1.msra.mxu0 %v6205
  %6228 = vmatprep.subr.mxu0 0.0
  %6229 = vmatpush1.msra.mxu0 0.0
  %6230 = vmatprep.subr.mxu0 0.0
  %6231 = vmatpush1.msra.mxu0 0.0
  %6232 = vmatprep.subr.mxu0 0.0
  %6233 = vmatpush1.msra.mxu0 0.0
  %6234 = vmatprep.subr.mxu0 0.0
  %6235 = vmatpush1.msra.mxu0 0.0
  %6236 = vmatprep.subr.mxu0 0.0
  %6237 = vmatpush1.msra.mxu0 0.0
  %6238 = vmatprep.subr.mxu0 0.0
  %6239 = vmatpush1.msra.mxu0 0.0
  %6240 = vmatprep.subr.mxu0 0.0
  %6241 = vmatpush1.msra.mxu0 0.0
  %6242 = vmatprep.subr.mxu0 0.0
  %6243 = vmatpush1.msra.mxu0 0.0
  %6244 = vmatprep.subr.mxu0 0.0
  %6245 = vmatpush1.msra.mxu0 0.0
  %6246 = vmatprep.subr.mxu0 0.0
  %6247 = vmatpush1.msra.mxu0 0.0
  %6248 = vmatprep.subr.mxu0 0.0
  %6249 = vmatpush1.msra.mxu0 0.0
  %6250 = vmatprep.subr.mxu0 0.0
  %6251 = vmatpush1.msra.mxu0 0.0
  %6252 = vmatprep.subr.mxu0 0.0
  %6253 = vmatpush1.msra.mxu0 0.0
  %6254 = vmatprep.subr.mxu0 0.0
  %6255 = vmatpush1.msra.mxu0 0.0
  %6256 = vmatprep.subr.mxu0 0.0
  %6257 = vmatpush1.msra.mxu0 0.0
  %6258 = vmatprep.subr.mxu0 0.0
  %6259 = vmatpush1.msra.mxu0 0.0
  %6260 = vmatprep.subr.mxu0 0.0
  %6261 = vmatpush1.msra.mxu0 0.0
  %6262 = vmatprep.subr.mxu0 0.0
  %6263 = vmatpush1.msra.mxu0 0.0
  %6264 = vmatprep.subr.mxu0 0.0
  %6265 = vmatpush1.msra.mxu0 0.0
  %6266 = vmatprep.subr.mxu0 0.0
  %6267 = vmatpush1.msra.mxu0 0.0
  %6268 = vmatprep.subr.mxu0 0.0
  %6269 = vmatpush1.msra.mxu0 0.0
  %6270 = vmatprep.subr.mxu0 0.0
  %6271 = vmatpush1.msra.mxu0 0.0
  %6272 = vmatprep.subr.mxu0 0.0
  %6273 = vmatpush1.msra.mxu0 0.0
  %6274 = vmatprep.subr.mxu0 0.0
  %6275 = vmatpush1.msra.mxu0 0.0
  %6276 = vmatprep.subr.mxu0 0.0
  %6277 = vmatpush1.msra.mxu0 0.0
  %6278 = vmatprep.subr.mxu0 0.0
  %6279 = vmatpush1.msra.mxu0 0.0
  %6280 = vmatprep.subr.mxu0 0.0
  %6281 = vmatpush1.msra.mxu0 0.0
  %6282 = vmatprep.subr.mxu0 0.0
  %6283 = vmatpush1.msra.mxu0 0.0
  %6284 = vmatprep.subr.mxu0 0.0
  %6285 = vmatpush1.msra.mxu0 0.0
  %6286 = vmatprep.subr.mxu0 0.0
  %6287 = vmatpush1.msra.mxu0 0.0
  %6288 = vmatprep.mubr.f32.mxu0 0.0
  %6289 = vmatmul.mubr.f32.gmra.mrb[0].mxu0 %v6213
  %v6290 = vpop.f32.mrb[0].mxu0
  %v6291 = vadd.f32 0.0, %v6290
  %v6292 = vpop.f32.mrb[0].mxu0
  %6293 = vmatprep.mubr.f32.mxu0 0.0
  %6294 = vmatmul.mubr.f32.gmra.mrb[0].mxu0 %v6216
  %v6295 = vpop.f32.mrb[0].mxu0
  %v6296 = vadd.f32 0.0, %v6295
  %v6297 = vpop.f32.mrb[0].mxu0
  %6298 = vmatprep.mubr.f32.mxu0 0.0
  %6299 = vmatmul.mubr.f32.gmra.mrb[0].mxu0 %v6219
  %v6300 = vpop.f32.mrb[0].mxu0
  %v6301 = vadd.f32 0.0, %v6300
  %v6302 = vpop.f32.mrb[0].mxu0
  %6303 = vmatprep.mubr.f32.mxu0 0.0
  %6304 = vmatmul.mubr.f32.gmra.mrb[0].mxu0 %v6222
  %v6305 = vpop.f32.mrb[0].mxu0
  %v6306 = vadd.f32 0.0, %v6305
  %v6307 = vpop.f32.mrb[0].mxu0
  %6308 = vdwg.mxu0
  %v6309 = vadd.f32 %v6097, %v6291
  %v6310 = vadd.f32 %v6098, %v6296
  %v6311 = vadd.f32 %v6099, %v6301
  %v6312 = vadd.f32 %v6100, %v6306
  %v6313 = vld [vmem:[%s1722] sm:$0xff]
  %v6314 = vld [vmem:[%s1722 + $0x8] sm:$0xff]
  %v6315 = vld [vmem:[%s1722 + $0x10] sm:$0xff]
  %v6316 = vld [vmem:[%s1722 + $0x18] sm:$0xff]
  %v6317 = vld [vmem:[%s1722 + $0x20] sm:$0xff]
  %v6318 = vld [vmem:[%s1722 + $0x28] sm:$0xff]
  %v6319 = vld [vmem:[%s1722 + $0x30] sm:$0xff]
  %v6320 = vld [vmem:[%s1722 + $0x38] sm:$0xff]
  %v6321 = vld [vmem:[%s1722 + $0x40] sm:$0xff]
  %v6322 = vld [vmem:[%s1722 + $0x48] sm:$0xff]
  %v6323 = vld [vmem:[%s1722 + $0x50] sm:$0xff]
  %v6324 = vld [vmem:[%s1722 + $0x58] sm:$0xff]
  %v6325 = vld [vmem:[%s1722 + $0x60] sm:$0xff]
  %v6326 = vld [vmem:[%s1722 + $0x68] sm:$0xff]
  %v6327 = vld [vmem:[%s1722 + $0x70] sm:$0xff]
  %v6328 = vld [vmem:[%s1722 + $0x78] sm:$0xff]
  %v6329 = vld [vmem:[%s1722 + $0x80] sm:$0xff]
  %v6330 = vld [vmem:[%s1722 + $0x88] sm:$0xff]
  %v6331 = vld [vmem:[%s1722 + $0x90] sm:$0xff]
  %v6332 = vld [vmem:[%s1722 + $0x98] sm:$0xff]
  %v6333 = vld [vmem:[%s1722 + $0xa0] sm:$0xff]
  %v6334 = vld [vmem:[%s1722 + $0xa8] sm:$0xff]
  %v6335 = vld [vmem:[%s1722 + $0xb0] sm:$0xff]
  %v6336 = vld [vmem:[%s1722 + $0xb8] sm:$0xff]
  %v6337 = vld [vmem:[%s1722 + $0xc0] sm:$0xff]
  %v6338 = vld [vmem:[%s1722 + $0xc8] sm:$0xff]
  %v6339 = vld [vmem:[%s1722 + $0xd0] sm:$0xff]
  %v6340 = vld [vmem:[%s1722 + $0xd8] sm:$0xff]
  %v6341 = vld [vmem:[%s1722 + $0xe0] sm:$0xff]
  %v6342 = vld [vmem:[%s1722 + $0xe8] sm:$0xff]
  %v6343 = vld [vmem:[%s1722 + $0xf0] sm:$0xff]
  %v6344 = vld [vmem:[%s1722 + $0xf8] sm:$0xff]
  %6345 = vmatprep.subr.mxu0 0.0
  %6346 = vmatpush1.msra.mxu0 %v6313
  %6347 = vmatprep.subr.mxu0 0.0
  %6348 = vmatpush1.msra.mxu0 %v6314
  %6349 = vmatprep.subr.mxu0 0.0
  %6350 = vmatpush1.msra.mxu0 %v6315
  %6351 = vmatprep.subr.mxu0 0.0
  %6352 = vmatpush1.msra.mxu0 %v6316
  %6353 = vmatprep.subr.mxu0 0.0
  %6354 = vmatpush1.msra.mxu0 %v6317
  %6355 = vmatprep.subr.mxu0 0.0
  %6356 = vmatpush1.msra.mxu0 %v6318
  %6357 = vmatprep.subr.mxu0 0.0
  %6358 = vmatpush1.msra.mxu0 %v6319
  %6359 = vmatprep.subr.mxu0 0.0
  %6360 = vmatpush1.msra.mxu0 %v6320
  %6361 = vmatprep.subr.mxu0 0.0
  %6362 = vmatpush1.msra.mxu0 %v6321
  %6363 = vmatprep.subr.mxu0 0.0
  %6364 = vmatpush1.msra.mxu0 %v6322
  %6365 = vmatprep.subr.mxu0 0.0
  %6366 = vmatpush1.msra.mxu0 %v6323
  %6367 = vmatprep.subr.mxu0 0.0
  %6368 = vmatpush1.msra.mxu0 %v6324
  %6369 = vmatprep.subr.mxu0 0.0
  %6370 = vmatpush1.msra.mxu0 %v6325
  %6371 = vmatprep.subr.mxu0 0.0
  %6372 = vmatpush1.msra.mxu0 %v6326
  %6373 = vmatprep.subr.mxu0 0.0
  %6374 = vmatpush1.msra.mxu0 %v6327
  %6375 = vmatprep.subr.mxu0 0.0
  %6376 = vmatpush1.msra.mxu0 %v6328
  %6377 = vmatprep.subr.mxu0 0.0
  %6378 = vmatpush1.msra.mxu0 %v6329
  %6379 = vmatprep.subr.mxu0 0.0
  %6380 = vmatpush1.msra.mxu0 %v6330
  %6381 = vmatprep.subr.mxu0 0.0
  %6382 = vmatpush1.msra.mxu0 %v6331
  %6383 = vmatprep.subr.mxu0 0.0
  %6384 = vmatpush1.msra.mxu0 %v6332
  %6385 = vmatprep.subr.mxu0 0.0
  %6386 = vmatpush1.msra.mxu0 %v6333
  %6387 = vmatprep.subr.mxu0 0.0
  %6388 = vmatpush1.msra.mxu0 %v6334
  %6389 = vmatprep.subr.mxu0 0.0
  %6390 = vmatpush1.msra.mxu0 %v6335
  %6391 = vmatprep.subr.mxu0 0.0
  %6392 = vmatpush1.msra.mxu0 %v6336
  %6393 = vmatprep.subr.mxu0 0.0
  %6394 = vmatpush1.msra.mxu0 %v6337
  %6395 = vmatprep.subr.mxu0 0.0
  %6396 = vmatpush1.msra.mxu0 %v6338
  %6397 = vmatprep.subr.mxu0 0.0
  %6398 = vmatpush1.msra.mxu0 %v6339
  %6399 = vmatprep.subr.mxu0 0.0
  %6400 = vmatpush1.msra.mxu0 %v6340
  %6401 = vmatprep.subr.mxu0 0.0
  %6402 = vmatpush1.msra.mxu0 %v6341
  %6403 = vmatprep.subr.mxu0 0.0
  %6404 = vmatpush1.msra.mxu0 %v6342
  %6405 = vmatprep.subr.mxu0 0.0
  %6406 = vmatpush1.msra.mxu0 %v6343
  %6407 = vmatprep.subr.mxu0 0.0
  %6408 = vmatpush1.msra.mxu0 %v6344
  %6409 = vmatprep.mubr.f32.mxu0 %v225
  %6410 = vmatmul.mubr.f32.gmra.mrb[0].mxu0 %v223
  %v6411 = vpop.f32.mrb[0].mxu0
  %v6412 = vadd.f32 0.0, %v6411
  %v6413 = vpop.f32.mrb[0].mxu0
  %6414 = vmatprep.mubr.f32.mxu0 %v231
  %6415 = vmatmul.mubr.f32.gmra.mrb[0].mxu0 %v229
  %v6416 = vpop.f32.mrb[0].mxu0
  %v6417 = vadd.f32 0.0, %v6416
  %v6418 = vpop.f32.mrb[0].mxu0
  %6419 = vdwg.mxu0
  %v6420 = vld [vmem:[%s1830] sm:$0xff]
  %v6421 = vld [vmem:[%s1830 + $0x8] sm:$0xff]
  %v6422 = vld [vmem:[%s1830 + $0x10] sm:$0xff]
  %v6423 = vld [vmem:[%s1830 + $0x18] sm:$0xff]
  %v6425 = vsel %vm457, %v6420, 0
  %v6428 = vsel %vm457, %v6421, 0
  %v6431 = vsel %vm457, %v6422, 0
  %v6434 = vsel %vm457, %v6423, 0
  %6436 = vmatprep.subr.mxu0 0.0
  %6437 = vmatpush1.msra.mxu0 %v6412
  %6438 = vmatprep.subr.mxu0 0.0
  %6439 = vmatpush1.msra.mxu0 %v6417
  %6440 = vmatprep.subr.mxu0 0.0
  %6441 = vmatpush1.msra.mxu0 0.0
  %6442 = vmatprep.subr.mxu0 0.0
  %6443 = vmatpush1.msra.mxu0 0.0
  %6444 = vmatprep.subr.mxu0 0.0
  %6445 = vmatpush1.msra.mxu0 0.0
  %6446 = vmatprep.subr.mxu0 0.0
  %6447 = vmatpush1.msra.mxu0 0.0
  %6448 = vmatprep.subr.mxu0 0.0
  %6449 = vmatpush1.msra.mxu0 0.0
  %6450 = vmatprep.subr.mxu0 0.0
  %6451 = vmatpush1.msra.mxu0 0.0
  %6452 = vmatprep.subr.mxu0 0.0
  %6453 = vmatpush1.msra.mxu0 0.0
  %6454 = vmatprep.subr.mxu0 0.0
  %6455 = vmatpush1.msra.mxu0 0.0
  %6456 = vmatprep.subr.mxu0 0.0
  %6457 = vmatpush1.msra.mxu0 0.0
  %6458 = vmatprep.subr.mxu0 0.0
  %6459 = vmatpush1.msra.mxu0 0.0
  %6460 = vmatprep.subr.mxu0 0.0
  %6461 = vmatpush1.msra.mxu0 0.0
  %6462 = vmatprep.subr.mxu0 0.0
  %6463 = vmatpush1.msra.mxu0 0.0
  %6464 = vmatprep.subr.mxu0 0.0
  %6465 = vmatpush1.msra.mxu0 0.0
  %6466 = vmatprep.subr.mxu0 0.0
  %6467 = vmatpush1.msra.mxu0 0.0
  %6468 = vmatprep.subr.mxu0 0.0
  %6469 = vmatpush1.msra.mxu0 0.0
  %6470 = vmatprep.subr.mxu0 0.0
  %6471 = vmatpush1.msra.mxu0 0.0
  %6472 = vmatprep.subr.mxu0 0.0
  %6473 = vmatpush1.msra.mxu0 0.0
  %6474 = vmatprep.subr.mxu0 0.0
  %6475 = vmatpush1.msra.mxu0 0.0
  %6476 = vmatprep.subr.mxu0 0.0
  %6477 = vmatpush1.msra.mxu0 0.0
  %6478 = vmatprep.subr.mxu0 0.0
  %6479 = vmatpush1.msra.mxu0 0.0
  %6480 = vmatprep.subr.mxu0 0.0
  %6481 = vmatpush1.msra.mxu0 0.0
  %6482 = vmatprep.subr.mxu0 0.0
  %6483 = vmatpush1.msra.mxu0 0.0
  %6484 = vmatprep.subr.mxu0 0.0
  %6485 = vmatpush1.msra.mxu0 0.0
  %6486 = vmatprep.subr.mxu0 0.0
  %6487 = vmatpush1.msra.mxu0 0.0
  %6488 = vmatprep.subr.mxu0 0.0
  %6489 = vmatpush1.msra.mxu0 0.0
  %6490 = vmatprep.subr.mxu0 0.0
  %6491 = vmatpush1.msra.mxu0 0.0
  %6492 = vmatprep.subr.mxu0 0.0
  %6493 = vmatpush1.msra.mxu0 0.0
  %6494 = vmatprep.subr.mxu0 0.0
  %6495 = vmatpush1.msra.mxu0 0.0
  %6496 = vmatprep.subr.mxu0 0.0
  %6497 = vmatpush1.msra.mxu0 0.0
  %6498 = vmatprep.subr.mxu0 0.0
  %6499 = vmatpush1.msra.mxu0 0.0
  %6500 = vmatprep.mubr.f32.mxu0 0.0
  %6501 = vmatmul.mubr.f32.gmra.mrb[0].mxu0 %v6425
  %v6502 = vpop.f32.mrb[0].mxu0
  %v6503 = vadd.f32 0.0, %v6502
  %v6504 = vpop.f32.mrb[0].mxu0
  %6505 = vmatprep.mubr.f32.mxu0 0.0
  %6506 = vmatmul.mubr.f32.gmra.mrb[0].mxu0 %v6428
  %v6507 = vpop.f32.mrb[0].mxu0
  %v6508 = vadd.f32 0.0, %v6507
  %v6509 = vpop.f32.mrb[0].mxu0
  %6510 = vmatprep.mubr.f32.mxu0 0.0
  %6511 = vmatmul.mubr.f32.gmra.mrb[0].mxu0 %v6431
  %v6512 = vpop.f32.mrb[0].mxu0
  %v6513 = vadd.f32 0.0, %v6512
  %v6514 = vpop.f32.mrb[0].mxu0
  %6515 = vmatprep.mubr.f32.mxu0 0.0
  %6516 = vmatmul.mubr.f32.gmra.mrb[0].mxu0 %v6434
  %v6517 = vpop.f32.mrb[0].mxu0
  %v6518 = vadd.f32 0.0, %v6517
  %v6519 = vpop.f32.mrb[0].mxu0
  %6520 = vdwg.mxu0
  %v6521 = vadd.f32 %v6309, %v6503
  %v6522 = vadd.f32 %v6310, %v6508
  %v6523 = vadd.f32 %v6311, %v6513
  %v6524 = vadd.f32 %v6312, %v6518
  %v6525 = vld [vmem:[%s1936] sm:$0xff]
  %v6526 = vld [vmem:[%s1936 + $0x8] sm:$0xff]
  %v6527 = vld [vmem:[%s1936 + $0x10] sm:$0xff]
  %v6528 = vld [vmem:[%s1936 + $0x18] sm:$0xff]
  %v6529 = vld [vmem:[%s1936 + $0x20] sm:$0xff]
  %v6530 = vld [vmem:[%s1936 + $0x28] sm:$0xff]
  %v6531 = vld [vmem:[%s1936 + $0x30] sm:$0xff]
  %v6532 = vld [vmem:[%s1936 + $0x38] sm:$0xff]
  %v6533 = vld [vmem:[%s1936 + $0x40] sm:$0xff]
  %v6534 = vld [vmem:[%s1936 + $0x48] sm:$0xff]
  %v6535 = vld [vmem:[%s1936 + $0x50] sm:$0xff]
  %v6536 = vld [vmem:[%s1936 + $0x58] sm:$0xff]
  %v6537 = vld [vmem:[%s1936 + $0x60] sm:$0xff]
  %v6538 = vld [vmem:[%s1936 + $0x68] sm:$0xff]
  %v6539 = vld [vmem:[%s1936 + $0x70] sm:$0xff]
  %v6540 = vld [vmem:[%s1936 + $0x78] sm:$0xff]
  %v6541 = vld [vmem:[%s1936 + $0x80] sm:$0xff]
  %v6542 = vld [vmem:[%s1936 + $0x88] sm:$0xff]
  %v6543 = vld [vmem:[%s1936 + $0x90] sm:$0xff]
  %v6544 = vld [vmem:[%s1936 + $0x98] sm:$0xff]
  %v6545 = vld [vmem:[%s1936 + $0xa0] sm:$0xff]
  %v6546 = vld [vmem:[%s1936 + $0xa8] sm:$0xff]
  %v6547 = vld [vmem:[%s1936 + $0xb0] sm:$0xff]
  %v6548 = vld [vmem:[%s1936 + $0xb8] sm:$0xff]
  %v6549 = vld [vmem:[%s1936 + $0xc0] sm:$0xff]
  %v6550 = vld [vmem:[%s1936 + $0xc8] sm:$0xff]
  %v6551 = vld [vmem:[%s1936 + $0xd0] sm:$0xff]
  %v6552 = vld [vmem:[%s1936 + $0xd8] sm:$0xff]
  %v6553 = vld [vmem:[%s1936 + $0xe0] sm:$0xff]
  %v6554 = vld [vmem:[%s1936 + $0xe8] sm:$0xff]
  %v6555 = vld [vmem:[%s1936 + $0xf0] sm:$0xff]
  %v6556 = vld [vmem:[%s1936 + $0xf8] sm:$0xff]
  %6557 = vmatprep.subr.mxu0 0.0
  %6558 = vmatpush1.msra.mxu0 %v6525
  %6559 = vmatprep.subr.mxu0 0.0
  %6560 = vmatpush1.msra.mxu0 %v6526
  %6561 = vmatprep.subr.mxu0 0.0
  %6562 = vmatpush1.msra.mxu0 %v6527
  %6563 = vmatprep.subr.mxu0 0.0
  %6564 = vmatpush1.msra.mxu0 %v6528
  %6565 = vmatprep.subr.mxu0 0.0
  %6566 = vmatpush1.msra.mxu0 %v6529
  %6567 = vmatprep.subr.mxu0 0.0
  %6568 = vmatpush1.msra.mxu0 %v6530
  %6569 = vmatprep.subr.mxu0 0.0
  %6570 = vmatpush1.msra.mxu0 %v6531
  %6571 = vmatprep.subr.mxu0 0.0
  %6572 = vmatpush1.msra.mxu0 %v6532
  %6573 = vmatprep.subr.mxu0 0.0
  %6574 = vmatpush1.msra.mxu0 %v6533
  %6575 = vmatprep.subr.mxu0 0.0
  %6576 = vmatpush1.msra.mxu0 %v6534
  %6577 = vmatprep.subr.mxu0 0.0
  %6578 = vmatpush1.msra.mxu0 %v6535
  %6579 = vmatprep.subr.mxu0 0.0
  %6580 = vmatpush1.msra.mxu0 %v6536
  %6581 = vmatprep.subr.mxu0 0.0
  %6582 = vmatpush1.msra.mxu0 %v6537
  %6583 = vmatprep.subr.mxu0 0.0
  %6584 = vmatpush1.msra.mxu0 %v6538
  %6585 = vmatprep.subr.mxu0 0.0
  %6586 = vmatpush1.msra.mxu0 %v6539
  %6587 = vmatprep.subr.mxu0 0.0
  %6588 = vmatpush1.msra.mxu0 %v6540
  %6589 = vmatprep.subr.mxu0 0.0
  %6590 = vmatpush1.msra.mxu0 %v6541
  %6591 = vmatprep.subr.mxu0 0.0
  %6592 = vmatpush1.msra.mxu0 %v6542
  %6593 = vmatprep.subr.mxu0 0.0
  %6594 = vmatpush1.msra.mxu0 %v6543
  %6595 = vmatprep.subr.mxu0 0.0
  %6596 = vmatpush1.msra.mxu0 %v6544
  %6597 = vmatprep.subr.mxu0 0.0
  %6598 = vmatpush1.msra.mxu0 %v6545
  %6599 = vmatprep.subr.mxu0 0.0
  %6600 = vmatpush1.msra.mxu0 %v6546
  %6601 = vmatprep.subr.mxu0 0.0
  %6602 = vmatpush1.msra.mxu0 %v6547
  %6603 = vmatprep.subr.mxu0 0.0
  %6604 = vmatpush1.msra.mxu0 %v6548
  %6605 = vmatprep.subr.mxu0 0.0
  %6606 = vmatpush1.msra.mxu0 %v6549
  %6607 = vmatprep.subr.mxu0 0.0
  %6608 = vmatpush1.msra.mxu0 %v6550
  %6609 = vmatprep.subr.mxu0 0.0
  %6610 = vmatpush1.msra.mxu0 %v6551
  %6611 = vmatprep.subr.mxu0 0.0
  %6612 = vmatpush1.msra.mxu0 %v6552
  %6613 = vmatprep.subr.mxu0 0.0
  %6614 = vmatpush1.msra.mxu0 %v6553
  %6615 = vmatprep.subr.mxu0 0.0
  %6616 = vmatpush1.msra.mxu0 %v6554
  %6617 = vmatprep.subr.mxu0 0.0
  %6618 = vmatpush1.msra.mxu0 %v6555
  %6619 = vmatprep.subr.mxu0 0.0
  %6620 = vmatpush1.msra.mxu0 %v6556
  %6621 = vmatprep.mubr.f32.mxu0 %v225
  %6622 = vmatmul.mubr.f32.gmra.mrb[0].mxu0 %v223
  %v6623 = vpop.f32.mrb[0].mxu0
  %v6624 = vadd.f32 0.0, %v6623
  %v6625 = vpop.f32.mrb[0].mxu0
  %6626 = vmatprep.mubr.f32.mxu0 %v231
  %6627 = vmatmul.mubr.f32.gmra.mrb[0].mxu0 %v229
  %v6628 = vpop.f32.mrb[0].mxu0
  %v6629 = vadd.f32 0.0, %v6628
  %v6630 = vpop.f32.mrb[0].mxu0
  %6631 = vdwg.mxu0
  %v6632 = vld [vmem:[%s2044] sm:$0xff]
  %v6633 = vld [vmem:[%s2044 + $0x8] sm:$0xff]
  %v6634 = vld [vmem:[%s2044 + $0x10] sm:$0xff]
  %v6635 = vld [vmem:[%s2044 + $0x18] sm:$0xff]
  %v6637 = vsel %vm457, %v6632, 0
  %v6640 = vsel %vm457, %v6633, 0
  %v6643 = vsel %vm457, %v6634, 0
  %v6646 = vsel %vm457, %v6635, 0
  %6648 = vmatprep.subr.mxu0 0.0
  %6649 = vmatpush1.msra.mxu0 %v6624
  %6650 = vmatprep.subr.mxu0 0.0
  %6651 = vmatpush1.msra.mxu0 %v6629
  %6652 = vmatprep.subr.mxu0 0.0
  %6653 = vmatpush1.msra.mxu0 0.0
  %6654 = vmatprep.subr.mxu0 0.0
  %6655 = vmatpush1.msra.mxu0 0.0
  %6656 = vmatprep.subr.mxu0 0.0
  %6657 = vmatpush1.msra.mxu0 0.0
  %6658 = vmatprep.subr.mxu0 0.0
  %6659 = vmatpush1.msra.mxu0 0.0
  %6660 = vmatprep.subr.mxu0 0.0
  %6661 = vmatpush1.msra.mxu0 0.0
  %6662 = vmatprep.subr.mxu0 0.0
  %6663 = vmatpush1.msra.mxu0 0.0
  %6664 = vmatprep.subr.mxu0 0.0
  %6665 = vmatpush1.msra.mxu0 0.0
  %6666 = vmatprep.subr.mxu0 0.0
  %6667 = vmatpush1.msra.mxu0 0.0
  %6668 = vmatprep.subr.mxu0 0.0
  %6669 = vmatpush1.msra.mxu0 0.0
  %6670 = vmatprep.subr.mxu0 0.0
  %6671 = vmatpush1.msra.mxu0 0.0
  %6672 = vmatprep.subr.mxu0 0.0
  %6673 = vmatpush1.msra.mxu0 0.0
  %6674 = vmatprep.subr.mxu0 0.0
  %6675 = vmatpush1.msra.mxu0 0.0
  %6676 = vmatprep.subr.mxu0 0.0
  %6677 = vmatpush1.msra.mxu0 0.0
  %6678 = vmatprep.subr.mxu0 0.0
  %6679 = vmatpush1.msra.mxu0 0.0
  %6680 = vmatprep.subr.mxu0 0.0
  %6681 = vmatpush1.msra.mxu0 0.0
  %6682 = vmatprep.subr.mxu0 0.0
  %6683 = vmatpush1.msra.mxu0 0.0
  %6684 = vmatprep.subr.mxu0 0.0
  %6685 = vmatpush1.msra.mxu0 0.0
  %6686 = vmatprep.subr.mxu0 0.0
  %6687 = vmatpush1.msra.mxu0 0.0
  %6688 = vmatprep.subr.mxu0 0.0
  %6689 = vmatpush1.msra.mxu0 0.0
  %6690 = vmatprep.subr.mxu0 0.0
  %6691 = vmatpush1.msra.mxu0 0.0
  %6692 = vmatprep.subr.mxu0 0.0
  %6693 = vmatpush1.msra.mxu0 0.0
  %6694 = vmatprep.subr.mxu0 0.0
  %6695 = vmatpush1.msra.mxu0 0.0
  %6696 = vmatprep.subr.mxu0 0.0
  %6697 = vmatpush1.msra.mxu0 0.0
  %6698 = vmatprep.subr.mxu0 0.0
  %6699 = vmatpush1.msra.mxu0 0.0
  %6700 = vmatprep.subr.mxu0 0.0
  %6701 = vmatpush1.msra.mxu0 0.0
  %6702 = vmatprep.subr.mxu0 0.0
  %6703 = vmatpush1.msra.mxu0 0.0
  %6704 = vmatprep.subr.mxu0 0.0
  %6705 = vmatpush1.msra.mxu0 0.0
  %6706 = vmatprep.subr.mxu0 0.0
  %6707 = vmatpush1.msra.mxu0 0.0
  %6708 = vmatprep.subr.mxu0 0.0
  %6709 = vmatpush1.msra.mxu0 0.0
  %6710 = vmatprep.subr.mxu0 0.0
  %6711 = vmatpush1.msra.mxu0 0.0
  %6712 = vmatprep.mubr.f32.mxu0 0.0
  %6713 = vmatmul.mubr.f32.gmra.mrb[0].mxu0 %v6637
  %v6714 = vpop.f32.mrb[0].mxu0
  %v6715 = vadd.f32 0.0, %v6714
  %v6716 = vpop.f32.mrb[0].mxu0
  %6717 = vmatprep.mubr.f32.mxu0 0.0
  %6718 = vmatmul.mubr.f32.gmra.mrb[0].mxu0 %v6640
  %v6719 = vpop.f32.mrb[0].mxu0
  %v6720 = vadd.f32 0.0, %v6719
  %v6721 = vpop.f32.mrb[0].mxu0
  %6722 = vmatprep.mubr.f32.mxu0 0.0
  %6723 = vmatmul.mubr.f32.gmra.mrb[0].mxu0 %v6643
  %v6724 = vpop.f32.mrb[0].mxu0
  %v6725 = vadd.f32 0.0, %v6724
  %v6726 = vpop.f32.mrb[0].mxu0
  %6727 = vmatprep.mubr.f32.mxu0 0.0
  %6728 = vmatmul.mubr.f32.gmra.mrb[0].mxu0 %v6646
  %v6729 = vpop.f32.mrb[0].mxu0
  %v6730 = vadd.f32 0.0, %v6729
  %v6731 = vpop.f32.mrb[0].mxu0
  %6732 = vdwg.mxu0
  %v6733 = vadd.f32 %v6521, %v6715
  %v6734 = vadd.f32 %v6522, %v6720
  %v6735 = vadd.f32 %v6523, %v6725
  %v6736 = vadd.f32 %v6524, %v6730
  %v6737 = vld [vmem:[%s5] sm:$0xff]
  %v6738 = vld [vmem:[%s5 + $0x8] sm:$0xff]
  %v6739 = vld [vmem:[%s5 + $0x10] sm:$0xff]
  %v6740 = vld [vmem:[%s5 + $0x18] sm:$0xff]
  %6742 = vset.pattern.permute.xlu0 0
  %6743 = vperm.xlu0 %6742, %v6737
  %v6744 = vpop.permute.xlu0 %6743
  %6747 = vset.pattern.permute.xlu0 0
  %6748 = vperm.xlu0 %6747, %v6738
  %v6749 = vpop.permute.xlu0 %6748
  %6752 = vset.pattern.permute.xlu0 0
  %6753 = vperm.xlu0 %6752, %v6739
  %v6754 = vpop.permute.xlu0 %6753
  %6757 = vset.pattern.permute.xlu0 0
  %6758 = vperm.xlu0 %6757, %v6740
  %v6759 = vpop.permute.xlu0 %6758
  %v6761 = vadd.f32 %v6733, %v6744
  %v6762 = vadd.f32 %v6734, %v6749
  %v6763 = vadd.f32 %v6735, %v6754
  %v6764 = vadd.f32 %v6736, %v6759
  %v6765 = vld [vmem:[%s7] sm:$0x1]
  %v6766 = vld [vmem:[%s6] sm:$0xff]
  %v6767 = vld [vmem:[%s6 + $0x8] sm:$0xff]
  %v6768 = vld [vmem:[%s6 + $0x10] sm:$0xff]
  %v6769 = vld [vmem:[%s6 + $0x18] sm:$0xff]
  %v6770 = vld [vmem:[%s6 + $0x20] sm:$0xff]
  %v6771 = vld [vmem:[%s6 + $0x28] sm:$0xff]
  %v6772 = vld [vmem:[%s6 + $0x30] sm:$0xff]
  %v6773 = vld [vmem:[%s6 + $0x38] sm:$0xff]
  %v6775 = vsel %vm2187, %v6761, 0
  %6777 = vmatprep.subr.mxu0 0.0
  %6778 = vmatpush1.msra.mxu0 %v6766
  %6779 = vmatprep.subr.mxu0 0.0
  %6780 = vmatpush1.msra.mxu0 %v6767
  %6781 = vmatprep.subr.mxu0 0.0
  %6782 = vmatpush1.msra.mxu0 %v6768
  %6783 = vmatprep.subr.mxu0 0.0
  %6784 = vmatpush1.msra.mxu0 %v6769
  %6785 = vmatprep.subr.mxu0 0.0
  %6786 = vmatpush1.msra.mxu0 %v6770
  %6787 = vmatprep.subr.mxu0 0.0
  %6788 = vmatpush1.msra.mxu0 %v6771
  %6789 = vmatprep.subr.mxu0 0.0
  %6790 = vmatpush1.msra.mxu0 %v6772
  %6791 = vmatprep.subr.mxu0 0.0
  %6792 = vmatpush1.msra.mxu0 %v6773
  %6793 = vmatprep.subr.mxu0 0.0
  %6794 = vmatpush1.msra.mxu0 0.0
  %6795 = vmatprep.subr.mxu0 0.0
  %6796 = vmatpush1.msra.mxu0 0.0
  %6797 = vmatprep.subr.mxu0 0.0
  %6798 = vmatpush1.msra.mxu0 0.0
  %6799 = vmatprep.subr.mxu0 0.0
  %6800 = vmatpush1.msra.mxu0 0.0
  %6801 = vmatprep.subr.mxu0 0.0
  %6802 = vmatpush1.msra.mxu0 0.0
  %6803 = vmatprep.subr.mxu0 0.0
  %6804 = vmatpush1.msra.mxu0 0.0
  %6805 = vmatprep.subr.mxu0 0.0
  %6806 = vmatpush1.msra.mxu0 0.0
  %6807 = vmatprep.subr.mxu0 0.0
  %6808 = vmatpush1.msra.mxu0 0.0
  %6809 = vmatprep.subr.mxu0 0.0
  %6810 = vmatpush1.msra.mxu0 0.0
  %6811 = vmatprep.subr.mxu0 0.0
  %6812 = vmatpush1.msra.mxu0 0.0
  %6813 = vmatprep.subr.mxu0 0.0
  %6814 = vmatpush1.msra.mxu0 0.0
  %6815 = vmatprep.subr.mxu0 0.0
  %6816 = vmatpush1.msra.mxu0 0.0
  %6817 = vmatprep.subr.mxu0 0.0
  %6818 = vmatpush1.msra.mxu0 0.0
  %6819 = vmatprep.subr.mxu0 0.0
  %6820 = vmatpush1.msra.mxu0 0.0
  %6821 = vmatprep.subr.mxu0 0.0
  %6822 = vmatpush1.msra.mxu0 0.0
  %6823 = vmatprep.subr.mxu0 0.0
  %6824 = vmatpush1.msra.mxu0 0.0
  %6825 = vmatprep.subr.mxu0 0.0
  %6826 = vmatpush1.msra.mxu0 0.0
  %6827 = vmatprep.subr.mxu0 0.0
  %6828 = vmatpush1.msra.mxu0 0.0
  %6829 = vmatprep.subr.mxu0 0.0
  %6830 = vmatpush1.msra.mxu0 0.0
  %6831 = vmatprep.subr.mxu0 0.0
  %6832 = vmatpush1.msra.mxu0 0.0
  %6833 = vmatprep.subr.mxu0 0.0
  %6834 = vmatpush1.msra.mxu0 0.0
  %6835 = vmatprep.subr.mxu0 0.0
  %6836 = vmatpush1.msra.mxu0 0.0
  %6837 = vmatprep.subr.mxu0 0.0
  %6838 = vmatpush1.msra.mxu0 0.0
  %6839 = vmatprep.subr.mxu0 0.0
  %6840 = vmatpush1.msra.mxu0 0.0
  %6841 = vmatprep.mubr.f32.mxu0 0.0
  %6842 = vmatmul.mubr.f32.gmra.mrb[0].mxu0 %v6775
  %v6843 = vpop.f32.mrb[0].mxu0
  %v6844 = vadd.f32 0.0, %v6843
  %v6845 = vpop.f32.mrb[0].mxu0
  %6846 = vdwg.mxu0
  %v6847 = vadd.f32 %v6765, %v6844
  %v6848 = vld [vmem:[%s2262] sm:$0xff]
  %v6849 = vld [vmem:[%s2262 + $0x8] sm:$0xff]
  %v6850 = vld [vmem:[%s2262 + $0x10] sm:$0xff]
  %v6851 = vld [vmem:[%s2262 + $0x18] sm:$0xff]
  %v6852 = vld [vmem:[%s2262 + $0x20] sm:$0xff]
  %v6853 = vld [vmem:[%s2262 + $0x28] sm:$0xff]
  %v6854 = vld [vmem:[%s2262 + $0x30] sm:$0xff]
  %v6855 = vld [vmem:[%s2262 + $0x38] sm:$0xff]
  %v6856 = vrot.slane %v6761, 1
  %v6857 = vsel %vm2187, %v6856, 0
  %6859 = vmatprep.subr.mxu0 0.0
  %6860 = vmatpush1.msra.mxu0 %v6848
  %6861 = vmatprep.subr.mxu0 0.0
  %6862 = vmatpush1.msra.mxu0 %v6849
  %6863 = vmatprep.subr.mxu0 0.0
  %6864 = vmatpush1.msra.mxu0 %v6850
  %6865 = vmatprep.subr.mxu0 0.0
  %6866 = vmatpush1.msra.mxu0 %v6851
  %6867 = vmatprep.subr.mxu0 0.0
  %6868 = vmatpush1.msra.mxu0 %v6852
  %6869 = vmatprep.subr.mxu0 0.0
  %6870 = vmatpush1.msra.mxu0 %v6853
  %6871 = vmatprep.subr.mxu0 0.0
  %6872 = vmatpush1.msra.mxu0 %v6854
  %6873 = vmatprep.subr.mxu0 0.0
  %6874 = vmatpush1.msra.mxu0 %v6855
  %6875 = vmatprep.subr.mxu0 0.0
  %6876 = vmatpush1.msra.mxu0 0.0
  %6877 = vmatprep.subr.mxu0 0.0
  %6878 = vmatpush1.msra.mxu0 0.0
  %6879 = vmatprep.subr.mxu0 0.0
  %6880 = vmatpush1.msra.mxu0 0.0
  %6881 = vmatprep.subr.mxu0 0.0
  %6882 = vmatpush1.msra.mxu0 0.0
  %6883 = vmatprep.subr.mxu0 0.0
  %6884 = vmatpush1.msra.mxu0 0.0
  %6885 = vmatprep.subr.mxu0 0.0
  %6886 = vmatpush1.msra.mxu0 0.0
  %6887 = vmatprep.subr.mxu0 0.0
  %6888 = vmatpush1.msra.mxu0 0.0
  %6889 = vmatprep.subr.mxu0 0.0
  %6890 = vmatpush1.msra.mxu0 0.0
  %6891 = vmatprep.subr.mxu0 0.0
  %6892 = vmatpush1.msra.mxu0 0.0
  %6893 = vmatprep.subr.mxu0 0.0
  %6894 = vmatpush1.msra.mxu0 0.0
  %6895 = vmatprep.subr.mxu0 0.0
  %6896 = vmatpush1.msra.mxu0 0.0
  %6897 = vmatprep.subr.mxu0 0.0
  %6898 = vmatpush1.msra.mxu0 0.0
  %6899 = vmatprep.subr.mxu0 0.0
  %6900 = vmatpush1.msra.mxu0 0.0
  %6901 = vmatprep.subr.mxu0 0.0
  %6902 = vmatpush1.msra.mxu0 0.0
  %6903 = vmatprep.subr.mxu0 0.0
  %6904 = vmatpush1.msra.mxu0 0.0
  %6905 = vmatprep.subr.mxu0 0.0
  %6906 = vmatpush1.msra.mxu0 0.0
  %6907 = vmatprep.subr.mxu0 0.0
  %6908 = vmatpush1.msra.mxu0 0.0
  %6909 = vmatprep.subr.mxu0 0.0
  %6910 = vmatpush1.msra.mxu0 0.0
  %6911 = vmatprep.subr.mxu0 0.0
  %6912 = vmatpush1.msra.mxu0 0.0
  %6913 = vmatprep.subr.mxu0 0.0
  %6914 = vmatpush1.msra.mxu0 0.0
  %6915 = vmatprep.subr.mxu0 0.0
  %6916 = vmatpush1.msra.mxu0 0.0
  %6917 = vmatprep.subr.mxu0 0.0
  %6918 = vmatpush1.msra.mxu0 0.0
  %6919 = vmatprep.subr.mxu0 0.0
  %6920 = vmatpush1.msra.mxu0 0.0
  %6921 = vmatprep.subr.mxu0 0.0
  %6922 = vmatpush1.msra.mxu0 0.0
  %6923 = vmatprep.mubr.f32.mxu0 0.0
  %6924 = vmatmul.mubr.f32.gmra.mrb[0].mxu0 %v6857
  %v6925 = vpop.f32.mrb[0].mxu0
  %v6926 = vadd.f32 0.0, %v6925
  %v6927 = vpop.f32.mrb[0].mxu0
  %6928 = vdwg.mxu0
  %v6929 = vadd.f32 %v6847, %v6926
  %v6930 = vld [vmem:[%s2345] sm:$0xff]
  %v6931 = vld [vmem:[%s2345 + $0x8] sm:$0xff]
  %v6932 = vld [vmem:[%s2345 + $0x10] sm:$0xff]
  %v6933 = vld [vmem:[%s2345 + $0x18] sm:$0xff]
  %v6934 = vld [vmem:[%s2345 + $0x20] sm:$0xff]
  %v6935 = vld [vmem:[%s2345 + $0x28] sm:$0xff]
  %v6936 = vld [vmem:[%s2345 + $0x30] sm:$0xff]
  %v6937 = vld [vmem:[%s2345 + $0x38] sm:$0xff]
  %v6938 = vrot.slane %v6761, 2
  %v6939 = vsel %vm2187, %v6938, 0
  %6941 = vmatprep.subr.mxu0 0.0
  %6942 = vmatpush1.msra.mxu0 %v6930
  %6943 = vmatprep.subr.mxu0 0.0
  %6944 = vmatpush1.msra.mxu0 %v6931
  %6945 = vmatprep.subr.mxu0 0.0
  %6946 = vmatpush1.msra.mxu0 %v6932
  %6947 = vmatprep.subr.mxu0 0.0
  %6948 = vmatpush1.msra.mxu0 %v6933
  %6949 = vmatprep.subr.mxu0 0.0
  %6950 = vmatpush1.msra.mxu0 %v6934
  %6951 = vmatprep.subr.mxu0 0.0
  %6952 = vmatpush1.msra.mxu0 %v6935
  %6953 = vmatprep.subr.mxu0 0.0
  %6954 = vmatpush1.msra.mxu0 %v6936
  %6955 = vmatprep.subr.mxu0 0.0
  %6956 = vmatpush1.msra.mxu0 %v6937
  %6957 = vmatprep.subr.mxu0 0.0
  %6958 = vmatpush1.msra.mxu0 0.0
  %6959 = vmatprep.subr.mxu0 0.0
  %6960 = vmatpush1.msra.mxu0 0.0
  %6961 = vmatprep.subr.mxu0 0.0
  %6962 = vmatpush1.msra.mxu0 0.0
  %6963 = vmatprep.subr.mxu0 0.0
  %6964 = vmatpush1.msra.mxu0 0.0
  %6965 = vmatprep.subr.mxu0 0.0
  %6966 = vmatpush1.msra.mxu0 0.0
  %6967 = vmatprep.subr.mxu0 0.0
  %6968 = vmatpush1.msra.mxu0 0.0
  %6969 = vmatprep.subr.mxu0 0.0
  %6970 = vmatpush1.msra.mxu0 0.0
  %6971 = vmatprep.subr.mxu0 0.0
  %6972 = vmatpush1.msra.mxu0 0.0
  %6973 = vmatprep.subr.mxu0 0.0
  %6974 = vmatpush1.msra.mxu0 0.0
  %6975 = vmatprep.subr.mxu0 0.0
  %6976 = vmatpush1.msra.mxu0 0.0
  %6977 = vmatprep.subr.mxu0 0.0
  %6978 = vmatpush1.msra.mxu0 0.0
  %6979 = vmatprep.subr.mxu0 0.0
  %6980 = vmatpush1.msra.mxu0 0.0
  %6981 = vmatprep.subr.mxu0 0.0
  %6982 = vmatpush1.msra.mxu0 0.0
  %6983 = vmatprep.subr.mxu0 0.0
  %6984 = vmatpush1.msra.mxu0 0.0
  %6985 = vmatprep.subr.mxu0 0.0
  %6986 = vmatpush1.msra.mxu0 0.0
  %6987 = vmatprep.subr.mxu0 0.0
  %6988 = vmatpush1.msra.mxu0 0.0
  %6989 = vmatprep.subr.mxu0 0.0
  %6990 = vmatpush1.msra.mxu0 0.0
  %6991 = vmatprep.subr.mxu0 0.0
  %6992 = vmatpush1.msra.mxu0 0.0
  %6993 = vmatprep.subr.mxu0 0.0
  %6994 = vmatpush1.msra.mxu0 0.0
  %6995 = vmatprep.subr.mxu0 0.0
  %6996 = vmatpush1.msra.mxu0 0.0
  %6997 = vmatprep.subr.mxu0 0.0
  %6998 = vmatpush1.msra.mxu0 0.0
  %6999 = vmatprep.subr.mxu0 0.0
  %7000 = vmatpush1.msra.mxu0 0.0
  %7001 = vmatprep.subr.mxu0 0.0
  %7002 = vmatpush1.msra.mxu0 0.0
  %7003 = vmatprep.subr.mxu0 0.0
  %7004 = vmatpush1.msra.mxu0 0.0
  %7005 = vmatprep.mubr.f32.mxu0 0.0
  %7006 = vmatmul.mubr.f32.gmra.mrb[0].mxu0 %v6939
  %v7007 = vpop.f32.mrb[0].mxu0
  %v7008 = vadd.f32 0.0, %v7007
  %v7009 = vpop.f32.mrb[0].mxu0
  %7010 = vdwg.mxu0
  %v7011 = vadd.f32 %v6929, %v7008
  %v7012 = vld [vmem:[%s2428] sm:$0xff]
  %v7013 = vld [vmem:[%s2428 + $0x8] sm:$0xff]
  %v7014 = vld [vmem:[%s2428 + $0x10] sm:$0xff]
  %v7015 = vld [vmem:[%s2428 + $0x18] sm:$0xff]
  %v7016 = vld [vmem:[%s2428 + $0x20] sm:$0xff]
  %v7017 = vld [vmem:[%s2428 + $0x28] sm:$0xff]
  %v7018 = vld [vmem:[%s2428 + $0x30] sm:$0xff]
  %v7019 = vld [vmem:[%s2428 + $0x38] sm:$0xff]
  %v7020 = vrot.slane %v6761, 3
  %v7021 = vsel %vm2187, %v7020, 0
  %7023 = vmatprep.subr.mxu0 0.0
  %7024 = vmatpush1.msra.mxu0 %v7012
  %7025 = vmatprep.subr.mxu0 0.0
  %7026 = vmatpush1.msra.mxu0 %v7013
  %7027 = vmatprep.subr.mxu0 0.0
  %7028 = vmatpush1.msra.mxu0 %v7014
  %7029 = vmatprep.subr.mxu0 0.0
  %7030 = vmatpush1.msra.mxu0 %v7015
  %7031 = vmatprep.subr.mxu0 0.0
  %7032 = vmatpush1.msra.mxu0 %v7016
  %7033 = vmatprep.subr.mxu0 0.0
  %7034 = vmatpush1.msra.mxu0 %v7017
  %7035 = vmatprep.subr.mxu0 0.0
  %7036 = vmatpush1.msra.mxu0 %v7018
  %7037 = vmatprep.subr.mxu0 0.0
  %7038 = vmatpush1.msra.mxu0 %v7019
  %7039 = vmatprep.subr.mxu0 0.0
  %7040 = vmatpush1.msra.mxu0 0.0
  %7041 = vmatprep.subr.mxu0 0.0
  %7042 = vmatpush1.msra.mxu0 0.0
  %7043 = vmatprep.subr.mxu0 0.0
  %7044 = vmatpush1.msra.mxu0 0.0
  %7045 = vmatprep.subr.mxu0 0.0
  %7046 = vmatpush1.msra.mxu0 0.0
  %7047 = vmatprep.subr.mxu0 0.0
  %7048 = vmatpush1.msra.mxu0 0.0
  %7049 = vmatprep.subr.mxu0 0.0
  %7050 = vmatpush1.msra.mxu0 0.0
  %7051 = vmatprep.subr.mxu0 0.0
  %7052 = vmatpush1.msra.mxu0 0.0
  %7053 = vmatprep.subr.mxu0 0.0
  %7054 = vmatpush1.msra.mxu0 0.0
  %7055 = vmatprep.subr.mxu0 0.0
  %7056 = vmatpush1.msra.mxu0 0.0
  %7057 = vmatprep.subr.mxu0 0.0
  %7058 = vmatpush1.msra.mxu0 0.0
  %7059 = vmatprep.subr.mxu0 0.0
  %7060 = vmatpush1.msra.mxu0 0.0
  %7061 = vmatprep.subr.mxu0 0.0
  %7062 = vmatpush1.msra.mxu0 0.0
  %7063 = vmatprep.subr.mxu0 0.0
  %7064 = vmatpush1.msra.mxu0 0.0
  %7065 = vmatprep.subr.mxu0 0.0
  %7066 = vmatpush1.msra.mxu0 0.0
  %7067 = vmatprep.subr.mxu0 0.0
  %7068 = vmatpush1.msra.mxu0 0.0
  %7069 = vmatprep.subr.mxu0 0.0
  %7070 = vmatpush1.msra.mxu0 0.0
  %7071 = vmatprep.subr.mxu0 0.0
  %7072 = vmatpush1.msra.mxu0 0.0
  %7073 = vmatprep.subr.mxu0 0.0
  %7074 = vmatpush1.msra.mxu0 0.0
  %7075 = vmatprep.subr.mxu0 0.0
  %7076 = vmatpush1.msra.mxu0 0.0
  %7077 = vmatprep.subr.mxu0 0.0
  %7078 = vmatpush1.msra.mxu0 0.0
  %7079 = vmatprep.subr.mxu0 0.0
  %7080 = vmatpush1.msra.mxu0 0.0
  %7081 = vmatprep.subr.mxu0 0.0
  %7082 = vmatpush1.msra.mxu0 0.0
  %7083 = vmatprep.subr.mxu0 0.0
  %7084 = vmatpush1.msra.mxu0 0.0
  %7085 = vmatprep.subr.mxu0 0.0
  %7086 = vmatpush1.msra.mxu0 0.0
  %7087 = vmatprep.mubr.f32.mxu0 0.0
  %7088 = vmatmul.mubr.f32.gmra.mrb[0].mxu0 %v7021
  %v7089 = vpop.f32.mrb[0].mxu0
  %v7090 = vadd.f32 0.0, %v7089
  %v7091 = vpop.f32.mrb[0].mxu0
  %7092 = vdwg.mxu0
  %v7093 = vadd.f32 %v7011, %v7090
  %v7094 = vld [vmem:[%s2511] sm:$0xff]
  %v7095 = vld [vmem:[%s2511 + $0x8] sm:$0xff]
  %v7096 = vld [vmem:[%s2511 + $0x10] sm:$0xff]
  %v7097 = vld [vmem:[%s2511 + $0x18] sm:$0xff]
  %v7098 = vld [vmem:[%s2511 + $0x20] sm:$0xff]
  %v7099 = vld [vmem:[%s2511 + $0x28] sm:$0xff]
  %v7100 = vld [vmem:[%s2511 + $0x30] sm:$0xff]
  %v7101 = vld [vmem:[%s2511 + $0x38] sm:$0xff]
  %v7102 = vrot.slane %v6761, 4
  %v7103 = vsel %vm2187, %v7102, 0
  %7105 = vmatprep.subr.mxu0 0.0
  %7106 = vmatpush1.msra.mxu0 %v7094
  %7107 = vmatprep.subr.mxu0 0.0
  %7108 = vmatpush1.msra.mxu0 %v7095
  %7109 = vmatprep.subr.mxu0 0.0
  %7110 = vmatpush1.msra.mxu0 %v7096
  %7111 = vmatprep.subr.mxu0 0.0
  %7112 = vmatpush1.msra.mxu0 %v7097
  %7113 = vmatprep.subr.mxu0 0.0
  %7114 = vmatpush1.msra.mxu0 %v7098
  %7115 = vmatprep.subr.mxu0 0.0
  %7116 = vmatpush1.msra.mxu0 %v7099
  %7117 = vmatprep.subr.mxu0 0.0
  %7118 = vmatpush1.msra.mxu0 %v7100
  %7119 = vmatprep.subr.mxu0 0.0
  %7120 = vmatpush1.msra.mxu0 %v7101
  %7121 = vmatprep.subr.mxu0 0.0
  %7122 = vmatpush1.msra.mxu0 0.0
  %7123 = vmatprep.subr.mxu0 0.0
  %7124 = vmatpush1.msra.mxu0 0.0
  %7125 = vmatprep.subr.mxu0 0.0
  %7126 = vmatpush1.msra.mxu0 0.0
  %7127 = vmatprep.subr.mxu0 0.0
  %7128 = vmatpush1.msra.mxu0 0.0
  %7129 = vmatprep.subr.mxu0 0.0
  %7130 = vmatpush1.msra.mxu0 0.0
  %7131 = vmatprep.subr.mxu0 0.0
  %7132 = vmatpush1.msra.mxu0 0.0
  %7133 = vmatprep.subr.mxu0 0.0
  %7134 = vmatpush1.msra.mxu0 0.0
  %7135 = vmatprep.subr.mxu0 0.0
  %7136 = vmatpush1.msra.mxu0 0.0
  %7137 = vmatprep.subr.mxu0 0.0
  %7138 = vmatpush1.msra.mxu0 0.0
  %7139 = vmatprep.subr.mxu0 0.0
  %7140 = vmatpush1.msra.mxu0 0.0
  %7141 = vmatprep.subr.mxu0 0.0
  %7142 = vmatpush1.msra.mxu0 0.0
  %7143 = vmatprep.subr.mxu0 0.0
  %7144 = vmatpush1.msra.mxu0 0.0
  %7145 = vmatprep.subr.mxu0 0.0
  %7146 = vmatpush1.msra.mxu0 0.0
  %7147 = vmatprep.subr.mxu0 0.0
  %7148 = vmatpush1.msra.mxu0 0.0
  %7149 = vmatprep.subr.mxu0 0.0
  %7150 = vmatpush1.msra.mxu0 0.0
  %7151 = vmatprep.subr.mxu0 0.0
  %7152 = vmatpush1.msra.mxu0 0.0
  %7153 = vmatprep.subr.mxu0 0.0
  %7154 = vmatpush1.msra.mxu0 0.0
  %7155 = vmatprep.subr.mxu0 0.0
  %7156 = vmatpush1.msra.mxu0 0.0
  %7157 = vmatprep.subr.mxu0 0.0
  %7158 = vmatpush1.msra.mxu0 0.0
  %7159 = vmatprep.subr.mxu0 0.0
  %7160 = vmatpush1.msra.mxu0 0.0
  %7161 = vmatprep.subr.mxu0 0.0
  %7162 = vmatpush1.msra.mxu0 0.0
  %7163 = vmatprep.subr.mxu0 0.0
  %7164 = vmatpush1.msra.mxu0 0.0
  %7165 = vmatprep.subr.mxu0 0.0
  %7166 = vmatpush1.msra.mxu0 0.0
  %7167 = vmatprep.subr.mxu0 0.0
  %7168 = vmatpush1.msra.mxu0 0.0
  %7169 = vmatprep.mubr.f32.mxu0 0.0
  %7170 = vmatmul.mubr.f32.gmra.mrb[0].mxu0 %v7103
  %v7171 = vpop.f32.mrb[0].mxu0
  %v7172 = vadd.f32 0.0, %v7171
  %v7173 = vpop.f32.mrb[0].mxu0
  %7174 = vdwg.mxu0
  %v7175 = vadd.f32 %v7093, %v7172
  %v7176 = vld [vmem:[%s2594] sm:$0xff]
  %v7177 = vld [vmem:[%s2594 + $0x8] sm:$0xff]
  %v7178 = vld [vmem:[%s2594 + $0x10] sm:$0xff]
  %v7179 = vld [vmem:[%s2594 + $0x18] sm:$0xff]
  %v7180 = vld [vmem:[%s2594 + $0x20] sm:$0xff]
  %v7181 = vld [vmem:[%s2594 + $0x28] sm:$0xff]
  %v7182 = vld [vmem:[%s2594 + $0x30] sm:$0xff]
  %v7183 = vld [vmem:[%s2594 + $0x38] sm:$0xff]
  %v7184 = vrot.slane %v6761, 5
  %v7185 = vsel %vm2187, %v7184, 0
  %7187 = vmatprep.subr.mxu0 0.0
  %7188 = vmatpush1.msra.mxu0 %v7176
  %7189 = vmatprep.subr.mxu0 0.0
  %7190 = vmatpush1.msra.mxu0 %v7177
  %7191 = vmatprep.subr.mxu0 0.0
  %7192 = vmatpush1.msra.mxu0 %v7178
  %7193 = vmatprep.subr.mxu0 0.0
  %7194 = vmatpush1.msra.mxu0 %v7179
  %7195 = vmatprep.subr.mxu0 0.0
  %7196 = vmatpush1.msra.mxu0 %v7180
  %7197 = vmatprep.subr.mxu0 0.0
  %7198 = vmatpush1.msra.mxu0 %v7181
  %7199 = vmatprep.subr.mxu0 0.0
  %7200 = vmatpush1.msra.mxu0 %v7182
  %7201 = vmatprep.subr.mxu0 0.0
  %7202 = vmatpush1.msra.mxu0 %v7183
  %7203 = vmatprep.subr.mxu0 0.0
  %7204 = vmatpush1.msra.mxu0 0.0
  %7205 = vmatprep.subr.mxu0 0.0
  %7206 = vmatpush1.msra.mxu0 0.0
  %7207 = vmatprep.subr.mxu0 0.0
  %7208 = vmatpush1.msra.mxu0 0.0
  %7209 = vmatprep.subr.mxu0 0.0
  %7210 = vmatpush1.msra.mxu0 0.0
  %7211 = vmatprep.subr.mxu0 0.0
  %7212 = vmatpush1.msra.mxu0 0.0
  %7213 = vmatprep.subr.mxu0 0.0
  %7214 = vmatpush1.msra.mxu0 0.0
  %7215 = vmatprep.subr.mxu0 0.0
  %7216 = vmatpush1.msra.mxu0 0.0
  %7217 = vmatprep.subr.mxu0 0.0
  %7218 = vmatpush1.msra.mxu0 0.0
  %7219 = vmatprep.subr.mxu0 0.0
  %7220 = vmatpush1.msra.mxu0 0.0
  %7221 = vmatprep.subr.mxu0 0.0
  %7222 = vmatpush1.msra.mxu0 0.0
  %7223 = vmatprep.subr.mxu0 0.0
  %7224 = vmatpush1.msra.mxu0 0.0
  %7225 = vmatprep.subr.mxu0 0.0
  %7226 = vmatpush1.msra.mxu0 0.0
  %7227 = vmatprep.subr.mxu0 0.0
  %7228 = vmatpush1.msra.mxu0 0.0
  %7229 = vmatprep.subr.mxu0 0.0
  %7230 = vmatpush1.msra.mxu0 0.0
  %7231 = vmatprep.subr.mxu0 0.0
  %7232 = vmatpush1.msra.mxu0 0.0
  %7233 = vmatprep.subr.mxu0 0.0
  %7234 = vmatpush1.msra.mxu0 0.0
  %7235 = vmatprep.subr.mxu0 0.0
  %7236 = vmatpush1.msra.mxu0 0.0
  %7237 = vmatprep.subr.mxu0 0.0
  %7238 = vmatpush1.msra.mxu0 0.0
  %7239 = vmatprep.subr.mxu0 0.0
  %7240 = vmatpush1.msra.mxu0 0.0
  %7241 = vmatprep.subr.mxu0 0.0
  %7242 = vmatpush1.msra.mxu0 0.0
  %7243 = vmatprep.subr.mxu0 0.0
  %7244 = vmatpush1.msra.mxu0 0.0
  %7245 = vmatprep.subr.mxu0 0.0
  %7246 = vmatpush1.msra.mxu0 0.0
  %7247 = vmatprep.subr.mxu0 0.0
  %7248 = vmatpush1.msra.mxu0 0.0
  %7249 = vmatprep.subr.mxu0 0.0
  %7250 = vmatpush1.msra.mxu0 0.0
  %7251 = vmatprep.mubr.f32.mxu0 0.0
  %7252 = vmatmul.mubr.f32.gmra.mrb[0].mxu0 %v7185
  %v7253 = vpop.f32.mrb[0].mxu0
  %v7254 = vadd.f32 0.0, %v7253
  %v7255 = vpop.f32.mrb[0].mxu0
  %7256 = vdwg.mxu0
  %v7257 = vadd.f32 %v7175, %v7254
  %v7258 = vld [vmem:[%s2677] sm:$0xff]
  %v7259 = vld [vmem:[%s2677 + $0x8] sm:$0xff]
  %v7260 = vld [vmem:[%s2677 + $0x10] sm:$0xff]
  %v7261 = vld [vmem:[%s2677 + $0x18] sm:$0xff]
  %v7262 = vld [vmem:[%s2677 + $0x20] sm:$0xff]
  %v7263 = vld [vmem:[%s2677 + $0x28] sm:$0xff]
  %v7264 = vld [vmem:[%s2677 + $0x30] sm:$0xff]
  %v7265 = vld [vmem:[%s2677 + $0x38] sm:$0xff]
  %v7266 = vrot.slane %v6761, 6
  %v7267 = vsel %vm2187, %v7266, 0
  %7269 = vmatprep.subr.mxu0 0.0
  %7270 = vmatpush1.msra.mxu0 %v7258
  %7271 = vmatprep.subr.mxu0 0.0
  %7272 = vmatpush1.msra.mxu0 %v7259
  %7273 = vmatprep.subr.mxu0 0.0
  %7274 = vmatpush1.msra.mxu0 %v7260
  %7275 = vmatprep.subr.mxu0 0.0
  %7276 = vmatpush1.msra.mxu0 %v7261
  %7277 = vmatprep.subr.mxu0 0.0
  %7278 = vmatpush1.msra.mxu0 %v7262
  %7279 = vmatprep.subr.mxu0 0.0
  %7280 = vmatpush1.msra.mxu0 %v7263
  %7281 = vmatprep.subr.mxu0 0.0
  %7282 = vmatpush1.msra.mxu0 %v7264
  %7283 = vmatprep.subr.mxu0 0.0
  %7284 = vmatpush1.msra.mxu0 %v7265
  %7285 = vmatprep.subr.mxu0 0.0
  %7286 = vmatpush1.msra.mxu0 0.0
  %7287 = vmatprep.subr.mxu0 0.0
  %7288 = vmatpush1.msra.mxu0 0.0
  %7289 = vmatprep.subr.mxu0 0.0
  %7290 = vmatpush1.msra.mxu0 0.0
  %7291 = vmatprep.subr.mxu0 0.0
  %7292 = vmatpush1.msra.mxu0 0.0
  %7293 = vmatprep.subr.mxu0 0.0
  %7294 = vmatpush1.msra.mxu0 0.0
  %7295 = vmatprep.subr.mxu0 0.0
  %7296 = vmatpush1.msra.mxu0 0.0
  %7297 = vmatprep.subr.mxu0 0.0
  %7298 = vmatpush1.msra.mxu0 0.0
  %7299 = vmatprep.subr.mxu0 0.0
  %7300 = vmatpush1.msra.mxu0 0.0
  %7301 = vmatprep.subr.mxu0 0.0
  %7302 = vmatpush1.msra.mxu0 0.0
  %7303 = vmatprep.subr.mxu0 0.0
  %7304 = vmatpush1.msra.mxu0 0.0
  %7305 = vmatprep.subr.mxu0 0.0
  %7306 = vmatpush1.msra.mxu0 0.0
  %7307 = vmatprep.subr.mxu0 0.0
  %7308 = vmatpush1.msra.mxu0 0.0
  %7309 = vmatprep.subr.mxu0 0.0
  %7310 = vmatpush1.msra.mxu0 0.0
  %7311 = vmatprep.subr.mxu0 0.0
  %7312 = vmatpush1.msra.mxu0 0.0
  %7313 = vmatprep.subr.mxu0 0.0
  %7314 = vmatpush1.msra.mxu0 0.0
  %7315 = vmatprep.subr.mxu0 0.0
  %7316 = vmatpush1.msra.mxu0 0.0
  %7317 = vmatprep.subr.mxu0 0.0
  %7318 = vmatpush1.msra.mxu0 0.0
  %7319 = vmatprep.subr.mxu0 0.0
  %7320 = vmatpush1.msra.mxu0 0.0
  %7321 = vmatprep.subr.mxu0 0.0
  %7322 = vmatpush1.msra.mxu0 0.0
  %7323 = vmatprep.subr.mxu0 0.0
  %7324 = vmatpush1.msra.mxu0 0.0
  %7325 = vmatprep.subr.mxu0 0.0
  %7326 = vmatpush1.msra.mxu0 0.0
  %7327 = vmatprep.subr.mxu0 0.0
  %7328 = vmatpush1.msra.mxu0 0.0
  %7329 = vmatprep.subr.mxu0 0.0
  %7330 = vmatpush1.msra.mxu0 0.0
  %7331 = vmatprep.subr.mxu0 0.0
  %7332 = vmatpush1.msra.mxu0 0.0
  %7333 = vmatprep.mubr.f32.mxu0 0.0
  %7334 = vmatmul.mubr.f32.gmra.mrb[0].mxu0 %v7267
  %v7335 = vpop.f32.mrb[0].mxu0
  %v7336 = vadd.f32 0.0, %v7335
  %v7337 = vpop.f32.mrb[0].mxu0
  %7338 = vdwg.mxu0
  %v7339 = vadd.f32 %v7257, %v7336
  %v7340 = vld [vmem:[%s2760] sm:$0xff]
  %v7341 = vld [vmem:[%s2760 + $0x8] sm:$0xff]
  %v7342 = vld [vmem:[%s2760 + $0x10] sm:$0xff]
  %v7343 = vld [vmem:[%s2760 + $0x18] sm:$0xff]
  %v7344 = vld [vmem:[%s2760 + $0x20] sm:$0xff]
  %v7345 = vld [vmem:[%s2760 + $0x28] sm:$0xff]
  %v7346 = vld [vmem:[%s2760 + $0x30] sm:$0xff]
  %v7347 = vld [vmem:[%s2760 + $0x38] sm:$0xff]
  %v7348 = vrot.slane %v6761, 7
  %v7349 = vsel %vm2187, %v7348, 0
  %7351 = vmatprep.subr.mxu0 0.0
  %7352 = vmatpush1.msra.mxu0 %v7340
  %7353 = vmatprep.subr.mxu0 0.0
  %7354 = vmatpush1.msra.mxu0 %v7341
  %7355 = vmatprep.subr.mxu0 0.0
  %7356 = vmatpush1.msra.mxu0 %v7342
  %7357 = vmatprep.subr.mxu0 0.0
  %7358 = vmatpush1.msra.mxu0 %v7343
  %7359 = vmatprep.subr.mxu0 0.0
  %7360 = vmatpush1.msra.mxu0 %v7344
  %7361 = vmatprep.subr.mxu0 0.0
  %7362 = vmatpush1.msra.mxu0 %v7345
  %7363 = vmatprep.subr.mxu0 0.0
  %7364 = vmatpush1.msra.mxu0 %v7346
  %7365 = vmatprep.subr.mxu0 0.0
  %7366 = vmatpush1.msra.mxu0 %v7347
  %7367 = vmatprep.subr.mxu0 0.0
  %7368 = vmatpush1.msra.mxu0 0.0
  %7369 = vmatprep.subr.mxu0 0.0
  %7370 = vmatpush1.msra.mxu0 0.0
  %7371 = vmatprep.subr.mxu0 0.0
  %7372 = vmatpush1.msra.mxu0 0.0
  %7373 = vmatprep.subr.mxu0 0.0
  %7374 = vmatpush1.msra.mxu0 0.0
  %7375 = vmatprep.subr.mxu0 0.0
  %7376 = vmatpush1.msra.mxu0 0.0
  %7377 = vmatprep.subr.mxu0 0.0
  %7378 = vmatpush1.msra.mxu0 0.0
  %7379 = vmatprep.subr.mxu0 0.0
  %7380 = vmatpush1.msra.mxu0 0.0
  %7381 = vmatprep.subr.mxu0 0.0
  %7382 = vmatpush1.msra.mxu0 0.0
  %7383 = vmatprep.subr.mxu0 0.0
  %7384 = vmatpush1.msra.mxu0 0.0
  %7385 = vmatprep.subr.mxu0 0.0
  %7386 = vmatpush1.msra.mxu0 0.0
  %7387 = vmatprep.subr.mxu0 0.0
  %7388 = vmatpush1.msra.mxu0 0.0
  %7389 = vmatprep.subr.mxu0 0.0
  %7390 = vmatpush1.msra.mxu0 0.0
  %7391 = vmatprep.subr.mxu0 0.0
  %7392 = vmatpush1.msra.mxu0 0.0
  %7393 = vmatprep.subr.mxu0 0.0
  %7394 = vmatpush1.msra.mxu0 0.0
  %7395 = vmatprep.subr.mxu0 0.0
  %7396 = vmatpush1.msra.mxu0 0.0
  %7397 = vmatprep.subr.mxu0 0.0
  %7398 = vmatpush1.msra.mxu0 0.0
  %7399 = vmatprep.subr.mxu0 0.0
  %7400 = vmatpush1.msra.mxu0 0.0
  %7401 = vmatprep.subr.mxu0 0.0
  %7402 = vmatpush1.msra.mxu0 0.0
  %7403 = vmatprep.subr.mxu0 0.0
  %7404 = vmatpush1.msra.mxu0 0.0
  %7405 = vmatprep.subr.mxu0 0.0
  %7406 = vmatpush1.msra.mxu0 0.0
  %7407 = vmatprep.subr.mxu0 0.0
  %7408 = vmatpush1.msra.mxu0 0.0
  %7409 = vmatprep.subr.mxu0 0.0
  %7410 = vmatpush1.msra.mxu0 0.0
  %7411 = vmatprep.subr.mxu0 0.0
  %7412 = vmatpush1.msra.mxu0 0.0
  %7413 = vmatprep.subr.mxu0 0.0
  %7414 = vmatpush1.msra.mxu0 0.0
  %7415 = vmatprep.mubr.f32.mxu0 0.0
  %7416 = vmatmul.mubr.f32.gmra.mrb[0].mxu0 %v7349
  %v7417 = vpop.f32.mrb[0].mxu0
  %v7418 = vadd.f32 0.0, %v7417
  %v7419 = vpop.f32.mrb[0].mxu0
  %7420 = vdwg.mxu0
  %v7421 = vadd.f32 %v7339, %v7418
  %v7422 = vld [vmem:[%s2843] sm:$0xff]
  %v7423 = vld [vmem:[%s2843 + $0x8] sm:$0xff]
  %v7424 = vld [vmem:[%s2843 + $0x10] sm:$0xff]
  %v7425 = vld [vmem:[%s2843 + $0x18] sm:$0xff]
  %v7426 = vld [vmem:[%s2843 + $0x20] sm:$0xff]
  %v7427 = vld [vmem:[%s2843 + $0x28] sm:$0xff]
  %v7428 = vld [vmem:[%s2843 + $0x30] sm:$0xff]
  %v7429 = vld [vmem:[%s2843 + $0x38] sm:$0xff]
  %v7431 = vsel %vm2187, %v6762, 0
  %7433 = vmatprep.subr.mxu0 0.0
  %7434 = vmatpush1.msra.mxu0 %v7422
  %7435 = vmatprep.subr.mxu0 0.0
  %7436 = vmatpush1.msra.mxu0 %v7423
  %7437 = vmatprep.subr.mxu0 0.0
  %7438 = vmatpush1.msra.mxu0 %v7424
  %7439 = vmatprep.subr.mxu0 0.0
  %7440 = vmatpush1.msra.mxu0 %v7425
  %7441 = vmatprep.subr.mxu0 0.0
  %7442 = vmatpush1.msra.mxu0 %v7426
  %7443 = vmatprep.subr.mxu0 0.0
  %7444 = vmatpush1.msra.mxu0 %v7427
  %7445 = vmatprep.subr.mxu0 0.0
  %7446 = vmatpush1.msra.mxu0 %v7428
  %7447 = vmatprep.subr.mxu0 0.0
  %7448 = vmatpush1.msra.mxu0 %v7429
  %7449 = vmatprep.subr.mxu0 0.0
  %7450 = vmatpush1.msra.mxu0 0.0
  %7451 = vmatprep.subr.mxu0 0.0
  %7452 = vmatpush1.msra.mxu0 0.0
  %7453 = vmatprep.subr.mxu0 0.0
  %7454 = vmatpush1.msra.mxu0 0.0
  %7455 = vmatprep.subr.mxu0 0.0
  %7456 = vmatpush1.msra.mxu0 0.0
  %7457 = vmatprep.subr.mxu0 0.0
  %7458 = vmatpush1.msra.mxu0 0.0
  %7459 = vmatprep.subr.mxu0 0.0
  %7460 = vmatpush1.msra.mxu0 0.0
  %7461 = vmatprep.subr.mxu0 0.0
  %7462 = vmatpush1.msra.mxu0 0.0
  %7463 = vmatprep.subr.mxu0 0.0
  %7464 = vmatpush1.msra.mxu0 0.0
  %7465 = vmatprep.subr.mxu0 0.0
  %7466 = vmatpush1.msra.mxu0 0.0
  %7467 = vmatprep.subr.mxu0 0.0
  %7468 = vmatpush1.msra.mxu0 0.0
  %7469 = vmatprep.subr.mxu0 0.0
  %7470 = vmatpush1.msra.mxu0 0.0
  %7471 = vmatprep.subr.mxu0 0.0
  %7472 = vmatpush1.msra.mxu0 0.0
  %7473 = vmatprep.subr.mxu0 0.0
  %7474 = vmatpush1.msra.mxu0 0.0
  %7475 = vmatprep.subr.mxu0 0.0
  %7476 = vmatpush1.msra.mxu0 0.0
  %7477 = vmatprep.subr.mxu0 0.0
  %7478 = vmatpush1.msra.mxu0 0.0
  %7479 = vmatprep.subr.mxu0 0.0
  %7480 = vmatpush1.msra.mxu0 0.0
  %7481 = vmatprep.subr.mxu0 0.0
  %7482 = vmatpush1.msra.mxu0 0.0
  %7483 = vmatprep.subr.mxu0 0.0
  %7484 = vmatpush1.msra.mxu0 0.0
  %7485 = vmatprep.subr.mxu0 0.0
  %7486 = vmatpush1.msra.mxu0 0.0
  %7487 = vmatprep.subr.mxu0 0.0
  %7488 = vmatpush1.msra.mxu0 0.0
  %7489 = vmatprep.subr.mxu0 0.0
  %7490 = vmatpush1.msra.mxu0 0.0
  %7491 = vmatprep.subr.mxu0 0.0
  %7492 = vmatpush1.msra.mxu0 0.0
  %7493 = vmatprep.subr.mxu0 0.0
  %7494 = vmatpush1.msra.mxu0 0.0
  %7495 = vmatprep.subr.mxu0 0.0
  %7496 = vmatpush1.msra.mxu0 0.0
  %7497 = vmatprep.mubr.f32.mxu0 0.0
  %7498 = vmatmul.mubr.f32.gmra.mrb[0].mxu0 %v7431
  %v7499 = vpop.f32.mrb[0].mxu0
  %v7500 = vadd.f32 0.0, %v7499
  %v7501 = vpop.f32.mrb[0].mxu0
  %7502 = vdwg.mxu0
  %v7503 = vadd.f32 %v7421, %v7500
  %v7504 = vld [vmem:[%s2926] sm:$0xff]
  %v7505 = vld [vmem:[%s2926 + $0x8] sm:$0xff]
  %v7506 = vld [vmem:[%s2926 + $0x10] sm:$0xff]
  %v7507 = vld [vmem:[%s2926 + $0x18] sm:$0xff]
  %v7508 = vld [vmem:[%s2926 + $0x20] sm:$0xff]
  %v7509 = vld [vmem:[%s2926 + $0x28] sm:$0xff]
  %v7510 = vld [vmem:[%s2926 + $0x30] sm:$0xff]
  %v7511 = vld [vmem:[%s2926 + $0x38] sm:$0xff]
  %v7512 = vrot.slane %v6762, 1
  %v7513 = vsel %vm2187, %v7512, 0
  %7515 = vmatprep.subr.mxu0 0.0
  %7516 = vmatpush1.msra.mxu0 %v7504
  %7517 = vmatprep.subr.mxu0 0.0
  %7518 = vmatpush1.msra.mxu0 %v7505
  %7519 = vmatprep.subr.mxu0 0.0
  %7520 = vmatpush1.msra.mxu0 %v7506
  %7521 = vmatprep.subr.mxu0 0.0
  %7522 = vmatpush1.msra.mxu0 %v7507
  %7523 = vmatprep.subr.mxu0 0.0
  %7524 = vmatpush1.msra.mxu0 %v7508
  %7525 = vmatprep.subr.mxu0 0.0
  %7526 = vmatpush1.msra.mxu0 %v7509
  %7527 = vmatprep.subr.mxu0 0.0
  %7528 = vmatpush1.msra.mxu0 %v7510
  %7529 = vmatprep.subr.mxu0 0.0
  %7530 = vmatpush1.msra.mxu0 %v7511
  %7531 = vmatprep.subr.mxu0 0.0
  %7532 = vmatpush1.msra.mxu0 0.0
  %7533 = vmatprep.subr.mxu0 0.0
  %7534 = vmatpush1.msra.mxu0 0.0
  %7535 = vmatprep.subr.mxu0 0.0
  %7536 = vmatpush1.msra.mxu0 0.0
  %7537 = vmatprep.subr.mxu0 0.0
  %7538 = vmatpush1.msra.mxu0 0.0
  %7539 = vmatprep.subr.mxu0 0.0
  %7540 = vmatpush1.msra.mxu0 0.0
  %7541 = vmatprep.subr.mxu0 0.0
  %7542 = vmatpush1.msra.mxu0 0.0
  %7543 = vmatprep.subr.mxu0 0.0
  %7544 = vmatpush1.msra.mxu0 0.0
  %7545 = vmatprep.subr.mxu0 0.0
  %7546 = vmatpush1.msra.mxu0 0.0
  %7547 = vmatprep.subr.mxu0 0.0
  %7548 = vmatpush1.msra.mxu0 0.0
  %7549 = vmatprep.subr.mxu0 0.0
  %7550 = vmatpush1.msra.mxu0 0.0
  %7551 = vmatprep.subr.mxu0 0.0
  %7552 = vmatpush1.msra.mxu0 0.0
  %7553 = vmatprep.subr.mxu0 0.0
  %7554 = vmatpush1.msra.mxu0 0.0
  %7555 = vmatprep.subr.mxu0 0.0
  %7556 = vmatpush1.msra.mxu0 0.0
  %7557 = vmatprep.subr.mxu0 0.0
  %7558 = vmatpush1.msra.mxu0 0.0
  %7559 = vmatprep.subr.mxu0 0.0
  %7560 = vmatpush1.msra.mxu0 0.0
  %7561 = vmatprep.subr.mxu0 0.0
  %7562 = vmatpush1.msra.mxu0 0.0
  %7563 = vmatprep.subr.mxu0 0.0
  %7564 = vmatpush1.msra.mxu0 0.0
  %7565 = vmatprep.subr.mxu0 0.0
  %7566 = vmatpush1.msra.mxu0 0.0
  %7567 = vmatprep.subr.mxu0 0.0
  %7568 = vmatpush1.msra.mxu0 0.0
  %7569 = vmatprep.subr.mxu0 0.0
  %7570 = vmatpush1.msra.mxu0 0.0
  %7571 = vmatprep.subr.mxu0 0.0
  %7572 = vmatpush1.msra.mxu0 0.0
  %7573 = vmatprep.subr.mxu0 0.0
  %7574 = vmatpush1.msra.mxu0 0.0
  %7575 = vmatprep.subr.mxu0 0.0
  %7576 = vmatpush1.msra.mxu0 0.0
  %7577 = vmatprep.subr.mxu0 0.0
  %7578 = vmatpush1.msra.mxu0 0.0
  %7579 = vmatprep.mubr.f32.mxu0 0.0
  %7580 = vmatmul.mubr.f32.gmra.mrb[0].mxu0 %v7513
  %v7581 = vpop.f32.mrb[0].mxu0
  %v7582 = vadd.f32 0.0, %v7581
  %v7583 = vpop.f32.mrb[0].mxu0
  %7584 = vdwg.mxu0
  %v7585 = vadd.f32 %v7503, %v7582
  %v7586 = vld [vmem:[%s3009] sm:$0xff]
  %v7587 = vld [vmem:[%s3009 + $0x8] sm:$0xff]
  %v7588 = vld [vmem:[%s3009 + $0x10] sm:$0xff]
  %v7589 = vld [vmem:[%s3009 + $0x18] sm:$0xff]
  %v7590 = vld [vmem:[%s3009 + $0x20] sm:$0xff]
  %v7591 = vld [vmem:[%s3009 + $0x28] sm:$0xff]
  %v7592 = vld [vmem:[%s3009 + $0x30] sm:$0xff]
  %v7593 = vld [vmem:[%s3009 + $0x38] sm:$0xff]
  %v7594 = vrot.slane %v6762, 2
  %v7595 = vsel %vm2187, %v7594, 0
  %7597 = vmatprep.subr.mxu0 0.0
  %7598 = vmatpush1.msra.mxu0 %v7586
  %7599 = vmatprep.subr.mxu0 0.0
  %7600 = vmatpush1.msra.mxu0 %v7587
  %7601 = vmatprep.subr.mxu0 0.0
  %7602 = vmatpush1.msra.mxu0 %v7588
  %7603 = vmatprep.subr.mxu0 0.0
  %7604 = vmatpush1.msra.mxu0 %v7589
  %7605 = vmatprep.subr.mxu0 0.0
  %7606 = vmatpush1.msra.mxu0 %v7590
  %7607 = vmatprep.subr.mxu0 0.0
  %7608 = vmatpush1.msra.mxu0 %v7591
  %7609 = vmatprep.subr.mxu0 0.0
  %7610 = vmatpush1.msra.mxu0 %v7592
  %7611 = vmatprep.subr.mxu0 0.0
  %7612 = vmatpush1.msra.mxu0 %v7593
  %7613 = vmatprep.subr.mxu0 0.0
  %7614 = vmatpush1.msra.mxu0 0.0
  %7615 = vmatprep.subr.mxu0 0.0
  %7616 = vmatpush1.msra.mxu0 0.0
  %7617 = vmatprep.subr.mxu0 0.0
  %7618 = vmatpush1.msra.mxu0 0.0
  %7619 = vmatprep.subr.mxu0 0.0
  %7620 = vmatpush1.msra.mxu0 0.0
  %7621 = vmatprep.subr.mxu0 0.0
  %7622 = vmatpush1.msra.mxu0 0.0
  %7623 = vmatprep.subr.mxu0 0.0
  %7624 = vmatpush1.msra.mxu0 0.0
  %7625 = vmatprep.subr.mxu0 0.0
  %7626 = vmatpush1.msra.mxu0 0.0
  %7627 = vmatprep.subr.mxu0 0.0
  %7628 = vmatpush1.msra.mxu0 0.0
  %7629 = vmatprep.subr.mxu0 0.0
  %7630 = vmatpush1.msra.mxu0 0.0
  %7631 = vmatprep.subr.mxu0 0.0
  %7632 = vmatpush1.msra.mxu0 0.0
  %7633 = vmatprep.subr.mxu0 0.0
  %7634 = vmatpush1.msra.mxu0 0.0
  %7635 = vmatprep.subr.mxu0 0.0
  %7636 = vmatpush1.msra.mxu0 0.0
  %7637 = vmatprep.subr.mxu0 0.0
  %7638 = vmatpush1.msra.mxu0 0.0
  %7639 = vmatprep.subr.mxu0 0.0
  %7640 = vmatpush1.msra.mxu0 0.0
  %7641 = vmatprep.subr.mxu0 0.0
  %7642 = vmatpush1.msra.mxu0 0.0
  %7643 = vmatprep.subr.mxu0 0.0
  %7644 = vmatpush1.msra.mxu0 0.0
  %7645 = vmatprep.subr.mxu0 0.0
  %7646 = vmatpush1.msra.mxu0 0.0
  %7647 = vmatprep.subr.mxu0 0.0
  %7648 = vmatpush1.msra.mxu0 0.0
  %7649 = vmatprep.subr.mxu0 0.0
  %7650 = vmatpush1.msra.mxu0 0.0
  %7651 = vmatprep.subr.mxu0 0.0
  %7652 = vmatpush1.msra.mxu0 0.0
  %7653 = vmatprep.subr.mxu0 0.0
  %7654 = vmatpush1.msra.mxu0 0.0
  %7655 = vmatprep.subr.mxu0 0.0
  %7656 = vmatpush1.msra.mxu0 0.0
  %7657 = vmatprep.subr.mxu0 0.0
  %7658 = vmatpush1.msra.mxu0 0.0
  %7659 = vmatprep.subr.mxu0 0.0
  %7660 = vmatpush1.msra.mxu0 0.0
  %7661 = vmatprep.mubr.f32.mxu0 0.0
  %7662 = vmatmul.mubr.f32.gmra.mrb[0].mxu0 %v7595
  %v7663 = vpop.f32.mrb[0].mxu0
  %v7664 = vadd.f32 0.0, %v7663
  %v7665 = vpop.f32.mrb[0].mxu0
  %7666 = vdwg.mxu0
  %v7667 = vadd.f32 %v7585, %v7664
  %v7668 = vld [vmem:[%s3092] sm:$0xff]
  %v7669 = vld [vmem:[%s3092 + $0x8] sm:$0xff]
  %v7670 = vld [vmem:[%s3092 + $0x10] sm:$0xff]
  %v7671 = vld [vmem:[%s3092 + $0x18] sm:$0xff]
  %v7672 = vld [vmem:[%s3092 + $0x20] sm:$0xff]
  %v7673 = vld [vmem:[%s3092 + $0x28] sm:$0xff]
  %v7674 = vld [vmem:[%s3092 + $0x30] sm:$0xff]
  %v7675 = vld [vmem:[%s3092 + $0x38] sm:$0xff]
  %v7676 = vrot.slane %v6762, 3
  %v7677 = vsel %vm2187, %v7676, 0
  %7679 = vmatprep.subr.mxu0 0.0
  %7680 = vmatpush1.msra.mxu0 %v7668
  %7681 = vmatprep.subr.mxu0 0.0
  %7682 = vmatpush1.msra.mxu0 %v7669
  %7683 = vmatprep.subr.mxu0 0.0
  %7684 = vmatpush1.msra.mxu0 %v7670
  %7685 = vmatprep.subr.mxu0 0.0
  %7686 = vmatpush1.msra.mxu0 %v7671
  %7687 = vmatprep.subr.mxu0 0.0
  %7688 = vmatpush1.msra.mxu0 %v7672
  %7689 = vmatprep.subr.mxu0 0.0
  %7690 = vmatpush1.msra.mxu0 %v7673
  %7691 = vmatprep.subr.mxu0 0.0
  %7692 = vmatpush1.msra.mxu0 %v7674
  %7693 = vmatprep.subr.mxu0 0.0
  %7694 = vmatpush1.msra.mxu0 %v7675
  %7695 = vmatprep.subr.mxu0 0.0
  %7696 = vmatpush1.msra.mxu0 0.0
  %7697 = vmatprep.subr.mxu0 0.0
  %7698 = vmatpush1.msra.mxu0 0.0
  %7699 = vmatprep.subr.mxu0 0.0
  %7700 = vmatpush1.msra.mxu0 0.0
  %7701 = vmatprep.subr.mxu0 0.0
  %7702 = vmatpush1.msra.mxu0 0.0
  %7703 = vmatprep.subr.mxu0 0.0
  %7704 = vmatpush1.msra.mxu0 0.0
  %7705 = vmatprep.subr.mxu0 0.0
  %7706 = vmatpush1.msra.mxu0 0.0
  %7707 = vmatprep.subr.mxu0 0.0
  %7708 = vmatpush1.msra.mxu0 0.0
  %7709 = vmatprep.subr.mxu0 0.0
  %7710 = vmatpush1.msra.mxu0 0.0
  %7711 = vmatprep.subr.mxu0 0.0
  %7712 = vmatpush1.msra.mxu0 0.0
  %7713 = vmatprep.subr.mxu0 0.0
  %7714 = vmatpush1.msra.mxu0 0.0
  %7715 = vmatprep.subr.mxu0 0.0
  %7716 = vmatpush1.msra.mxu0 0.0
  %7717 = vmatprep.subr.mxu0 0.0
  %7718 = vmatpush1.msra.mxu0 0.0
  %7719 = vmatprep.subr.mxu0 0.0
  %7720 = vmatpush1.msra.mxu0 0.0
  %7721 = vmatprep.subr.mxu0 0.0
  %7722 = vmatpush1.msra.mxu0 0.0
  %7723 = vmatprep.subr.mxu0 0.0
  %7724 = vmatpush1.msra.mxu0 0.0
  %7725 = vmatprep.subr.mxu0 0.0
  %7726 = vmatpush1.msra.mxu0 0.0
  %7727 = vmatprep.subr.mxu0 0.0
  %7728 = vmatpush1.msra.mxu0 0.0
  %7729 = vmatprep.subr.mxu0 0.0
  %7730 = vmatpush1.msra.mxu0 0.0
  %7731 = vmatprep.subr.mxu0 0.0
  %7732 = vmatpush1.msra.mxu0 0.0
  %7733 = vmatprep.subr.mxu0 0.0
  %7734 = vmatpush1.msra.mxu0 0.0
  %7735 = vmatprep.subr.mxu0 0.0
  %7736 = vmatpush1.msra.mxu0 0.0
  %7737 = vmatprep.subr.mxu0 0.0
  %7738 = vmatpush1.msra.mxu0 0.0
  %7739 = vmatprep.subr.mxu0 0.0
  %7740 = vmatpush1.msra.mxu0 0.0
  %7741 = vmatprep.subr.mxu0 0.0
  %7742 = vmatpush1.msra.mxu0 0.0
  %7743 = vmatprep.mubr.f32.mxu0 0.0
  %7744 = vmatmul.mubr.f32.gmra.mrb[0].mxu0 %v7677
  %v7745 = vpop.f32.mrb[0].mxu0
  %v7746 = vadd.f32 0.0, %v7745
  %v7747 = vpop.f32.mrb[0].mxu0
  %7748 = vdwg.mxu0
  %v7749 = vadd.f32 %v7667, %v7746
  %v7750 = vld [vmem:[%s3175] sm:$0xff]
  %v7751 = vld [vmem:[%s3175 + $0x8] sm:$0xff]
  %v7752 = vld [vmem:[%s3175 + $0x10] sm:$0xff]
  %v7753 = vld [vmem:[%s3175 + $0x18] sm:$0xff]
  %v7754 = vld [vmem:[%s3175 + $0x20] sm:$0xff]
  %v7755 = vld [vmem:[%s3175 + $0x28] sm:$0xff]
  %v7756 = vld [vmem:[%s3175 + $0x30] sm:$0xff]
  %v7757 = vld [vmem:[%s3175 + $0x38] sm:$0xff]
  %v7758 = vrot.slane %v6762, 4
  %v7759 = vsel %vm2187, %v7758, 0
  %7761 = vmatprep.subr.mxu0 0.0
  %7762 = vmatpush1.msra.mxu0 %v7750
  %7763 = vmatprep.subr.mxu0 0.0
  %7764 = vmatpush1.msra.mxu0 %v7751
  %7765 = vmatprep.subr.mxu0 0.0
  %7766 = vmatpush1.msra.mxu0 %v7752
  %7767 = vmatprep.subr.mxu0 0.0
  %7768 = vmatpush1.msra.mxu0 %v7753
  %7769 = vmatprep.subr.mxu0 0.0
  %7770 = vmatpush1.msra.mxu0 %v7754
  %7771 = vmatprep.subr.mxu0 0.0
  %7772 = vmatpush1.msra.mxu0 %v7755
  %7773 = vmatprep.subr.mxu0 0.0
  %7774 = vmatpush1.msra.mxu0 %v7756
  %7775 = vmatprep.subr.mxu0 0.0
  %7776 = vmatpush1.msra.mxu0 %v7757
  %7777 = vmatprep.subr.mxu0 0.0
  %7778 = vmatpush1.msra.mxu0 0.0
  %7779 = vmatprep.subr.mxu0 0.0
  %7780 = vmatpush1.msra.mxu0 0.0
  %7781 = vmatprep.subr.mxu0 0.0
  %7782 = vmatpush1.msra.mxu0 0.0
  %7783 = vmatprep.subr.mxu0 0.0
  %7784 = vmatpush1.msra.mxu0 0.0
  %7785 = vmatprep.subr.mxu0 0.0
  %7786 = vmatpush1.msra.mxu0 0.0
  %7787 = vmatprep.subr.mxu0 0.0
  %7788 = vmatpush1.msra.mxu0 0.0
  %7789 = vmatprep.subr.mxu0 0.0
  %7790 = vmatpush1.msra.mxu0 0.0
  %7791 = vmatprep.subr.mxu0 0.0
  %7792 = vmatpush1.msra.mxu0 0.0
  %7793 = vmatprep.subr.mxu0 0.0
  %7794 = vmatpush1.msra.mxu0 0.0
  %7795 = vmatprep.subr.mxu0 0.0
  %7796 = vmatpush1.msra.mxu0 0.0
  %7797 = vmatprep.subr.mxu0 0.0
  %7798 = vmatpush1.msra.mxu0 0.0
  %7799 = vmatprep.subr.mxu0 0.0
  %7800 = vmatpush1.msra.mxu0 0.0
  %7801 = vmatprep.subr.mxu0 0.0
  %7802 = vmatpush1.msra.mxu0 0.0
  %7803 = vmatprep.subr.mxu0 0.0
  %7804 = vmatpush1.msra.mxu0 0.0
  %7805 = vmatprep.subr.mxu0 0.0
  %7806 = vmatpush1.msra.mxu0 0.0
  %7807 = vmatprep.subr.mxu0 0.0
  %7808 = vmatpush1.msra.mxu0 0.0
  %7809 = vmatprep.subr.mxu0 0.0
  %7810 = vmatpush1.msra.mxu0 0.0
  %7811 = vmatprep.subr.mxu0 0.0
  %7812 = vmatpush1.msra.mxu0 0.0
  %7813 = vmatprep.subr.mxu0 0.0
  %7814 = vmatpush1.msra.mxu0 0.0
  %7815 = vmatprep.subr.mxu0 0.0
  %7816 = vmatpush1.msra.mxu0 0.0
  %7817 = vmatprep.subr.mxu0 0.0
  %7818 = vmatpush1.msra.mxu0 0.0
  %7819 = vmatprep.subr.mxu0 0.0
  %7820 = vmatpush1.msra.mxu0 0.0
  %7821 = vmatprep.subr.mxu0 0.0
  %7822 = vmatpush1.msra.mxu0 0.0
  %7823 = vmatprep.subr.mxu0 0.0
  %7824 = vmatpush1.msra.mxu0 0.0
  %7825 = vmatprep.mubr.f32.mxu0 0.0
  %7826 = vmatmul.mubr.f32.gmra.mrb[0].mxu0 %v7759
  %v7827 = vpop.f32.mrb[0].mxu0
  %v7828 = vadd.f32 0.0, %v7827
  %v7829 = vpop.f32.mrb[0].mxu0
  %7830 = vdwg.mxu0
  %v7831 = vadd.f32 %v7749, %v7828
  %v7832 = vld [vmem:[%s3258] sm:$0xff]
  %v7833 = vld [vmem:[%s3258 + $0x8] sm:$0xff]
  %v7834 = vld [vmem:[%s3258 + $0x10] sm:$0xff]
  %v7835 = vld [vmem:[%s3258 + $0x18] sm:$0xff]
  %v7836 = vld [vmem:[%s3258 + $0x20] sm:$0xff]
  %v7837 = vld [vmem:[%s3258 + $0x28] sm:$0xff]
  %v7838 = vld [vmem:[%s3258 + $0x30] sm:$0xff]
  %v7839 = vld [vmem:[%s3258 + $0x38] sm:$0xff]
  %v7840 = vrot.slane %v6762, 5
  %v7841 = vsel %vm2187, %v7840, 0
  %7843 = vmatprep.subr.mxu0 0.0
  %7844 = vmatpush1.msra.mxu0 %v7832
  %7845 = vmatprep.subr.mxu0 0.0
  %7846 = vmatpush1.msra.mxu0 %v7833
  %7847 = vmatprep.subr.mxu0 0.0
  %7848 = vmatpush1.msra.mxu0 %v7834
  %7849 = vmatprep.subr.mxu0 0.0
  %7850 = vmatpush1.msra.mxu0 %v7835
  %7851 = vmatprep.subr.mxu0 0.0
  %7852 = vmatpush1.msra.mxu0 %v7836
  %7853 = vmatprep.subr.mxu0 0.0
  %7854 = vmatpush1.msra.mxu0 %v7837
  %7855 = vmatprep.subr.mxu0 0.0
  %7856 = vmatpush1.msra.mxu0 %v7838
  %7857 = vmatprep.subr.mxu0 0.0
  %7858 = vmatpush1.msra.mxu0 %v7839
  %7859 = vmatprep.subr.mxu0 0.0
  %7860 = vmatpush1.msra.mxu0 0.0
  %7861 = vmatprep.subr.mxu0 0.0
  %7862 = vmatpush1.msra.mxu0 0.0
  %7863 = vmatprep.subr.mxu0 0.0
  %7864 = vmatpush1.msra.mxu0 0.0
  %7865 = vmatprep.subr.mxu0 0.0
  %7866 = vmatpush1.msra.mxu0 0.0
  %7867 = vmatprep.subr.mxu0 0.0
  %7868 = vmatpush1.msra.mxu0 0.0
  %7869 = vmatprep.subr.mxu0 0.0
  %7870 = vmatpush1.msra.mxu0 0.0
  %7871 = vmatprep.subr.mxu0 0.0
  %7872 = vmatpush1.msra.mxu0 0.0
  %7873 = vmatprep.subr.mxu0 0.0
  %7874 = vmatpush1.msra.mxu0 0.0
  %7875 = vmatprep.subr.mxu0 0.0
  %7876 = vmatpush1.msra.mxu0 0.0
  %7877 = vmatprep.subr.mxu0 0.0
  %7878 = vmatpush1.msra.mxu0 0.0
  %7879 = vmatprep.subr.mxu0 0.0
  %7880 = vmatpush1.msra.mxu0 0.0
  %7881 = vmatprep.subr.mxu0 0.0
  %7882 = vmatpush1.msra.mxu0 0.0
  %7883 = vmatprep.subr.mxu0 0.0
  %7884 = vmatpush1.msra.mxu0 0.0
  %7885 = vmatprep.subr.mxu0 0.0
  %7886 = vmatpush1.msra.mxu0 0.0
  %7887 = vmatprep.subr.mxu0 0.0
  %7888 = vmatpush1.msra.mxu0 0.0
  %7889 = vmatprep.subr.mxu0 0.0
  %7890 = vmatpush1.msra.mxu0 0.0
  %7891 = vmatprep.subr.mxu0 0.0
  %7892 = vmatpush1.msra.mxu0 0.0
  %7893 = vmatprep.subr.mxu0 0.0
  %7894 = vmatpush1.msra.mxu0 0.0
  %7895 = vmatprep.subr.mxu0 0.0
  %7896 = vmatpush1.msra.mxu0 0.0
  %7897 = vmatprep.subr.mxu0 0.0
  %7898 = vmatpush1.msra.mxu0 0.0
  %7899 = vmatprep.subr.mxu0 0.0
  %7900 = vmatpush1.msra.mxu0 0.0
  %7901 = vmatprep.subr.mxu0 0.0
  %7902 = vmatpush1.msra.mxu0 0.0
  %7903 = vmatprep.subr.mxu0 0.0
  %7904 = vmatpush1.msra.mxu0 0.0
  %7905 = vmatprep.subr.mxu0 0.0
  %7906 = vmatpush1.msra.mxu0 0.0
  %7907 = vmatprep.mubr.f32.mxu0 0.0
  %7908 = vmatmul.mubr.f32.gmra.mrb[0].mxu0 %v7841
  %v7909 = vpop.f32.mrb[0].mxu0
  %v7910 = vadd.f32 0.0, %v7909
  %v7911 = vpop.f32.mrb[0].mxu0
  %7912 = vdwg.mxu0
  %v7913 = vadd.f32 %v7831, %v7910
  %v7914 = vld [vmem:[%s3341] sm:$0xff]
  %v7915 = vld [vmem:[%s3341 + $0x8] sm:$0xff]
  %v7916 = vld [vmem:[%s3341 + $0x10] sm:$0xff]
  %v7917 = vld [vmem:[%s3341 + $0x18] sm:$0xff]
  %v7918 = vld [vmem:[%s3341 + $0x20] sm:$0xff]
  %v7919 = vld [vmem:[%s3341 + $0x28] sm:$0xff]
  %v7920 = vld [vmem:[%s3341 + $0x30] sm:$0xff]
  %v7921 = vld [vmem:[%s3341 + $0x38] sm:$0xff]
  %v7922 = vrot.slane %v6762, 6
  %v7923 = vsel %vm2187, %v7922, 0
  %7925 = vmatprep.subr.mxu0 0.0
  %7926 = vmatpush1.msra.mxu0 %v7914
  %7927 = vmatprep.subr.mxu0 0.0
  %7928 = vmatpush1.msra.mxu0 %v7915
  %7929 = vmatprep.subr.mxu0 0.0
  %7930 = vmatpush1.msra.mxu0 %v7916
  %7931 = vmatprep.subr.mxu0 0.0
  %7932 = vmatpush1.msra.mxu0 %v7917
  %7933 = vmatprep.subr.mxu0 0.0
  %7934 = vmatpush1.msra.mxu0 %v7918
  %7935 = vmatprep.subr.mxu0 0.0
  %7936 = vmatpush1.msra.mxu0 %v7919
  %7937 = vmatprep.subr.mxu0 0.0
  %7938 = vmatpush1.msra.mxu0 %v7920
  %7939 = vmatprep.subr.mxu0 0.0
  %7940 = vmatpush1.msra.mxu0 %v7921
  %7941 = vmatprep.subr.mxu0 0.0
  %7942 = vmatpush1.msra.mxu0 0.0
  %7943 = vmatprep.subr.mxu0 0.0
  %7944 = vmatpush1.msra.mxu0 0.0
  %7945 = vmatprep.subr.mxu0 0.0
  %7946 = vmatpush1.msra.mxu0 0.0
  %7947 = vmatprep.subr.mxu0 0.0
  %7948 = vmatpush1.msra.mxu0 0.0
  %7949 = vmatprep.subr.mxu0 0.0
  %7950 = vmatpush1.msra.mxu0 0.0
  %7951 = vmatprep.subr.mxu0 0.0
  %7952 = vmatpush1.msra.mxu0 0.0
  %7953 = vmatprep.subr.mxu0 0.0
  %7954 = vmatpush1.msra.mxu0 0.0
  %7955 = vmatprep.subr.mxu0 0.0
  %7956 = vmatpush1.msra.mxu0 0.0
  %7957 = vmatprep.subr.mxu0 0.0
  %7958 = vmatpush1.msra.mxu0 0.0
  %7959 = vmatprep.subr.mxu0 0.0
  %7960 = vmatpush1.msra.mxu0 0.0
  %7961 = vmatprep.subr.mxu0 0.0
  %7962 = vmatpush1.msra.mxu0 0.0
  %7963 = vmatprep.subr.mxu0 0.0
  %7964 = vmatpush1.msra.mxu0 0.0
  %7965 = vmatprep.subr.mxu0 0.0
  %7966 = vmatpush1.msra.mxu0 0.0
  %7967 = vmatprep.subr.mxu0 0.0
  %7968 = vmatpush1.msra.mxu0 0.0
  %7969 = vmatprep.subr.mxu0 0.0
  %7970 = vmatpush1.msra.mxu0 0.0
  %7971 = vmatprep.subr.mxu0 0.0
  %7972 = vmatpush1.msra.mxu0 0.0
  %7973 = vmatprep.subr.mxu0 0.0
  %7974 = vmatpush1.msra.mxu0 0.0
  %7975 = vmatprep.subr.mxu0 0.0
  %7976 = vmatpush1.msra.mxu0 0.0
  %7977 = vmatprep.subr.mxu0 0.0
  %7978 = vmatpush1.msra.mxu0 0.0
  %7979 = vmatprep.subr.mxu0 0.0
  %7980 = vmatpush1.msra.mxu0 0.0
  %7981 = vmatprep.subr.mxu0 0.0
  %7982 = vmatpush1.msra.mxu0 0.0
  %7983 = vmatprep.subr.mxu0 0.0
  %7984 = vmatpush1.msra.mxu0 0.0
  %7985 = vmatprep.subr.mxu0 0.0
  %7986 = vmatpush1.msra.mxu0 0.0
  %7987 = vmatprep.subr.mxu0 0.0
  %7988 = vmatpush1.msra.mxu0 0.0
  %7989 = vmatprep.mubr.f32.mxu0 0.0
  %7990 = vmatmul.mubr.f32.gmra.mrb[0].mxu0 %v7923
  %v7991 = vpop.f32.mrb[0].mxu0
  %v7992 = vadd.f32 0.0, %v7991
  %v7993 = vpop.f32.mrb[0].mxu0
  %7994 = vdwg.mxu0
  %v7995 = vadd.f32 %v7913, %v7992
  %v7996 = vld [vmem:[%s3424] sm:$0xff]
  %v7997 = vld [vmem:[%s3424 + $0x8] sm:$0xff]
  %v7998 = vld [vmem:[%s3424 + $0x10] sm:$0xff]
  %v7999 = vld [vmem:[%s3424 + $0x18] sm:$0xff]
  %v8000 = vld [vmem:[%s3424 + $0x20] sm:$0xff]
  %v8001 = vld [vmem:[%s3424 + $0x28] sm:$0xff]
  %v8002 = vld [vmem:[%s3424 + $0x30] sm:$0xff]
  %v8003 = vld [vmem:[%s3424 + $0x38] sm:$0xff]
  %v8004 = vrot.slane %v6762, 7
  %v8005 = vsel %vm2187, %v8004, 0
  %8007 = vmatprep.subr.mxu0 0.0
  %8008 = vmatpush1.msra.mxu0 %v7996
  %8009 = vmatprep.subr.mxu0 0.0
  %8010 = vmatpush1.msra.mxu0 %v7997
  %8011 = vmatprep.subr.mxu0 0.0
  %8012 = vmatpush1.msra.mxu0 %v7998
  %8013 = vmatprep.subr.mxu0 0.0
  %8014 = vmatpush1.msra.mxu0 %v7999
  %8015 = vmatprep.subr.mxu0 0.0
  %8016 = vmatpush1.msra.mxu0 %v8000
  %8017 = vmatprep.subr.mxu0 0.0
  %8018 = vmatpush1.msra.mxu0 %v8001
  %8019 = vmatprep.subr.mxu0 0.0
  %8020 = vmatpush1.msra.mxu0 %v8002
  %8021 = vmatprep.subr.mxu0 0.0
  %8022 = vmatpush1.msra.mxu0 %v8003
  %8023 = vmatprep.subr.mxu0 0.0
  %8024 = vmatpush1.msra.mxu0 0.0
  %8025 = vmatprep.subr.mxu0 0.0
  %8026 = vmatpush1.msra.mxu0 0.0
  %8027 = vmatprep.subr.mxu0 0.0
  %8028 = vmatpush1.msra.mxu0 0.0
  %8029 = vmatprep.subr.mxu0 0.0
  %8030 = vmatpush1.msra.mxu0 0.0
  %8031 = vmatprep.subr.mxu0 0.0
  %8032 = vmatpush1.msra.mxu0 0.0
  %8033 = vmatprep.subr.mxu0 0.0
  %8034 = vmatpush1.msra.mxu0 0.0
  %8035 = vmatprep.subr.mxu0 0.0
  %8036 = vmatpush1.msra.mxu0 0.0
  %8037 = vmatprep.subr.mxu0 0.0
  %8038 = vmatpush1.msra.mxu0 0.0
  %8039 = vmatprep.subr.mxu0 0.0
  %8040 = vmatpush1.msra.mxu0 0.0
  %8041 = vmatprep.subr.mxu0 0.0
  %8042 = vmatpush1.msra.mxu0 0.0
  %8043 = vmatprep.subr.mxu0 0.0
  %8044 = vmatpush1.msra.mxu0 0.0
  %8045 = vmatprep.subr.mxu0 0.0
  %8046 = vmatpush1.msra.mxu0 0.0
  %8047 = vmatprep.subr.mxu0 0.0
  %8048 = vmatpush1.msra.mxu0 0.0
  %8049 = vmatprep.subr.mxu0 0.0
  %8050 = vmatpush1.msra.mxu0 0.0
  %8051 = vmatprep.subr.mxu0 0.0
  %8052 = vmatpush1.msra.mxu0 0.0
  %8053 = vmatprep.subr.mxu0 0.0
  %8054 = vmatpush1.msra.mxu0 0.0
  %8055 = vmatprep.subr.mxu0 0.0
  %8056 = vmatpush1.msra.mxu0 0.0
  %8057 = vmatprep.subr.mxu0 0.0
  %8058 = vmatpush1.msra.mxu0 0.0
  %8059 = vmatprep.subr.mxu0 0.0
  %8060 = vmatpush1.msra.mxu0 0.0
  %8061 = vmatprep.subr.mxu0 0.0
  %8062 = vmatpush1.msra.mxu0 0.0
  %8063 = vmatprep.subr.mxu0 0.0
  %8064 = vmatpush1.msra.mxu0 0.0
  %8065 = vmatprep.subr.mxu0 0.0
  %8066 = vmatpush1.msra.mxu0 0.0
  %8067 = vmatprep.subr.mxu0 0.0
  %8068 = vmatpush1.msra.mxu0 0.0
  %8069 = vmatprep.subr.mxu0 0.0
  %8070 = vmatpush1.msra.mxu0 0.0
  %8071 = vmatprep.mubr.f32.mxu0 0.0
  %8072 = vmatmul.mubr.f32.gmra.mrb[0].mxu0 %v8005
  %v8073 = vpop.f32.mrb[0].mxu0
  %v8074 = vadd.f32 0.0, %v8073
  %v8075 = vpop.f32.mrb[0].mxu0
  %8076 = vdwg.mxu0
  %v8077 = vadd.f32 %v7995, %v8074
  %v8078 = vld [vmem:[%s3507] sm:$0xff]
  %v8079 = vld [vmem:[%s3507 + $0x8] sm:$0xff]
  %v8080 = vld [vmem:[%s3507 + $0x10] sm:$0xff]
  %v8081 = vld [vmem:[%s3507 + $0x18] sm:$0xff]
  %v8082 = vld [vmem:[%s3507 + $0x20] sm:$0xff]
  %v8083 = vld [vmem:[%s3507 + $0x28] sm:$0xff]
  %v8084 = vld [vmem:[%s3507 + $0x30] sm:$0xff]
  %v8085 = vld [vmem:[%s3507 + $0x38] sm:$0xff]
  %v8087 = vsel %vm2187, %v6763, 0
  %8089 = vmatprep.subr.mxu0 0.0
  %8090 = vmatpush1.msra.mxu0 %v8078
  %8091 = vmatprep.subr.mxu0 0.0
  %8092 = vmatpush1.msra.mxu0 %v8079
  %8093 = vmatprep.subr.mxu0 0.0
  %8094 = vmatpush1.msra.mxu0 %v8080
  %8095 = vmatprep.subr.mxu0 0.0
  %8096 = vmatpush1.msra.mxu0 %v8081
  %8097 = vmatprep.subr.mxu0 0.0
  %8098 = vmatpush1.msra.mxu0 %v8082
  %8099 = vmatprep.subr.mxu0 0.0
  %8100 = vmatpush1.msra.mxu0 %v8083
  %8101 = vmatprep.subr.mxu0 0.0
  %8102 = vmatpush1.msra.mxu0 %v8084
  %8103 = vmatprep.subr.mxu0 0.0
  %8104 = vmatpush1.msra.mxu0 %v8085
  %8105 = vmatprep.subr.mxu0 0.0
  %8106 = vmatpush1.msra.mxu0 0.0
  %8107 = vmatprep.subr.mxu0 0.0
  %8108 = vmatpush1.msra.mxu0 0.0
  %8109 = vmatprep.subr.mxu0 0.0
  %8110 = vmatpush1.msra.mxu0 0.0
  %8111 = vmatprep.subr.mxu0 0.0
  %8112 = vmatpush1.msra.mxu0 0.0
  %8113 = vmatprep.subr.mxu0 0.0
  %8114 = vmatpush1.msra.mxu0 0.0
  %8115 = vmatprep.subr.mxu0 0.0
  %8116 = vmatpush1.msra.mxu0 0.0
  %8117 = vmatprep.subr.mxu0 0.0
  %8118 = vmatpush1.msra.mxu0 0.0
  %8119 = vmatprep.subr.mxu0 0.0
  %8120 = vmatpush1.msra.mxu0 0.0
  %8121 = vmatprep.subr.mxu0 0.0
  %8122 = vmatpush1.msra.mxu0 0.0
  %8123 = vmatprep.subr.mxu0 0.0
  %8124 = vmatpush1.msra.mxu0 0.0
  %8125 = vmatprep.subr.mxu0 0.0
  %8126 = vmatpush1.msra.mxu0 0.0
  %8127 = vmatprep.subr.mxu0 0.0
  %8128 = vmatpush1.msra.mxu0 0.0
  %8129 = vmatprep.subr.mxu0 0.0
  %8130 = vmatpush1.msra.mxu0 0.0
  %8131 = vmatprep.subr.mxu0 0.0
  %8132 = vmatpush1.msra.mxu0 0.0
  %8133 = vmatprep.subr.mxu0 0.0
  %8134 = vmatpush1.msra.mxu0 0.0
  %8135 = vmatprep.subr.mxu0 0.0
  %8136 = vmatpush1.msra.mxu0 0.0
  %8137 = vmatprep.subr.mxu0 0.0
  %8138 = vmatpush1.msra.mxu0 0.0
  %8139 = vmatprep.subr.mxu0 0.0
  %8140 = vmatpush1.msra.mxu0 0.0
  %8141 = vmatprep.subr.mxu0 0.0
  %8142 = vmatpush1.msra.mxu0 0.0
  %8143 = vmatprep.subr.mxu0 0.0
  %8144 = vmatpush1.msra.mxu0 0.0
  %8145 = vmatprep.subr.mxu0 0.0
  %8146 = vmatpush1.msra.mxu0 0.0
  %8147 = vmatprep.subr.mxu0 0.0
  %8148 = vmatpush1.msra.mxu0 0.0
  %8149 = vmatprep.subr.mxu0 0.0
  %8150 = vmatpush1.msra.mxu0 0.0
  %8151 = vmatprep.subr.mxu0 0.0
  %8152 = vmatpush1.msra.mxu0 0.0
  %8153 = vmatprep.mubr.f32.mxu0 0.0
  %8154 = vmatmul.mubr.f32.gmra.mrb[0].mxu0 %v8087
  %v8155 = vpop.f32.mrb[0].mxu0
  %v8156 = vadd.f32 0.0, %v8155
  %v8157 = vpop.f32.mrb[0].mxu0
  %8158 = vdwg.mxu0
  %v8159 = vadd.f32 %v8077, %v8156
  %v8160 = vld [vmem:[%s3590] sm:$0xff]
  %v8161 = vld [vmem:[%s3590 + $0x8] sm:$0xff]
  %v8162 = vld [vmem:[%s3590 + $0x10] sm:$0xff]
  %v8163 = vld [vmem:[%s3590 + $0x18] sm:$0xff]
  %v8164 = vld [vmem:[%s3590 + $0x20] sm:$0xff]
  %v8165 = vld [vmem:[%s3590 + $0x28] sm:$0xff]
  %v8166 = vld [vmem:[%s3590 + $0x30] sm:$0xff]
  %v8167 = vld [vmem:[%s3590 + $0x38] sm:$0xff]
  %v8168 = vrot.slane %v6763, 1
  %v8169 = vsel %vm2187, %v8168, 0
  %8171 = vmatprep.subr.mxu0 0.0
  %8172 = vmatpush1.msra.mxu0 %v8160
  %8173 = vmatprep.subr.mxu0 0.0
  %8174 = vmatpush1.msra.mxu0 %v8161
  %8175 = vmatprep.subr.mxu0 0.0
  %8176 = vmatpush1.msra.mxu0 %v8162
  %8177 = vmatprep.subr.mxu0 0.0
  %8178 = vmatpush1.msra.mxu0 %v8163
  %8179 = vmatprep.subr.mxu0 0.0
  %8180 = vmatpush1.msra.mxu0 %v8164
  %8181 = vmatprep.subr.mxu0 0.0
  %8182 = vmatpush1.msra.mxu0 %v8165
  %8183 = vmatprep.subr.mxu0 0.0
  %8184 = vmatpush1.msra.mxu0 %v8166
  %8185 = vmatprep.subr.mxu0 0.0
  %8186 = vmatpush1.msra.mxu0 %v8167
  %8187 = vmatprep.subr.mxu0 0.0
  %8188 = vmatpush1.msra.mxu0 0.0
  %8189 = vmatprep.subr.mxu0 0.0
  %8190 = vmatpush1.msra.mxu0 0.0
  %8191 = vmatprep.subr.mxu0 0.0
  %8192 = vmatpush1.msra.mxu0 0.0
  %8193 = vmatprep.subr.mxu0 0.0
  %8194 = vmatpush1.msra.mxu0 0.0
  %8195 = vmatprep.subr.mxu0 0.0
  %8196 = vmatpush1.msra.mxu0 0.0
  %8197 = vmatprep.subr.mxu0 0.0
  %8198 = vmatpush1.msra.mxu0 0.0
  %8199 = vmatprep.subr.mxu0 0.0
  %8200 = vmatpush1.msra.mxu0 0.0
  %8201 = vmatprep.subr.mxu0 0.0
  %8202 = vmatpush1.msra.mxu0 0.0
  %8203 = vmatprep.subr.mxu0 0.0
  %8204 = vmatpush1.msra.mxu0 0.0
  %8205 = vmatprep.subr.mxu0 0.0
  %8206 = vmatpush1.msra.mxu0 0.0
  %8207 = vmatprep.subr.mxu0 0.0
  %8208 = vmatpush1.msra.mxu0 0.0
  %8209 = vmatprep.subr.mxu0 0.0
  %8210 = vmatpush1.msra.mxu0 0.0
  %8211 = vmatprep.subr.mxu0 0.0
  %8212 = vmatpush1.msra.mxu0 0.0
  %8213 = vmatprep.subr.mxu0 0.0
  %8214 = vmatpush1.msra.mxu0 0.0
  %8215 = vmatprep.subr.mxu0 0.0
  %8216 = vmatpush1.msra.mxu0 0.0
  %8217 = vmatprep.subr.mxu0 0.0
  %8218 = vmatpush1.msra.mxu0 0.0
  %8219 = vmatprep.subr.mxu0 0.0
  %8220 = vmatpush1.msra.mxu0 0.0
  %8221 = vmatprep.subr.mxu0 0.0
  %8222 = vmatpush1.msra.mxu0 0.0
  %8223 = vmatprep.subr.mxu0 0.0
  %8224 = vmatpush1.msra.mxu0 0.0
  %8225 = vmatprep.subr.mxu0 0.0
  %8226 = vmatpush1.msra.mxu0 0.0
  %8227 = vmatprep.subr.mxu0 0.0
  %8228 = vmatpush1.msra.mxu0 0.0
  %8229 = vmatprep.subr.mxu0 0.0
  %8230 = vmatpush1.msra.mxu0 0.0
  %8231 = vmatprep.subr.mxu0 0.0
  %8232 = vmatpush1.msra.mxu0 0.0
  %8233 = vmatprep.subr.mxu0 0.0
  %8234 = vmatpush1.msra.mxu0 0.0
  %8235 = vmatprep.mubr.f32.mxu0 0.0
  %8236 = vmatmul.mubr.f32.gmra.mrb[0].mxu0 %v8169
  %v8237 = vpop.f32.mrb[0].mxu0
  %v8238 = vadd.f32 0.0, %v8237
  %v8239 = vpop.f32.mrb[0].mxu0
  %8240 = vdwg.mxu0
  %v8241 = vadd.f32 %v8159, %v8238
  %v8242 = vld [vmem:[%s3673] sm:$0xff]
  %v8243 = vld [vmem:[%s3673 + $0x8] sm:$0xff]
  %v8244 = vld [vmem:[%s3673 + $0x10] sm:$0xff]
  %v8245 = vld [vmem:[%s3673 + $0x18] sm:$0xff]
  %v8246 = vld [vmem:[%s3673 + $0x20] sm:$0xff]
  %v8247 = vld [vmem:[%s3673 + $0x28] sm:$0xff]
  %v8248 = vld [vmem:[%s3673 + $0x30] sm:$0xff]
  %v8249 = vld [vmem:[%s3673 + $0x38] sm:$0xff]
  %v8250 = vrot.slane %v6763, 2
  %v8251 = vsel %vm2187, %v8250, 0
  %8253 = vmatprep.subr.mxu0 0.0
  %8254 = vmatpush1.msra.mxu0 %v8242
  %8255 = vmatprep.subr.mxu0 0.0
  %8256 = vmatpush1.msra.mxu0 %v8243
  %8257 = vmatprep.subr.mxu0 0.0
  %8258 = vmatpush1.msra.mxu0 %v8244
  %8259 = vmatprep.subr.mxu0 0.0
  %8260 = vmatpush1.msra.mxu0 %v8245
  %8261 = vmatprep.subr.mxu0 0.0
  %8262 = vmatpush1.msra.mxu0 %v8246
  %8263 = vmatprep.subr.mxu0 0.0
  %8264 = vmatpush1.msra.mxu0 %v8247
  %8265 = vmatprep.subr.mxu0 0.0
  %8266 = vmatpush1.msra.mxu0 %v8248
  %8267 = vmatprep.subr.mxu0 0.0
  %8268 = vmatpush1.msra.mxu0 %v8249
  %8269 = vmatprep.subr.mxu0 0.0
  %8270 = vmatpush1.msra.mxu0 0.0
  %8271 = vmatprep.subr.mxu0 0.0
  %8272 = vmatpush1.msra.mxu0 0.0
  %8273 = vmatprep.subr.mxu0 0.0
  %8274 = vmatpush1.msra.mxu0 0.0
  %8275 = vmatprep.subr.mxu0 0.0
  %8276 = vmatpush1.msra.mxu0 0.0
  %8277 = vmatprep.subr.mxu0 0.0
  %8278 = vmatpush1.msra.mxu0 0.0
  %8279 = vmatprep.subr.mxu0 0.0
  %8280 = vmatpush1.msra.mxu0 0.0
  %8281 = vmatprep.subr.mxu0 0.0
  %8282 = vmatpush1.msra.mxu0 0.0
  %8283 = vmatprep.subr.mxu0 0.0
  %8284 = vmatpush1.msra.mxu0 0.0
  %8285 = vmatprep.subr.mxu0 0.0
  %8286 = vmatpush1.msra.mxu0 0.0
  %8287 = vmatprep.subr.mxu0 0.0
  %8288 = vmatpush1.msra.mxu0 0.0
  %8289 = vmatprep.subr.mxu0 0.0
  %8290 = vmatpush1.msra.mxu0 0.0
  %8291 = vmatprep.subr.mxu0 0.0
  %8292 = vmatpush1.msra.mxu0 0.0
  %8293 = vmatprep.subr.mxu0 0.0
  %8294 = vmatpush1.msra.mxu0 0.0
  %8295 = vmatprep.subr.mxu0 0.0
  %8296 = vmatpush1.msra.mxu0 0.0
  %8297 = vmatprep.subr.mxu0 0.0
  %8298 = vmatpush1.msra.mxu0 0.0
  %8299 = vmatprep.subr.mxu0 0.0
  %8300 = vmatpush1.msra.mxu0 0.0
  %8301 = vmatprep.subr.mxu0 0.0
  %8302 = vmatpush1.msra.mxu0 0.0
  %8303 = vmatprep.subr.mxu0 0.0
  %8304 = vmatpush1.msra.mxu0 0.0
  %8305 = vmatprep.subr.mxu0 0.0
  %8306 = vmatpush1.msra.mxu0 0.0
  %8307 = vmatprep.subr.mxu0 0.0
  %8308 = vmatpush1.msra.mxu0 0.0
  %8309 = vmatprep.subr.mxu0 0.0
  %8310 = vmatpush1.msra.mxu0 0.0
  %8311 = vmatprep.subr.mxu0 0.0
  %8312 = vmatpush1.msra.mxu0 0.0
  %8313 = vmatprep.subr.mxu0 0.0
  %8314 = vmatpush1.msra.mxu0 0.0
  %8315 = vmatprep.subr.mxu0 0.0
  %8316 = vmatpush1.msra.mxu0 0.0
  %8317 = vmatprep.mubr.f32.mxu0 0.0
  %8318 = vmatmul.mubr.f32.gmra.mrb[0].mxu0 %v8251
  %v8319 = vpop.f32.mrb[0].mxu0
  %v8320 = vadd.f32 0.0, %v8319
  %v8321 = vpop.f32.mrb[0].mxu0
  %8322 = vdwg.mxu0
  %v8323 = vadd.f32 %v8241, %v8320
  %v8324 = vld [vmem:[%s3756] sm:$0xff]
  %v8325 = vld [vmem:[%s3756 + $0x8] sm:$0xff]
  %v8326 = vld [vmem:[%s3756 + $0x10] sm:$0xff]
  %v8327 = vld [vmem:[%s3756 + $0x18] sm:$0xff]
  %v8328 = vld [vmem:[%s3756 + $0x20] sm:$0xff]
  %v8329 = vld [vmem:[%s3756 + $0x28] sm:$0xff]
  %v8330 = vld [vmem:[%s3756 + $0x30] sm:$0xff]
  %v8331 = vld [vmem:[%s3756 + $0x38] sm:$0xff]
  %v8332 = vrot.slane %v6763, 3
  %v8333 = vsel %vm2187, %v8332, 0
  %8335 = vmatprep.subr.mxu0 0.0
  %8336 = vmatpush1.msra.mxu0 %v8324
  %8337 = vmatprep.subr.mxu0 0.0
  %8338 = vmatpush1.msra.mxu0 %v8325
  %8339 = vmatprep.subr.mxu0 0.0
  %8340 = vmatpush1.msra.mxu0 %v8326
  %8341 = vmatprep.subr.mxu0 0.0
  %8342 = vmatpush1.msra.mxu0 %v8327
  %8343 = vmatprep.subr.mxu0 0.0
  %8344 = vmatpush1.msra.mxu0 %v8328
  %8345 = vmatprep.subr.mxu0 0.0
  %8346 = vmatpush1.msra.mxu0 %v8329
  %8347 = vmatprep.subr.mxu0 0.0
  %8348 = vmatpush1.msra.mxu0 %v8330
  %8349 = vmatprep.subr.mxu0 0.0
  %8350 = vmatpush1.msra.mxu0 %v8331
  %8351 = vmatprep.subr.mxu0 0.0
  %8352 = vmatpush1.msra.mxu0 0.0
  %8353 = vmatprep.subr.mxu0 0.0
  %8354 = vmatpush1.msra.mxu0 0.0
  %8355 = vmatprep.subr.mxu0 0.0
  %8356 = vmatpush1.msra.mxu0 0.0
  %8357 = vmatprep.subr.mxu0 0.0
  %8358 = vmatpush1.msra.mxu0 0.0
  %8359 = vmatprep.subr.mxu0 0.0
  %8360 = vmatpush1.msra.mxu0 0.0
  %8361 = vmatprep.subr.mxu0 0.0
  %8362 = vmatpush1.msra.mxu0 0.0
  %8363 = vmatprep.subr.mxu0 0.0
  %8364 = vmatpush1.msra.mxu0 0.0
  %8365 = vmatprep.subr.mxu0 0.0
  %8366 = vmatpush1.msra.mxu0 0.0
  %8367 = vmatprep.subr.mxu0 0.0
  %8368 = vmatpush1.msra.mxu0 0.0
  %8369 = vmatprep.subr.mxu0 0.0
  %8370 = vmatpush1.msra.mxu0 0.0
  %8371 = vmatprep.subr.mxu0 0.0
  %8372 = vmatpush1.msra.mxu0 0.0
  %8373 = vmatprep.subr.mxu0 0.0
  %8374 = vmatpush1.msra.mxu0 0.0
  %8375 = vmatprep.subr.mxu0 0.0
  %8376 = vmatpush1.msra.mxu0 0.0
  %8377 = vmatprep.subr.mxu0 0.0
  %8378 = vmatpush1.msra.mxu0 0.0
  %8379 = vmatprep.subr.mxu0 0.0
  %8380 = vmatpush1.msra.mxu0 0.0
  %8381 = vmatprep.subr.mxu0 0.0
  %8382 = vmatpush1.msra.mxu0 0.0
  %8383 = vmatprep.subr.mxu0 0.0
  %8384 = vmatpush1.msra.mxu0 0.0
  %8385 = vmatprep.subr.mxu0 0.0
  %8386 = vmatpush1.msra.mxu0 0.0
  %8387 = vmatprep.subr.mxu0 0.0
  %8388 = vmatpush1.msra.mxu0 0.0
  %8389 = vmatprep.subr.mxu0 0.0
  %8390 = vmatpush1.msra.mxu0 0.0
  %8391 = vmatprep.subr.mxu0 0.0
  %8392 = vmatpush1.msra.mxu0 0.0
  %8393 = vmatprep.subr.mxu0 0.0
  %8394 = vmatpush1.msra.mxu0 0.0
  %8395 = vmatprep.subr.mxu0 0.0
  %8396 = vmatpush1.msra.mxu0 0.0
  %8397 = vmatprep.subr.mxu0 0.0
  %8398 = vmatpush1.msra.mxu0 0.0
  %8399 = vmatprep.mubr.f32.mxu0 0.0
  %8400 = vmatmul.mubr.f32.gmra.mrb[0].mxu0 %v8333
  %v8401 = vpop.f32.mrb[0].mxu0
  %v8402 = vadd.f32 0.0, %v8401
  %v8403 = vpop.f32.mrb[0].mxu0
  %8404 = vdwg.mxu0
  %v8405 = vadd.f32 %v8323, %v8402
  %v8406 = vld [vmem:[%s3839] sm:$0xff]
  %v8407 = vld [vmem:[%s3839 + $0x8] sm:$0xff]
  %v8408 = vld [vmem:[%s3839 + $0x10] sm:$0xff]
  %v8409 = vld [vmem:[%s3839 + $0x18] sm:$0xff]
  %v8410 = vld [vmem:[%s3839 + $0x20] sm:$0xff]
  %v8411 = vld [vmem:[%s3839 + $0x28] sm:$0xff]
  %v8412 = vld [vmem:[%s3839 + $0x30] sm:$0xff]
  %v8413 = vld [vmem:[%s3839 + $0x38] sm:$0xff]
  %v8414 = vrot.slane %v6763, 4
  %v8415 = vsel %vm2187, %v8414, 0
  %8417 = vmatprep.subr.mxu0 0.0
  %8418 = vmatpush1.msra.mxu0 %v8406
  %8419 = vmatprep.subr.mxu0 0.0
  %8420 = vmatpush1.msra.mxu0 %v8407
  %8421 = vmatprep.subr.mxu0 0.0
  %8422 = vmatpush1.msra.mxu0 %v8408
  %8423 = vmatprep.subr.mxu0 0.0
  %8424 = vmatpush1.msra.mxu0 %v8409
  %8425 = vmatprep.subr.mxu0 0.0
  %8426 = vmatpush1.msra.mxu0 %v8410
  %8427 = vmatprep.subr.mxu0 0.0
  %8428 = vmatpush1.msra.mxu0 %v8411
  %8429 = vmatprep.subr.mxu0 0.0
  %8430 = vmatpush1.msra.mxu0 %v8412
  %8431 = vmatprep.subr.mxu0 0.0
  %8432 = vmatpush1.msra.mxu0 %v8413
  %8433 = vmatprep.subr.mxu0 0.0
  %8434 = vmatpush1.msra.mxu0 0.0
  %8435 = vmatprep.subr.mxu0 0.0
  %8436 = vmatpush1.msra.mxu0 0.0
  %8437 = vmatprep.subr.mxu0 0.0
  %8438 = vmatpush1.msra.mxu0 0.0
  %8439 = vmatprep.subr.mxu0 0.0
  %8440 = vmatpush1.msra.mxu0 0.0
  %8441 = vmatprep.subr.mxu0 0.0
  %8442 = vmatpush1.msra.mxu0 0.0
  %8443 = vmatprep.subr.mxu0 0.0
  %8444 = vmatpush1.msra.mxu0 0.0
  %8445 = vmatprep.subr.mxu0 0.0
  %8446 = vmatpush1.msra.mxu0 0.0
  %8447 = vmatprep.subr.mxu0 0.0
  %8448 = vmatpush1.msra.mxu0 0.0
  %8449 = vmatprep.subr.mxu0 0.0
  %8450 = vmatpush1.msra.mxu0 0.0
  %8451 = vmatprep.subr.mxu0 0.0
  %8452 = vmatpush1.msra.mxu0 0.0
  %8453 = vmatprep.subr.mxu0 0.0
  %8454 = vmatpush1.msra.mxu0 0.0
  %8455 = vmatprep.subr.mxu0 0.0
  %8456 = vmatpush1.msra.mxu0 0.0
  %8457 = vmatprep.subr.mxu0 0.0
  %8458 = vmatpush1.msra.mxu0 0.0
  %8459 = vmatprep.subr.mxu0 0.0
  %8460 = vmatpush1.msra.mxu0 0.0
  %8461 = vmatprep.subr.mxu0 0.0
  %8462 = vmatpush1.msra.mxu0 0.0
  %8463 = vmatprep.subr.mxu0 0.0
  %8464 = vmatpush1.msra.mxu0 0.0
  %8465 = vmatprep.subr.mxu0 0.0
  %8466 = vmatpush1.msra.mxu0 0.0
  %8467 = vmatprep.subr.mxu0 0.0
  %8468 = vmatpush1.msra.mxu0 0.0
  %8469 = vmatprep.subr.mxu0 0.0
  %8470 = vmatpush1.msra.mxu0 0.0
  %8471 = vmatprep.subr.mxu0 0.0
  %8472 = vmatpush1.msra.mxu0 0.0
  %8473 = vmatprep.subr.mxu0 0.0
  %8474 = vmatpush1.msra.mxu0 0.0
  %8475 = vmatprep.subr.mxu0 0.0
  %8476 = vmatpush1.msra.mxu0 0.0
  %8477 = vmatprep.subr.mxu0 0.0
  %8478 = vmatpush1.msra.mxu0 0.0
  %8479 = vmatprep.subr.mxu0 0.0
  %8480 = vmatpush1.msra.mxu0 0.0
  %8481 = vmatprep.mubr.f32.mxu0 0.0
  %8482 = vmatmul.mubr.f32.gmra.mrb[0].mxu0 %v8415
  %v8483 = vpop.f32.mrb[0].mxu0
  %v8484 = vadd.f32 0.0, %v8483
  %v8485 = vpop.f32.mrb[0].mxu0
  %8486 = vdwg.mxu0
  %v8487 = vadd.f32 %v8405, %v8484
  %v8488 = vld [vmem:[%s3922] sm:$0xff]
  %v8489 = vld [vmem:[%s3922 + $0x8] sm:$0xff]
  %v8490 = vld [vmem:[%s3922 + $0x10] sm:$0xff]
  %v8491 = vld [vmem:[%s3922 + $0x18] sm:$0xff]
  %v8492 = vld [vmem:[%s3922 + $0x20] sm:$0xff]
  %v8493 = vld [vmem:[%s3922 + $0x28] sm:$0xff]
  %v8494 = vld [vmem:[%s3922 + $0x30] sm:$0xff]
  %v8495 = vld [vmem:[%s3922 + $0x38] sm:$0xff]
  %v8496 = vrot.slane %v6763, 5
  %v8497 = vsel %vm2187, %v8496, 0
  %8499 = vmatprep.subr.mxu0 0.0
  %8500 = vmatpush1.msra.mxu0 %v8488
  %8501 = vmatprep.subr.mxu0 0.0
  %8502 = vmatpush1.msra.mxu0 %v8489
  %8503 = vmatprep.subr.mxu0 0.0
  %8504 = vmatpush1.msra.mxu0 %v8490
  %8505 = vmatprep.subr.mxu0 0.0
  %8506 = vmatpush1.msra.mxu0 %v8491
  %8507 = vmatprep.subr.mxu0 0.0
  %8508 = vmatpush1.msra.mxu0 %v8492
  %8509 = vmatprep.subr.mxu0 0.0
  %8510 = vmatpush1.msra.mxu0 %v8493
  %8511 = vmatprep.subr.mxu0 0.0
  %8512 = vmatpush1.msra.mxu0 %v8494
  %8513 = vmatprep.subr.mxu0 0.0
  %8514 = vmatpush1.msra.mxu0 %v8495
  %8515 = vmatprep.subr.mxu0 0.0
  %8516 = vmatpush1.msra.mxu0 0.0
  %8517 = vmatprep.subr.mxu0 0.0
  %8518 = vmatpush1.msra.mxu0 0.0
  %8519 = vmatprep.subr.mxu0 0.0
  %8520 = vmatpush1.msra.mxu0 0.0
  %8521 = vmatprep.subr.mxu0 0.0
  %8522 = vmatpush1.msra.mxu0 0.0
  %8523 = vmatprep.subr.mxu0 0.0
  %8524 = vmatpush1.msra.mxu0 0.0
  %8525 = vmatprep.subr.mxu0 0.0
  %8526 = vmatpush1.msra.mxu0 0.0
  %8527 = vmatprep.subr.mxu0 0.0
  %8528 = vmatpush1.msra.mxu0 0.0
  %8529 = vmatprep.subr.mxu0 0.0
  %8530 = vmatpush1.msra.mxu0 0.0
  %8531 = vmatprep.subr.mxu0 0.0
  %8532 = vmatpush1.msra.mxu0 0.0
  %8533 = vmatprep.subr.mxu0 0.0
  %8534 = vmatpush1.msra.mxu0 0.0
  %8535 = vmatprep.subr.mxu0 0.0
  %8536 = vmatpush1.msra.mxu0 0.0
  %8537 = vmatprep.subr.mxu0 0.0
  %8538 = vmatpush1.msra.mxu0 0.0
  %8539 = vmatprep.subr.mxu0 0.0
  %8540 = vmatpush1.msra.mxu0 0.0
  %8541 = vmatprep.subr.mxu0 0.0
  %8542 = vmatpush1.msra.mxu0 0.0
  %8543 = vmatprep.subr.mxu0 0.0
  %8544 = vmatpush1.msra.mxu0 0.0
  %8545 = vmatprep.subr.mxu0 0.0
  %8546 = vmatpush1.msra.mxu0 0.0
  %8547 = vmatprep.subr.mxu0 0.0
  %8548 = vmatpush1.msra.mxu0 0.0
  %8549 = vmatprep.subr.mxu0 0.0
  %8550 = vmatpush1.msra.mxu0 0.0
  %8551 = vmatprep.subr.mxu0 0.0
  %8552 = vmatpush1.msra.mxu0 0.0
  %8553 = vmatprep.subr.mxu0 0.0
  %8554 = vmatpush1.msra.mxu0 0.0
  %8555 = vmatprep.subr.mxu0 0.0
  %8556 = vmatpush1.msra.mxu0 0.0
  %8557 = vmatprep.subr.mxu0 0.0
  %8558 = vmatpush1.msra.mxu0 0.0
  %8559 = vmatprep.subr.mxu0 0.0
  %8560 = vmatpush1.msra.mxu0 0.0
  %8561 = vmatprep.subr.mxu0 0.0
  %8562 = vmatpush1.msra.mxu0 0.0
  %8563 = vmatprep.mubr.f32.mxu0 0.0
  %8564 = vmatmul.mubr.f32.gmra.mrb[0].mxu0 %v8497
  %v8565 = vpop.f32.mrb[0].mxu0
  %v8566 = vadd.f32 0.0, %v8565
  %v8567 = vpop.f32.mrb[0].mxu0
  %8568 = vdwg.mxu0
  %v8569 = vadd.f32 %v8487, %v8566
  %v8570 = vld [vmem:[%s4005] sm:$0xff]
  %v8571 = vld [vmem:[%s4005 + $0x8] sm:$0xff]
  %v8572 = vld [vmem:[%s4005 + $0x10] sm:$0xff]
  %v8573 = vld [vmem:[%s4005 + $0x18] sm:$0xff]
  %v8574 = vld [vmem:[%s4005 + $0x20] sm:$0xff]
  %v8575 = vld [vmem:[%s4005 + $0x28] sm:$0xff]
  %v8576 = vld [vmem:[%s4005 + $0x30] sm:$0xff]
  %v8577 = vld [vmem:[%s4005 + $0x38] sm:$0xff]
  %v8578 = vrot.slane %v6763, 6
  %v8579 = vsel %vm2187, %v8578, 0
  %8581 = vmatprep.subr.mxu0 0.0
  %8582 = vmatpush1.msra.mxu0 %v8570
  %8583 = vmatprep.subr.mxu0 0.0
  %8584 = vmatpush1.msra.mxu0 %v8571
  %8585 = vmatprep.subr.mxu0 0.0
  %8586 = vmatpush1.msra.mxu0 %v8572
  %8587 = vmatprep.subr.mxu0 0.0
  %8588 = vmatpush1.msra.mxu0 %v8573
  %8589 = vmatprep.subr.mxu0 0.0
  %8590 = vmatpush1.msra.mxu0 %v8574
  %8591 = vmatprep.subr.mxu0 0.0
  %8592 = vmatpush1.msra.mxu0 %v8575
  %8593 = vmatprep.subr.mxu0 0.0
  %8594 = vmatpush1.msra.mxu0 %v8576
  %8595 = vmatprep.subr.mxu0 0.0
  %8596 = vmatpush1.msra.mxu0 %v8577
  %8597 = vmatprep.subr.mxu0 0.0
  %8598 = vmatpush1.msra.mxu0 0.0
  %8599 = vmatprep.subr.mxu0 0.0
  %8600 = vmatpush1.msra.mxu0 0.0
  %8601 = vmatprep.subr.mxu0 0.0
  %8602 = vmatpush1.msra.mxu0 0.0
  %8603 = vmatprep.subr.mxu0 0.0
  %8604 = vmatpush1.msra.mxu0 0.0
  %8605 = vmatprep.subr.mxu0 0.0
  %8606 = vmatpush1.msra.mxu0 0.0
  %8607 = vmatprep.subr.mxu0 0.0
  %8608 = vmatpush1.msra.mxu0 0.0
  %8609 = vmatprep.subr.mxu0 0.0
  %8610 = vmatpush1.msra.mxu0 0.0
  %8611 = vmatprep.subr.mxu0 0.0
  %8612 = vmatpush1.msra.mxu0 0.0
  %8613 = vmatprep.subr.mxu0 0.0
  %8614 = vmatpush1.msra.mxu0 0.0
  %8615 = vmatprep.subr.mxu0 0.0
  %8616 = vmatpush1.msra.mxu0 0.0
  %8617 = vmatprep.subr.mxu0 0.0
  %8618 = vmatpush1.msra.mxu0 0.0
  %8619 = vmatprep.subr.mxu0 0.0
  %8620 = vmatpush1.msra.mxu0 0.0
  %8621 = vmatprep.subr.mxu0 0.0
  %8622 = vmatpush1.msra.mxu0 0.0
  %8623 = vmatprep.subr.mxu0 0.0
  %8624 = vmatpush1.msra.mxu0 0.0
  %8625 = vmatprep.subr.mxu0 0.0
  %8626 = vmatpush1.msra.mxu0 0.0
  %8627 = vmatprep.subr.mxu0 0.0
  %8628 = vmatpush1.msra.mxu0 0.0
  %8629 = vmatprep.subr.mxu0 0.0
  %8630 = vmatpush1.msra.mxu0 0.0
  %8631 = vmatprep.subr.mxu0 0.0
  %8632 = vmatpush1.msra.mxu0 0.0
  %8633 = vmatprep.subr.mxu0 0.0
  %8634 = vmatpush1.msra.mxu0 0.0
  %8635 = vmatprep.subr.mxu0 0.0
  %8636 = vmatpush1.msra.mxu0 0.0
  %8637 = vmatprep.subr.mxu0 0.0
  %8638 = vmatpush1.msra.mxu0 0.0
  %8639 = vmatprep.subr.mxu0 0.0
  %8640 = vmatpush1.msra.mxu0 0.0
  %8641 = vmatprep.subr.mxu0 0.0
  %8642 = vmatpush1.msra.mxu0 0.0
  %8643 = vmatprep.subr.mxu0 0.0
  %8644 = vmatpush1.msra.mxu0 0.0
  %8645 = vmatprep.mubr.f32.mxu0 0.0
  %8646 = vmatmul.mubr.f32.gmra.mrb[0].mxu0 %v8579
  %v8647 = vpop.f32.mrb[0].mxu0
  %v8648 = vadd.f32 0.0, %v8647
  %v8649 = vpop.f32.mrb[0].mxu0
  %8650 = vdwg.mxu0
  %v8651 = vadd.f32 %v8569, %v8648
  %v8652 = vld [vmem:[%s4088] sm:$0xff]
  %v8653 = vld [vmem:[%s4088 + $0x8] sm:$0xff]
  %v8654 = vld [vmem:[%s4088 + $0x10] sm:$0xff]
  %v8655 = vld [vmem:[%s4088 + $0x18] sm:$0xff]
  %v8656 = vld [vmem:[%s4088 + $0x20] sm:$0xff]
  %v8657 = vld [vmem:[%s4088 + $0x28] sm:$0xff]
  %v8658 = vld [vmem:[%s4088 + $0x30] sm:$0xff]
  %v8659 = vld [vmem:[%s4088 + $0x38] sm:$0xff]
  %v8660 = vrot.slane %v6763, 7
  %v8661 = vsel %vm2187, %v8660, 0
  %8663 = vmatprep.subr.mxu0 0.0
  %8664 = vmatpush1.msra.mxu0 %v8652
  %8665 = vmatprep.subr.mxu0 0.0
  %8666 = vmatpush1.msra.mxu0 %v8653
  %8667 = vmatprep.subr.mxu0 0.0
  %8668 = vmatpush1.msra.mxu0 %v8654
  %8669 = vmatprep.subr.mxu0 0.0
  %8670 = vmatpush1.msra.mxu0 %v8655
  %8671 = vmatprep.subr.mxu0 0.0
  %8672 = vmatpush1.msra.mxu0 %v8656
  %8673 = vmatprep.subr.mxu0 0.0
  %8674 = vmatpush1.msra.mxu0 %v8657
  %8675 = vmatprep.subr.mxu0 0.0
  %8676 = vmatpush1.msra.mxu0 %v8658
  %8677 = vmatprep.subr.mxu0 0.0
  %8678 = vmatpush1.msra.mxu0 %v8659
  %8679 = vmatprep.subr.mxu0 0.0
  %8680 = vmatpush1.msra.mxu0 0.0
  %8681 = vmatprep.subr.mxu0 0.0
  %8682 = vmatpush1.msra.mxu0 0.0
  %8683 = vmatprep.subr.mxu0 0.0
  %8684 = vmatpush1.msra.mxu0 0.0
  %8685 = vmatprep.subr.mxu0 0.0
  %8686 = vmatpush1.msra.mxu0 0.0
  %8687 = vmatprep.subr.mxu0 0.0
  %8688 = vmatpush1.msra.mxu0 0.0
  %8689 = vmatprep.subr.mxu0 0.0
  %8690 = vmatpush1.msra.mxu0 0.0
  %8691 = vmatprep.subr.mxu0 0.0
  %8692 = vmatpush1.msra.mxu0 0.0
  %8693 = vmatprep.subr.mxu0 0.0
  %8694 = vmatpush1.msra.mxu0 0.0
  %8695 = vmatprep.subr.mxu0 0.0
  %8696 = vmatpush1.msra.mxu0 0.0
  %8697 = vmatprep.subr.mxu0 0.0
  %8698 = vmatpush1.msra.mxu0 0.0
  %8699 = vmatprep.subr.mxu0 0.0
  %8700 = vmatpush1.msra.mxu0 0.0
  %8701 = vmatprep.subr.mxu0 0.0
  %8702 = vmatpush1.msra.mxu0 0.0
  %8703 = vmatprep.subr.mxu0 0.0
  %8704 = vmatpush1.msra.mxu0 0.0
  %8705 = vmatprep.subr.mxu0 0.0
  %8706 = vmatpush1.msra.mxu0 0.0
  %8707 = vmatprep.subr.mxu0 0.0
  %8708 = vmatpush1.msra.mxu0 0.0
  %8709 = vmatprep.subr.mxu0 0.0
  %8710 = vmatpush1.msra.mxu0 0.0
  %8711 = vmatprep.subr.mxu0 0.0
  %8712 = vmatpush1.msra.mxu0 0.0
  %8713 = vmatprep.subr.mxu0 0.0
  %8714 = vmatpush1.msra.mxu0 0.0
  %8715 = vmatprep.subr.mxu0 0.0
  %8716 = vmatpush1.msra.mxu0 0.0
  %8717 = vmatprep.subr.mxu0 0.0
  %8718 = vmatpush1.msra.mxu0 0.0
  %8719 = vmatprep.subr.mxu0 0.0
  %8720 = vmatpush1.msra.mxu0 0.0
  %8721 = vmatprep.subr.mxu0 0.0
  %8722 = vmatpush1.msra.mxu0 0.0
  %8723 = vmatprep.subr.mxu0 0.0
  %8724 = vmatpush1.msra.mxu0 0.0
  %8725 = vmatprep.subr.mxu0 0.0
  %8726 = vmatpush1.msra.mxu0 0.0
  %8727 = vmatprep.mubr.f32.mxu0 0.0
  %8728 = vmatmul.mubr.f32.gmra.mrb[0].mxu0 %v8661
  %v8729 = vpop.f32.mrb[0].mxu0
  %v8730 = vadd.f32 0.0, %v8729
  %v8731 = vpop.f32.mrb[0].mxu0
  %8732 = vdwg.mxu0
  %v8733 = vadd.f32 %v8651, %v8730
  %v8734 = vld [vmem:[%s4171] sm:$0xff]
  %v8735 = vld [vmem:[%s4171 + $0x8] sm:$0xff]
  %v8736 = vld [vmem:[%s4171 + $0x10] sm:$0xff]
  %v8737 = vld [vmem:[%s4171 + $0x18] sm:$0xff]
  %v8738 = vld [vmem:[%s4171 + $0x20] sm:$0xff]
  %v8739 = vld [vmem:[%s4171 + $0x28] sm:$0xff]
  %v8740 = vld [vmem:[%s4171 + $0x30] sm:$0xff]
  %v8741 = vld [vmem:[%s4171 + $0x38] sm:$0xff]
  %v8743 = vsel %vm2187, %v6764, 0
  %8745 = vmatprep.subr.mxu0 0.0
  %8746 = vmatpush1.msra.mxu0 %v8734
  %8747 = vmatprep.subr.mxu0 0.0
  %8748 = vmatpush1.msra.mxu0 %v8735
  %8749 = vmatprep.subr.mxu0 0.0
  %8750 = vmatpush1.msra.mxu0 %v8736
  %8751 = vmatprep.subr.mxu0 0.0
  %8752 = vmatpush1.msra.mxu0 %v8737
  %8753 = vmatprep.subr.mxu0 0.0
  %8754 = vmatpush1.msra.mxu0 %v8738
  %8755 = vmatprep.subr.mxu0 0.0
  %8756 = vmatpush1.msra.mxu0 %v8739
  %8757 = vmatprep.subr.mxu0 0.0
  %8758 = vmatpush1.msra.mxu0 %v8740
  %8759 = vmatprep.subr.mxu0 0.0
  %8760 = vmatpush1.msra.mxu0 %v8741
  %8761 = vmatprep.subr.mxu0 0.0
  %8762 = vmatpush1.msra.mxu0 0.0
  %8763 = vmatprep.subr.mxu0 0.0
  %8764 = vmatpush1.msra.mxu0 0.0
  %8765 = vmatprep.subr.mxu0 0.0
  %8766 = vmatpush1.msra.mxu0 0.0
  %8767 = vmatprep.subr.mxu0 0.0
  %8768 = vmatpush1.msra.mxu0 0.0
  %8769 = vmatprep.subr.mxu0 0.0
  %8770 = vmatpush1.msra.mxu0 0.0
  %8771 = vmatprep.subr.mxu0 0.0
  %8772 = vmatpush1.msra.mxu0 0.0
  %8773 = vmatprep.subr.mxu0 0.0
  %8774 = vmatpush1.msra.mxu0 0.0
  %8775 = vmatprep.subr.mxu0 0.0
  %8776 = vmatpush1.msra.mxu0 0.0
  %8777 = vmatprep.subr.mxu0 0.0
  %8778 = vmatpush1.msra.mxu0 0.0
  %8779 = vmatprep.subr.mxu0 0.0
  %8780 = vmatpush1.msra.mxu0 0.0
  %8781 = vmatprep.subr.mxu0 0.0
  %8782 = vmatpush1.msra.mxu0 0.0
  %8783 = vmatprep.subr.mxu0 0.0
  %8784 = vmatpush1.msra.mxu0 0.0
  %8785 = vmatprep.subr.mxu0 0.0
  %8786 = vmatpush1.msra.mxu0 0.0
  %8787 = vmatprep.subr.mxu0 0.0
  %8788 = vmatpush1.msra.mxu0 0.0
  %8789 = vmatprep.subr.mxu0 0.0
  %8790 = vmatpush1.msra.mxu0 0.0
  %8791 = vmatprep.subr.mxu0 0.0
  %8792 = vmatpush1.msra.mxu0 0.0
  %8793 = vmatprep.subr.mxu0 0.0
  %8794 = vmatpush1.msra.mxu0 0.0
  %8795 = vmatprep.subr.mxu0 0.0
  %8796 = vmatpush1.msra.mxu0 0.0
  %8797 = vmatprep.subr.mxu0 0.0
  %8798 = vmatpush1.msra.mxu0 0.0
  %8799 = vmatprep.subr.mxu0 0.0
  %8800 = vmatpush1.msra.mxu0 0.0
  %8801 = vmatprep.subr.mxu0 0.0
  %8802 = vmatpush1.msra.mxu0 0.0
  %8803 = vmatprep.subr.mxu0 0.0
  %8804 = vmatpush1.msra.mxu0 0.0
  %8805 = vmatprep.subr.mxu0 0.0
  %8806 = vmatpush1.msra.mxu0 0.0
  %8807 = vmatprep.subr.mxu0 0.0
  %8808 = vmatpush1.msra.mxu0 0.0
  %8809 = vmatprep.mubr.f32.mxu0 0.0
  %8810 = vmatmul.mubr.f32.gmra.mrb[0].mxu0 %v8743
  %v8811 = vpop.f32.mrb[0].mxu0
  %v8812 = vadd.f32 0.0, %v8811
  %v8813 = vpop.f32.mrb[0].mxu0
  %8814 = vdwg.mxu0
  %v8815 = vadd.f32 %v8733, %v8812
  %v8816 = vld [vmem:[%s4254] sm:$0xff]
  %v8817 = vld [vmem:[%s4254 + $0x8] sm:$0xff]
  %v8818 = vld [vmem:[%s4254 + $0x10] sm:$0xff]
  %v8819 = vld [vmem:[%s4254 + $0x18] sm:$0xff]
  %v8820 = vld [vmem:[%s4254 + $0x20] sm:$0xff]
  %v8821 = vld [vmem:[%s4254 + $0x28] sm:$0xff]
  %v8822 = vld [vmem:[%s4254 + $0x30] sm:$0xff]
  %v8823 = vld [vmem:[%s4254 + $0x38] sm:$0xff]
  %v8824 = vrot.slane %v6764, 1
  %v8825 = vsel %vm2187, %v8824, 0
  %8827 = vmatprep.subr.mxu0 0.0
  %8828 = vmatpush1.msra.mxu0 %v8816
  %8829 = vmatprep.subr.mxu0 0.0
  %8830 = vmatpush1.msra.mxu0 %v8817
  %8831 = vmatprep.subr.mxu0 0.0
  %8832 = vmatpush1.msra.mxu0 %v8818
  %8833 = vmatprep.subr.mxu0 0.0
  %8834 = vmatpush1.msra.mxu0 %v8819
  %8835 = vmatprep.subr.mxu0 0.0
  %8836 = vmatpush1.msra.mxu0 %v8820
  %8837 = vmatprep.subr.mxu0 0.0
  %8838 = vmatpush1.msra.mxu0 %v8821
  %8839 = vmatprep.subr.mxu0 0.0
  %8840 = vmatpush1.msra.mxu0 %v8822
  %8841 = vmatprep.subr.mxu0 0.0
  %8842 = vmatpush1.msra.mxu0 %v8823
  %8843 = vmatprep.subr.mxu0 0.0
  %8844 = vmatpush1.msra.mxu0 0.0
  %8845 = vmatprep.subr.mxu0 0.0
  %8846 = vmatpush1.msra.mxu0 0.0
  %8847 = vmatprep.subr.mxu0 0.0
  %8848 = vmatpush1.msra.mxu0 0.0
  %8849 = vmatprep.subr.mxu0 0.0
  %8850 = vmatpush1.msra.mxu0 0.0
  %8851 = vmatprep.subr.mxu0 0.0
  %8852 = vmatpush1.msra.mxu0 0.0
  %8853 = vmatprep.subr.mxu0 0.0
  %8854 = vmatpush1.msra.mxu0 0.0
  %8855 = vmatprep.subr.mxu0 0.0
  %8856 = vmatpush1.msra.mxu0 0.0
  %8857 = vmatprep.subr.mxu0 0.0
  %8858 = vmatpush1.msra.mxu0 0.0
  %8859 = vmatprep.subr.mxu0 0.0
  %8860 = vmatpush1.msra.mxu0 0.0
  %8861 = vmatprep.subr.mxu0 0.0
  %8862 = vmatpush1.msra.mxu0 0.0
  %8863 = vmatprep.subr.mxu0 0.0
  %8864 = vmatpush1.msra.mxu0 0.0
  %8865 = vmatprep.subr.mxu0 0.0
  %8866 = vmatpush1.msra.mxu0 0.0
  %8867 = vmatprep.subr.mxu0 0.0
  %8868 = vmatpush1.msra.mxu0 0.0
  %8869 = vmatprep.subr.mxu0 0.0
  %8870 = vmatpush1.msra.mxu0 0.0
  %8871 = vmatprep.subr.mxu0 0.0
  %8872 = vmatpush1.msra.mxu0 0.0
  %8873 = vmatprep.subr.mxu0 0.0
  %8874 = vmatpush1.msra.mxu0 0.0
  %8875 = vmatprep.subr.mxu0 0.0
  %8876 = vmatpush1.msra.mxu0 0.0
  %8877 = vmatprep.subr.mxu0 0.0
  %8878 = vmatpush1.msra.mxu0 0.0
  %8879 = vmatprep.subr.mxu0 0.0
  %8880 = vmatpush1.msra.mxu0 0.0
  %8881 = vmatprep.subr.mxu0 0.0
  %8882 = vmatpush1.msra.mxu0 0.0
  %8883 = vmatprep.subr.mxu0 0.0
  %8884 = vmatpush1.msra.mxu0 0.0
  %8885 = vmatprep.subr.mxu0 0.0
  %8886 = vmatpush1.msra.mxu0 0.0
  %8887 = vmatprep.subr.mxu0 0.0
  %8888 = vmatpush1.msra.mxu0 0.0
  %8889 = vmatprep.subr.mxu0 0.0
  %8890 = vmatpush1.msra.mxu0 0.0
  %8891 = vmatprep.mubr.f32.mxu0 0.0
  %8892 = vmatmul.mubr.f32.gmra.mrb[0].mxu0 %v8825
  %v8893 = vpop.f32.mrb[0].mxu0
  %v8894 = vadd.f32 0.0, %v8893
  %v8895 = vpop.f32.mrb[0].mxu0
  %8896 = vdwg.mxu0
  %v8897 = vadd.f32 %v8815, %v8894
  %v8898 = vld [vmem:[%s4337] sm:$0xff]
  %v8899 = vld [vmem:[%s4337 + $0x8] sm:$0xff]
  %v8900 = vld [vmem:[%s4337 + $0x10] sm:$0xff]
  %v8901 = vld [vmem:[%s4337 + $0x18] sm:$0xff]
  %v8902 = vld [vmem:[%s4337 + $0x20] sm:$0xff]
  %v8903 = vld [vmem:[%s4337 + $0x28] sm:$0xff]
  %v8904 = vld [vmem:[%s4337 + $0x30] sm:$0xff]
  %v8905 = vld [vmem:[%s4337 + $0x38] sm:$0xff]
  %v8906 = vrot.slane %v6764, 2
  %v8907 = vsel %vm2187, %v8906, 0
  %8909 = vmatprep.subr.mxu0 0.0
  %8910 = vmatpush1.msra.mxu0 %v8898
  %8911 = vmatprep.subr.mxu0 0.0
  %8912 = vmatpush1.msra.mxu0 %v8899
  %8913 = vmatprep.subr.mxu0 0.0
  %8914 = vmatpush1.msra.mxu0 %v8900
  %8915 = vmatprep.subr.mxu0 0.0
  %8916 = vmatpush1.msra.mxu0 %v8901
  %8917 = vmatprep.subr.mxu0 0.0
  %8918 = vmatpush1.msra.mxu0 %v8902
  %8919 = vmatprep.subr.mxu0 0.0
  %8920 = vmatpush1.msra.mxu0 %v8903
  %8921 = vmatprep.subr.mxu0 0.0
  %8922 = vmatpush1.msra.mxu0 %v8904
  %8923 = vmatprep.subr.mxu0 0.0
  %8924 = vmatpush1.msra.mxu0 %v8905
  %8925 = vmatprep.subr.mxu0 0.0
  %8926 = vmatpush1.msra.mxu0 0.0
  %8927 = vmatprep.subr.mxu0 0.0
  %8928 = vmatpush1.msra.mxu0 0.0
  %8929 = vmatprep.subr.mxu0 0.0
  %8930 = vmatpush1.msra.mxu0 0.0
  %8931 = vmatprep.subr.mxu0 0.0
  %8932 = vmatpush1.msra.mxu0 0.0
  %8933 = vmatprep.subr.mxu0 0.0
  %8934 = vmatpush1.msra.mxu0 0.0
  %8935 = vmatprep.subr.mxu0 0.0
  %8936 = vmatpush1.msra.mxu0 0.0
  %8937 = vmatprep.subr.mxu0 0.0
  %8938 = vmatpush1.msra.mxu0 0.0
  %8939 = vmatprep.subr.mxu0 0.0
  %8940 = vmatpush1.msra.mxu0 0.0
  %8941 = vmatprep.subr.mxu0 0.0
  %8942 = vmatpush1.msra.mxu0 0.0
  %8943 = vmatprep.subr.mxu0 0.0
  %8944 = vmatpush1.msra.mxu0 0.0
  %8945 = vmatprep.subr.mxu0 0.0
  %8946 = vmatpush1.msra.mxu0 0.0
  %8947 = vmatprep.subr.mxu0 0.0
  %8948 = vmatpush1.msra.mxu0 0.0
  %8949 = vmatprep.subr.mxu0 0.0
  %8950 = vmatpush1.msra.mxu0 0.0
  %8951 = vmatprep.subr.mxu0 0.0
  %8952 = vmatpush1.msra.mxu0 0.0
  %8953 = vmatprep.subr.mxu0 0.0
  %8954 = vmatpush1.msra.mxu0 0.0
  %8955 = vmatprep.subr.mxu0 0.0
  %8956 = vmatpush1.msra.mxu0 0.0
  %8957 = vmatprep.subr.mxu0 0.0
  %8958 = vmatpush1.msra.mxu0 0.0
  %8959 = vmatprep.subr.mxu0 0.0
  %8960 = vmatpush1.msra.mxu0 0.0
  %8961 = vmatprep.subr.mxu0 0.0
  %8962 = vmatpush1.msra.mxu0 0.0
  %8963 = vmatprep.subr.mxu0 0.0
  %8964 = vmatpush1.msra.mxu0 0.0
  %8965 = vmatprep.subr.mxu0 0.0
  %8966 = vmatpush1.msra.mxu0 0.0
  %8967 = vmatprep.subr.mxu0 0.0
  %8968 = vmatpush1.msra.mxu0 0.0
  %8969 = vmatprep.subr.mxu0 0.0
  %8970 = vmatpush1.msra.mxu0 0.0
  %8971 = vmatprep.subr.mxu0 0.0
  %8972 = vmatpush1.msra.mxu0 0.0
  %8973 = vmatprep.mubr.f32.mxu0 0.0
  %8974 = vmatmul.mubr.f32.gmra.mrb[0].mxu0 %v8907
  %v8975 = vpop.f32.mrb[0].mxu0
  %v8976 = vadd.f32 0.0, %v8975
  %v8977 = vpop.f32.mrb[0].mxu0
  %8978 = vdwg.mxu0
  %v8979 = vadd.f32 %v8897, %v8976
  %v8980 = vld [vmem:[%s4420] sm:$0xff]
  %v8981 = vld [vmem:[%s4420 + $0x8] sm:$0xff]
  %v8982 = vld [vmem:[%s4420 + $0x10] sm:$0xff]
  %v8983 = vld [vmem:[%s4420 + $0x18] sm:$0xff]
  %v8984 = vld [vmem:[%s4420 + $0x20] sm:$0xff]
  %v8985 = vld [vmem:[%s4420 + $0x28] sm:$0xff]
  %v8986 = vld [vmem:[%s4420 + $0x30] sm:$0xff]
  %v8987 = vld [vmem:[%s4420 + $0x38] sm:$0xff]
  %v8988 = vrot.slane %v6764, 3
  %v8989 = vsel %vm2187, %v8988, 0
  %8991 = vmatprep.subr.mxu0 0.0
  %8992 = vmatpush1.msra.mxu0 %v8980
  %8993 = vmatprep.subr.mxu0 0.0
  %8994 = vmatpush1.msra.mxu0 %v8981
  %8995 = vmatprep.subr.mxu0 0.0
  %8996 = vmatpush1.msra.mxu0 %v8982
  %8997 = vmatprep.subr.mxu0 0.0
  %8998 = vmatpush1.msra.mxu0 %v8983
  %8999 = vmatprep.subr.mxu0 0.0
  %9000 = vmatpush1.msra.mxu0 %v8984
  %9001 = vmatprep.subr.mxu0 0.0
  %9002 = vmatpush1.msra.mxu0 %v8985
  %9003 = vmatprep.subr.mxu0 0.0
  %9004 = vmatpush1.msra.mxu0 %v8986
  %9005 = vmatprep.subr.mxu0 0.0
  %9006 = vmatpush1.msra.mxu0 %v8987
  %9007 = vmatprep.subr.mxu0 0.0
  %9008 = vmatpush1.msra.mxu0 0.0
  %9009 = vmatprep.subr.mxu0 0.0
  %9010 = vmatpush1.msra.mxu0 0.0
  %9011 = vmatprep.subr.mxu0 0.0
  %9012 = vmatpush1.msra.mxu0 0.0
  %9013 = vmatprep.subr.mxu0 0.0
  %9014 = vmatpush1.msra.mxu0 0.0
  %9015 = vmatprep.subr.mxu0 0.0
  %9016 = vmatpush1.msra.mxu0 0.0
  %9017 = vmatprep.subr.mxu0 0.0
  %9018 = vmatpush1.msra.mxu0 0.0
  %9019 = vmatprep.subr.mxu0 0.0
  %9020 = vmatpush1.msra.mxu0 0.0
  %9021 = vmatprep.subr.mxu0 0.0
  %9022 = vmatpush1.msra.mxu0 0.0
  %9023 = vmatprep.subr.mxu0 0.0
  %9024 = vmatpush1.msra.mxu0 0.0
  %9025 = vmatprep.subr.mxu0 0.0
  %9026 = vmatpush1.msra.mxu0 0.0
  %9027 = vmatprep.subr.mxu0 0.0
  %9028 = vmatpush1.msra.mxu0 0.0
  %9029 = vmatprep.subr.mxu0 0.0
  %9030 = vmatpush1.msra.mxu0 0.0
  %9031 = vmatprep.subr.mxu0 0.0
  %9032 = vmatpush1.msra.mxu0 0.0
  %9033 = vmatprep.subr.mxu0 0.0
  %9034 = vmatpush1.msra.mxu0 0.0
  %9035 = vmatprep.subr.mxu0 0.0
  %9036 = vmatpush1.msra.mxu0 0.0
  %9037 = vmatprep.subr.mxu0 0.0
  %9038 = vmatpush1.msra.mxu0 0.0
  %9039 = vmatprep.subr.mxu0 0.0
  %9040 = vmatpush1.msra.mxu0 0.0
  %9041 = vmatprep.subr.mxu0 0.0
  %9042 = vmatpush1.msra.mxu0 0.0
  %9043 = vmatprep.subr.mxu0 0.0
  %9044 = vmatpush1.msra.mxu0 0.0
  %9045 = vmatprep.subr.mxu0 0.0
  %9046 = vmatpush1.msra.mxu0 0.0
  %9047 = vmatprep.subr.mxu0 0.0
  %9048 = vmatpush1.msra.mxu0 0.0
  %9049 = vmatprep.subr.mxu0 0.0
  %9050 = vmatpush1.msra.mxu0 0.0
  %9051 = vmatprep.subr.mxu0 0.0
  %9052 = vmatpush1.msra.mxu0 0.0
  %9053 = vmatprep.subr.mxu0 0.0
  %9054 = vmatpush1.msra.mxu0 0.0
  %9055 = vmatprep.mubr.f32.mxu0 0.0
  %9056 = vmatmul.mubr.f32.gmra.mrb[0].mxu0 %v8989
  %v9057 = vpop.f32.mrb[0].mxu0
  %v9058 = vadd.f32 0.0, %v9057
  %v9059 = vpop.f32.mrb[0].mxu0
  %9060 = vdwg.mxu0
  %v9061 = vadd.f32 %v8979, %v9058
  %v9062 = vld [vmem:[%s4503] sm:$0xff]
  %v9063 = vld [vmem:[%s4503 + $0x8] sm:$0xff]
  %v9064 = vld [vmem:[%s4503 + $0x10] sm:$0xff]
  %v9065 = vld [vmem:[%s4503 + $0x18] sm:$0xff]
  %v9066 = vld [vmem:[%s4503 + $0x20] sm:$0xff]
  %v9067 = vld [vmem:[%s4503 + $0x28] sm:$0xff]
  %v9068 = vld [vmem:[%s4503 + $0x30] sm:$0xff]
  %v9069 = vld [vmem:[%s4503 + $0x38] sm:$0xff]
  %v9070 = vrot.slane %v6764, 4
  %v9071 = vsel %vm2187, %v9070, 0
  %9073 = vmatprep.subr.mxu0 0.0
  %9074 = vmatpush1.msra.mxu0 %v9062
  %9075 = vmatprep.subr.mxu0 0.0
  %9076 = vmatpush1.msra.mxu0 %v9063
  %9077 = vmatprep.subr.mxu0 0.0
  %9078 = vmatpush1.msra.mxu0 %v9064
  %9079 = vmatprep.subr.mxu0 0.0
  %9080 = vmatpush1.msra.mxu0 %v9065
  %9081 = vmatprep.subr.mxu0 0.0
  %9082 = vmatpush1.msra.mxu0 %v9066
  %9083 = vmatprep.subr.mxu0 0.0
  %9084 = vmatpush1.msra.mxu0 %v9067
  %9085 = vmatprep.subr.mxu0 0.0
  %9086 = vmatpush1.msra.mxu0 %v9068
  %9087 = vmatprep.subr.mxu0 0.0
  %9088 = vmatpush1.msra.mxu0 %v9069
  %9089 = vmatprep.subr.mxu0 0.0
  %9090 = vmatpush1.msra.mxu0 0.0
  %9091 = vmatprep.subr.mxu0 0.0
  %9092 = vmatpush1.msra.mxu0 0.0
  %9093 = vmatprep.subr.mxu0 0.0
  %9094 = vmatpush1.msra.mxu0 0.0
  %9095 = vmatprep.subr.mxu0 0.0
  %9096 = vmatpush1.msra.mxu0 0.0
  %9097 = vmatprep.subr.mxu0 0.0
  %9098 = vmatpush1.msra.mxu0 0.0
  %9099 = vmatprep.subr.mxu0 0.0
  %9100 = vmatpush1.msra.mxu0 0.0
  %9101 = vmatprep.subr.mxu0 0.0
  %9102 = vmatpush1.msra.mxu0 0.0
  %9103 = vmatprep.subr.mxu0 0.0
  %9104 = vmatpush1.msra.mxu0 0.0
  %9105 = vmatprep.subr.mxu0 0.0
  %9106 = vmatpush1.msra.mxu0 0.0
  %9107 = vmatprep.subr.mxu0 0.0
  %9108 = vmatpush1.msra.mxu0 0.0
  %9109 = vmatprep.subr.mxu0 0.0
  %9110 = vmatpush1.msra.mxu0 0.0
  %9111 = vmatprep.subr.mxu0 0.0
  %9112 = vmatpush1.msra.mxu0 0.0
  %9113 = vmatprep.subr.mxu0 0.0
  %9114 = vmatpush1.msra.mxu0 0.0
  %9115 = vmatprep.subr.mxu0 0.0
  %9116 = vmatpush1.msra.mxu0 0.0
  %9117 = vmatprep.subr.mxu0 0.0
  %9118 = vmatpush1.msra.mxu0 0.0
  %9119 = vmatprep.subr.mxu0 0.0
  %9120 = vmatpush1.msra.mxu0 0.0
  %9121 = vmatprep.subr.mxu0 0.0
  %9122 = vmatpush1.msra.mxu0 0.0
  %9123 = vmatprep.subr.mxu0 0.0
  %9124 = vmatpush1.msra.mxu0 0.0
  %9125 = vmatprep.subr.mxu0 0.0
  %9126 = vmatpush1.msra.mxu0 0.0
  %9127 = vmatprep.subr.mxu0 0.0
  %9128 = vmatpush1.msra.mxu0 0.0
  %9129 = vmatprep.subr.mxu0 0.0
  %9130 = vmatpush1.msra.mxu0 0.0
  %9131 = vmatprep.subr.mxu0 0.0
  %9132 = vmatpush1.msra.mxu0 0.0
  %9133 = vmatprep.subr.mxu0 0.0
  %9134 = vmatpush1.msra.mxu0 0.0
  %9135 = vmatprep.subr.mxu0 0.0
  %9136 = vmatpush1.msra.mxu0 0.0
  %9137 = vmatprep.mubr.f32.mxu0 0.0
  %9138 = vmatmul.mubr.f32.gmra.mrb[0].mxu0 %v9071
  %v9139 = vpop.f32.mrb[0].mxu0
  %v9140 = vadd.f32 0.0, %v9139
  %v9141 = vpop.f32.mrb[0].mxu0
  %9142 = vdwg.mxu0
  %v9143 = vadd.f32 %v9061, %v9140
  %v9144 = vld [vmem:[%s4586] sm:$0xff]
  %v9145 = vld [vmem:[%s4586 + $0x8] sm:$0xff]
  %v9146 = vld [vmem:[%s4586 + $0x10] sm:$0xff]
  %v9147 = vld [vmem:[%s4586 + $0x18] sm:$0xff]
  %v9148 = vld [vmem:[%s4586 + $0x20] sm:$0xff]
  %v9149 = vld [vmem:[%s4586 + $0x28] sm:$0xff]
  %v9150 = vld [vmem:[%s4586 + $0x30] sm:$0xff]
  %v9151 = vld [vmem:[%s4586 + $0x38] sm:$0xff]
  %v9152 = vrot.slane %v6764, 5
  %v9153 = vsel %vm2187, %v9152, 0
  %9155 = vmatprep.subr.mxu0 0.0
  %9156 = vmatpush1.msra.mxu0 %v9144
  %9157 = vmatprep.subr.mxu0 0.0
  %9158 = vmatpush1.msra.mxu0 %v9145
  %9159 = vmatprep.subr.mxu0 0.0
  %9160 = vmatpush1.msra.mxu0 %v9146
  %9161 = vmatprep.subr.mxu0 0.0
  %9162 = vmatpush1.msra.mxu0 %v9147
  %9163 = vmatprep.subr.mxu0 0.0
  %9164 = vmatpush1.msra.mxu0 %v9148
  %9165 = vmatprep.subr.mxu0 0.0
  %9166 = vmatpush1.msra.mxu0 %v9149
  %9167 = vmatprep.subr.mxu0 0.0
  %9168 = vmatpush1.msra.mxu0 %v9150
  %9169 = vmatprep.subr.mxu0 0.0
  %9170 = vmatpush1.msra.mxu0 %v9151
  %9171 = vmatprep.subr.mxu0 0.0
  %9172 = vmatpush1.msra.mxu0 0.0
  %9173 = vmatprep.subr.mxu0 0.0
  %9174 = vmatpush1.msra.mxu0 0.0
  %9175 = vmatprep.subr.mxu0 0.0
  %9176 = vmatpush1.msra.mxu0 0.0
  %9177 = vmatprep.subr.mxu0 0.0
  %9178 = vmatpush1.msra.mxu0 0.0
  %9179 = vmatprep.subr.mxu0 0.0
  %9180 = vmatpush1.msra.mxu0 0.0
  %9181 = vmatprep.subr.mxu0 0.0
  %9182 = vmatpush1.msra.mxu0 0.0
  %9183 = vmatprep.subr.mxu0 0.0
  %9184 = vmatpush1.msra.mxu0 0.0
  %9185 = vmatprep.subr.mxu0 0.0
  %9186 = vmatpush1.msra.mxu0 0.0
  %9187 = vmatprep.subr.mxu0 0.0
  %9188 = vmatpush1.msra.mxu0 0.0
  %9189 = vmatprep.subr.mxu0 0.0
  %9190 = vmatpush1.msra.mxu0 0.0
  %9191 = vmatprep.subr.mxu0 0.0
  %9192 = vmatpush1.msra.mxu0 0.0
  %9193 = vmatprep.subr.mxu0 0.0
  %9194 = vmatpush1.msra.mxu0 0.0
  %9195 = vmatprep.subr.mxu0 0.0
  %9196 = vmatpush1.msra.mxu0 0.0
  %9197 = vmatprep.subr.mxu0 0.0
  %9198 = vmatpush1.msra.mxu0 0.0
  %9199 = vmatprep.subr.mxu0 0.0
  %9200 = vmatpush1.msra.mxu0 0.0
  %9201 = vmatprep.subr.mxu0 0.0
  %9202 = vmatpush1.msra.mxu0 0.0
  %9203 = vmatprep.subr.mxu0 0.0
  %9204 = vmatpush1.msra.mxu0 0.0
  %9205 = vmatprep.subr.mxu0 0.0
  %9206 = vmatpush1.msra.mxu0 0.0
  %9207 = vmatprep.subr.mxu0 0.0
  %9208 = vmatpush1.msra.mxu0 0.0
  %9209 = vmatprep.subr.mxu0 0.0
  %9210 = vmatpush1.msra.mxu0 0.0
  %9211 = vmatprep.subr.mxu0 0.0
  %9212 = vmatpush1.msra.mxu0 0.0
  %9213 = vmatprep.subr.mxu0 0.0
  %9214 = vmatpush1.msra.mxu0 0.0
  %9215 = vmatprep.subr.mxu0 0.0
  %9216 = vmatpush1.msra.mxu0 0.0
  %9217 = vmatprep.subr.mxu0 0.0
  %9218 = vmatpush1.msra.mxu0 0.0
  %9219 = vmatprep.mubr.f32.mxu0 0.0
  %9220 = vmatmul.mubr.f32.gmra.mrb[0].mxu0 %v9153
  %v9221 = vpop.f32.mrb[0].mxu0
  %v9222 = vadd.f32 0.0, %v9221
  %v9223 = vpop.f32.mrb[0].mxu0
  %9224 = vdwg.mxu0
  %v9225 = vadd.f32 %v9143, %v9222
  %v9226 = vld [vmem:[%s4669] sm:$0xff]
  %v9227 = vld [vmem:[%s4669 + $0x8] sm:$0xff]
  %v9228 = vld [vmem:[%s4669 + $0x10] sm:$0xff]
  %v9229 = vld [vmem:[%s4669 + $0x18] sm:$0xff]
  %v9230 = vld [vmem:[%s4669 + $0x20] sm:$0xff]
  %v9231 = vld [vmem:[%s4669 + $0x28] sm:$0xff]
  %v9232 = vld [vmem:[%s4669 + $0x30] sm:$0xff]
  %v9233 = vld [vmem:[%s4669 + $0x38] sm:$0xff]
  %v9234 = vrot.slane %v6764, 6
  %v9235 = vsel %vm2187, %v9234, 0
  %9237 = vmatprep.subr.mxu0 0.0
  %9238 = vmatpush1.msra.mxu0 %v9226
  %9239 = vmatprep.subr.mxu0 0.0
  %9240 = vmatpush1.msra.mxu0 %v9227
  %9241 = vmatprep.subr.mxu0 0.0
  %9242 = vmatpush1.msra.mxu0 %v9228
  %9243 = vmatprep.subr.mxu0 0.0
  %9244 = vmatpush1.msra.mxu0 %v9229
  %9245 = vmatprep.subr.mxu0 0.0
  %9246 = vmatpush1.msra.mxu0 %v9230
  %9247 = vmatprep.subr.mxu0 0.0
  %9248 = vmatpush1.msra.mxu0 %v9231
  %9249 = vmatprep.subr.mxu0 0.0
  %9250 = vmatpush1.msra.mxu0 %v9232
  %9251 = vmatprep.subr.mxu0 0.0
  %9252 = vmatpush1.msra.mxu0 %v9233
  %9253 = vmatprep.subr.mxu0 0.0
  %9254 = vmatpush1.msra.mxu0 0.0
  %9255 = vmatprep.subr.mxu0 0.0
  %9256 = vmatpush1.msra.mxu0 0.0
  %9257 = vmatprep.subr.mxu0 0.0
  %9258 = vmatpush1.msra.mxu0 0.0
  %9259 = vmatprep.subr.mxu0 0.0
  %9260 = vmatpush1.msra.mxu0 0.0
  %9261 = vmatprep.subr.mxu0 0.0
  %9262 = vmatpush1.msra.mxu0 0.0
  %9263 = vmatprep.subr.mxu0 0.0
  %9264 = vmatpush1.msra.mxu0 0.0
  %9265 = vmatprep.subr.mxu0 0.0
  %9266 = vmatpush1.msra.mxu0 0.0
  %9267 = vmatprep.subr.mxu0 0.0
  %9268 = vmatpush1.msra.mxu0 0.0
  %9269 = vmatprep.subr.mxu0 0.0
  %9270 = vmatpush1.msra.mxu0 0.0
  %9271 = vmatprep.subr.mxu0 0.0
  %9272 = vmatpush1.msra.mxu0 0.0
  %9273 = vmatprep.subr.mxu0 0.0
  %9274 = vmatpush1.msra.mxu0 0.0
  %9275 = vmatprep.subr.mxu0 0.0
  %9276 = vmatpush1.msra.mxu0 0.0
  %9277 = vmatprep.subr.mxu0 0.0
  %9278 = vmatpush1.msra.mxu0 0.0
  %9279 = vmatprep.subr.mxu0 0.0
  %9280 = vmatpush1.msra.mxu0 0.0
  %9281 = vmatprep.subr.mxu0 0.0
  %9282 = vmatpush1.msra.mxu0 0.0
  %9283 = vmatprep.subr.mxu0 0.0
  %9284 = vmatpush1.msra.mxu0 0.0
  %9285 = vmatprep.subr.mxu0 0.0
  %9286 = vmatpush1.msra.mxu0 0.0
  %9287 = vmatprep.subr.mxu0 0.0
  %9288 = vmatpush1.msra.mxu0 0.0
  %9289 = vmatprep.subr.mxu0 0.0
  %9290 = vmatpush1.msra.mxu0 0.0
  %9291 = vmatprep.subr.mxu0 0.0
  %9292 = vmatpush1.msra.mxu0 0.0
  %9293 = vmatprep.subr.mxu0 0.0
  %9294 = vmatpush1.msra.mxu0 0.0
  %9295 = vmatprep.subr.mxu0 0.0
  %9296 = vmatpush1.msra.mxu0 0.0
  %9297 = vmatprep.subr.mxu0 0.0
  %9298 = vmatpush1.msra.mxu0 0.0
  %9299 = vmatprep.subr.mxu0 0.0
  %9300 = vmatpush1.msra.mxu0 0.0
  %9301 = vmatprep.mubr.f32.mxu0 0.0
  %9302 = vmatmul.mubr.f32.gmra.mrb[0].mxu0 %v9235
  %v9303 = vpop.f32.mrb[0].mxu0
  %v9304 = vadd.f32 0.0, %v9303
  %v9305 = vpop.f32.mrb[0].mxu0
  %9306 = vdwg.mxu0
  %v9307 = vadd.f32 %v9225, %v9304
  %v9308 = vld [vmem:[%s4752] sm:$0xff]
  %v9309 = vld [vmem:[%s4752 + $0x8] sm:$0xff]
  %v9310 = vld [vmem:[%s4752 + $0x10] sm:$0xff]
  %v9311 = vld [vmem:[%s4752 + $0x18] sm:$0xff]
  %v9312 = vld [vmem:[%s4752 + $0x20] sm:$0xff]
  %v9313 = vld [vmem:[%s4752 + $0x28] sm:$0xff]
  %v9314 = vld [vmem:[%s4752 + $0x30] sm:$0xff]
  %v9315 = vld [vmem:[%s4752 + $0x38] sm:$0xff]
  %v9316 = vrot.slane %v6764, 7
  %v9317 = vsel %vm2187, %v9316, 0
  %9319 = vmatprep.subr.mxu0 0.0
  %9320 = vmatpush1.msra.mxu0 %v9308
  %9321 = vmatprep.subr.mxu0 0.0
  %9322 = vmatpush1.msra.mxu0 %v9309
  %9323 = vmatprep.subr.mxu0 0.0
  %9324 = vmatpush1.msra.mxu0 %v9310
  %9325 = vmatprep.subr.mxu0 0.0
  %9326 = vmatpush1.msra.mxu0 %v9311
  %9327 = vmatprep.subr.mxu0 0.0
  %9328 = vmatpush1.msra.mxu0 %v9312
  %9329 = vmatprep.subr.mxu0 0.0
  %9330 = vmatpush1.msra.mxu0 %v9313
  %9331 = vmatprep.subr.mxu0 0.0
  %9332 = vmatpush1.msra.mxu0 %v9314
  %9333 = vmatprep.subr.mxu0 0.0
  %9334 = vmatpush1.msra.mxu0 %v9315
  %9335 = vmatprep.subr.mxu0 0.0
  %9336 = vmatpush1.msra.mxu0 0.0
  %9337 = vmatprep.subr.mxu0 0.0
  %9338 = vmatpush1.msra.mxu0 0.0
  %9339 = vmatprep.subr.mxu0 0.0
  %9340 = vmatpush1.msra.mxu0 0.0
  %9341 = vmatprep.subr.mxu0 0.0
  %9342 = vmatpush1.msra.mxu0 0.0
  %9343 = vmatprep.subr.mxu0 0.0
  %9344 = vmatpush1.msra.mxu0 0.0
  %9345 = vmatprep.subr.mxu0 0.0
  %9346 = vmatpush1.msra.mxu0 0.0
  %9347 = vmatprep.subr.mxu0 0.0
  %9348 = vmatpush1.msra.mxu0 0.0
  %9349 = vmatprep.subr.mxu0 0.0
  %9350 = vmatpush1.msra.mxu0 0.0
  %9351 = vmatprep.subr.mxu0 0.0
  %9352 = vmatpush1.msra.mxu0 0.0
  %9353 = vmatprep.subr.mxu0 0.0
  %9354 = vmatpush1.msra.mxu0 0.0
  %9355 = vmatprep.subr.mxu0 0.0
  %9356 = vmatpush1.msra.mxu0 0.0
  %9357 = vmatprep.subr.mxu0 0.0
  %9358 = vmatpush1.msra.mxu0 0.0
  %9359 = vmatprep.subr.mxu0 0.0
  %9360 = vmatpush1.msra.mxu0 0.0
  %9361 = vmatprep.subr.mxu0 0.0
  %9362 = vmatpush1.msra.mxu0 0.0
  %9363 = vmatprep.subr.mxu0 0.0
  %9364 = vmatpush1.msra.mxu0 0.0
  %9365 = vmatprep.subr.mxu0 0.0
  %9366 = vmatpush1.msra.mxu0 0.0
  %9367 = vmatprep.subr.mxu0 0.0
  %9368 = vmatpush1.msra.mxu0 0.0
  %9369 = vmatprep.subr.mxu0 0.0
  %9370 = vmatpush1.msra.mxu0 0.0
  %9371 = vmatprep.subr.mxu0 0.0
  %9372 = vmatpush1.msra.mxu0 0.0
  %9373 = vmatprep.subr.mxu0 0.0
  %9374 = vmatpush1.msra.mxu0 0.0
  %9375 = vmatprep.subr.mxu0 0.0
  %9376 = vmatpush1.msra.mxu0 0.0
  %9377 = vmatprep.subr.mxu0 0.0
  %9378 = vmatpush1.msra.mxu0 0.0
  %9379 = vmatprep.subr.mxu0 0.0
  %9380 = vmatpush1.msra.mxu0 0.0
  %9381 = vmatprep.subr.mxu0 0.0
  %9382 = vmatpush1.msra.mxu0 0.0
  %9383 = vmatprep.mubr.f32.mxu0 0.0
  %9384 = vmatmul.mubr.f32.gmra.mrb[0].mxu0 %v9317
  %v9385 = vpop.f32.mrb[0].mxu0
  %v9386 = vadd.f32 0.0, %v9385
  %v9387 = vpop.f32.mrb[0].mxu0
  %9388 = vdwg.mxu0
  %v9389 = vadd.f32 %v9307, %v9386
  %9390 = vst.msk [vmem:[%s8 + $0x1] sm:$0x1] %vm4835, %v9389
  // Predicated region
  $region34: #{multi_output_model.1} parent=0 // pred_check
    _
  $region35: #{multi_output_model.1} parent=0 // pred_check_branch
    %9392 = sbr.rel (0) target = $region37
  $region36: #{multi_output_model.1} parent=0 // pred_region
    _
  $region37: #{multi_output_model.1} parent=0 // pred_fallthru
    _
  // Predicated region
  $region38: #{multi_output_model.1} parent=0 // pred_check
    _
  $region39: #{multi_output_model.1} parent=0 // pred_check_branch
    %9394 = sbr.rel (0) target = $region41
  $region40: #{multi_output_model.1} parent=0 // pred_region
    _
  $region41: #{multi_output_model.1} parent=0 // pred_fallthru
    _

</llo_original>
